<compile_context>
chip_gen: v6e
topology: v6e:2x2x1
jax: 0.10.0
libtpu: 0.0.40
codegen_flags: <defaults>
</compile_context>

<pallas_src>
from functools import partial

import jax
import jax.numpy as jnp
from jax.experimental import pallas as pl
from jax.experimental.pallas import tpu as pltpu


def _patch_embed2_kernel(x_ref, w_ref, wmu_ref, sum_ref, selg_ref, beta_ref, o_ref,
                         *, eps, inv_e):
    # x_ref:    (TH*W, C+1)   input pixels of this row tile, channels-last + ones col
    # w_ref:    (C+1, 16*E)   fused ConvTranspose2d weight (+ bias row), cols = (i,j,e)
    # wmu_ref:  (C+1, 16)     per-(i,j)-group mean of w_ref columns (exact, host-made)
    # sum_ref:  (16*E, 16)    0/1 group-sum matrix (lane group -> 16)
    # selg_ref: (16, 16*E)    group -> lanes broadcast matrix with gamma folded in
    # beta_ref: (1, 16*E)     LN beta, tiled 16x over (i, j)
    # o_ref:    (TH, 4, W, 4*E)  output rows 4h+i live at [:, i, :, :]
    th, _, w_sp, four_e = o_ref.shape

    x = x_ref[...]                                                       # (M, C+1)
    # 1) fused conv-transpose matmul; conv bias comes from the ones column.
    y = jnp.dot(x, w_ref[...], preferred_element_type=jnp.float32)      # (M, 16E)

    # 2) 16-wide grouped LayerNorm statistics (per (i, j) sub-token group).
    mu16 = jnp.dot(x, wmu_ref[...], preferred_element_type=jnp.float32)             # (M, 16)
    m2_16 = jnp.dot(y * y, sum_ref[...], preferred_element_type=jnp.float32) * inv_e
    var16 = jnp.maximum(m2_16 - mu16 * mu16, 0.0)      # E[z^2] - mu^2, clamp cancellation
    rstd16 = jax.lax.rsqrt(var16 + eps)                # EUP work: 16 lanes/row, not 16E
    shift16 = -(mu16 * rstd16)

    # 3) broadcast per-group scale/shift to the packed (i, j, e) lanes (gamma folded
    #    into selg):  out = y * (rstd*gamma) + (-mu*rstd*gamma) + beta
    a = jnp.dot(rstd16, selg_ref[...], preferred_element_type=jnp.float32)           # (M, 16E)
    s = jnp.dot(shift16, selg_ref[...], preferred_element_type=jnp.float32)          # (M, 16E)
    out = (y * a + s + beta_ref[...]).astype(o_ref.dtype)               # cast at store only

    # 4) depth-to-space: sub-row i of every input row h goes to output row 4h + i.
    for i in range(4):
        sub = out[:, i * four_e:(i + 1) * four_e]       # aligned lane slice, (M, 4E)
        o_ref[:, i, :, :] = sub.reshape(th, w_sp, four_e)


def _pick_row_tile(B, H, W, E, budget_bytes=4 << 20, min_steps=8):
    """Pick TH so the (TH*W, 16E) f32 intermediate fits `budget_bytes` while keeping
    at least `min_steps` (>=2 as a fallback) grid steps — enough to shard across both
    v7x TensorCores and keep the output DMA double-buffered."""
    cands = [t for t in range(1, H + 1)
             if H % t == 0 and ((t * W) % 8 == 0 or t == H)]
    fits = lambda t: t * W * 16 * E * 4 <= budget_bytes
    steps = lambda t: B * (H // t)
    for need in (min_steps, 2, 1):
        good = [t for t in cands if fits(t) and steps(t) >= need]
        if good:
            return max(good)
    return min(cands)


def patch_embed2_pallas(x, weight, bias, gamma, beta, *, patch_size=(4, 4),
                        row_tile=None, eps=1e-5, out_dtype=jnp.bfloat16):
    """Fused ConvTranspose2d(k=4, s=4) + flatten + transpose + LayerNorm.

    x: (B, C, H, W); weight: (C, E, 4, 4) (PyTorch ConvTranspose2d layout);
    bias / gamma / beta: (E,).
    Returns (tokens, (H // patch_size[0], W // patch_size[1])) with tokens of shape
    (B, 4H * 4W, E) in `out_dtype` (bf16 by default; math is f32 throughout).
    """
    B, C, H, W = x.shape
    Cw, E, kh, kw = weight.shape
    assert (Cw, kh, kw) == (C, 4, 4), "PatchEmbed2 uses ConvTranspose2d(k=4, s=4)"

    TH = row_tile if row_tile is not None else _pick_row_tile(B, H, W, E)
    assert H % TH == 0 and ((TH * W) % 8 == 0 or TH == H)

    f32 = jnp.float32
    # Layout plumbing (outside the kernel; all cheap relative to the 16E-per-pixel output):
    x_tok = jnp.transpose(x.astype(f32), (0, 2, 3, 1)).reshape(B, H * W, C)
    x_aug = jnp.concatenate([x_tok, jnp.ones((B, H * W, 1), f32)], axis=-1)   # (B,HW,C+1)

    w_all = jnp.transpose(weight.astype(f32), (0, 2, 3, 1)).reshape(C, 16 * E)  # cols=(i,j,e)
    bias_t = jnp.tile(bias.astype(f32), 16)[None, :]                            # (1, 16E)
    w_aug = jnp.concatenate([w_all, bias_t], axis=0)                            # (C+1, 16E)
    wmu = w_aug.reshape(C + 1, 16, E).mean(axis=-1)                             # (C+1, 16)
    eye16 = jnp.eye(16, dtype=f32)
    sum16 = jnp.repeat(eye16, E, axis=0)                                        # (16E, 16) 0/1
    selg = jnp.repeat(eye16, E, axis=1) * jnp.tile(gamma.astype(f32), 16)[None, :]  # (16,16E)
    beta_t = jnp.tile(beta.astype(f32), 16)[None, :]                            # (1, 16E)

    # VMEM budget: ~6 live f32 (TH*W,16E) tiles + double-buffered in/out blocks + consts,
    # capped at 48 MiB (safe inside v7x's 64 MiB/TC; v5e/v6e have 128 MiB physical).
    out_isize = jnp.dtype(out_dtype).itemsize
    itm = TH * W * 16 * E * 4
    blocks = 2 * TH * W * 16 * E * out_isize + 2 * TH * W * (C + 1) * 4
    consts = 2 * (w_aug.size + wmu.size + sum16.size + selg.size + beta_t.size) * 4
    vmem_limit = int(max(32 << 20, min(6 * itm + blocks + consts + (8 << 20), 48 << 20)))

    cmap = lambda b, t: (0, 0)

    def run(const_pipeline_mode):
        ck = {} if const_pipeline_mode is None else {"pipeline_mode": const_pipeline_mode}
        return pl.pallas_call(
            partial(_patch_embed2_kernel, eps=eps, inv_e=1.0 / E),
            out_shape=jax.ShapeDtypeStruct((B, H, 4, W, 4 * E), out_dtype),
            grid=(B, H // TH),
            in_specs=[
                pl.BlockSpec((pl.Squeezed(), TH * W, C + 1), lambda b, t: (b, t, 0)),
                pl.BlockSpec((C + 1, 16 * E), cmap, **ck),
                pl.BlockSpec((C + 1, 16), cmap, **ck),
                pl.BlockSpec((16 * E, 16), cmap, **ck),
                pl.BlockSpec((16, 16 * E), cmap, **ck),
                pl.BlockSpec((1, 16 * E), cmap, **ck),
            ],
            out_specs=pl.BlockSpec((pl.Squeezed(), TH, 4, W, 4 * E),
                                   lambda b, t: (b, t, 0, 0, 0)),
            compiler_params=pltpu.CompilerParams(
                dimension_semantics=("parallel", "parallel"),
                vmem_limit_bytes=vmem_limit,
            ),
        )(x_aug, w_aug, wmu, sum16, selg, beta_t)

    try:
        # Grid-constant operands never change across the grid: a single VMEM buffer is
        # enough (saves the needless double-buffer — VMEM headroom on v7x).
        out = run(pl.Buffered(1))
    except Exception:   # compatibility fallback: jax without Buffered(1) support
        out = run(None)

    tokens = out.reshape(B, 4 * H * 4 * W, E)   # contiguous: (h, i, w, j) token order
    return tokens, (H // patch_size[0], W // patch_size[1])


def patch_embed2_ref(x, weight, bias, gamma, beta, eps=1e-5):
    """Pure-JAX reference mirroring the PyTorch forward (f32 HIGHEST-precision einsum)."""
    B, C, H, W = x.shape
    E = weight.shape[1]
    y = jnp.einsum('bchw,ceij->bhiwje', x, weight,
                   precision=jax.lax.Precision.HIGHEST)   # out[4h+i, 4w+j, e]
    y = y.reshape(B, 16 * H * W, E) + bias
    mu = jnp.mean(y, axis=-1, keepdims=True)
    var = jnp.mean((y - mu) ** 2, axis=-1, keepdims=True)
    return (y - mu) / jnp.sqrt(var + eps) * gamma + beta


if __name__ == "__main__":
    root = jax.random.PRNGKey(0)

    cases = [
        # (B, in_chans, H, W, embed_dim, row_tile, out_dtype, tol)
        (2, 3, 8, 8, 128, None, jnp.bfloat16, 3e-2),   # default bf16 path, auto tile -> grid (2,4)
        (1, 4, 4, 8, 192, None, jnp.float32, 1e-2),    # module-default E=192, f32 out -> grid (1,2)
        (1, 3, 16, 16, 128, 4, jnp.bfloat16, 3e-2),    # explicit row_tile, grid (1,4)
    ]
    for idx, (B, C, H, W, E, row_tile, odt, tol) in enumerate(cases):
        k = jax.random.fold_in(root, idx)
        kx, kw_, kb, kg, kbe = jax.random.split(k, 5)
        x = jax.random.normal(kx, (B, C, H, W), dtype=jnp.float32)
        weight = 0.1 * jax.random.normal(kw_, (C, E, 4, 4), dtype=jnp.float32)
        bias = 0.1 * jax.random.normal(kb, (E,), dtype=jnp.float32)
        gamma = 1.0 + 0.1 * jax.random.normal(kg, (E,), dtype=jnp.float32)
        beta = 0.1 * jax.random.normal(kbe, (E,), dtype=jnp.float32)

        tokens, (hp, wp) = patch_embed2_pallas(
            x, weight, bias, gamma, beta, patch_size=(4, 4),
            row_tile=row_tile, out_dtype=odt)
        tokens = jax.block_until_ready(tokens)

        assert tokens.dtype == jnp.dtype(odt)
        assert tokens.shape == (B, 16 * H * W, E)
        assert (hp, wp) == (H // 4, W // 4)

        ref = patch_embed2_ref(x, weight, bias, gamma, beta)
        got = tokens.astype(jnp.float32)
        err = float(jnp.max(jnp.abs(got - ref)))
        # Tolerance documented per the review: default-precision MXU passes for the
        # conv / stats / broadcast matmuls (+ bf16 output cast for the bf16 cases).
        assert jnp.allclose(got, ref, atol=tol, rtol=tol), \
            f"case {idx}: max abs err = {err}"

    print("KERNEL_OK")
</pallas_src>

<mosaic_0001>
module attributes {stable_mosaic.version = 11 : i64} {
  func.func @_patch_embed2_kernel(%arg0: i32, %arg1: i32, %arg2: memref<1x16x4xf32, #tpu.memory_space<vmem>>, %arg3: memref<4x2048xf32, #tpu.memory_space<vmem>>, %arg4: memref<4x16xf32, #tpu.memory_space<vmem>>, %arg5: memref<2048x16xf32, #tpu.memory_space<vmem>>, %arg6: memref<16x2048xf32, #tpu.memory_space<vmem>>, %arg7: memref<1x2048xf32, #tpu.memory_space<vmem>>, %arg8: memref<1x2x4x8x512xbf16, #tpu.memory_space<vmem>>) attributes {dimension_semantics = [#tpu.dimension_semantics<parallel>, #tpu.dimension_semantics<parallel>], iteration_bounds = array<i64: 2, 4>, scalar_prefetch = 0 : i64, scratch_operands = 0 : i64, tpu.core_type = #tpu.core_type<tc>, window_params = [{transform_indices = @transform_0, window_bounds = array<i64: 1, 16, 4>}, {pipeline_mode = #tpu.pipeline_mode<synchronous>, transform_indices = @transform_1, window_bounds = array<i64: 4, 2048>}, {pipeline_mode = #tpu.pipeline_mode<synchronous>, transform_indices = @transform_2, window_bounds = array<i64: 4, 16>}, {pipeline_mode = #tpu.pipeline_mode<synchronous>, transform_indices = @transform_3, window_bounds = array<i64: 2048, 16>}, {pipeline_mode = #tpu.pipeline_mode<synchronous>, transform_indices = @transform_4, window_bounds = array<i64: 16, 2048>}, {pipeline_mode = #tpu.pipeline_mode<synchronous>, transform_indices = @transform_5, window_bounds = array<i64: 1, 2048>}, {transform_indices = @transform_6, window_bounds = array<i64: 1, 2, 4, 8, 512>}]} {
    %c0 = arith.constant 0 : index
    %c0_0 = arith.constant 0 : index
    %c0_1 = arith.constant 0 : index
    %0 = vector.load %arg2[%c0, %c0_0, %c0_1] : memref<1x16x4xf32, #tpu.memory_space<vmem>>, vector<1x16x4xf32>
    %1 = vector.shape_cast %0 : vector<1x16x4xf32> to vector<16x4xf32>
    %c0_2 = arith.constant 0 : index
    %c0_3 = arith.constant 0 : index
    %2 = vector.load %arg3[%c0_2, %c0_3] : memref<4x2048xf32, #tpu.memory_space<vmem>>, vector<4x2048xf32>
    %cst = arith.constant dense<0.000000e+00> : vector<16x2048xf32>
    %3 = tpu.matmul %1, %2, %cst {dimension_numbers = #tpu.dot_dimension_numbers<[1], [0], [0], [1], [0, 0, 1, 1], [], []>} : vector<16x4xf32>, vector<4x2048xf32>, vector<16x2048xf32> -> vector<16x2048xf32>
    %c0_4 = arith.constant 0 : index
    %c0_5 = arith.constant 0 : index
    %4 = vector.load %arg4[%c0_4, %c0_5] : memref<4x16xf32, #tpu.memory_space<vmem>>, vector<4x16xf32>
    %cst_6 = arith.constant dense<0.000000e+00> : vector<16x16xf32>
    %5 = tpu.matmul %1, %4, %cst_6 {dimension_numbers = #tpu.dot_dimension_numbers<[1], [0], [0], [1], [0, 0, 1, 1], [], []>} : vector<16x4xf32>, vector<4x16xf32>, vector<16x16xf32> -> vector<16x16xf32>
    %6 = arith.mulf %3, %3 : vector<16x2048xf32>
    %c0_7 = arith.constant 0 : index
    %c0_8 = arith.constant 0 : index
    %7 = vector.load %arg5[%c0_7, %c0_8] : memref<2048x16xf32, #tpu.memory_space<vmem>>, vector<2048x16xf32>
    %cst_9 = arith.constant dense<0.000000e+00> : vector<16x16xf32>
    %8 = tpu.matmul %6, %7, %cst_9 {dimension_numbers = #tpu.dot_dimension_numbers<[1], [0], [0], [1], [0, 0, 1, 1], [], []>} : vector<16x2048xf32>, vector<2048x16xf32>, vector<16x16xf32> -> vector<16x16xf32>
    %cst_10 = arith.constant 7.812500e-03 : f32
    %9 = vector.broadcast %cst_10 : f32 to vector<16x16xf32>
    %10 = arith.mulf %8, %9 : vector<16x16xf32>
    %11 = arith.mulf %5, %5 : vector<16x16xf32>
    %12 = arith.subf %10, %11 : vector<16x16xf32>
    %cst_11 = arith.constant 0.000000e+00 : f32
    %13 = vector.broadcast %cst_11 : f32 to vector<16x16xf32>
    %14 = arith.maximumf %12, %13 : vector<16x16xf32>
    %cst_12 = arith.constant 9.99999974E-6 : f32
    %15 = vector.broadcast %cst_12 : f32 to vector<16x16xf32>
    %16 = arith.addf %14, %15 : vector<16x16xf32>
    %17 = math.rsqrt %16 : vector<16x16xf32>
    %18 = arith.mulf %5, %17 : vector<16x16xf32>
    %cst_13 = arith.constant 0.000000e+00 : f32
    %19 = vector.broadcast %cst_13 : f32 to vector<16x16xf32>
    %20 = arith.subf %19, %18 : vector<16x16xf32>
    %c0_14 = arith.constant 0 : index
    %c0_15 = arith.constant 0 : index
    %21 = vector.load %arg6[%c0_14, %c0_15] : memref<16x2048xf32, #tpu.memory_space<vmem>>, vector<16x2048xf32>
    %cst_16 = arith.constant dense<0.000000e+00> : vector<16x2048xf32>
    %22 = tpu.matmul %17, %21, %cst_16 {dimension_numbers = #tpu.dot_dimension_numbers<[1], [0], [0], [1], [0, 0, 1, 1], [], []>} : vector<16x16xf32>, vector<16x2048xf32>, vector<16x2048xf32> -> vector<16x2048xf32>
    %c0_17 = arith.constant 0 : index
    %c0_18 = arith.constant 0 : index
    %23 = vector.load %arg6[%c0_17, %c0_18] : memref<16x2048xf32, #tpu.memory_space<vmem>>, vector<16x2048xf32>
    %cst_19 = arith.constant dense<0.000000e+00> : vector<16x2048xf32>
    %24 = tpu.matmul %20, %23, %cst_19 {dimension_numbers = #tpu.dot_dimension_numbers<[1], [0], [0], [1], [0, 0, 1, 1], [], []>} : vector<16x16xf32>, vector<16x2048xf32>, vector<16x2048xf32> -> vector<16x2048xf32>
    %25 = arith.mulf %3, %22 : vector<16x2048xf32>
    %26 = arith.addf %25, %24 : vector<16x2048xf32>
    %c0_20 = arith.constant 0 : index
    %c0_21 = arith.constant 0 : index
    %27 = vector.load %arg7[%c0_20, %c0_21] : memref<1x2048xf32, #tpu.memory_space<vmem>>, vector<1x2048xf32>
    %28 = vector.broadcast %27 : vector<1x2048xf32> to vector<16x2048xf32>
    %29 = arith.addf %26, %28 : vector<16x2048xf32>
    %30 = arith.truncf %29 : vector<16x2048xf32> to vector<16x2048xbf16>
    %31 = vector.extract_strided_slice %30 {offsets = [0, 0], sizes = [16, 512], strides = [1, 1]} : vector<16x2048xbf16> to vector<16x512xbf16>
    %32 = vector.shape_cast %31 : vector<16x512xbf16> to vector<2x8x512xbf16>
    %c0_22 = arith.constant 0 : index
    %c0_23 = arith.constant 0 : index
    %c0_24 = arith.constant 0 : index
    %c0_25 = arith.constant 0 : index
    %c0_26 = arith.constant 0 : index
    %33 = vector.load %arg8[%c0_22, %c0_23, %c0_24, %c0_25, %c0_26] : memref<1x2x4x8x512xbf16, #tpu.memory_space<vmem>>, vector<1x2x1x8x512xbf16>
    %34 = vector.shape_cast %33 : vector<1x2x1x8x512xbf16> to vector<2x8x512xbf16>
    %35 = vector.shape_cast %32 : vector<2x8x512xbf16> to vector<1x2x1x8x512xbf16>
    tpu.vector_store %arg8[%c0_22, %c0_23, %c0_24, %c0_25, %c0_26], %35 {strides = array<i32>} : memref<1x2x4x8x512xbf16, #tpu.memory_space<vmem>>, vector<1x2x1x8x512xbf16>,
    %36 = vector.extract_strided_slice %30 {offsets = [0, 512], sizes = [16, 512], strides = [1, 1]} : vector<16x2048xbf16> to vector<16x512xbf16>
    %37 = vector.shape_cast %36 : vector<16x512xbf16> to vector<2x8x512xbf16>
    %c0_27 = arith.constant 0 : index
    %c0_28 = arith.constant 0 : index
    %c1 = arith.constant 1 : index
    %c0_29 = arith.constant 0 : index
    %c0_30 = arith.constant 0 : index
    %38 = vector.load %arg8[%c0_27, %c0_28, %c1, %c0_29, %c0_30] : memref<1x2x4x8x512xbf16, #tpu.memory_space<vmem>>, vector<1x2x1x8x512xbf16>
    %39 = vector.shape_cast %38 : vector<1x2x1x8x512xbf16> to vector<2x8x512xbf16>
    %40 = vector.shape_cast %37 : vector<2x8x512xbf16> to vector<1x2x1x8x512xbf16>
    tpu.vector_store %arg8[%c0_27, %c0_28, %c1, %c0_29, %c0_30], %40 {strides = array<i32>} : memref<1x2x4x8x512xbf16, #tpu.memory_space<vmem>>, vector<1x2x1x8x512xbf16>,
    %41 = vector.extract_strided_slice %30 {offsets = [0, 1024], sizes = [16, 512], strides = [1, 1]} : vector<16x2048xbf16> to vector<16x512xbf16>
    %42 = vector.shape_cast %41 : vector<16x512xbf16> to vector<2x8x512xbf16>
    %c0_31 = arith.constant 0 : index
    %c0_32 = arith.constant 0 : index
    %c2 = arith.constant 2 : index
    %c0_33 = arith.constant 0 : index
    %c0_34 = arith.constant 0 : index
    %43 = vector.load %arg8[%c0_31, %c0_32, %c2, %c0_33, %c0_34] : memref<1x2x4x8x512xbf16, #tpu.memory_space<vmem>>, vector<1x2x1x8x512xbf16>
    %44 = vector.shape_cast %43 : vector<1x2x1x8x512xbf16> to vector<2x8x512xbf16>
    %45 = vector.shape_cast %42 : vector<2x8x512xbf16> to vector<1x2x1x8x512xbf16>
    tpu.vector_store %arg8[%c0_31, %c0_32, %c2, %c0_33, %c0_34], %45 {strides = array<i32>} : memref<1x2x4x8x512xbf16, #tpu.memory_space<vmem>>, vector<1x2x1x8x512xbf16>,
    %46 = vector.extract_strided_slice %30 {offsets = [0, 1536], sizes = [16, 512], strides = [1, 1]} : vector<16x2048xbf16> to vector<16x512xbf16>
    %47 = vector.shape_cast %46 : vector<16x512xbf16> to vector<2x8x512xbf16>
    %c0_35 = arith.constant 0 : index
    %c0_36 = arith.constant 0 : index
    %c3 = arith.constant 3 : index
    %c0_37 = arith.constant 0 : index
    %c0_38 = arith.constant 0 : index
    %48 = vector.load %arg8[%c0_35, %c0_36, %c3, %c0_37, %c0_38] : memref<1x2x4x8x512xbf16, #tpu.memory_space<vmem>>, vector<1x2x1x8x512xbf16>
    %49 = vector.shape_cast %48 : vector<1x2x1x8x512xbf16> to vector<2x8x512xbf16>
    %50 = vector.shape_cast %47 : vector<2x8x512xbf16> to vector<1x2x1x8x512xbf16>
    tpu.vector_store %arg8[%c0_35, %c0_36, %c3, %c0_37, %c0_38], %50 {strides = array<i32>} : memref<1x2x4x8x512xbf16, #tpu.memory_space<vmem>>, vector<1x2x1x8x512xbf16>,
    return
  }
  func.func @transform_0(%arg0: i32, %arg1: i32) -> (i32, i32, i32) {
    %c0_i32 = arith.constant 0 : i32
    %c0_i32_0 = arith.constant 0 : i32
    return %arg0, %arg1, %c0_i32 : i32, i32, i32
  }
  func.func @transform_1(%arg0: i32, %arg1: i32) -> (i32, i32) {
    %c0_i32 = arith.constant 0 : i32
    %c0_i32_0 = arith.constant 0 : i32
    %c0_i32_1 = arith.constant 0 : i32
    return %c0_i32, %c0_i32_0 : i32, i32
  }
  func.func @transform_2(%arg0: i32, %arg1: i32) -> (i32, i32) {
    %c0_i32 = arith.constant 0 : i32
    %c0_i32_0 = arith.constant 0 : i32
    %c0_i32_1 = arith.constant 0 : i32
    return %c0_i32, %c0_i32_0 : i32, i32
  }
  func.func @transform_3(%arg0: i32, %arg1: i32) -> (i32, i32) {
    %c0_i32 = arith.constant 0 : i32
    %c0_i32_0 = arith.constant 0 : i32
    %c0_i32_1 = arith.constant 0 : i32
    return %c0_i32, %c0_i32_0 : i32, i32
  }
  func.func @transform_4(%arg0: i32, %arg1: i32) -> (i32, i32) {
    %c0_i32 = arith.constant 0 : i32
    %c0_i32_0 = arith.constant 0 : i32
    %c0_i32_1 = arith.constant 0 : i32
    return %c0_i32, %c0_i32_0 : i32, i32
  }
  func.func @transform_5(%arg0: i32, %arg1: i32) -> (i32, i32) {
    %c0_i32 = arith.constant 0 : i32
    %c0_i32_0 = arith.constant 0 : i32
    %c0_i32_1 = arith.constant 0 : i32
    return %c0_i32, %c0_i32_0 : i32, i32
  }
  func.func @transform_6(%arg0: i32, %arg1: i32) -> (i32, i32, i32, i32, i32) {
    %c0_i32 = arith.constant 0 : i32
    %c0_i32_0 = arith.constant 0 : i32
    %c0_i32_1 = arith.constant 0 : i32
    %c0_i32_2 = arith.constant 0 : i32
    return %arg0, %arg1, %c0_i32, %c0_i32_0, %c0_i32_1 : i32, i32, i32, i32, i32
  }
}

module attributes {stable_mosaic.version = 11 : i64} {
  func.func @_patch_embed2_kernel(%arg0: i32, %arg1: i32, %arg2: memref<1x16x4xf32, #tpu.memory_space<vmem>>, %arg3: memref<4x2048xf32, #tpu.memory_space<vmem>>, %arg4: memref<4x16xf32, #tpu.memory_space<vmem>>, %arg5: memref<2048x16xf32, #tpu.memory_space<vmem>>, %arg6: memref<16x2048xf32, #tpu.memory_space<vmem>>, %arg7: memref<1x2048xf32, #tpu.memory_space<vmem>>, %arg8: memref<1x2x4x8x512xbf16, #tpu.memory_space<vmem>>) attributes {dimension_semantics = [#tpu.dimension_semantics<parallel>, #tpu.dimension_semantics<parallel>], iteration_bounds = array<i64: 2, 4>, scalar_prefetch = 0 : i64, scratch_operands = 0 : i64, tpu.core_type = #tpu.core_type<tc>, window_params = [{transform_indices = @transform_0, window_bounds = array<i64: 1, 16, 4>}, {pipeline_mode = #tpu.pipeline_mode<synchronous>, transform_indices = @transform_1, window_bounds = array<i64: 4, 2048>}, {pipeline_mode = #tpu.pipeline_mode<synchronous>, transform_indices = @transform_2, window_bounds = array<i64: 4, 16>}, {pipeline_mode = #tpu.pipeline_mode<synchronous>, transform_indices = @transform_3, window_bounds = array<i64: 2048, 16>}, {pipeline_mode = #tpu.pipeline_mode<synchronous>, transform_indices = @transform_4, window_bounds = array<i64: 16, 2048>}, {pipeline_mode = #tpu.pipeline_mode<synchronous>, transform_indices = @transform_5, window_bounds = array<i64: 1, 2048>}, {transform_indices = @transform_6, window_bounds = array<i64: 1, 2, 4, 8, 512>}]} {
    %c0 = arith.constant 0 : index
    %c0_0 = arith.constant 0 : index
    %c0_1 = arith.constant 0 : index
    %0 = vector.load %arg2[%c0, %c0_0, %c0_1] : memref<1x16x4xf32, #tpu.memory_space<vmem>>, vector<1x16x4xf32>
    %1 = vector.shape_cast %0 : vector<1x16x4xf32> to vector<16x4xf32>
    %c0_2 = arith.constant 0 : index
    %c0_3 = arith.constant 0 : index
    %2 = vector.load %arg3[%c0_2, %c0_3] : memref<4x2048xf32, #tpu.memory_space<vmem>>, vector<4x2048xf32>
    %cst = arith.constant dense<0.000000e+00> : vector<16x2048xf32>
    %3 = tpu.matmul %1, %2, %cst {dimension_numbers = #tpu.dot_dimension_numbers<[1], [0], [0], [1], [0, 0, 1, 1], [], []>} : vector<16x4xf32>, vector<4x2048xf32>, vector<16x2048xf32> -> vector<16x2048xf32>
    %c0_4 = arith.constant 0 : index
    %c0_5 = arith.constant 0 : index
    %4 = vector.load %arg4[%c0_4, %c0_5] : memref<4x16xf32, #tpu.memory_space<vmem>>, vector<4x16xf32>
    %cst_6 = arith.constant dense<0.000000e+00> : vector<16x16xf32>
    %5 = tpu.matmul %1, %4, %cst_6 {dimension_numbers = #tpu.dot_dimension_numbers<[1], [0], [0], [1], [0, 0, 1, 1], [], []>} : vector<16x4xf32>, vector<4x16xf32>, vector<16x16xf32> -> vector<16x16xf32>
    %6 = arith.mulf %3, %3 : vector<16x2048xf32>
    %c0_7 = arith.constant 0 : index
    %c0_8 = arith.constant 0 : index
    %7 = vector.load %arg5[%c0_7, %c0_8] : memref<2048x16xf32, #tpu.memory_space<vmem>>, vector<2048x16xf32>
    %cst_9 = arith.constant dense<0.000000e+00> : vector<16x16xf32>
    %8 = tpu.matmul %6, %7, %cst_9 {dimension_numbers = #tpu.dot_dimension_numbers<[1], [0], [0], [1], [0, 0, 1, 1], [], []>} : vector<16x2048xf32>, vector<2048x16xf32>, vector<16x16xf32> -> vector<16x16xf32>
    %cst_10 = arith.constant 7.812500e-03 : f32
    %9 = vector.broadcast %cst_10 : f32 to vector<16x16xf32>
    %10 = arith.mulf %8, %9 : vector<16x16xf32>
    %11 = arith.mulf %5, %5 : vector<16x16xf32>
    %12 = arith.subf %10, %11 : vector<16x16xf32>
    %cst_11 = arith.constant 0.000000e+00 : f32
    %13 = vector.broadcast %cst_11 : f32 to vector<16x16xf32>
    %14 = arith.maximumf %12, %13 : vector<16x16xf32>
    %cst_12 = arith.constant 9.99999974E-6 : f32
    %15 = vector.broadcast %cst_12 : f32 to vector<16x16xf32>
    %16 = arith.addf %14, %15 : vector<16x16xf32>
    %17 = math.rsqrt %16 : vector<16x16xf32>
    %18 = arith.mulf %5, %17 : vector<16x16xf32>
    %cst_13 = arith.constant 0.000000e+00 : f32
    %19 = vector.broadcast %cst_13 : f32 to vector<16x16xf32>
    %20 = arith.subf %19, %18 : vector<16x16xf32>
    %c0_14 = arith.constant 0 : index
    %c0_15 = arith.constant 0 : index
    %21 = vector.load %arg6[%c0_14, %c0_15] : memref<16x2048xf32, #tpu.memory_space<vmem>>, vector<16x2048xf32>
    %cst_16 = arith.constant dense<0.000000e+00> : vector<16x2048xf32>
    %22 = tpu.matmul %17, %21, %cst_16 {dimension_numbers = #tpu.dot_dimension_numbers<[1], [0], [0], [1], [0, 0, 1, 1], [], []>} : vector<16x16xf32>, vector<16x2048xf32>, vector<16x2048xf32> -> vector<16x2048xf32>
    %c0_17 = arith.constant 0 : index
    %c0_18 = arith.constant 0 : index
    %23 = vector.load %arg6[%c0_17, %c0_18] : memref<16x2048xf32, #tpu.memory_space<vmem>>, vector<16x2048xf32>
    %cst_19 = arith.constant dense<0.000000e+00> : vector<16x2048xf32>
    %24 = tpu.matmul %20, %23, %cst_19 {dimension_numbers = #tpu.dot_dimension_numbers<[1], [0], [0], [1], [0, 0, 1, 1], [], []>} : vector<16x16xf32>, vector<16x2048xf32>, vector<16x2048xf32> -> vector<16x2048xf32>
    %25 = arith.mulf %3, %22 : vector<16x2048xf32>
    %26 = arith.addf %25, %24 : vector<16x2048xf32>
    %c0_20 = arith.constant 0 : index
    %c0_21 = arith.constant 0 : index
    %27 = vector.load %arg7[%c0_20, %c0_21] : memref<1x2048xf32, #tpu.memory_space<vmem>>, vector<1x2048xf32>
    %28 = vector.broadcast %27 : vector<1x2048xf32> to vector<16x2048xf32>
    %29 = arith.addf %26, %28 : vector<16x2048xf32>
    %30 = arith.truncf %29 : vector<16x2048xf32> to vector<16x2048xbf16>
    %31 = vector.extract_strided_slice %30 {offsets = [0, 0], sizes = [16, 512], strides = [1, 1]} : vector<16x2048xbf16> to vector<16x512xbf16>
    %32 = vector.shape_cast %31 : vector<16x512xbf16> to vector<2x8x512xbf16>
    %c0_22 = arith.constant 0 : index
    %c0_23 = arith.constant 0 : index
    %c0_24 = arith.constant 0 : index
    %c0_25 = arith.constant 0 : index
    %c0_26 = arith.constant 0 : index
    %33 = vector.load %arg8[%c0_22, %c0_23, %c0_24, %c0_25, %c0_26] : memref<1x2x4x8x512xbf16, #tpu.memory_space<vmem>>, vector<1x2x1x8x512xbf16>
    %34 = vector.shape_cast %33 : vector<1x2x1x8x512xbf16> to vector<2x8x512xbf16>
    %35 = vector.shape_cast %32 : vector<2x8x512xbf16> to vector<1x2x1x8x512xbf16>
    tpu.vector_store %arg8[%c0_22, %c0_23, %c0_24, %c0_25, %c0_26], %35 {strides = array<i32>} : memref<1x2x4x8x512xbf16, #tpu.memory_space<vmem>>, vector<1x2x1x8x512xbf16>,
    %36 = vector.extract_strided_slice %30 {offsets = [0, 512], sizes = [16, 512], strides = [1, 1]} : vector<16x2048xbf16> to vector<16x512xbf16>
    %37 = vector.shape_cast %36 : vector<16x512xbf16> to vector<2x8x512xbf16>
    %c0_27 = arith.constant 0 : index
    %c0_28 = arith.constant 0 : index
    %c1 = arith.constant 1 : index
    %c0_29 = arith.constant 0 : index
    %c0_30 = arith.constant 0 : index
    %38 = vector.load %arg8[%c0_27, %c0_28, %c1, %c0_29, %c0_30] : memref<1x2x4x8x512xbf16, #tpu.memory_space<vmem>>, vector<1x2x1x8x512xbf16>
    %39 = vector.shape_cast %38 : vector<1x2x1x8x512xbf16> to vector<2x8x512xbf16>
    %40 = vector.shape_cast %37 : vector<2x8x512xbf16> to vector<1x2x1x8x512xbf16>
    tpu.vector_store %arg8[%c0_27, %c0_28, %c1, %c0_29, %c0_30], %40 {strides = array<i32>} : memref<1x2x4x8x512xbf16, #tpu.memory_space<vmem>>, vector<1x2x1x8x512xbf16>,
    %41 = vector.extract_strided_slice %30 {offsets = [0, 1024], sizes = [16, 512], strides = [1, 1]} : vector<16x2048xbf16> to vector<16x512xbf16>
    %42 = vector.shape_cast %41 : vector<16x512xbf16> to vector<2x8x512xbf16>
    %c0_31 = arith.constant 0 : index
    %c0_32 = arith.constant 0 : index
    %c2 = arith.constant 2 : index
    %c0_33 = arith.constant 0 : index
    %c0_34 = arith.constant 0 : index
    %43 = vector.load %arg8[%c0_31, %c0_32, %c2, %c0_33, %c0_34] : memref<1x2x4x8x512xbf16, #tpu.memory_space<vmem>>, vector<1x2x1x8x512xbf16>
    %44 = vector.shape_cast %43 : vector<1x2x1x8x512xbf16> to vector<2x8x512xbf16>
    %45 = vector.shape_cast %42 : vector<2x8x512xbf16> to vector<1x2x1x8x512xbf16>
    tpu.vector_store %arg8[%c0_31, %c0_32, %c2, %c0_33, %c0_34], %45 {strides = array<i32>} : memref<1x2x4x8x512xbf16, #tpu.memory_space<vmem>>, vector<1x2x1x8x512xbf16>,
    %46 = vector.extract_strided_slice %30 {offsets = [0, 1536], sizes = [16, 512], strides = [1, 1]} : vector<16x2048xbf16> to vector<16x512xbf16>
    %47 = vector.shape_cast %46 : vector<16x512xbf16> to vector<2x8x512xbf16>
    %c0_35 = arith.constant 0 : index
    %c0_36 = arith.constant 0 : index
    %c3 = arith.constant 3 : index
    %c0_37 = arith.constant 0 : index
    %c0_38 = arith.constant 0 : index
    %48 = vector.load %arg8[%c0_35, %c0_36, %c3, %c0_37, %c0_38] : memref<1x2x4x8x512xbf16, #tpu.memory_space<vmem>>, vector<1x2x1x8x512xbf16>
    %49 = vector.shape_cast %48 : vector<1x2x1x8x512xbf16> to vector<2x8x512xbf16>
    %50 = vector.shape_cast %47 : vector<2x8x512xbf16> to vector<1x2x1x8x512xbf16>
    tpu.vector_store %arg8[%c0_35, %c0_36, %c3, %c0_37, %c0_38], %50 {strides = array<i32>} : memref<1x2x4x8x512xbf16, #tpu.memory_space<vmem>>, vector<1x2x1x8x512xbf16>,
    return
  }
  func.func @transform_0(%arg0: i32, %arg1: i32) -> (i32, i32, i32) {
    %c0_i32 = arith.constant 0 : i32
    %c0_i32_0 = arith.constant 0 : i32
    return %arg0, %arg1, %c0_i32 : i32, i32, i32
  }
  func.func @transform_1(%arg0: i32, %arg1: i32) -> (i32, i32) {
    %c0_i32 = arith.constant 0 : i32
    %c0_i32_0 = arith.constant 0 : i32
    %c0_i32_1 = arith.constant 0 : i32
    return %c0_i32, %c0_i32_0 : i32, i32
  }
  func.func @transform_2(%arg0: i32, %arg1: i32) -> (i32, i32) {
    %c0_i32 = arith.constant 0 : i32
    %c0_i32_0 = arith.constant 0 : i32
    %c0_i32_1 = arith.constant 0 : i32
    return %c0_i32, %c0_i32_0 : i32, i32
  }
  func.func @transform_3(%arg0: i32, %arg1: i32) -> (i32, i32) {
    %c0_i32 = arith.constant 0 : i32
    %c0_i32_0 = arith.constant 0 : i32
    %c0_i32_1 = arith.constant 0 : i32
    return %c0_i32, %c0_i32_0 : i32, i32
  }
  func.func @transform_4(%arg0: i32, %arg1: i32) -> (i32, i32) {
    %c0_i32 = arith.constant 0 : i32
    %c0_i32_0 = arith.constant 0 : i32
    %c0_i32_1 = arith.constant 0 : i32
    return %c0_i32, %c0_i32_0 : i32, i32
  }
  func.func @transform_5(%arg0: i32, %arg1: i32) -> (i32, i32) {
    %c0_i32 = arith.constant 0 : i32
    %c0_i32_0 = arith.constant 0 : i32
    %c0_i32_1 = arith.constant 0 : i32
    return %c0_i32, %c0_i32_0 : i32, i32
  }
  func.func @transform_6(%arg0: i32, %arg1: i32) -> (i32, i32, i32, i32, i32) {
    %c0_i32 = arith.constant 0 : i32
    %c0_i32_0 = arith.constant 0 : i32
    %c0_i32_1 = arith.constant 0 : i32
    %c0_i32_2 = arith.constant 0 : i32
    return %arg0, %arg1, %c0_i32, %c0_i32_0, %c0_i32_1 : i32, i32, i32, i32, i32
  }
}

</mosaic_0001>

<llo_original>
// kernel: tpu_custom_call.1
$region0: #{tpu_custom_call.1}
  #allocation0 [shape = 'u32[]', space=smem, size = 0x4, offset = 0x4, fixed_abs, tag = 'smem constant byte address 0x4 - core index']
  #allocation1 [shape = 'u32[144,128]{1,0:T(1,128)}', space=vmem, size = 0x12000, scoped, tag = 'internal scratch']
  %s0 = inlined_call_operand.vmem [shape: f32[2,64,4], index: 0, kind: input, shape index: {}]
  %s1 = inlined_call_operand.vmem [shape: f32[4,2048], index: 1, kind: input, shape index: {}]
  %s2 = inlined_call_operand.vmem [shape: f32[4,16], index: 2, kind: input, shape index: {}]
  %s3 = inlined_call_operand.vmem [shape: f32[2048,16], index: 3, kind: input, shape index: {}]
  %s4 = inlined_call_operand.vmem [shape: f32[16,2048], index: 4, kind: input, shape index: {}]
  %s5 = inlined_call_operand.vmem [shape: f32[1,2048], index: 5, kind: input, shape index: {}]
  %s6 = inlined_call_operand.hbm [shape: bf16[2,8,4,8,512], index: 6, kind: output, shape index: {}]
  %s7 = sld [smem:[#allocation0]]
  $region57: #{tpu_custom_call.1} parent=0
    _
  %s9 = ssub.s32 1, %s7
  %s10 = scalar_select 0, %s9, %s7
  $region1: #{tpu_custom_call.1} parent=0
    #allocation2 [shape = 'u8[131072]{0}', space=vmem, size = 0x20000, scoped, tag = 'output window, operand 0']
    #allocation3 [shape = 's32[2]{0}', space=sflag, size = 0x8, scoped, tag = 'scoped memory for tpu_custom_call.1']
    %11 = vsyncpa [#allocation3], 0
    %s12 = scalar_lea.sflag [#allocation3], 1
    %13 = vsyncpa %s12, 0
    loop: start=0, step=1, limit=10
    $region2: #{tpu_custom_call.1} parent=1 // loop_pre_header
      _
    $region3: #{tpu_custom_call.1} parent=1 // loop_header
      %s15 = sphi 0, %s19
      %p16 = scmp.ge.s32.totalorder %s15, 10
      %s22 = sphi 0, %s34
      %s23 = sphi 0, %s30
      %s24 = sphi 0, %s22
      %s25 = sphi 0, %s23
      %s26 = sphi 0, %s24
      %s27 = sphi 0, %s25
      %s39 = sphi 0, %s41
      %s42 = sphi 0, %s39
      %s43 = sphi 0, %s42
      %s59 = sphi 0, %s43
      %s63 = sphi 0, %s63
      %s65 = sphi 0, %s63
      %s66 = sphi 0, %s65
      %s80 = sphi 0, %s66
      %s84 = sphi 0, %s84
      %s86 = sphi 0, %s84
      %s87 = sphi 0, %s86
      %s101 = sphi 0, %s87
      %s105 = sphi 0, %s105
      %s107 = sphi 0, %s105
      %s108 = sphi 0, %s107
      %s122 = sphi 0, %s108
      %s126 = sphi 0, %s126
      %s128 = sphi 0, %s126
      %s129 = sphi 0, %s128
      %s143 = sphi 0, %s129
      %s147 = sphi 0, %s147
      %s149 = sphi 0, %s147
      %s150 = sphi 0, %s149
      %s164 = sphi 0, %s150
      %s172 = sphi 0, %s174
      %s175 = sphi 0, %s172
      %s176 = sphi 0, %s175
      %s192 = sphi 0, %s176
    $region4: #{tpu_custom_call.1} parent=1 // loop_header_branch
      %18 = sbr.rel (%p16) target = $region8
    $region5: #{tpu_custom_call.1} parent=1 // loop_body
      %s20 = ssub.s32 %s15, 1
      %s21 = ssub.s32 %s15, 2
      %s28 = sadd.s32 1, %s23
      %p29 = scmp.ge.s32.totalorder %s28, 4
      %s30 = scalar_select %p29, 0, %s28
      %s31 = sadd.s32 1, %s22
      %s32 = scalar_select %p29, %s31, %s22
      %p33 = scmp.ge.s32.totalorder %s32, 2
      %s34 = scalar_select %p33, 0, %s32
      %s35 = ssub.s32 %s22, %s34
      %s36 = ssub.s32 %s23, %s30
      %s37 = sor.u32 %s35, %s36
      %p38 = scmp.eq.s32.totalorder %s37, 0
      %s40 = sadd.s32 %s39, 1
      %s41 = scalar_select %p38, %s39, %s40
      %p44 = pneg %p38
      %p45 = scmp.eq.s32.totalorder %s15, 7
      %p46 = por %p44, %p45
      %p47 = scmp.ne.s32.totalorder %s39, %s42
      %p48 = scmp.eq.s32.totalorder %s15, 0
      %p49 = por %p47, %p48
      %p50 = scmp.ne.s32.totalorder %s39, %s42
      %p51 = scmp.eq.s32.totalorder %s20, 7
      %p52 = por %p50, %p51
      %p53 = scmp.ne.s32.totalorder %s42, %s43
      %p54 = scmp.eq.s32.totalorder %s20, 0
      %p55 = por %p53, %p54
      %p56 = scmp.ne.s32.totalorder %s42, %s43
      %p57 = scmp.eq.s32.totalorder %s21, 7
      %p58 = por %p56, %p57
      %p60 = scmp.ne.s32.totalorder %s43, %s59
      %p61 = scmp.eq.s32.totalorder %s21, 0
      %p62 = por %p60, %p61
      %s64 = sadd.s32 %s63, 1
      %p67 = scmp.eq.s32.totalorder %s15, 7
      %p68 = scmp.ne.s32.totalorder %s63, %s65
      %p69 = scmp.eq.s32.totalorder %s15, 0
      %p70 = por %p68, %p69
      %p71 = scmp.ne.s32.totalorder %s63, %s65
      %p72 = scmp.eq.s32.totalorder %s20, 7
      %p73 = por %p71, %p72
      %p74 = scmp.ne.s32.totalorder %s65, %s66
      %p75 = scmp.eq.s32.totalorder %s20, 0
      %p76 = por %p74, %p75
      %p77 = scmp.ne.s32.totalorder %s65, %s66
      %p78 = scmp.eq.s32.totalorder %s21, 7
      %p79 = por %p77, %p78
      %p81 = scmp.ne.s32.totalorder %s66, %s80
      %p82 = scmp.eq.s32.totalorder %s21, 0
      %p83 = por %p81, %p82
      %s85 = sadd.s32 %s84, 1
      %p88 = scmp.eq.s32.totalorder %s15, 7
      %p89 = scmp.ne.s32.totalorder %s84, %s86
      %p90 = scmp.eq.s32.totalorder %s15, 0
      %p91 = por %p89, %p90
      %p92 = scmp.ne.s32.totalorder %s84, %s86
      %p93 = scmp.eq.s32.totalorder %s20, 7
      %p94 = por %p92, %p93
      %p95 = scmp.ne.s32.totalorder %s86, %s87
      %p96 = scmp.eq.s32.totalorder %s20, 0
      %p97 = por %p95, %p96
      %p98 = scmp.ne.s32.totalorder %s86, %s87
      %p99 = scmp.eq.s32.totalorder %s21, 7
      %p100 = por %p98, %p99
      %p102 = scmp.ne.s32.totalorder %s87, %s101
      %p103 = scmp.eq.s32.totalorder %s21, 0
      %p104 = por %p102, %p103
      %s106 = sadd.s32 %s105, 1
      %p109 = scmp.eq.s32.totalorder %s15, 7
      %p110 = scmp.ne.s32.totalorder %s105, %s107
      %p111 = scmp.eq.s32.totalorder %s15, 0
      %p112 = por %p110, %p111
      %p113 = scmp.ne.s32.totalorder %s105, %s107
      %p114 = scmp.eq.s32.totalorder %s20, 7
      %p115 = por %p113, %p114
      %p116 = scmp.ne.s32.totalorder %s107, %s108
      %p117 = scmp.eq.s32.totalorder %s20, 0
      %p118 = por %p116, %p117
      %p119 = scmp.ne.s32.totalorder %s107, %s108
      %p120 = scmp.eq.s32.totalorder %s21, 7
      %p121 = por %p119, %p120
      %p123 = scmp.ne.s32.totalorder %s108, %s122
      %p124 = scmp.eq.s32.totalorder %s21, 0
      %p125 = por %p123, %p124
      %s127 = sadd.s32 %s126, 1
      %p130 = scmp.eq.s32.totalorder %s15, 7
      %p131 = scmp.ne.s32.totalorder %s126, %s128
      %p132 = scmp.eq.s32.totalorder %s15, 0
      %p133 = por %p131, %p132
      %p134 = scmp.ne.s32.totalorder %s126, %s128
      %p135 = scmp.eq.s32.totalorder %s20, 7
      %p136 = por %p134, %p135
      %p137 = scmp.ne.s32.totalorder %s128, %s129
      %p138 = scmp.eq.s32.totalorder %s20, 0
      %p139 = por %p137, %p138
      %p140 = scmp.ne.s32.totalorder %s128, %s129
      %p141 = scmp.eq.s32.totalorder %s21, 7
      %p142 = por %p140, %p141
      %p144 = scmp.ne.s32.totalorder %s129, %s143
      %p145 = scmp.eq.s32.totalorder %s21, 0
      %p146 = por %p144, %p145
      %s148 = sadd.s32 %s147, 1
      %p151 = scmp.eq.s32.totalorder %s15, 7
      %p152 = scmp.ne.s32.totalorder %s147, %s149
      %p153 = scmp.eq.s32.totalorder %s15, 0
      %p154 = por %p152, %p153
      %p155 = scmp.ne.s32.totalorder %s147, %s149
      %p156 = scmp.eq.s32.totalorder %s20, 7
      %p157 = por %p155, %p156
      %p158 = scmp.ne.s32.totalorder %s149, %s150
      %p159 = scmp.eq.s32.totalorder %s20, 0
      %p160 = por %p158, %p159
      %p161 = scmp.ne.s32.totalorder %s149, %s150
      %p162 = scmp.eq.s32.totalorder %s21, 7
      %p163 = por %p161, %p162
      %p165 = scmp.ne.s32.totalorder %s150, %s164
      %p166 = scmp.eq.s32.totalorder %s21, 0
      %p167 = por %p165, %p166
      %s168 = ssub.s32 %s22, %s34
      %s169 = ssub.s32 %s23, %s30
      %s170 = sor.u32 %s168, %s169
      %p171 = scmp.eq.s32.totalorder %s170, 0
      %s173 = sadd.s32 %s172, 1
      %s174 = scalar_select %p171, %s172, %s173
      %p177 = pneg %p171
      %p178 = scmp.eq.s32.totalorder %s15, 7
      %p179 = por %p177, %p178
      %p180 = scmp.ne.s32.totalorder %s172, %s175
      %p181 = scmp.eq.s32.totalorder %s15, 0
      %p182 = por %p180, %p181
      %p183 = scmp.ne.s32.totalorder %s172, %s175
      %p184 = scmp.eq.s32.totalorder %s20, 7
      %p185 = por %p183, %p184
      %p186 = scmp.ne.s32.totalorder %s175, %s176
      %p187 = scmp.eq.s32.totalorder %s20, 0
      %p188 = por %p186, %p187
      %p189 = scmp.ne.s32.totalorder %s175, %s176
      %p190 = scmp.eq.s32.totalorder %s21, 7
      %p191 = por %p189, %p190
      %p193 = scmp.ne.s32.totalorder %s176, %s192
      %p194 = scmp.eq.s32.totalorder %s21, 0
      %p195 = por %p193, %p194
      %p196 = scmp.le.s32.totalorder 1, %s15
      %p197 = scmp.lt.s32.totalorder %s15, 9
      %p198 = pnand %p196, %p197
      %p199 = pneg %p198
      // Predicated region
      $region9: #{tpu_custom_call.1} parent=5 // pred_check
        _
      $region10: #{tpu_custom_call.1} parent=5 // pred_check_branch
        %201 = sbr.rel (%p198) target = $region12
      $region11: #{tpu_custom_call.1} parent=5 // pred_region
        %s202 = ssub.s32 %s15, 1
        // Predicated region
        $region13: #{tpu_custom_call.1} parent=11 // pred_check
          %p203 = pneg %p76
        $region14: #{tpu_custom_call.1} parent=11 // pred_check_branch
          %205 = sbr.rel (%p203) target = $region16
        $region15: #{tpu_custom_call.1} parent=11 // pred_region
          _
        $region16: #{tpu_custom_call.1} parent=11 // pred_fallthru
          _
        // Predicated region
        $region17: #{tpu_custom_call.1} parent=11 // pred_check
          %p206 = pneg %p97
        $region18: #{tpu_custom_call.1} parent=11 // pred_check_branch
          %208 = sbr.rel (%p206) target = $region20
        $region19: #{tpu_custom_call.1} parent=11 // pred_region
          _
        $region20: #{tpu_custom_call.1} parent=11 // pred_fallthru
          _
        // Predicated region
        $region21: #{tpu_custom_call.1} parent=11 // pred_check
          %p209 = pneg %p118
        $region22: #{tpu_custom_call.1} parent=11 // pred_check_branch
          %211 = sbr.rel (%p209) target = $region24
        $region23: #{tpu_custom_call.1} parent=11 // pred_region
          _
        $region24: #{tpu_custom_call.1} parent=11 // pred_fallthru
          _
        // Predicated region
        $region25: #{tpu_custom_call.1} parent=11 // pred_check
          %p212 = pneg %p139
        $region26: #{tpu_custom_call.1} parent=11 // pred_check_branch
          %214 = sbr.rel (%p212) target = $region28
        $region27: #{tpu_custom_call.1} parent=11 // pred_region
          _
        $region28: #{tpu_custom_call.1} parent=11 // pred_fallthru
          _
        // Predicated region
        $region29: #{tpu_custom_call.1} parent=11 // pred_check
          %p215 = pneg %p160
        $region30: #{tpu_custom_call.1} parent=11 // pred_check_branch
          %217 = sbr.rel (%p215) target = $region32
        $region31: #{tpu_custom_call.1} parent=11 // pred_region
          _
        $region32: #{tpu_custom_call.1} parent=11 // pred_fallthru
          _
      $region12: #{tpu_custom_call.1} parent=5 // pred_fallthru
        _
      %p218 = scmp.lt.s32.totalorder %s15, 8
      // Predicated region
      $region33: #{tpu_custom_call.1} parent=5 // pred_check
        %p219 = pneg %p218
      $region34: #{tpu_custom_call.1} parent=5 // pred_check_branch
        %221 = sbr.rel (%p219) target = $region36
      $region35: #{tpu_custom_call.1} parent=5 // pred_region
        // Predicated region
        $region37: #{tpu_custom_call.1} parent=35 // pred_check
          %p222 = pneg %p49
        $region38: #{tpu_custom_call.1} parent=35 // pred_check_branch
          %224 = sbr.rel (%p222) target = $region40
        $region39: #{tpu_custom_call.1} parent=35 // pred_region
          %s225 = smul.u32 2, %s23
          %p226 = scmp.lt.s32.totalorder %s22, 1
          %s227 = scalar_select %p226, %s22, 1
          %p228 = scmp.lt.s32.totalorder %s225, 7
          %s229 = scalar_select %p228, %s225, 7
          %s230 = smul.addr %s227, 8
          %s231 = sadd.s32 %s229, %s230
          %s232 = smul.addr %s231, 8
          %s233 = scalar_lea.vmem %s0, %s232
          %s234 = smul.u32 2, %s23
        $region40: #{tpu_custom_call.1} parent=35 // pred_fallthru
          _
      $region36: #{tpu_custom_call.1} parent=5 // pred_fallthru
        _
      %p235 = scmp.le.s32.totalorder 1, %s15
      %p236 = scmp.lt.s32.totalorder %s15, 9
      %p237 = pnand %p235, %p236
      %p238 = pneg %p237
      // Predicated region
      $region41: #{tpu_custom_call.1} parent=5 // pred_check
        _
      $region42: #{tpu_custom_call.1} parent=5 // pred_check_branch
        %240 = sbr.rel (%p237) target = $region44
      $region43: #{tpu_custom_call.1} parent=5 // pred_region
        %s241 = ssub.s32 %s15, 1
        %s242 = smul.u32 2, %s25
        %p243 = scmp.lt.s32.totalorder %s24, 1
        %s244 = scalar_select %p243, %s24, 1
        %p245 = scmp.lt.s32.totalorder %s242, 7
        %s246 = scalar_select %p245, %s242, 7
        %s247 = smul.addr %s244, 8
        %s248 = sadd.s32 %s246, %s247
        %s249 = smul.addr %s248, 8
        %s250 = scalar_lea.vmem %s0, %s249
        %p251 = pneg %p55
        %p252 = pneg %p52
        %p253 = pneg %p76
        %p254 = pneg %p73
        %p255 = pneg %p97
        %p256 = pneg %p94
        %p257 = pneg %p118
        %p258 = pneg %p115
        %p259 = pneg %p139
        %p260 = pneg %p136
        %p261 = pneg %p160
        %p262 = pneg %p157
        %p263 = pneg %p188
        %p264 = pneg %p185
        %s265 = sand.u32 %s175, 1
        %s266 = scalar_lea.sflag [#allocation3], %s265
        %s267 = sand.u32 %s175, 1
        %s268 = smul.addr %s267, 128
        %s269 = scalar_lea.vmem [#allocation2], %s268
        %s270 = smul.u32 2, %s25
        %p271 = scmp.lt.s32.totalorder %s24, 1
        %s272 = scalar_select %p271, %s24, 1
        %p273 = scmp.lt.s32.totalorder %s270, 7
        %s274 = scalar_select %p273, %s270, 7
        %s275 = smul.addr %s272, 8
        %s276 = sadd.s32 %s274, %s275
        %s277 = smul.addr %s276, 8
        %s278 = scalar_lea.vmem %s0, %s277
        %s279 = smul.u32 2, %s25
        %s280 = smul.u32 2, %s25
        %v281 = vld [vmem:[%s278] sm:$0xff]
        %v282 = vld [vmem:[%s278 + $0x8] sm:$0xff]
        %v283 = vld [vmem:[%s1] sm:$0xff]
        %v284 = vld [vmem:[%s1 + $0x8] sm:$0xff]
        %v285 = vld [vmem:[%s1 + $0x10] sm:$0xff]
        %v286 = vld [vmem:[%s1 + $0x18] sm:$0xff]
        %v287 = vld [vmem:[%s1 + $0x20] sm:$0xff]
        %v288 = vld [vmem:[%s1 + $0x28] sm:$0xff]
        %v289 = vld [vmem:[%s1 + $0x30] sm:$0xff]
        %v290 = vld [vmem:[%s1 + $0x38] sm:$0xff]
        %v299 = vcombine.high %v283, %v283
        %v300 = vcombine.high %v284, %v284
        %v301 = vcombine.high %v285, %v285
        %v302 = vcombine.high %v286, %v286
        %v303 = vcombine.high %v287, %v287
        %v304 = vcombine.high %v288, %v288
        %v305 = vcombine.high %v289, %v289
        %v306 = vcombine.high %v290, %v290
        %vm307 = vcmask 31744
        %v309 = vsel %vm307, %v281, 0
        %v312 = vsel %vm307, %v282, 0
        %vm314 = vcmask 1043456
        %v315 = vsel %vm314, %v283, 0
        %v317 = vsel %vm314, %v299, 0
        %v319 = vsel %vm314, %v284, 0
        %v321 = vsel %vm314, %v300, 0
        %v323 = vsel %vm314, %v285, 0
        %v325 = vsel %vm314, %v301, 0
        %v327 = vsel %vm314, %v286, 0
        %v329 = vsel %vm314, %v302, 0
        %v331 = vsel %vm314, %v287, 0
        %v333 = vsel %vm314, %v303, 0
        %v335 = vsel %vm314, %v288, 0
        %v337 = vsel %vm314, %v304, 0
        %v339 = vsel %vm314, %v289, 0
        %v341 = vsel %vm314, %v305, 0
        %v343 = vsel %vm314, %v290, 0
        %v345 = vsel %vm314, %v306, 0
        %347 = vmatprep.subr.mxu0 0.0
        %348 = vmatpush1.msra.mxu0 0.0
        %349 = vmatprep.subr.mxu0 0.0
        %350 = vmatpush1.msra.mxu0 0.0
        %351 = vmatprep.subr.mxu0 0.0
        %352 = vmatpush1.msra.mxu0 0.0
        %353 = vmatprep.subr.mxu0 0.0
        %354 = vmatpush1.msra.mxu0 0.0
        %355 = vmatprep.subr.mxu0 0.0
        %356 = vmatpush1.msra.mxu0 0.0
        %357 = vmatprep.subr.mxu0 0.0
        %358 = vmatpush1.msra.mxu0 0.0
        %359 = vmatprep.subr.mxu0 0.0
        %360 = vmatpush1.msra.mxu0 0.0
        %361 = vmatprep.subr.mxu0 0.0
        %362 = vmatpush1.msra.mxu0 0.0
        %363 = vmatprep.subr.mxu0 0.0
        %364 = vmatpush1.msra.mxu0 0.0
        %365 = vmatprep.subr.mxu0 0.0
        %366 = vmatpush1.msra.mxu0 0.0
        %367 = vmatprep.subr.mxu0 0.0
        %368 = vmatpush1.msra.mxu0 0.0
        %369 = vmatprep.subr.mxu0 0.0
        %370 = vmatpush1.msra.mxu0 0.0
        %371 = vmatprep.subr.mxu0 0.0
        %372 = vmatpush1.msra.mxu0 0.0
        %373 = vmatprep.subr.mxu0 0.0
        %374 = vmatpush1.msra.mxu0 0.0
        %375 = vmatprep.subr.mxu0 0.0
        %376 = vmatpush1.msra.mxu0 0.0
        %377 = vmatprep.subr.mxu0 %v317
        %378 = vmatpush1.msra.mxu0 %v315
        %379 = vmatprep.subr.mxu0 0.0
        %380 = vmatpush2.msra.mxu0 0.0
        %381 = vmatprep.subr.mxu0 0.0
        %382 = vmatpush2.msra.mxu0 0.0
        %383 = vmatprep.subr.mxu0 0.0
        %384 = vmatpush2.msra.mxu0 0.0
        %385 = vmatprep.subr.mxu0 0.0
        %386 = vmatpush2.msra.mxu0 0.0
        %387 = vmatprep.subr.mxu0 0.0
        %388 = vmatpush2.msra.mxu0 0.0
        %389 = vmatprep.subr.mxu0 0.0
        %390 = vmatpush2.msra.mxu0 0.0
        %391 = vmatprep.subr.mxu0 0.0
        %392 = vmatpush2.msra.mxu0 0.0
        %393 = vmatprep.subr.mxu0 0.0
        %394 = vmatpush2.msra.mxu0 0.0
        %395 = vmatprep.subr.mxu0 0.0
        %396 = vmatpush2.msra.mxu0 0.0
        %397 = vmatprep.subr.mxu0 0.0
        %398 = vmatpush2.msra.mxu0 0.0
        %399 = vmatprep.subr.mxu0 0.0
        %400 = vmatpush2.msra.mxu0 0.0
        %401 = vmatprep.subr.mxu0 0.0
        %402 = vmatpush2.msra.mxu0 0.0
        %403 = vmatprep.subr.mxu0 0.0
        %404 = vmatpush2.msra.mxu0 0.0
        %405 = vmatprep.subr.mxu0 0.0
        %406 = vmatpush2.msra.mxu0 0.0
        %407 = vmatprep.subr.mxu0 0.0
        %408 = vmatpush2.msra.mxu0 0.0
        %409 = vmatprep.subr.mxu0 0.0
        %410 = vmatpush2.msra.mxu0 0.0
        %411 = vmatprep.mubr.f32.mxu0 0.0
        %412 = vmatmul.mubr.f32.gmra.mxu0 %v309
        %v413 = vpop.f32.mrf.mxu0
        %v414 = vadd.f32 0.0, %v413
        %v415 = vpop.f32.mrf.mxu0
        %v416 = vadd.f32 0.0, %v415
        %417 = vmatprep.mubr.f32.mxu0 0.0
        %418 = vmatmul.mubr.f32.gmra.mxu0 %v312
        %v419 = vpop.f32.mrf.mxu0
        %v420 = vadd.f32 0.0, %v419
        %v421 = vpop.f32.mrf.mxu0
        %v422 = vadd.f32 0.0, %v421
        %423 = vdwg.mxu0
        %424 = vmatprep.subr.mxu0 0.0
        %425 = vmatpush1.msra.mxu0 0.0
        %426 = vmatprep.subr.mxu0 0.0
        %427 = vmatpush1.msra.mxu0 0.0
        %428 = vmatprep.subr.mxu0 0.0
        %429 = vmatpush1.msra.mxu0 0.0
        %430 = vmatprep.subr.mxu0 0.0
        %431 = vmatpush1.msra.mxu0 0.0
        %432 = vmatprep.subr.mxu0 0.0
        %433 = vmatpush1.msra.mxu0 0.0
        %434 = vmatprep.subr.mxu0 0.0
        %435 = vmatpush1.msra.mxu0 0.0
        %436 = vmatprep.subr.mxu0 0.0
        %437 = vmatpush1.msra.mxu0 0.0
        %438 = vmatprep.subr.mxu0 0.0
        %439 = vmatpush1.msra.mxu0 0.0
        %440 = vmatprep.subr.mxu0 0.0
        %441 = vmatpush1.msra.mxu0 0.0
        %442 = vmatprep.subr.mxu0 0.0
        %443 = vmatpush1.msra.mxu0 0.0
        %444 = vmatprep.subr.mxu0 0.0
        %445 = vmatpush1.msra.mxu0 0.0
        %446 = vmatprep.subr.mxu0 0.0
        %447 = vmatpush1.msra.mxu0 0.0
        %448 = vmatprep.subr.mxu0 0.0
        %449 = vmatpush1.msra.mxu0 0.0
        %450 = vmatprep.subr.mxu0 0.0
        %451 = vmatpush1.msra.mxu0 0.0
        %452 = vmatprep.subr.mxu0 0.0
        %453 = vmatpush1.msra.mxu0 0.0
        %454 = vmatprep.subr.mxu0 %v321
        %455 = vmatpush1.msra.mxu0 %v319
        %456 = vmatprep.subr.mxu0 0.0
        %457 = vmatpush2.msra.mxu0 0.0
        %458 = vmatprep.subr.mxu0 0.0
        %459 = vmatpush2.msra.mxu0 0.0
        %460 = vmatprep.subr.mxu0 0.0
        %461 = vmatpush2.msra.mxu0 0.0
        %462 = vmatprep.subr.mxu0 0.0
        %463 = vmatpush2.msra.mxu0 0.0
        %464 = vmatprep.subr.mxu0 0.0
        %465 = vmatpush2.msra.mxu0 0.0
        %466 = vmatprep.subr.mxu0 0.0
        %467 = vmatpush2.msra.mxu0 0.0
        %468 = vmatprep.subr.mxu0 0.0
        %469 = vmatpush2.msra.mxu0 0.0
        %470 = vmatprep.subr.mxu0 0.0
        %471 = vmatpush2.msra.mxu0 0.0
        %472 = vmatprep.subr.mxu0 0.0
        %473 = vmatpush2.msra.mxu0 0.0
        %474 = vmatprep.subr.mxu0 0.0
        %475 = vmatpush2.msra.mxu0 0.0
        %476 = vmatprep.subr.mxu0 0.0
        %477 = vmatpush2.msra.mxu0 0.0
        %478 = vmatprep.subr.mxu0 0.0
        %479 = vmatpush2.msra.mxu0 0.0
        %480 = vmatprep.subr.mxu0 0.0
        %481 = vmatpush2.msra.mxu0 0.0
        %482 = vmatprep.subr.mxu0 0.0
        %483 = vmatpush2.msra.mxu0 0.0
        %484 = vmatprep.subr.mxu0 0.0
        %485 = vmatpush2.msra.mxu0 0.0
        %486 = vmatprep.subr.mxu0 0.0
        %487 = vmatpush2.msra.mxu0 0.0
        %488 = vmatprep.mubr.f32.mxu0 0.0
        %489 = vmatmul.mubr.f32.gmra.mxu0 %v309
        %v490 = vpop.f32.mrf.mxu0
        %v491 = vadd.f32 0.0, %v490
        %v492 = vpop.f32.mrf.mxu0
        %v493 = vadd.f32 0.0, %v492
        %494 = vmatprep.mubr.f32.mxu0 0.0
        %495 = vmatmul.mubr.f32.gmra.mxu0 %v312
        %v496 = vpop.f32.mrf.mxu0
        %v497 = vadd.f32 0.0, %v496
        %v498 = vpop.f32.mrf.mxu0
        %v499 = vadd.f32 0.0, %v498
        %500 = vdwg.mxu0
        %501 = vmatprep.subr.mxu0 0.0
        %502 = vmatpush1.msra.mxu0 0.0
        %503 = vmatprep.subr.mxu0 0.0
        %504 = vmatpush1.msra.mxu0 0.0
        %505 = vmatprep.subr.mxu0 0.0
        %506 = vmatpush1.msra.mxu0 0.0
        %507 = vmatprep.subr.mxu0 0.0
        %508 = vmatpush1.msra.mxu0 0.0
        %509 = vmatprep.subr.mxu0 0.0
        %510 = vmatpush1.msra.mxu0 0.0
        %511 = vmatprep.subr.mxu0 0.0
        %512 = vmatpush1.msra.mxu0 0.0
        %513 = vmatprep.subr.mxu0 0.0
        %514 = vmatpush1.msra.mxu0 0.0
        %515 = vmatprep.subr.mxu0 0.0
        %516 = vmatpush1.msra.mxu0 0.0
        %517 = vmatprep.subr.mxu0 0.0
        %518 = vmatpush1.msra.mxu0 0.0
        %519 = vmatprep.subr.mxu0 0.0
        %520 = vmatpush1.msra.mxu0 0.0
        %521 = vmatprep.subr.mxu0 0.0
        %522 = vmatpush1.msra.mxu0 0.0
        %523 = vmatprep.subr.mxu0 0.0
        %524 = vmatpush1.msra.mxu0 0.0
        %525 = vmatprep.subr.mxu0 0.0
        %526 = vmatpush1.msra.mxu0 0.0
        %527 = vmatprep.subr.mxu0 0.0
        %528 = vmatpush1.msra.mxu0 0.0
        %529 = vmatprep.subr.mxu0 0.0
        %530 = vmatpush1.msra.mxu0 0.0
        %531 = vmatprep.subr.mxu0 %v325
        %532 = vmatpush1.msra.mxu0 %v323
        %533 = vmatprep.subr.mxu0 0.0
        %534 = vmatpush2.msra.mxu0 0.0
        %535 = vmatprep.subr.mxu0 0.0
        %536 = vmatpush2.msra.mxu0 0.0
        %537 = vmatprep.subr.mxu0 0.0
        %538 = vmatpush2.msra.mxu0 0.0
        %539 = vmatprep.subr.mxu0 0.0
        %540 = vmatpush2.msra.mxu0 0.0
        %541 = vmatprep.subr.mxu0 0.0
        %542 = vmatpush2.msra.mxu0 0.0
        %543 = vmatprep.subr.mxu0 0.0
        %544 = vmatpush2.msra.mxu0 0.0
        %545 = vmatprep.subr.mxu0 0.0
        %546 = vmatpush2.msra.mxu0 0.0
        %547 = vmatprep.subr.mxu0 0.0
        %548 = vmatpush2.msra.mxu0 0.0
        %549 = vmatprep.subr.mxu0 0.0
        %550 = vmatpush2.msra.mxu0 0.0
        %551 = vmatprep.subr.mxu0 0.0
        %552 = vmatpush2.msra.mxu0 0.0
        %553 = vmatprep.subr.mxu0 0.0
        %554 = vmatpush2.msra.mxu0 0.0
        %555 = vmatprep.subr.mxu0 0.0
        %556 = vmatpush2.msra.mxu0 0.0
        %557 = vmatprep.subr.mxu0 0.0
        %558 = vmatpush2.msra.mxu0 0.0
        %559 = vmatprep.subr.mxu0 0.0
        %560 = vmatpush2.msra.mxu0 0.0
        %561 = vmatprep.subr.mxu0 0.0
        %562 = vmatpush2.msra.mxu0 0.0
        %563 = vmatprep.subr.mxu0 0.0
        %564 = vmatpush2.msra.mxu0 0.0
        %565 = vmatprep.mubr.f32.mxu0 0.0
        %566 = vmatmul.mubr.f32.gmra.mxu0 %v309
        %v567 = vpop.f32.mrf.mxu0
        %v568 = vadd.f32 0.0, %v567
        %v569 = vpop.f32.mrf.mxu0
        %v570 = vadd.f32 0.0, %v569
        %571 = vmatprep.mubr.f32.mxu0 0.0
        %572 = vmatmul.mubr.f32.gmra.mxu0 %v312
        %v573 = vpop.f32.mrf.mxu0
        %v574 = vadd.f32 0.0, %v573
        %v575 = vpop.f32.mrf.mxu0
        %v576 = vadd.f32 0.0, %v575
        %577 = vdwg.mxu0
        %578 = vmatprep.subr.mxu0 0.0
        %579 = vmatpush1.msra.mxu0 0.0
        %580 = vmatprep.subr.mxu0 0.0
        %581 = vmatpush1.msra.mxu0 0.0
        %582 = vmatprep.subr.mxu0 0.0
        %583 = vmatpush1.msra.mxu0 0.0
        %584 = vmatprep.subr.mxu0 0.0
        %585 = vmatpush1.msra.mxu0 0.0
        %586 = vmatprep.subr.mxu0 0.0
        %587 = vmatpush1.msra.mxu0 0.0
        %588 = vmatprep.subr.mxu0 0.0
        %589 = vmatpush1.msra.mxu0 0.0
        %590 = vmatprep.subr.mxu0 0.0
        %591 = vmatpush1.msra.mxu0 0.0
        %592 = vmatprep.subr.mxu0 0.0
        %593 = vmatpush1.msra.mxu0 0.0
        %594 = vmatprep.subr.mxu0 0.0
        %595 = vmatpush1.msra.mxu0 0.0
        %596 = vmatprep.subr.mxu0 0.0
        %597 = vmatpush1.msra.mxu0 0.0
        %598 = vmatprep.subr.mxu0 0.0
        %599 = vmatpush1.msra.mxu0 0.0
        %600 = vmatprep.subr.mxu0 0.0
        %601 = vmatpush1.msra.mxu0 0.0
        %602 = vmatprep.subr.mxu0 0.0
        %603 = vmatpush1.msra.mxu0 0.0
        %604 = vmatprep.subr.mxu0 0.0
        %605 = vmatpush1.msra.mxu0 0.0
        %606 = vmatprep.subr.mxu0 0.0
        %607 = vmatpush1.msra.mxu0 0.0
        %608 = vmatprep.subr.mxu0 %v329
        %609 = vmatpush1.msra.mxu0 %v327
        %610 = vmatprep.subr.mxu0 0.0
        %611 = vmatpush2.msra.mxu0 0.0
        %612 = vmatprep.subr.mxu0 0.0
        %613 = vmatpush2.msra.mxu0 0.0
        %614 = vmatprep.subr.mxu0 0.0
        %615 = vmatpush2.msra.mxu0 0.0
        %616 = vmatprep.subr.mxu0 0.0
        %617 = vmatpush2.msra.mxu0 0.0
        %618 = vmatprep.subr.mxu0 0.0
        %619 = vmatpush2.msra.mxu0 0.0
        %620 = vmatprep.subr.mxu0 0.0
        %621 = vmatpush2.msra.mxu0 0.0
        %622 = vmatprep.subr.mxu0 0.0
        %623 = vmatpush2.msra.mxu0 0.0
        %624 = vmatprep.subr.mxu0 0.0
        %625 = vmatpush2.msra.mxu0 0.0
        %626 = vmatprep.subr.mxu0 0.0
        %627 = vmatpush2.msra.mxu0 0.0
        %628 = vmatprep.subr.mxu0 0.0
        %629 = vmatpush2.msra.mxu0 0.0
        %630 = vmatprep.subr.mxu0 0.0
        %631 = vmatpush2.msra.mxu0 0.0
        %632 = vmatprep.subr.mxu0 0.0
        %633 = vmatpush2.msra.mxu0 0.0
        %634 = vmatprep.subr.mxu0 0.0
        %635 = vmatpush2.msra.mxu0 0.0
        %636 = vmatprep.subr.mxu0 0.0
        %637 = vmatpush2.msra.mxu0 0.0
        %638 = vmatprep.subr.mxu0 0.0
        %639 = vmatpush2.msra.mxu0 0.0
        %640 = vmatprep.subr.mxu0 0.0
        %641 = vmatpush2.msra.mxu0 0.0
        %642 = vmatprep.mubr.f32.mxu0 0.0
        %643 = vmatmul.mubr.f32.gmra.mxu0 %v309
        %v644 = vpop.f32.mrf.mxu0
        %v645 = vadd.f32 0.0, %v644
        %v646 = vpop.f32.mrf.mxu0
        %v647 = vadd.f32 0.0, %v646
        %648 = vmatprep.mubr.f32.mxu0 0.0
        %649 = vmatmul.mubr.f32.gmra.mxu0 %v312
        %v650 = vpop.f32.mrf.mxu0
        %v651 = vadd.f32 0.0, %v650
        %v652 = vpop.f32.mrf.mxu0
        %v653 = vadd.f32 0.0, %v652
        %654 = vdwg.mxu0
        %655 = vmatprep.subr.mxu0 0.0
        %656 = vmatpush1.msra.mxu0 0.0
        %657 = vmatprep.subr.mxu0 0.0
        %658 = vmatpush1.msra.mxu0 0.0
        %659 = vmatprep.subr.mxu0 0.0
        %660 = vmatpush1.msra.mxu0 0.0
        %661 = vmatprep.subr.mxu0 0.0
        %662 = vmatpush1.msra.mxu0 0.0
        %663 = vmatprep.subr.mxu0 0.0
        %664 = vmatpush1.msra.mxu0 0.0
        %665 = vmatprep.subr.mxu0 0.0
        %666 = vmatpush1.msra.mxu0 0.0
        %667 = vmatprep.subr.mxu0 0.0
        %668 = vmatpush1.msra.mxu0 0.0
        %669 = vmatprep.subr.mxu0 0.0
        %670 = vmatpush1.msra.mxu0 0.0
        %671 = vmatprep.subr.mxu0 0.0
        %672 = vmatpush1.msra.mxu0 0.0
        %673 = vmatprep.subr.mxu0 0.0
        %674 = vmatpush1.msra.mxu0 0.0
        %675 = vmatprep.subr.mxu0 0.0
        %676 = vmatpush1.msra.mxu0 0.0
        %677 = vmatprep.subr.mxu0 0.0
        %678 = vmatpush1.msra.mxu0 0.0
        %679 = vmatprep.subr.mxu0 0.0
        %680 = vmatpush1.msra.mxu0 0.0
        %681 = vmatprep.subr.mxu0 0.0
        %682 = vmatpush1.msra.mxu0 0.0
        %683 = vmatprep.subr.mxu0 0.0
        %684 = vmatpush1.msra.mxu0 0.0
        %685 = vmatprep.subr.mxu0 %v333
        %686 = vmatpush1.msra.mxu0 %v331
        %687 = vmatprep.subr.mxu0 0.0
        %688 = vmatpush2.msra.mxu0 0.0
        %689 = vmatprep.subr.mxu0 0.0
        %690 = vmatpush2.msra.mxu0 0.0
        %691 = vmatprep.subr.mxu0 0.0
        %692 = vmatpush2.msra.mxu0 0.0
        %693 = vmatprep.subr.mxu0 0.0
        %694 = vmatpush2.msra.mxu0 0.0
        %695 = vmatprep.subr.mxu0 0.0
        %696 = vmatpush2.msra.mxu0 0.0
        %697 = vmatprep.subr.mxu0 0.0
        %698 = vmatpush2.msra.mxu0 0.0
        %699 = vmatprep.subr.mxu0 0.0
        %700 = vmatpush2.msra.mxu0 0.0
        %701 = vmatprep.subr.mxu0 0.0
        %702 = vmatpush2.msra.mxu0 0.0
        %703 = vmatprep.subr.mxu0 0.0
        %704 = vmatpush2.msra.mxu0 0.0
        %705 = vmatprep.subr.mxu0 0.0
        %706 = vmatpush2.msra.mxu0 0.0
        %707 = vmatprep.subr.mxu0 0.0
        %708 = vmatpush2.msra.mxu0 0.0
        %709 = vmatprep.subr.mxu0 0.0
        %710 = vmatpush2.msra.mxu0 0.0
        %711 = vmatprep.subr.mxu0 0.0
        %712 = vmatpush2.msra.mxu0 0.0
        %713 = vmatprep.subr.mxu0 0.0
        %714 = vmatpush2.msra.mxu0 0.0
        %715 = vmatprep.subr.mxu0 0.0
        %716 = vmatpush2.msra.mxu0 0.0
        %717 = vmatprep.subr.mxu0 0.0
        %718 = vmatpush2.msra.mxu0 0.0
        %719 = vmatprep.mubr.f32.mxu0 0.0
        %720 = vmatmul.mubr.f32.gmra.mxu0 %v309
        %v721 = vpop.f32.mrf.mxu0
        %v722 = vadd.f32 0.0, %v721
        %v723 = vpop.f32.mrf.mxu0
        %v724 = vadd.f32 0.0, %v723
        %725 = vmatprep.mubr.f32.mxu0 0.0
        %726 = vmatmul.mubr.f32.gmra.mxu0 %v312
        %v727 = vpop.f32.mrf.mxu0
        %v728 = vadd.f32 0.0, %v727
        %v729 = vpop.f32.mrf.mxu0
        %v730 = vadd.f32 0.0, %v729
        %731 = vdwg.mxu0
        %732 = vmatprep.subr.mxu0 0.0
        %733 = vmatpush1.msra.mxu0 0.0
        %734 = vmatprep.subr.mxu0 0.0
        %735 = vmatpush1.msra.mxu0 0.0
        %736 = vmatprep.subr.mxu0 0.0
        %737 = vmatpush1.msra.mxu0 0.0
        %738 = vmatprep.subr.mxu0 0.0
        %739 = vmatpush1.msra.mxu0 0.0
        %740 = vmatprep.subr.mxu0 0.0
        %741 = vmatpush1.msra.mxu0 0.0
        %742 = vmatprep.subr.mxu0 0.0
        %743 = vmatpush1.msra.mxu0 0.0
        %744 = vmatprep.subr.mxu0 0.0
        %745 = vmatpush1.msra.mxu0 0.0
        %746 = vmatprep.subr.mxu0 0.0
        %747 = vmatpush1.msra.mxu0 0.0
        %748 = vmatprep.subr.mxu0 0.0
        %749 = vmatpush1.msra.mxu0 0.0
        %750 = vmatprep.subr.mxu0 0.0
        %751 = vmatpush1.msra.mxu0 0.0
        %752 = vmatprep.subr.mxu0 0.0
        %753 = vmatpush1.msra.mxu0 0.0
        %754 = vmatprep.subr.mxu0 0.0
        %755 = vmatpush1.msra.mxu0 0.0
        %756 = vmatprep.subr.mxu0 0.0
        %757 = vmatpush1.msra.mxu0 0.0
        %758 = vmatprep.subr.mxu0 0.0
        %759 = vmatpush1.msra.mxu0 0.0
        %760 = vmatprep.subr.mxu0 0.0
        %761 = vmatpush1.msra.mxu0 0.0
        %762 = vmatprep.subr.mxu0 %v337
        %763 = vmatpush1.msra.mxu0 %v335
        %764 = vmatprep.subr.mxu0 0.0
        %765 = vmatpush2.msra.mxu0 0.0
        %766 = vmatprep.subr.mxu0 0.0
        %767 = vmatpush2.msra.mxu0 0.0
        %768 = vmatprep.subr.mxu0 0.0
        %769 = vmatpush2.msra.mxu0 0.0
        %770 = vmatprep.subr.mxu0 0.0
        %771 = vmatpush2.msra.mxu0 0.0
        %772 = vmatprep.subr.mxu0 0.0
        %773 = vmatpush2.msra.mxu0 0.0
        %774 = vmatprep.subr.mxu0 0.0
        %775 = vmatpush2.msra.mxu0 0.0
        %776 = vmatprep.subr.mxu0 0.0
        %777 = vmatpush2.msra.mxu0 0.0
        %778 = vmatprep.subr.mxu0 0.0
        %779 = vmatpush2.msra.mxu0 0.0
        %780 = vmatprep.subr.mxu0 0.0
        %781 = vmatpush2.msra.mxu0 0.0
        %782 = vmatprep.subr.mxu0 0.0
        %783 = vmatpush2.msra.mxu0 0.0
        %784 = vmatprep.subr.mxu0 0.0
        %785 = vmatpush2.msra.mxu0 0.0
        %786 = vmatprep.subr.mxu0 0.0
        %787 = vmatpush2.msra.mxu0 0.0
        %788 = vmatprep.subr.mxu0 0.0
        %789 = vmatpush2.msra.mxu0 0.0
        %790 = vmatprep.subr.mxu0 0.0
        %791 = vmatpush2.msra.mxu0 0.0
        %792 = vmatprep.subr.mxu0 0.0
        %793 = vmatpush2.msra.mxu0 0.0
        %794 = vmatprep.subr.mxu0 0.0
        %795 = vmatpush2.msra.mxu0 0.0
        %796 = vmatprep.mubr.f32.mxu0 0.0
        %797 = vmatmul.mubr.f32.gmra.mxu0 %v309
        %v798 = vpop.f32.mrf.mxu0
        %v799 = vadd.f32 0.0, %v798
        %v800 = vpop.f32.mrf.mxu0
        %v801 = vadd.f32 0.0, %v800
        %802 = vmatprep.mubr.f32.mxu0 0.0
        %803 = vmatmul.mubr.f32.gmra.mxu0 %v312
        %v804 = vpop.f32.mrf.mxu0
        %v805 = vadd.f32 0.0, %v804
        %v806 = vpop.f32.mrf.mxu0
        %v807 = vadd.f32 0.0, %v806
        %808 = vdwg.mxu0
        %809 = vmatprep.subr.mxu0 0.0
        %810 = vmatpush1.msra.mxu0 0.0
        %811 = vmatprep.subr.mxu0 0.0
        %812 = vmatpush1.msra.mxu0 0.0
        %813 = vmatprep.subr.mxu0 0.0
        %814 = vmatpush1.msra.mxu0 0.0
        %815 = vmatprep.subr.mxu0 0.0
        %816 = vmatpush1.msra.mxu0 0.0
        %817 = vmatprep.subr.mxu0 0.0
        %818 = vmatpush1.msra.mxu0 0.0
        %819 = vmatprep.subr.mxu0 0.0
        %820 = vmatpush1.msra.mxu0 0.0
        %821 = vmatprep.subr.mxu0 0.0
        %822 = vmatpush1.msra.mxu0 0.0
        %823 = vmatprep.subr.mxu0 0.0
        %824 = vmatpush1.msra.mxu0 0.0
        %825 = vmatprep.subr.mxu0 0.0
        %826 = vmatpush1.msra.mxu0 0.0
        %827 = vmatprep.subr.mxu0 0.0
        %828 = vmatpush1.msra.mxu0 0.0
        %829 = vmatprep.subr.mxu0 0.0
        %830 = vmatpush1.msra.mxu0 0.0
        %831 = vmatprep.subr.mxu0 0.0
        %832 = vmatpush1.msra.mxu0 0.0
        %833 = vmatprep.subr.mxu0 0.0
        %834 = vmatpush1.msra.mxu0 0.0
        %835 = vmatprep.subr.mxu0 0.0
        %836 = vmatpush1.msra.mxu0 0.0
        %837 = vmatprep.subr.mxu0 0.0
        %838 = vmatpush1.msra.mxu0 0.0
        %839 = vmatprep.subr.mxu0 %v341
        %840 = vmatpush1.msra.mxu0 %v339
        %841 = vmatprep.subr.mxu0 0.0
        %842 = vmatpush2.msra.mxu0 0.0
        %843 = vmatprep.subr.mxu0 0.0
        %844 = vmatpush2.msra.mxu0 0.0
        %845 = vmatprep.subr.mxu0 0.0
        %846 = vmatpush2.msra.mxu0 0.0
        %847 = vmatprep.subr.mxu0 0.0
        %848 = vmatpush2.msra.mxu0 0.0
        %849 = vmatprep.subr.mxu0 0.0
        %850 = vmatpush2.msra.mxu0 0.0
        %851 = vmatprep.subr.mxu0 0.0
        %852 = vmatpush2.msra.mxu0 0.0
        %853 = vmatprep.subr.mxu0 0.0
        %854 = vmatpush2.msra.mxu0 0.0
        %855 = vmatprep.subr.mxu0 0.0
        %856 = vmatpush2.msra.mxu0 0.0
        %857 = vmatprep.subr.mxu0 0.0
        %858 = vmatpush2.msra.mxu0 0.0
        %859 = vmatprep.subr.mxu0 0.0
        %860 = vmatpush2.msra.mxu0 0.0
        %861 = vmatprep.subr.mxu0 0.0
        %862 = vmatpush2.msra.mxu0 0.0
        %863 = vmatprep.subr.mxu0 0.0
        %864 = vmatpush2.msra.mxu0 0.0
        %865 = vmatprep.subr.mxu0 0.0
        %866 = vmatpush2.msra.mxu0 0.0
        %867 = vmatprep.subr.mxu0 0.0
        %868 = vmatpush2.msra.mxu0 0.0
        %869 = vmatprep.subr.mxu0 0.0
        %870 = vmatpush2.msra.mxu0 0.0
        %871 = vmatprep.subr.mxu0 0.0
        %872 = vmatpush2.msra.mxu0 0.0
        %873 = vmatprep.mubr.f32.mxu0 0.0
        %874 = vmatmul.mubr.f32.gmra.mxu0 %v309
        %v875 = vpop.f32.mrf.mxu0
        %v876 = vadd.f32 0.0, %v875
        %v877 = vpop.f32.mrf.mxu0
        %v878 = vadd.f32 0.0, %v877
        %879 = vmatprep.mubr.f32.mxu0 0.0
        %880 = vmatmul.mubr.f32.gmra.mxu0 %v312
        %v881 = vpop.f32.mrf.mxu0
        %v882 = vadd.f32 0.0, %v881
        %v883 = vpop.f32.mrf.mxu0
        %v884 = vadd.f32 0.0, %v883
        %885 = vdwg.mxu0
        %886 = vmatprep.subr.mxu0 0.0
        %887 = vmatpush1.msra.mxu0 0.0
        %888 = vmatprep.subr.mxu0 0.0
        %889 = vmatpush1.msra.mxu0 0.0
        %890 = vmatprep.subr.mxu0 0.0
        %891 = vmatpush1.msra.mxu0 0.0
        %892 = vmatprep.subr.mxu0 0.0
        %893 = vmatpush1.msra.mxu0 0.0
        %894 = vmatprep.subr.mxu0 0.0
        %895 = vmatpush1.msra.mxu0 0.0
        %896 = vmatprep.subr.mxu0 0.0
        %897 = vmatpush1.msra.mxu0 0.0
        %898 = vmatprep.subr.mxu0 0.0
        %899 = vmatpush1.msra.mxu0 0.0
        %900 = vmatprep.subr.mxu0 0.0
        %901 = vmatpush1.msra.mxu0 0.0
        %902 = vmatprep.subr.mxu0 0.0
        %903 = vmatpush1.msra.mxu0 0.0
        %904 = vmatprep.subr.mxu0 0.0
        %905 = vmatpush1.msra.mxu0 0.0
        %906 = vmatprep.subr.mxu0 0.0
        %907 = vmatpush1.msra.mxu0 0.0
        %908 = vmatprep.subr.mxu0 0.0
        %909 = vmatpush1.msra.mxu0 0.0
        %910 = vmatprep.subr.mxu0 0.0
        %911 = vmatpush1.msra.mxu0 0.0
        %912 = vmatprep.subr.mxu0 0.0
        %913 = vmatpush1.msra.mxu0 0.0
        %914 = vmatprep.subr.mxu0 0.0
        %915 = vmatpush1.msra.mxu0 0.0
        %916 = vmatprep.subr.mxu0 %v345
        %917 = vmatpush1.msra.mxu0 %v343
        %918 = vmatprep.subr.mxu0 0.0
        %919 = vmatpush2.msra.mxu0 0.0
        %920 = vmatprep.subr.mxu0 0.0
        %921 = vmatpush2.msra.mxu0 0.0
        %922 = vmatprep.subr.mxu0 0.0
        %923 = vmatpush2.msra.mxu0 0.0
        %924 = vmatprep.subr.mxu0 0.0
        %925 = vmatpush2.msra.mxu0 0.0
        %926 = vmatprep.subr.mxu0 0.0
        %927 = vmatpush2.msra.mxu0 0.0
        %928 = vmatprep.subr.mxu0 0.0
        %929 = vmatpush2.msra.mxu0 0.0
        %930 = vmatprep.subr.mxu0 0.0
        %931 = vmatpush2.msra.mxu0 0.0
        %932 = vmatprep.subr.mxu0 0.0
        %933 = vmatpush2.msra.mxu0 0.0
        %934 = vmatprep.subr.mxu0 0.0
        %935 = vmatpush2.msra.mxu0 0.0
        %936 = vmatprep.subr.mxu0 0.0
        %937 = vmatpush2.msra.mxu0 0.0
        %938 = vmatprep.subr.mxu0 0.0
        %939 = vmatpush2.msra.mxu0 0.0
        %940 = vmatprep.subr.mxu0 0.0
        %941 = vmatpush2.msra.mxu0 0.0
        %942 = vmatprep.subr.mxu0 0.0
        %943 = vmatpush2.msra.mxu0 0.0
        %944 = vmatprep.subr.mxu0 0.0
        %945 = vmatpush2.msra.mxu0 0.0
        %946 = vmatprep.subr.mxu0 0.0
        %947 = vmatpush2.msra.mxu0 0.0
        %948 = vmatprep.subr.mxu0 0.0
        %949 = vmatpush2.msra.mxu0 0.0
        %950 = vmatprep.mubr.f32.mxu0 0.0
        %951 = vmatmul.mubr.f32.gmra.mxu0 %v309
        %v952 = vpop.f32.mrf.mxu0
        %v953 = vadd.f32 0.0, %v952
        %v954 = vpop.f32.mrf.mxu0
        %v955 = vadd.f32 0.0, %v954
        %956 = vmatprep.mubr.f32.mxu0 0.0
        %957 = vmatmul.mubr.f32.gmra.mxu0 %v312
        %v958 = vpop.f32.mrf.mxu0
        %v959 = vadd.f32 0.0, %v958
        %v960 = vpop.f32.mrf.mxu0
        %v961 = vadd.f32 0.0, %v960
        %962 = vdwg.mxu0
        %v963 = vld [vmem:[%s2] sm:$0xf]
        %v965 = vsel %vm314, %v963, 0
        %967 = vmatprep.subr.mxu0 0.0
        %968 = vmatpush1.msra.mxu0 0.0
        %969 = vmatprep.subr.mxu0 0.0
        %970 = vmatpush1.msra.mxu0 0.0
        %971 = vmatprep.subr.mxu0 0.0
        %972 = vmatpush1.msra.mxu0 0.0
        %973 = vmatprep.subr.mxu0 0.0
        %974 = vmatpush1.msra.mxu0 0.0
        %975 = vmatprep.subr.mxu0 0.0
        %976 = vmatpush1.msra.mxu0 0.0
        %977 = vmatprep.subr.mxu0 0.0
        %978 = vmatpush1.msra.mxu0 0.0
        %979 = vmatprep.subr.mxu0 0.0
        %980 = vmatpush1.msra.mxu0 0.0
        %981 = vmatprep.subr.mxu0 0.0
        %982 = vmatpush1.msra.mxu0 0.0
        %983 = vmatprep.subr.mxu0 0.0
        %984 = vmatpush1.msra.mxu0 0.0
        %985 = vmatprep.subr.mxu0 0.0
        %986 = vmatpush1.msra.mxu0 0.0
        %987 = vmatprep.subr.mxu0 0.0
        %988 = vmatpush1.msra.mxu0 0.0
        %989 = vmatprep.subr.mxu0 0.0
        %990 = vmatpush1.msra.mxu0 0.0
        %991 = vmatprep.subr.mxu0 0.0
        %992 = vmatpush1.msra.mxu0 0.0
        %993 = vmatprep.subr.mxu0 0.0
        %994 = vmatpush1.msra.mxu0 0.0
        %995 = vmatprep.subr.mxu0 0.0
        %996 = vmatpush1.msra.mxu0 0.0
        %997 = vmatprep.subr.mxu0 0.0
        %998 = vmatpush1.msra.mxu0 %v965
        %999 = vmatprep.subr.mxu0 0.0
        %1000 = vmatpush2.msra.mxu0 0.0
        %1001 = vmatprep.subr.mxu0 0.0
        %1002 = vmatpush2.msra.mxu0 0.0
        %1003 = vmatprep.subr.mxu0 0.0
        %1004 = vmatpush2.msra.mxu0 0.0
        %1005 = vmatprep.subr.mxu0 0.0
        %1006 = vmatpush2.msra.mxu0 0.0
        %1007 = vmatprep.subr.mxu0 0.0
        %1008 = vmatpush2.msra.mxu0 0.0
        %1009 = vmatprep.subr.mxu0 0.0
        %1010 = vmatpush2.msra.mxu0 0.0
        %1011 = vmatprep.subr.mxu0 0.0
        %1012 = vmatpush2.msra.mxu0 0.0
        %1013 = vmatprep.subr.mxu0 0.0
        %1014 = vmatpush2.msra.mxu0 0.0
        %1015 = vmatprep.subr.mxu0 0.0
        %1016 = vmatpush2.msra.mxu0 0.0
        %1017 = vmatprep.subr.mxu0 0.0
        %1018 = vmatpush2.msra.mxu0 0.0
        %1019 = vmatprep.subr.mxu0 0.0
        %1020 = vmatpush2.msra.mxu0 0.0
        %1021 = vmatprep.subr.mxu0 0.0
        %1022 = vmatpush2.msra.mxu0 0.0
        %1023 = vmatprep.subr.mxu0 0.0
        %1024 = vmatpush2.msra.mxu0 0.0
        %1025 = vmatprep.subr.mxu0 0.0
        %1026 = vmatpush2.msra.mxu0 0.0
        %1027 = vmatprep.subr.mxu0 0.0
        %1028 = vmatpush2.msra.mxu0 0.0
        %1029 = vmatprep.subr.mxu0 0.0
        %1030 = vmatpush2.msra.mxu0 0.0
        %1031 = vmatprep.mubr.f32.mxu0 0.0
        %1032 = vmatmul.mubr.f32.gmra.mxu0 %v309
        %v1033 = vpop.f32.mrf.mxu0
        %v1034 = vadd.f32 0.0, %v1033
        %v1035 = vpop.f32.mrf.mxu0
        %1036 = vmatprep.mubr.f32.mxu0 0.0
        %1037 = vmatmul.mubr.f32.gmra.mxu0 %v312
        %v1038 = vpop.f32.mrf.mxu0
        %v1039 = vadd.f32 0.0, %v1038
        %v1040 = vpop.f32.mrf.mxu0
        %1041 = vdwg.mxu0
        %v1042 = vmul.f32 %v414, %v414
        %v1043 = vmul.f32 %v416, %v416
        %v1044 = vmul.f32 %v491, %v491
        %v1045 = vmul.f32 %v493, %v493
        %v1046 = vmul.f32 %v568, %v568
        %v1047 = vmul.f32 %v570, %v570
        %v1048 = vmul.f32 %v645, %v645
        %v1049 = vmul.f32 %v647, %v647
        %v1050 = vmul.f32 %v722, %v722
        %v1051 = vmul.f32 %v724, %v724
        %v1052 = vmul.f32 %v799, %v799
        %v1053 = vmul.f32 %v801, %v801
        %v1054 = vmul.f32 %v876, %v876
        %v1055 = vmul.f32 %v878, %v878
        %v1056 = vmul.f32 %v953, %v953
        %v1057 = vmul.f32 %v955, %v955
        %v1058 = vmul.f32 %v420, %v420
        %v1059 = vmul.f32 %v422, %v422
        %v1060 = vmul.f32 %v497, %v497
        %v1061 = vmul.f32 %v499, %v499
        %v1062 = vmul.f32 %v574, %v574
        %v1063 = vmul.f32 %v576, %v576
        %v1064 = vmul.f32 %v651, %v651
        %v1065 = vmul.f32 %v653, %v653
        %v1066 = vmul.f32 %v728, %v728
        %v1067 = vmul.f32 %v730, %v730
        %v1068 = vmul.f32 %v805, %v805
        %v1069 = vmul.f32 %v807, %v807
        %v1070 = vmul.f32 %v882, %v882
        %v1071 = vmul.f32 %v884, %v884
        %v1072 = vmul.f32 %v959, %v959
        %v1073 = vmul.f32 %v961, %v961
        %v1074 = vld [vmem:[%s3] sm:$0xff]
        %v1075 = vld [vmem:[%s3 + $0x8] sm:$0xff]
        %v1076 = vld [vmem:[%s3 + $0x10] sm:$0xff]
        %v1077 = vld [vmem:[%s3 + $0x18] sm:$0xff]
        %v1078 = vld [vmem:[%s3 + $0x20] sm:$0xff]
        %v1079 = vld [vmem:[%s3 + $0x28] sm:$0xff]
        %v1080 = vld [vmem:[%s3 + $0x30] sm:$0xff]
        %v1081 = vld [vmem:[%s3 + $0x38] sm:$0xff]
        %v1082 = vld [vmem:[%s3 + $0x40] sm:$0xff]
        %v1083 = vld [vmem:[%s3 + $0x48] sm:$0xff]
        %v1084 = vld [vmem:[%s3 + $0x50] sm:$0xff]
        %v1085 = vld [vmem:[%s3 + $0x58] sm:$0xff]
        %v1086 = vld [vmem:[%s3 + $0x60] sm:$0xff]
        %v1087 = vld [vmem:[%s3 + $0x68] sm:$0xff]
        %v1088 = vld [vmem:[%s3 + $0x70] sm:$0xff]
        %v1089 = vld [vmem:[%s3 + $0x78] sm:$0xff]
        %v1090 = vld [vmem:[%s3 + $0x80] sm:$0xff]
        %v1091 = vld [vmem:[%s3 + $0x88] sm:$0xff]
        %v1092 = vld [vmem:[%s3 + $0x90] sm:$0xff]
        %v1093 = vld [vmem:[%s3 + $0x98] sm:$0xff]
        %v1094 = vld [vmem:[%s3 + $0xa0] sm:$0xff]
        %v1095 = vld [vmem:[%s3 + $0xa8] sm:$0xff]
        %v1096 = vld [vmem:[%s3 + $0xb0] sm:$0xff]
        %v1097 = vld [vmem:[%s3 + $0xb8] sm:$0xff]
        %v1098 = vld [vmem:[%s3 + $0xc0] sm:$0xff]
        %v1099 = vld [vmem:[%s3 + $0xc8] sm:$0xff]
        %v1100 = vld [vmem:[%s3 + $0xd0] sm:$0xff]
        %v1101 = vld [vmem:[%s3 + $0xd8] sm:$0xff]
        %v1102 = vld [vmem:[%s3 + $0xe0] sm:$0xff]
        %v1103 = vld [vmem:[%s3 + $0xe8] sm:$0xff]
        %v1104 = vld [vmem:[%s3 + $0xf0] sm:$0xff]
        %v1105 = vld [vmem:[%s3 + $0xf8] sm:$0xff]
        %v1106 = vld [vmem:[%s3 + $0x100] sm:$0xff]
        %v1107 = vld [vmem:[%s3 + $0x108] sm:$0xff]
        %v1108 = vld [vmem:[%s3 + $0x110] sm:$0xff]
        %v1109 = vld [vmem:[%s3 + $0x118] sm:$0xff]
        %v1110 = vld [vmem:[%s3 + $0x120] sm:$0xff]
        %v1111 = vld [vmem:[%s3 + $0x128] sm:$0xff]
        %v1112 = vld [vmem:[%s3 + $0x130] sm:$0xff]
        %v1113 = vld [vmem:[%s3 + $0x138] sm:$0xff]
        %v1114 = vld [vmem:[%s3 + $0x140] sm:$0xff]
        %v1115 = vld [vmem:[%s3 + $0x148] sm:$0xff]
        %v1116 = vld [vmem:[%s3 + $0x150] sm:$0xff]
        %v1117 = vld [vmem:[%s3 + $0x158] sm:$0xff]
        %v1118 = vld [vmem:[%s3 + $0x160] sm:$0xff]
        %v1119 = vld [vmem:[%s3 + $0x168] sm:$0xff]
        %v1120 = vld [vmem:[%s3 + $0x170] sm:$0xff]
        %v1121 = vld [vmem:[%s3 + $0x178] sm:$0xff]
        %v1122 = vld [vmem:[%s3 + $0x180] sm:$0xff]
        %v1123 = vld [vmem:[%s3 + $0x188] sm:$0xff]
        %v1124 = vld [vmem:[%s3 + $0x190] sm:$0xff]
        %v1125 = vld [vmem:[%s3 + $0x198] sm:$0xff]
        %v1126 = vld [vmem:[%s3 + $0x1a0] sm:$0xff]
        %v1127 = vld [vmem:[%s3 + $0x1a8] sm:$0xff]
        %v1128 = vld [vmem:[%s3 + $0x1b0] sm:$0xff]
        %v1129 = vld [vmem:[%s3 + $0x1b8] sm:$0xff]
        %v1130 = vld [vmem:[%s3 + $0x1c0] sm:$0xff]
        %v1131 = vld [vmem:[%s3 + $0x1c8] sm:$0xff]
        %v1132 = vld [vmem:[%s3 + $0x1d0] sm:$0xff]
        %v1133 = vld [vmem:[%s3 + $0x1d8] sm:$0xff]
        %v1134 = vld [vmem:[%s3 + $0x1e0] sm:$0xff]
        %v1135 = vld [vmem:[%s3 + $0x1e8] sm:$0xff]
        %v1136 = vld [vmem:[%s3 + $0x1f0] sm:$0xff]
        %v1137 = vld [vmem:[%s3 + $0x1f8] sm:$0xff]
        %v1138 = vld [vmem:[%s3 + $0x200] sm:$0xff]
        %v1139 = vld [vmem:[%s3 + $0x208] sm:$0xff]
        %v1140 = vld [vmem:[%s3 + $0x210] sm:$0xff]
        %v1141 = vld [vmem:[%s3 + $0x218] sm:$0xff]
        %v1142 = vld [vmem:[%s3 + $0x220] sm:$0xff]
        %v1143 = vld [vmem:[%s3 + $0x228] sm:$0xff]
        %v1144 = vld [vmem:[%s3 + $0x230] sm:$0xff]
        %v1145 = vld [vmem:[%s3 + $0x238] sm:$0xff]
        %v1146 = vld [vmem:[%s3 + $0x240] sm:$0xff]
        %v1147 = vld [vmem:[%s3 + $0x248] sm:$0xff]
        %v1148 = vld [vmem:[%s3 + $0x250] sm:$0xff]
        %v1149 = vld [vmem:[%s3 + $0x258] sm:$0xff]
        %v1150 = vld [vmem:[%s3 + $0x260] sm:$0xff]
        %v1151 = vld [vmem:[%s3 + $0x268] sm:$0xff]
        %v1152 = vld [vmem:[%s3 + $0x270] sm:$0xff]
        %v1153 = vld [vmem:[%s3 + $0x278] sm:$0xff]
        %v1154 = vld [vmem:[%s3 + $0x280] sm:$0xff]
        %v1155 = vld [vmem:[%s3 + $0x288] sm:$0xff]
        %v1156 = vld [vmem:[%s3 + $0x290] sm:$0xff]
        %v1157 = vld [vmem:[%s3 + $0x298] sm:$0xff]
        %v1158 = vld [vmem:[%s3 + $0x2a0] sm:$0xff]
        %v1159 = vld [vmem:[%s3 + $0x2a8] sm:$0xff]
        %v1160 = vld [vmem:[%s3 + $0x2b0] sm:$0xff]
        %v1161 = vld [vmem:[%s3 + $0x2b8] sm:$0xff]
        %v1162 = vld [vmem:[%s3 + $0x2c0] sm:$0xff]
        %v1163 = vld [vmem:[%s3 + $0x2c8] sm:$0xff]
        %v1164 = vld [vmem:[%s3 + $0x2d0] sm:$0xff]
        %v1165 = vld [vmem:[%s3 + $0x2d8] sm:$0xff]
        %v1166 = vld [vmem:[%s3 + $0x2e0] sm:$0xff]
        %v1167 = vld [vmem:[%s3 + $0x2e8] sm:$0xff]
        %v1168 = vld [vmem:[%s3 + $0x2f0] sm:$0xff]
        %v1169 = vld [vmem:[%s3 + $0x2f8] sm:$0xff]
        %v1170 = vld [vmem:[%s3 + $0x300] sm:$0xff]
        %v1171 = vld [vmem:[%s3 + $0x308] sm:$0xff]
        %v1172 = vld [vmem:[%s3 + $0x310] sm:$0xff]
        %v1173 = vld [vmem:[%s3 + $0x318] sm:$0xff]
        %v1174 = vld [vmem:[%s3 + $0x320] sm:$0xff]
        %v1175 = vld [vmem:[%s3 + $0x328] sm:$0xff]
        %v1176 = vld [vmem:[%s3 + $0x330] sm:$0xff]
        %v1177 = vld [vmem:[%s3 + $0x338] sm:$0xff]
        %v1178 = vld [vmem:[%s3 + $0x340] sm:$0xff]
        %v1179 = vld [vmem:[%s3 + $0x348] sm:$0xff]
        %v1180 = vld [vmem:[%s3 + $0x350] sm:$0xff]
        %v1181 = vld [vmem:[%s3 + $0x358] sm:$0xff]
        %v1182 = vld [vmem:[%s3 + $0x360] sm:$0xff]
        %v1183 = vld [vmem:[%s3 + $0x368] sm:$0xff]
        %v1184 = vld [vmem:[%s3 + $0x370] sm:$0xff]
        %v1185 = vld [vmem:[%s3 + $0x378] sm:$0xff]
        %v1186 = vld [vmem:[%s3 + $0x380] sm:$0xff]
        %v1187 = vld [vmem:[%s3 + $0x388] sm:$0xff]
        %v1188 = vld [vmem:[%s3 + $0x390] sm:$0xff]
        %v1189 = vld [vmem:[%s3 + $0x398] sm:$0xff]
        %v1190 = vld [vmem:[%s3 + $0x3a0] sm:$0xff]
        %v1191 = vld [vmem:[%s3 + $0x3a8] sm:$0xff]
        %v1192 = vld [vmem:[%s3 + $0x3b0] sm:$0xff]
        %v1193 = vld [vmem:[%s3 + $0x3b8] sm:$0xff]
        %v1194 = vld [vmem:[%s3 + $0x3c0] sm:$0xff]
        %v1195 = vld [vmem:[%s3 + $0x3c8] sm:$0xff]
        %v1196 = vld [vmem:[%s3 + $0x3d0] sm:$0xff]
        %v1197 = vld [vmem:[%s3 + $0x3d8] sm:$0xff]
        %v1198 = vld [vmem:[%s3 + $0x3e0] sm:$0xff]
        %v1199 = vld [vmem:[%s3 + $0x3e8] sm:$0xff]
        %v1200 = vld [vmem:[%s3 + $0x3f0] sm:$0xff]
        %v1201 = vld [vmem:[%s3 + $0x3f8] sm:$0xff]
        %v1202 = vld [vmem:[%s3 + $0x400] sm:$0xff]
        %v1203 = vld [vmem:[%s3 + $0x408] sm:$0xff]
        %v1204 = vld [vmem:[%s3 + $0x410] sm:$0xff]
        %v1205 = vld [vmem:[%s3 + $0x418] sm:$0xff]
        %v1206 = vld [vmem:[%s3 + $0x420] sm:$0xff]
        %v1207 = vld [vmem:[%s3 + $0x428] sm:$0xff]
        %v1208 = vld [vmem:[%s3 + $0x430] sm:$0xff]
        %v1209 = vld [vmem:[%s3 + $0x438] sm:$0xff]
        %v1210 = vld [vmem:[%s3 + $0x440] sm:$0xff]
        %v1211 = vld [vmem:[%s3 + $0x448] sm:$0xff]
        %v1212 = vld [vmem:[%s3 + $0x450] sm:$0xff]
        %v1213 = vld [vmem:[%s3 + $0x458] sm:$0xff]
        %v1214 = vld [vmem:[%s3 + $0x460] sm:$0xff]
        %v1215 = vld [vmem:[%s3 + $0x468] sm:$0xff]
        %v1216 = vld [vmem:[%s3 + $0x470] sm:$0xff]
        %v1217 = vld [vmem:[%s3 + $0x478] sm:$0xff]
        %v1218 = vld [vmem:[%s3 + $0x480] sm:$0xff]
        %v1219 = vld [vmem:[%s3 + $0x488] sm:$0xff]
        %v1220 = vld [vmem:[%s3 + $0x490] sm:$0xff]
        %v1221 = vld [vmem:[%s3 + $0x498] sm:$0xff]
        %v1222 = vld [vmem:[%s3 + $0x4a0] sm:$0xff]
        %v1223 = vld [vmem:[%s3 + $0x4a8] sm:$0xff]
        %v1224 = vld [vmem:[%s3 + $0x4b0] sm:$0xff]
        %v1225 = vld [vmem:[%s3 + $0x4b8] sm:$0xff]
        %v1226 = vld [vmem:[%s3 + $0x4c0] sm:$0xff]
        %v1227 = vld [vmem:[%s3 + $0x4c8] sm:$0xff]
        %v1228 = vld [vmem:[%s3 + $0x4d0] sm:$0xff]
        %v1229 = vld [vmem:[%s3 + $0x4d8] sm:$0xff]
        %v1230 = vld [vmem:[%s3 + $0x4e0] sm:$0xff]
        %v1231 = vld [vmem:[%s3 + $0x4e8] sm:$0xff]
        %v1232 = vld [vmem:[%s3 + $0x4f0] sm:$0xff]
        %v1233 = vld [vmem:[%s3 + $0x4f8] sm:$0xff]
        %v1234 = vld [vmem:[%s3 + $0x500] sm:$0xff]
        %v1235 = vld [vmem:[%s3 + $0x508] sm:$0xff]
        %v1236 = vld [vmem:[%s3 + $0x510] sm:$0xff]
        %v1237 = vld [vmem:[%s3 + $0x518] sm:$0xff]
        %v1238 = vld [vmem:[%s3 + $0x520] sm:$0xff]
        %v1239 = vld [vmem:[%s3 + $0x528] sm:$0xff]
        %v1240 = vld [vmem:[%s3 + $0x530] sm:$0xff]
        %v1241 = vld [vmem:[%s3 + $0x538] sm:$0xff]
        %v1242 = vld [vmem:[%s3 + $0x540] sm:$0xff]
        %v1243 = vld [vmem:[%s3 + $0x548] sm:$0xff]
        %v1244 = vld [vmem:[%s3 + $0x550] sm:$0xff]
        %v1245 = vld [vmem:[%s3 + $0x558] sm:$0xff]
        %v1246 = vld [vmem:[%s3 + $0x560] sm:$0xff]
        %v1247 = vld [vmem:[%s3 + $0x568] sm:$0xff]
        %v1248 = vld [vmem:[%s3 + $0x570] sm:$0xff]
        %v1249 = vld [vmem:[%s3 + $0x578] sm:$0xff]
        %v1250 = vld [vmem:[%s3 + $0x580] sm:$0xff]
        %v1251 = vld [vmem:[%s3 + $0x588] sm:$0xff]
        %v1252 = vld [vmem:[%s3 + $0x590] sm:$0xff]
        %v1253 = vld [vmem:[%s3 + $0x598] sm:$0xff]
        %v1254 = vld [vmem:[%s3 + $0x5a0] sm:$0xff]
        %v1255 = vld [vmem:[%s3 + $0x5a8] sm:$0xff]
        %v1256 = vld [vmem:[%s3 + $0x5b0] sm:$0xff]
        %v1257 = vld [vmem:[%s3 + $0x5b8] sm:$0xff]
        %v1258 = vld [vmem:[%s3 + $0x5c0] sm:$0xff]
        %v1259 = vld [vmem:[%s3 + $0x5c8] sm:$0xff]
        %v1260 = vld [vmem:[%s3 + $0x5d0] sm:$0xff]
        %v1261 = vld [vmem:[%s3 + $0x5d8] sm:$0xff]
        %v1262 = vld [vmem:[%s3 + $0x5e0] sm:$0xff]
        %v1263 = vld [vmem:[%s3 + $0x5e8] sm:$0xff]
        %v1264 = vld [vmem:[%s3 + $0x5f0] sm:$0xff]
        %v1265 = vld [vmem:[%s3 + $0x5f8] sm:$0xff]
        %v1266 = vld [vmem:[%s3 + $0x600] sm:$0xff]
        %v1267 = vld [vmem:[%s3 + $0x608] sm:$0xff]
        %v1268 = vld [vmem:[%s3 + $0x610] sm:$0xff]
        %v1269 = vld [vmem:[%s3 + $0x618] sm:$0xff]
        %v1270 = vld [vmem:[%s3 + $0x620] sm:$0xff]
        %v1271 = vld [vmem:[%s3 + $0x628] sm:$0xff]
        %v1272 = vld [vmem:[%s3 + $0x630] sm:$0xff]
        %v1273 = vld [vmem:[%s3 + $0x638] sm:$0xff]
        %v1274 = vld [vmem:[%s3 + $0x640] sm:$0xff]
        %v1275 = vld [vmem:[%s3 + $0x648] sm:$0xff]
        %v1276 = vld [vmem:[%s3 + $0x650] sm:$0xff]
        %v1277 = vld [vmem:[%s3 + $0x658] sm:$0xff]
        %v1278 = vld [vmem:[%s3 + $0x660] sm:$0xff]
        %v1279 = vld [vmem:[%s3 + $0x668] sm:$0xff]
        %v1280 = vld [vmem:[%s3 + $0x670] sm:$0xff]
        %v1281 = vld [vmem:[%s3 + $0x678] sm:$0xff]
        %v1282 = vld [vmem:[%s3 + $0x680] sm:$0xff]
        %v1283 = vld [vmem:[%s3 + $0x688] sm:$0xff]
        %v1284 = vld [vmem:[%s3 + $0x690] sm:$0xff]
        %v1285 = vld [vmem:[%s3 + $0x698] sm:$0xff]
        %v1286 = vld [vmem:[%s3 + $0x6a0] sm:$0xff]
        %v1287 = vld [vmem:[%s3 + $0x6a8] sm:$0xff]
        %v1288 = vld [vmem:[%s3 + $0x6b0] sm:$0xff]
        %v1289 = vld [vmem:[%s3 + $0x6b8] sm:$0xff]
        %v1290 = vld [vmem:[%s3 + $0x6c0] sm:$0xff]
        %v1291 = vld [vmem:[%s3 + $0x6c8] sm:$0xff]
        %v1292 = vld [vmem:[%s3 + $0x6d0] sm:$0xff]
        %v1293 = vld [vmem:[%s3 + $0x6d8] sm:$0xff]
        %v1294 = vld [vmem:[%s3 + $0x6e0] sm:$0xff]
        %v1295 = vld [vmem:[%s3 + $0x6e8] sm:$0xff]
        %v1296 = vld [vmem:[%s3 + $0x6f0] sm:$0xff]
        %v1297 = vld [vmem:[%s3 + $0x6f8] sm:$0xff]
        %v1298 = vld [vmem:[%s3 + $0x700] sm:$0xff]
        %v1299 = vld [vmem:[%s3 + $0x708] sm:$0xff]
        %v1300 = vld [vmem:[%s3 + $0x710] sm:$0xff]
        %v1301 = vld [vmem:[%s3 + $0x718] sm:$0xff]
        %v1302 = vld [vmem:[%s3 + $0x720] sm:$0xff]
        %v1303 = vld [vmem:[%s3 + $0x728] sm:$0xff]
        %v1304 = vld [vmem:[%s3 + $0x730] sm:$0xff]
        %v1305 = vld [vmem:[%s3 + $0x738] sm:$0xff]
        %v1306 = vld [vmem:[%s3 + $0x740] sm:$0xff]
        %v1307 = vld [vmem:[%s3 + $0x748] sm:$0xff]
        %v1308 = vld [vmem:[%s3 + $0x750] sm:$0xff]
        %v1309 = vld [vmem:[%s3 + $0x758] sm:$0xff]
        %v1310 = vld [vmem:[%s3 + $0x760] sm:$0xff]
        %v1311 = vld [vmem:[%s3 + $0x768] sm:$0xff]
        %v1312 = vld [vmem:[%s3 + $0x770] sm:$0xff]
        %v1313 = vld [vmem:[%s3 + $0x778] sm:$0xff]
        %v1314 = vld [vmem:[%s3 + $0x780] sm:$0xff]
        %v1315 = vld [vmem:[%s3 + $0x788] sm:$0xff]
        %v1316 = vld [vmem:[%s3 + $0x790] sm:$0xff]
        %v1317 = vld [vmem:[%s3 + $0x798] sm:$0xff]
        %v1318 = vld [vmem:[%s3 + $0x7a0] sm:$0xff]
        %v1319 = vld [vmem:[%s3 + $0x7a8] sm:$0xff]
        %v1320 = vld [vmem:[%s3 + $0x7b0] sm:$0xff]
        %v1321 = vld [vmem:[%s3 + $0x7b8] sm:$0xff]
        %v1322 = vld [vmem:[%s3 + $0x7c0] sm:$0xff]
        %v1323 = vld [vmem:[%s3 + $0x7c8] sm:$0xff]
        %v1324 = vld [vmem:[%s3 + $0x7d0] sm:$0xff]
        %v1325 = vld [vmem:[%s3 + $0x7d8] sm:$0xff]
        %v1326 = vld [vmem:[%s3 + $0x7e0] sm:$0xff]
        %v1327 = vld [vmem:[%s3 + $0x7e8] sm:$0xff]
        %v1328 = vld [vmem:[%s3 + $0x7f0] sm:$0xff]
        %v1329 = vld [vmem:[%s3 + $0x7f8] sm:$0xff]
        %1330 = vmatprep.subr.mxu0 0.0
        %1331 = vmatpush1.msra.mxu0 %v1089
        %1332 = vmatprep.subr.mxu0 0.0
        %1333 = vmatpush1.msra.mxu0 %v1088
        %1334 = vmatprep.subr.mxu0 0.0
        %1335 = vmatpush1.msra.mxu0 %v1087
        %1336 = vmatprep.subr.mxu0 0.0
        %1337 = vmatpush1.msra.mxu0 %v1086
        %1338 = vmatprep.subr.mxu0 0.0
        %1339 = vmatpush1.msra.mxu0 %v1085
        %1340 = vmatprep.subr.mxu0 0.0
        %1341 = vmatpush1.msra.mxu0 %v1084
        %1342 = vmatprep.subr.mxu0 0.0
        %1343 = vmatpush1.msra.mxu0 %v1083
        %1344 = vmatprep.subr.mxu0 0.0
        %1345 = vmatpush1.msra.mxu0 %v1082
        %1346 = vmatprep.subr.mxu0 0.0
        %1347 = vmatpush1.msra.mxu0 %v1081
        %1348 = vmatprep.subr.mxu0 0.0
        %1349 = vmatpush1.msra.mxu0 %v1080
        %1350 = vmatprep.subr.mxu0 0.0
        %1351 = vmatpush1.msra.mxu0 %v1079
        %1352 = vmatprep.subr.mxu0 0.0
        %1353 = vmatpush1.msra.mxu0 %v1078
        %1354 = vmatprep.subr.mxu0 0.0
        %1355 = vmatpush1.msra.mxu0 %v1077
        %1356 = vmatprep.subr.mxu0 0.0
        %1357 = vmatpush1.msra.mxu0 %v1076
        %1358 = vmatprep.subr.mxu0 0.0
        %1359 = vmatpush1.msra.mxu0 %v1075
        %1360 = vmatprep.subr.mxu0 0.0
        %1361 = vmatpush1.msra.mxu0 %v1074
        %1362 = vmatprep.subr.mxu0 0.0
        %1363 = vmatpush2.msra.mxu0 %v1105
        %1364 = vmatprep.subr.mxu0 0.0
        %1365 = vmatpush2.msra.mxu0 %v1104
        %1366 = vmatprep.subr.mxu0 0.0
        %1367 = vmatpush2.msra.mxu0 %v1103
        %1368 = vmatprep.subr.mxu0 0.0
        %1369 = vmatpush2.msra.mxu0 %v1102
        %1370 = vmatprep.subr.mxu0 0.0
        %1371 = vmatpush2.msra.mxu0 %v1101
        %1372 = vmatprep.subr.mxu0 0.0
        %1373 = vmatpush2.msra.mxu0 %v1100
        %1374 = vmatprep.subr.mxu0 0.0
        %1375 = vmatpush2.msra.mxu0 %v1099
        %1376 = vmatprep.subr.mxu0 0.0
        %1377 = vmatpush2.msra.mxu0 %v1098
        %1378 = vmatprep.subr.mxu0 0.0
        %1379 = vmatpush2.msra.mxu0 %v1097
        %1380 = vmatprep.subr.mxu0 0.0
        %1381 = vmatpush2.msra.mxu0 %v1096
        %1382 = vmatprep.subr.mxu0 0.0
        %1383 = vmatpush2.msra.mxu0 %v1095
        %1384 = vmatprep.subr.mxu0 0.0
        %1385 = vmatpush2.msra.mxu0 %v1094
        %1386 = vmatprep.subr.mxu0 0.0
        %1387 = vmatpush2.msra.mxu0 %v1093
        %1388 = vmatprep.subr.mxu0 0.0
        %1389 = vmatpush2.msra.mxu0 %v1092
        %1390 = vmatprep.subr.mxu0 0.0
        %1391 = vmatpush2.msra.mxu0 %v1091
        %1392 = vmatprep.subr.mxu0 0.0
        %1393 = vmatpush2.msra.mxu0 %v1090
        %1394 = vmatprep.mubr.f32.mxu0 %v1043
        %1395 = vmatmul.mubr.f32.gmra.mxu0 %v1042
        %v1396 = vpop.f32.mrf.mxu0
        %v1397 = vadd.f32 0.0, %v1396
        %v1398 = vpop.f32.mrf.mxu0
        %1399 = vmatprep.mubr.f32.mxu0 %v1059
        %1400 = vmatmul.mubr.f32.gmra.mxu0 %v1058
        %v1401 = vpop.f32.mrf.mxu0
        %v1402 = vadd.f32 0.0, %v1401
        %v1403 = vpop.f32.mrf.mxu0
        %1404 = vdwg.mxu0
        %1405 = vmatprep.subr.mxu0 0.0
        %1406 = vmatpush1.msra.mxu0 %v1121
        %1407 = vmatprep.subr.mxu0 0.0
        %1408 = vmatpush1.msra.mxu0 %v1120
        %1409 = vmatprep.subr.mxu0 0.0
        %1410 = vmatpush1.msra.mxu0 %v1119
        %1411 = vmatprep.subr.mxu0 0.0
        %1412 = vmatpush1.msra.mxu0 %v1118
        %1413 = vmatprep.subr.mxu0 0.0
        %1414 = vmatpush1.msra.mxu0 %v1117
        %1415 = vmatprep.subr.mxu0 0.0
        %1416 = vmatpush1.msra.mxu0 %v1116
        %1417 = vmatprep.subr.mxu0 0.0
        %1418 = vmatpush1.msra.mxu0 %v1115
        %1419 = vmatprep.subr.mxu0 0.0
        %1420 = vmatpush1.msra.mxu0 %v1114
        %1421 = vmatprep.subr.mxu0 0.0
        %1422 = vmatpush1.msra.mxu0 %v1113
        %1423 = vmatprep.subr.mxu0 0.0
        %1424 = vmatpush1.msra.mxu0 %v1112
        %1425 = vmatprep.subr.mxu0 0.0
        %1426 = vmatpush1.msra.mxu0 %v1111
        %1427 = vmatprep.subr.mxu0 0.0
        %1428 = vmatpush1.msra.mxu0 %v1110
        %1429 = vmatprep.subr.mxu0 0.0
        %1430 = vmatpush1.msra.mxu0 %v1109
        %1431 = vmatprep.subr.mxu0 0.0
        %1432 = vmatpush1.msra.mxu0 %v1108
        %1433 = vmatprep.subr.mxu0 0.0
        %1434 = vmatpush1.msra.mxu0 %v1107
        %1435 = vmatprep.subr.mxu0 0.0
        %1436 = vmatpush1.msra.mxu0 %v1106
        %1437 = vmatprep.subr.mxu0 0.0
        %1438 = vmatpush2.msra.mxu0 %v1137
        %1439 = vmatprep.subr.mxu0 0.0
        %1440 = vmatpush2.msra.mxu0 %v1136
        %1441 = vmatprep.subr.mxu0 0.0
        %1442 = vmatpush2.msra.mxu0 %v1135
        %1443 = vmatprep.subr.mxu0 0.0
        %1444 = vmatpush2.msra.mxu0 %v1134
        %1445 = vmatprep.subr.mxu0 0.0
        %1446 = vmatpush2.msra.mxu0 %v1133
        %1447 = vmatprep.subr.mxu0 0.0
        %1448 = vmatpush2.msra.mxu0 %v1132
        %1449 = vmatprep.subr.mxu0 0.0
        %1450 = vmatpush2.msra.mxu0 %v1131
        %1451 = vmatprep.subr.mxu0 0.0
        %1452 = vmatpush2.msra.mxu0 %v1130
        %1453 = vmatprep.subr.mxu0 0.0
        %1454 = vmatpush2.msra.mxu0 %v1129
        %1455 = vmatprep.subr.mxu0 0.0
        %1456 = vmatpush2.msra.mxu0 %v1128
        %1457 = vmatprep.subr.mxu0 0.0
        %1458 = vmatpush2.msra.mxu0 %v1127
        %1459 = vmatprep.subr.mxu0 0.0
        %1460 = vmatpush2.msra.mxu0 %v1126
        %1461 = vmatprep.subr.mxu0 0.0
        %1462 = vmatpush2.msra.mxu0 %v1125
        %1463 = vmatprep.subr.mxu0 0.0
        %1464 = vmatpush2.msra.mxu0 %v1124
        %1465 = vmatprep.subr.mxu0 0.0
        %1466 = vmatpush2.msra.mxu0 %v1123
        %1467 = vmatprep.subr.mxu0 0.0
        %1468 = vmatpush2.msra.mxu0 %v1122
        %1469 = vmatprep.mubr.f32.mxu0 %v1045
        %1470 = vmatmul.mubr.f32.gmra.mxu0 %v1044
        %v1471 = vpop.f32.mrf.mxu0
        %v1472 = vadd.f32 %v1397, %v1471
        %v1473 = vpop.f32.mrf.mxu0
        %1474 = vmatprep.mubr.f32.mxu0 %v1061
        %1475 = vmatmul.mubr.f32.gmra.mxu0 %v1060
        %v1476 = vpop.f32.mrf.mxu0
        %v1477 = vadd.f32 %v1402, %v1476
        %v1478 = vpop.f32.mrf.mxu0
        %1479 = vdwg.mxu0
        %1480 = vmatprep.subr.mxu0 0.0
        %1481 = vmatpush1.msra.mxu0 %v1153
        %1482 = vmatprep.subr.mxu0 0.0
        %1483 = vmatpush1.msra.mxu0 %v1152
        %1484 = vmatprep.subr.mxu0 0.0
        %1485 = vmatpush1.msra.mxu0 %v1151
        %1486 = vmatprep.subr.mxu0 0.0
        %1487 = vmatpush1.msra.mxu0 %v1150
        %1488 = vmatprep.subr.mxu0 0.0
        %1489 = vmatpush1.msra.mxu0 %v1149
        %1490 = vmatprep.subr.mxu0 0.0
        %1491 = vmatpush1.msra.mxu0 %v1148
        %1492 = vmatprep.subr.mxu0 0.0
        %1493 = vmatpush1.msra.mxu0 %v1147
        %1494 = vmatprep.subr.mxu0 0.0
        %1495 = vmatpush1.msra.mxu0 %v1146
        %1496 = vmatprep.subr.mxu0 0.0
        %1497 = vmatpush1.msra.mxu0 %v1145
        %1498 = vmatprep.subr.mxu0 0.0
        %1499 = vmatpush1.msra.mxu0 %v1144
        %1500 = vmatprep.subr.mxu0 0.0
        %1501 = vmatpush1.msra.mxu0 %v1143
        %1502 = vmatprep.subr.mxu0 0.0
        %1503 = vmatpush1.msra.mxu0 %v1142
        %1504 = vmatprep.subr.mxu0 0.0
        %1505 = vmatpush1.msra.mxu0 %v1141
        %1506 = vmatprep.subr.mxu0 0.0
        %1507 = vmatpush1.msra.mxu0 %v1140
        %1508 = vmatprep.subr.mxu0 0.0
        %1509 = vmatpush1.msra.mxu0 %v1139
        %1510 = vmatprep.subr.mxu0 0.0
        %1511 = vmatpush1.msra.mxu0 %v1138
        %1512 = vmatprep.subr.mxu0 0.0
        %1513 = vmatpush2.msra.mxu0 %v1169
        %1514 = vmatprep.subr.mxu0 0.0
        %1515 = vmatpush2.msra.mxu0 %v1168
        %1516 = vmatprep.subr.mxu0 0.0
        %1517 = vmatpush2.msra.mxu0 %v1167
        %1518 = vmatprep.subr.mxu0 0.0
        %1519 = vmatpush2.msra.mxu0 %v1166
        %1520 = vmatprep.subr.mxu0 0.0
        %1521 = vmatpush2.msra.mxu0 %v1165
        %1522 = vmatprep.subr.mxu0 0.0
        %1523 = vmatpush2.msra.mxu0 %v1164
        %1524 = vmatprep.subr.mxu0 0.0
        %1525 = vmatpush2.msra.mxu0 %v1163
        %1526 = vmatprep.subr.mxu0 0.0
        %1527 = vmatpush2.msra.mxu0 %v1162
        %1528 = vmatprep.subr.mxu0 0.0
        %1529 = vmatpush2.msra.mxu0 %v1161
        %1530 = vmatprep.subr.mxu0 0.0
        %1531 = vmatpush2.msra.mxu0 %v1160
        %1532 = vmatprep.subr.mxu0 0.0
        %1533 = vmatpush2.msra.mxu0 %v1159
        %1534 = vmatprep.subr.mxu0 0.0
        %1535 = vmatpush2.msra.mxu0 %v1158
        %1536 = vmatprep.subr.mxu0 0.0
        %1537 = vmatpush2.msra.mxu0 %v1157
        %1538 = vmatprep.subr.mxu0 0.0
        %1539 = vmatpush2.msra.mxu0 %v1156
        %1540 = vmatprep.subr.mxu0 0.0
        %1541 = vmatpush2.msra.mxu0 %v1155
        %1542 = vmatprep.subr.mxu0 0.0
        %1543 = vmatpush2.msra.mxu0 %v1154
        %1544 = vmatprep.mubr.f32.mxu0 %v1047
        %1545 = vmatmul.mubr.f32.gmra.mxu0 %v1046
        %v1546 = vpop.f32.mrf.mxu0
        %v1547 = vadd.f32 %v1472, %v1546
        %v1548 = vpop.f32.mrf.mxu0
        %1549 = vmatprep.mubr.f32.mxu0 %v1063
        %1550 = vmatmul.mubr.f32.gmra.mxu0 %v1062
        %v1551 = vpop.f32.mrf.mxu0
        %v1552 = vadd.f32 %v1477, %v1551
        %v1553 = vpop.f32.mrf.mxu0
        %1554 = vdwg.mxu0
        %1555 = vmatprep.subr.mxu0 0.0
        %1556 = vmatpush1.msra.mxu0 %v1185
        %1557 = vmatprep.subr.mxu0 0.0
        %1558 = vmatpush1.msra.mxu0 %v1184
        %1559 = vmatprep.subr.mxu0 0.0
        %1560 = vmatpush1.msra.mxu0 %v1183
        %1561 = vmatprep.subr.mxu0 0.0
        %1562 = vmatpush1.msra.mxu0 %v1182
        %1563 = vmatprep.subr.mxu0 0.0
        %1564 = vmatpush1.msra.mxu0 %v1181
        %1565 = vmatprep.subr.mxu0 0.0
        %1566 = vmatpush1.msra.mxu0 %v1180
        %1567 = vmatprep.subr.mxu0 0.0
        %1568 = vmatpush1.msra.mxu0 %v1179
        %1569 = vmatprep.subr.mxu0 0.0
        %1570 = vmatpush1.msra.mxu0 %v1178
        %1571 = vmatprep.subr.mxu0 0.0
        %1572 = vmatpush1.msra.mxu0 %v1177
        %1573 = vmatprep.subr.mxu0 0.0
        %1574 = vmatpush1.msra.mxu0 %v1176
        %1575 = vmatprep.subr.mxu0 0.0
        %1576 = vmatpush1.msra.mxu0 %v1175
        %1577 = vmatprep.subr.mxu0 0.0
        %1578 = vmatpush1.msra.mxu0 %v1174
        %1579 = vmatprep.subr.mxu0 0.0
        %1580 = vmatpush1.msra.mxu0 %v1173
        %1581 = vmatprep.subr.mxu0 0.0
        %1582 = vmatpush1.msra.mxu0 %v1172
        %1583 = vmatprep.subr.mxu0 0.0
        %1584 = vmatpush1.msra.mxu0 %v1171
        %1585 = vmatprep.subr.mxu0 0.0
        %1586 = vmatpush1.msra.mxu0 %v1170
        %1587 = vmatprep.subr.mxu0 0.0
        %1588 = vmatpush2.msra.mxu0 %v1201
        %1589 = vmatprep.subr.mxu0 0.0
        %1590 = vmatpush2.msra.mxu0 %v1200
        %1591 = vmatprep.subr.mxu0 0.0
        %1592 = vmatpush2.msra.mxu0 %v1199
        %1593 = vmatprep.subr.mxu0 0.0
        %1594 = vmatpush2.msra.mxu0 %v1198
        %1595 = vmatprep.subr.mxu0 0.0
        %1596 = vmatpush2.msra.mxu0 %v1197
        %1597 = vmatprep.subr.mxu0 0.0
        %1598 = vmatpush2.msra.mxu0 %v1196
        %1599 = vmatprep.subr.mxu0 0.0
        %1600 = vmatpush2.msra.mxu0 %v1195
        %1601 = vmatprep.subr.mxu0 0.0
        %1602 = vmatpush2.msra.mxu0 %v1194
        %1603 = vmatprep.subr.mxu0 0.0
        %1604 = vmatpush2.msra.mxu0 %v1193
        %1605 = vmatprep.subr.mxu0 0.0
        %1606 = vmatpush2.msra.mxu0 %v1192
        %1607 = vmatprep.subr.mxu0 0.0
        %1608 = vmatpush2.msra.mxu0 %v1191
        %1609 = vmatprep.subr.mxu0 0.0
        %1610 = vmatpush2.msra.mxu0 %v1190
        %1611 = vmatprep.subr.mxu0 0.0
        %1612 = vmatpush2.msra.mxu0 %v1189
        %1613 = vmatprep.subr.mxu0 0.0
        %1614 = vmatpush2.msra.mxu0 %v1188
        %1615 = vmatprep.subr.mxu0 0.0
        %1616 = vmatpush2.msra.mxu0 %v1187
        %1617 = vmatprep.subr.mxu0 0.0
        %1618 = vmatpush2.msra.mxu0 %v1186
        %1619 = vmatprep.mubr.f32.mxu0 %v1049
        %1620 = vmatmul.mubr.f32.gmra.mxu0 %v1048
        %v1621 = vpop.f32.mrf.mxu0
        %v1622 = vadd.f32 %v1547, %v1621
        %v1623 = vpop.f32.mrf.mxu0
        %1624 = vmatprep.mubr.f32.mxu0 %v1065
        %1625 = vmatmul.mubr.f32.gmra.mxu0 %v1064
        %v1626 = vpop.f32.mrf.mxu0
        %v1627 = vadd.f32 %v1552, %v1626
        %v1628 = vpop.f32.mrf.mxu0
        %1629 = vdwg.mxu0
        %1630 = vmatprep.subr.mxu0 0.0
        %1631 = vmatpush1.msra.mxu0 %v1217
        %1632 = vmatprep.subr.mxu0 0.0
        %1633 = vmatpush1.msra.mxu0 %v1216
        %1634 = vmatprep.subr.mxu0 0.0
        %1635 = vmatpush1.msra.mxu0 %v1215
        %1636 = vmatprep.subr.mxu0 0.0
        %1637 = vmatpush1.msra.mxu0 %v1214
        %1638 = vmatprep.subr.mxu0 0.0
        %1639 = vmatpush1.msra.mxu0 %v1213
        %1640 = vmatprep.subr.mxu0 0.0
        %1641 = vmatpush1.msra.mxu0 %v1212
        %1642 = vmatprep.subr.mxu0 0.0
        %1643 = vmatpush1.msra.mxu0 %v1211
        %1644 = vmatprep.subr.mxu0 0.0
        %1645 = vmatpush1.msra.mxu0 %v1210
        %1646 = vmatprep.subr.mxu0 0.0
        %1647 = vmatpush1.msra.mxu0 %v1209
        %1648 = vmatprep.subr.mxu0 0.0
        %1649 = vmatpush1.msra.mxu0 %v1208
        %1650 = vmatprep.subr.mxu0 0.0
        %1651 = vmatpush1.msra.mxu0 %v1207
        %1652 = vmatprep.subr.mxu0 0.0
        %1653 = vmatpush1.msra.mxu0 %v1206
        %1654 = vmatprep.subr.mxu0 0.0
        %1655 = vmatpush1.msra.mxu0 %v1205
        %1656 = vmatprep.subr.mxu0 0.0
        %1657 = vmatpush1.msra.mxu0 %v1204
        %1658 = vmatprep.subr.mxu0 0.0
        %1659 = vmatpush1.msra.mxu0 %v1203
        %1660 = vmatprep.subr.mxu0 0.0
        %1661 = vmatpush1.msra.mxu0 %v1202
        %1662 = vmatprep.subr.mxu0 0.0
        %1663 = vmatpush2.msra.mxu0 %v1233
        %1664 = vmatprep.subr.mxu0 0.0
        %1665 = vmatpush2.msra.mxu0 %v1232
        %1666 = vmatprep.subr.mxu0 0.0
        %1667 = vmatpush2.msra.mxu0 %v1231
        %1668 = vmatprep.subr.mxu0 0.0
        %1669 = vmatpush2.msra.mxu0 %v1230
        %1670 = vmatprep.subr.mxu0 0.0
        %1671 = vmatpush2.msra.mxu0 %v1229
        %1672 = vmatprep.subr.mxu0 0.0
        %1673 = vmatpush2.msra.mxu0 %v1228
        %1674 = vmatprep.subr.mxu0 0.0
        %1675 = vmatpush2.msra.mxu0 %v1227
        %1676 = vmatprep.subr.mxu0 0.0
        %1677 = vmatpush2.msra.mxu0 %v1226
        %1678 = vmatprep.subr.mxu0 0.0
        %1679 = vmatpush2.msra.mxu0 %v1225
        %1680 = vmatprep.subr.mxu0 0.0
        %1681 = vmatpush2.msra.mxu0 %v1224
        %1682 = vmatprep.subr.mxu0 0.0
        %1683 = vmatpush2.msra.mxu0 %v1223
        %1684 = vmatprep.subr.mxu0 0.0
        %1685 = vmatpush2.msra.mxu0 %v1222
        %1686 = vmatprep.subr.mxu0 0.0
        %1687 = vmatpush2.msra.mxu0 %v1221
        %1688 = vmatprep.subr.mxu0 0.0
        %1689 = vmatpush2.msra.mxu0 %v1220
        %1690 = vmatprep.subr.mxu0 0.0
        %1691 = vmatpush2.msra.mxu0 %v1219
        %1692 = vmatprep.subr.mxu0 0.0
        %1693 = vmatpush2.msra.mxu0 %v1218
        %1694 = vmatprep.mubr.f32.mxu0 %v1051
        %1695 = vmatmul.mubr.f32.gmra.mxu0 %v1050
        %v1696 = vpop.f32.mrf.mxu0
        %v1697 = vadd.f32 %v1622, %v1696
        %v1698 = vpop.f32.mrf.mxu0
        %1699 = vmatprep.mubr.f32.mxu0 %v1067
        %1700 = vmatmul.mubr.f32.gmra.mxu0 %v1066
        %v1701 = vpop.f32.mrf.mxu0
        %v1702 = vadd.f32 %v1627, %v1701
        %v1703 = vpop.f32.mrf.mxu0
        %1704 = vdwg.mxu0
        %1705 = vmatprep.subr.mxu0 0.0
        %1706 = vmatpush1.msra.mxu0 %v1249
        %1707 = vmatprep.subr.mxu0 0.0
        %1708 = vmatpush1.msra.mxu0 %v1248
        %1709 = vmatprep.subr.mxu0 0.0
        %1710 = vmatpush1.msra.mxu0 %v1247
        %1711 = vmatprep.subr.mxu0 0.0
        %1712 = vmatpush1.msra.mxu0 %v1246
        %1713 = vmatprep.subr.mxu0 0.0
        %1714 = vmatpush1.msra.mxu0 %v1245
        %1715 = vmatprep.subr.mxu0 0.0
        %1716 = vmatpush1.msra.mxu0 %v1244
        %1717 = vmatprep.subr.mxu0 0.0
        %1718 = vmatpush1.msra.mxu0 %v1243
        %1719 = vmatprep.subr.mxu0 0.0
        %1720 = vmatpush1.msra.mxu0 %v1242
        %1721 = vmatprep.subr.mxu0 0.0
        %1722 = vmatpush1.msra.mxu0 %v1241
        %1723 = vmatprep.subr.mxu0 0.0
        %1724 = vmatpush1.msra.mxu0 %v1240
        %1725 = vmatprep.subr.mxu0 0.0
        %1726 = vmatpush1.msra.mxu0 %v1239
        %1727 = vmatprep.subr.mxu0 0.0
        %1728 = vmatpush1.msra.mxu0 %v1238
        %1729 = vmatprep.subr.mxu0 0.0
        %1730 = vmatpush1.msra.mxu0 %v1237
        %1731 = vmatprep.subr.mxu0 0.0
        %1732 = vmatpush1.msra.mxu0 %v1236
        %1733 = vmatprep.subr.mxu0 0.0
        %1734 = vmatpush1.msra.mxu0 %v1235
        %1735 = vmatprep.subr.mxu0 0.0
        %1736 = vmatpush1.msra.mxu0 %v1234
        %1737 = vmatprep.subr.mxu0 0.0
        %1738 = vmatpush2.msra.mxu0 %v1265
        %1739 = vmatprep.subr.mxu0 0.0
        %1740 = vmatpush2.msra.mxu0 %v1264
        %1741 = vmatprep.subr.mxu0 0.0
        %1742 = vmatpush2.msra.mxu0 %v1263
        %1743 = vmatprep.subr.mxu0 0.0
        %1744 = vmatpush2.msra.mxu0 %v1262
        %1745 = vmatprep.subr.mxu0 0.0
        %1746 = vmatpush2.msra.mxu0 %v1261
        %1747 = vmatprep.subr.mxu0 0.0
        %1748 = vmatpush2.msra.mxu0 %v1260
        %1749 = vmatprep.subr.mxu0 0.0
        %1750 = vmatpush2.msra.mxu0 %v1259
        %1751 = vmatprep.subr.mxu0 0.0
        %1752 = vmatpush2.msra.mxu0 %v1258
        %1753 = vmatprep.subr.mxu0 0.0
        %1754 = vmatpush2.msra.mxu0 %v1257
        %1755 = vmatprep.subr.mxu0 0.0
        %1756 = vmatpush2.msra.mxu0 %v1256
        %1757 = vmatprep.subr.mxu0 0.0
        %1758 = vmatpush2.msra.mxu0 %v1255
        %1759 = vmatprep.subr.mxu0 0.0
        %1760 = vmatpush2.msra.mxu0 %v1254
        %1761 = vmatprep.subr.mxu0 0.0
        %1762 = vmatpush2.msra.mxu0 %v1253
        %1763 = vmatprep.subr.mxu0 0.0
        %1764 = vmatpush2.msra.mxu0 %v1252
        %1765 = vmatprep.subr.mxu0 0.0
        %1766 = vmatpush2.msra.mxu0 %v1251
        %1767 = vmatprep.subr.mxu0 0.0
        %1768 = vmatpush2.msra.mxu0 %v1250
        %1769 = vmatprep.mubr.f32.mxu0 %v1053
        %1770 = vmatmul.mubr.f32.gmra.mxu0 %v1052
        %v1771 = vpop.f32.mrf.mxu0
        %v1772 = vadd.f32 %v1697, %v1771
        %v1773 = vpop.f32.mrf.mxu0
        %1774 = vmatprep.mubr.f32.mxu0 %v1069
        %1775 = vmatmul.mubr.f32.gmra.mxu0 %v1068
        %v1776 = vpop.f32.mrf.mxu0
        %v1777 = vadd.f32 %v1702, %v1776
        %v1778 = vpop.f32.mrf.mxu0
        %1779 = vdwg.mxu0
        %1780 = vmatprep.subr.mxu0 0.0
        %1781 = vmatpush1.msra.mxu0 %v1281
        %1782 = vmatprep.subr.mxu0 0.0
        %1783 = vmatpush1.msra.mxu0 %v1280
        %1784 = vmatprep.subr.mxu0 0.0
        %1785 = vmatpush1.msra.mxu0 %v1279
        %1786 = vmatprep.subr.mxu0 0.0
        %1787 = vmatpush1.msra.mxu0 %v1278
        %1788 = vmatprep.subr.mxu0 0.0
        %1789 = vmatpush1.msra.mxu0 %v1277
        %1790 = vmatprep.subr.mxu0 0.0
        %1791 = vmatpush1.msra.mxu0 %v1276
        %1792 = vmatprep.subr.mxu0 0.0
        %1793 = vmatpush1.msra.mxu0 %v1275
        %1794 = vmatprep.subr.mxu0 0.0
        %1795 = vmatpush1.msra.mxu0 %v1274
        %1796 = vmatprep.subr.mxu0 0.0
        %1797 = vmatpush1.msra.mxu0 %v1273
        %1798 = vmatprep.subr.mxu0 0.0
        %1799 = vmatpush1.msra.mxu0 %v1272
        %1800 = vmatprep.subr.mxu0 0.0
        %1801 = vmatpush1.msra.mxu0 %v1271
        %1802 = vmatprep.subr.mxu0 0.0
        %1803 = vmatpush1.msra.mxu0 %v1270
        %1804 = vmatprep.subr.mxu0 0.0
        %1805 = vmatpush1.msra.mxu0 %v1269
        %1806 = vmatprep.subr.mxu0 0.0
        %1807 = vmatpush1.msra.mxu0 %v1268
        %1808 = vmatprep.subr.mxu0 0.0
        %1809 = vmatpush1.msra.mxu0 %v1267
        %1810 = vmatprep.subr.mxu0 0.0
        %1811 = vmatpush1.msra.mxu0 %v1266
        %1812 = vmatprep.subr.mxu0 0.0
        %1813 = vmatpush2.msra.mxu0 %v1297
        %1814 = vmatprep.subr.mxu0 0.0
        %1815 = vmatpush2.msra.mxu0 %v1296
        %1816 = vmatprep.subr.mxu0 0.0
        %1817 = vmatpush2.msra.mxu0 %v1295
        %1818 = vmatprep.subr.mxu0 0.0
        %1819 = vmatpush2.msra.mxu0 %v1294
        %1820 = vmatprep.subr.mxu0 0.0
        %1821 = vmatpush2.msra.mxu0 %v1293
        %1822 = vmatprep.subr.mxu0 0.0
        %1823 = vmatpush2.msra.mxu0 %v1292
        %1824 = vmatprep.subr.mxu0 0.0
        %1825 = vmatpush2.msra.mxu0 %v1291
        %1826 = vmatprep.subr.mxu0 0.0
        %1827 = vmatpush2.msra.mxu0 %v1290
        %1828 = vmatprep.subr.mxu0 0.0
        %1829 = vmatpush2.msra.mxu0 %v1289
        %1830 = vmatprep.subr.mxu0 0.0
        %1831 = vmatpush2.msra.mxu0 %v1288
        %1832 = vmatprep.subr.mxu0 0.0
        %1833 = vmatpush2.msra.mxu0 %v1287
        %1834 = vmatprep.subr.mxu0 0.0
        %1835 = vmatpush2.msra.mxu0 %v1286
        %1836 = vmatprep.subr.mxu0 0.0
        %1837 = vmatpush2.msra.mxu0 %v1285
        %1838 = vmatprep.subr.mxu0 0.0
        %1839 = vmatpush2.msra.mxu0 %v1284
        %1840 = vmatprep.subr.mxu0 0.0
        %1841 = vmatpush2.msra.mxu0 %v1283
        %1842 = vmatprep.subr.mxu0 0.0
        %1843 = vmatpush2.msra.mxu0 %v1282
        %1844 = vmatprep.mubr.f32.mxu0 %v1055
        %1845 = vmatmul.mubr.f32.gmra.mxu0 %v1054
        %v1846 = vpop.f32.mrf.mxu0
        %v1847 = vadd.f32 %v1772, %v1846
        %v1848 = vpop.f32.mrf.mxu0
        %1849 = vmatprep.mubr.f32.mxu0 %v1071
        %1850 = vmatmul.mubr.f32.gmra.mxu0 %v1070
        %v1851 = vpop.f32.mrf.mxu0
        %v1852 = vadd.f32 %v1777, %v1851
        %v1853 = vpop.f32.mrf.mxu0
        %1854 = vdwg.mxu0
        %1855 = vmatprep.subr.mxu0 0.0
        %1856 = vmatpush1.msra.mxu0 %v1313
        %1857 = vmatprep.subr.mxu0 0.0
        %1858 = vmatpush1.msra.mxu0 %v1312
        %1859 = vmatprep.subr.mxu0 0.0
        %1860 = vmatpush1.msra.mxu0 %v1311
        %1861 = vmatprep.subr.mxu0 0.0
        %1862 = vmatpush1.msra.mxu0 %v1310
        %1863 = vmatprep.subr.mxu0 0.0
        %1864 = vmatpush1.msra.mxu0 %v1309
        %1865 = vmatprep.subr.mxu0 0.0
        %1866 = vmatpush1.msra.mxu0 %v1308
        %1867 = vmatprep.subr.mxu0 0.0
        %1868 = vmatpush1.msra.mxu0 %v1307
        %1869 = vmatprep.subr.mxu0 0.0
        %1870 = vmatpush1.msra.mxu0 %v1306
        %1871 = vmatprep.subr.mxu0 0.0
        %1872 = vmatpush1.msra.mxu0 %v1305
        %1873 = vmatprep.subr.mxu0 0.0
        %1874 = vmatpush1.msra.mxu0 %v1304
        %1875 = vmatprep.subr.mxu0 0.0
        %1876 = vmatpush1.msra.mxu0 %v1303
        %1877 = vmatprep.subr.mxu0 0.0
        %1878 = vmatpush1.msra.mxu0 %v1302
        %1879 = vmatprep.subr.mxu0 0.0
        %1880 = vmatpush1.msra.mxu0 %v1301
        %1881 = vmatprep.subr.mxu0 0.0
        %1882 = vmatpush1.msra.mxu0 %v1300
        %1883 = vmatprep.subr.mxu0 0.0
        %1884 = vmatpush1.msra.mxu0 %v1299
        %1885 = vmatprep.subr.mxu0 0.0
        %1886 = vmatpush1.msra.mxu0 %v1298
        %1887 = vmatprep.subr.mxu0 0.0
        %1888 = vmatpush2.msra.mxu0 %v1329
        %1889 = vmatprep.subr.mxu0 0.0
        %1890 = vmatpush2.msra.mxu0 %v1328
        %1891 = vmatprep.subr.mxu0 0.0
        %1892 = vmatpush2.msra.mxu0 %v1327
        %1893 = vmatprep.subr.mxu0 0.0
        %1894 = vmatpush2.msra.mxu0 %v1326
        %1895 = vmatprep.subr.mxu0 0.0
        %1896 = vmatpush2.msra.mxu0 %v1325
        %1897 = vmatprep.subr.mxu0 0.0
        %1898 = vmatpush2.msra.mxu0 %v1324
        %1899 = vmatprep.subr.mxu0 0.0
        %1900 = vmatpush2.msra.mxu0 %v1323
        %1901 = vmatprep.subr.mxu0 0.0
        %1902 = vmatpush2.msra.mxu0 %v1322
        %1903 = vmatprep.subr.mxu0 0.0
        %1904 = vmatpush2.msra.mxu0 %v1321
        %1905 = vmatprep.subr.mxu0 0.0
        %1906 = vmatpush2.msra.mxu0 %v1320
        %1907 = vmatprep.subr.mxu0 0.0
        %1908 = vmatpush2.msra.mxu0 %v1319
        %1909 = vmatprep.subr.mxu0 0.0
        %1910 = vmatpush2.msra.mxu0 %v1318
        %1911 = vmatprep.subr.mxu0 0.0
        %1912 = vmatpush2.msra.mxu0 %v1317
        %1913 = vmatprep.subr.mxu0 0.0
        %1914 = vmatpush2.msra.mxu0 %v1316
        %1915 = vmatprep.subr.mxu0 0.0
        %1916 = vmatpush2.msra.mxu0 %v1315
        %1917 = vmatprep.subr.mxu0 0.0
        %1918 = vmatpush2.msra.mxu0 %v1314
        %1919 = vmatprep.mubr.f32.mxu0 %v1057
        %1920 = vmatmul.mubr.f32.gmra.mxu0 %v1056
        %v1921 = vpop.f32.mrf.mxu0
        %v1922 = vadd.f32 %v1847, %v1921
        %v1923 = vpop.f32.mrf.mxu0
        %1924 = vmatprep.mubr.f32.mxu0 %v1073
        %1925 = vmatmul.mubr.f32.gmra.mxu0 %v1072
        %v1926 = vpop.f32.mrf.mxu0
        %v1927 = vadd.f32 %v1852, %v1926
        %v1928 = vpop.f32.mrf.mxu0
        %1929 = vdwg.mxu0
        %v1930 = vmul.f32 %v1922, 0.0078125
        %v1931 = vmul.f32 %v1927, 0.0078125
        %v1932 = vmul.f32 %v1034, %v1034
        %v1933 = vmul.f32 %v1039, %v1039
        %v1934 = vsub.f32 %v1930, %v1932
        %v1935 = vsub.f32 %v1931, %v1933
        %v1936 = vmax.f32 %v1934, 0.0
        %v1937 = vmax.f32 %v1935, 0.0
        %v1938 = vadd.f32 %v1936, 1e-05
        %v1939 = vadd.f32 %v1937, 1e-05
        %v1940 = vrsqrt.pop %v1938
        %v1941 = vrsqrt.pop %v1939
        %v1942 = vmul.f32 %v1034, %v1940
        %v1943 = vmul.f32 %v1039, %v1941
        %v1944 = vsub.f32 0.0, %v1942
        %v1945 = vsub.f32 0.0, %v1943
        %v1946 = vld [vmem:[%s4] sm:$0xff]
        %v1947 = vld [vmem:[%s4 + $0x8] sm:$0xff]
        %v1948 = vld [vmem:[%s4 + $0x10] sm:$0xff]
        %v1949 = vld [vmem:[%s4 + $0x18] sm:$0xff]
        %v1950 = vld [vmem:[%s4 + $0x20] sm:$0xff]
        %v1951 = vld [vmem:[%s4 + $0x28] sm:$0xff]
        %v1952 = vld [vmem:[%s4 + $0x30] sm:$0xff]
        %v1953 = vld [vmem:[%s4 + $0x38] sm:$0xff]
        %v1954 = vld [vmem:[%s4 + $0x40] sm:$0xff]
        %v1955 = vld [vmem:[%s4 + $0x48] sm:$0xff]
        %v1956 = vld [vmem:[%s4 + $0x50] sm:$0xff]
        %v1957 = vld [vmem:[%s4 + $0x58] sm:$0xff]
        %v1958 = vld [vmem:[%s4 + $0x60] sm:$0xff]
        %v1959 = vld [vmem:[%s4 + $0x68] sm:$0xff]
        %v1960 = vld [vmem:[%s4 + $0x70] sm:$0xff]
        %v1961 = vld [vmem:[%s4 + $0x78] sm:$0xff]
        %v1962 = vld [vmem:[%s4 + $0x80] sm:$0xff]
        %v1963 = vld [vmem:[%s4 + $0x88] sm:$0xff]
        %v1964 = vld [vmem:[%s4 + $0x90] sm:$0xff]
        %v1965 = vld [vmem:[%s4 + $0x98] sm:$0xff]
        %v1966 = vld [vmem:[%s4 + $0xa0] sm:$0xff]
        %v1967 = vld [vmem:[%s4 + $0xa8] sm:$0xff]
        %v1968 = vld [vmem:[%s4 + $0xb0] sm:$0xff]
        %v1969 = vld [vmem:[%s4 + $0xb8] sm:$0xff]
        %v1970 = vld [vmem:[%s4 + $0xc0] sm:$0xff]
        %v1971 = vld [vmem:[%s4 + $0xc8] sm:$0xff]
        %v1972 = vld [vmem:[%s4 + $0xd0] sm:$0xff]
        %v1973 = vld [vmem:[%s4 + $0xd8] sm:$0xff]
        %v1974 = vld [vmem:[%s4 + $0xe0] sm:$0xff]
        %v1975 = vld [vmem:[%s4 + $0xe8] sm:$0xff]
        %v1976 = vld [vmem:[%s4 + $0xf0] sm:$0xff]
        %v1977 = vld [vmem:[%s4 + $0xf8] sm:$0xff]
        %vm1978 = vcmask 130048
        %v1980 = vsel %vm1978, %v1940, 0
        %v1983 = vsel %vm1978, %v1941, 0
        %1985 = vmatprep.subr.mxu0 0.0
        %1986 = vmatpush1.msra.mxu0 0.0
        %1987 = vmatprep.subr.mxu0 0.0
        %1988 = vmatpush1.msra.mxu0 0.0
        %1989 = vmatprep.subr.mxu0 0.0
        %1990 = vmatpush1.msra.mxu0 0.0
        %1991 = vmatprep.subr.mxu0 0.0
        %1992 = vmatpush1.msra.mxu0 0.0
        %1993 = vmatprep.subr.mxu0 0.0
        %1994 = vmatpush1.msra.mxu0 0.0
        %1995 = vmatprep.subr.mxu0 0.0
        %1996 = vmatpush1.msra.mxu0 0.0
        %1997 = vmatprep.subr.mxu0 0.0
        %1998 = vmatpush1.msra.mxu0 0.0
        %1999 = vmatprep.subr.mxu0 0.0
        %2000 = vmatpush1.msra.mxu0 0.0
        %2001 = vmatprep.subr.mxu0 0.0
        %2002 = vmatpush1.msra.mxu0 0.0
        %2003 = vmatprep.subr.mxu0 0.0
        %2004 = vmatpush1.msra.mxu0 0.0
        %2005 = vmatprep.subr.mxu0 0.0
        %2006 = vmatpush1.msra.mxu0 0.0
        %2007 = vmatprep.subr.mxu0 0.0
        %2008 = vmatpush1.msra.mxu0 0.0
        %2009 = vmatprep.subr.mxu0 0.0
        %2010 = vmatpush1.msra.mxu0 0.0
        %2011 = vmatprep.subr.mxu0 0.0
        %2012 = vmatpush1.msra.mxu0 0.0
        %2013 = vmatprep.subr.mxu0 %v1963
        %2014 = vmatpush1.msra.mxu0 %v1962
        %2015 = vmatprep.subr.mxu0 %v1947
        %2016 = vmatpush1.msra.mxu0 %v1946
        %2017 = vmatprep.subr.mxu0 0.0
        %2018 = vmatpush2.msra.mxu0 0.0
        %2019 = vmatprep.subr.mxu0 0.0
        %2020 = vmatpush2.msra.mxu0 0.0
        %2021 = vmatprep.subr.mxu0 0.0
        %2022 = vmatpush2.msra.mxu0 0.0
        %2023 = vmatprep.subr.mxu0 0.0
        %2024 = vmatpush2.msra.mxu0 0.0
        %2025 = vmatprep.subr.mxu0 0.0
        %2026 = vmatpush2.msra.mxu0 0.0
        %2027 = vmatprep.subr.mxu0 0.0
        %2028 = vmatpush2.msra.mxu0 0.0
        %2029 = vmatprep.subr.mxu0 0.0
        %2030 = vmatpush2.msra.mxu0 0.0
        %2031 = vmatprep.subr.mxu0 0.0
        %2032 = vmatpush2.msra.mxu0 0.0
        %2033 = vmatprep.subr.mxu0 0.0
        %2034 = vmatpush2.msra.mxu0 0.0
        %2035 = vmatprep.subr.mxu0 0.0
        %2036 = vmatpush2.msra.mxu0 0.0
        %2037 = vmatprep.subr.mxu0 0.0
        %2038 = vmatpush2.msra.mxu0 0.0
        %2039 = vmatprep.subr.mxu0 0.0
        %2040 = vmatpush2.msra.mxu0 0.0
        %2041 = vmatprep.subr.mxu0 0.0
        %2042 = vmatpush2.msra.mxu0 0.0
        %2043 = vmatprep.subr.mxu0 0.0
        %2044 = vmatpush2.msra.mxu0 0.0
        %2045 = vmatprep.subr.mxu0 0.0
        %2046 = vmatpush2.msra.mxu0 0.0
        %2047 = vmatprep.subr.mxu0 0.0
        %2048 = vmatpush2.msra.mxu0 0.0
        %2049 = vmatprep.mubr.f32.mxu0 0.0
        %2050 = vmatmul.mubr.f32.gmra.mxu0 %v1980
        %v2051 = vpop.f32.mrf.mxu0
        %v2052 = vadd.f32 0.0, %v2051
        %v2053 = vpop.f32.mrf.mxu0
        %v2054 = vadd.f32 0.0, %v2053
        %2055 = vmatprep.mubr.f32.mxu0 0.0
        %2056 = vmatmul.mubr.f32.gmra.mxu0 %v1983
        %v2057 = vpop.f32.mrf.mxu0
        %v2058 = vadd.f32 0.0, %v2057
        %v2059 = vpop.f32.mrf.mxu0
        %v2060 = vadd.f32 0.0, %v2059
        %2061 = vdwg.mxu0
        %2062 = vmatprep.subr.mxu0 0.0
        %2063 = vmatpush1.msra.mxu0 0.0
        %2064 = vmatprep.subr.mxu0 0.0
        %2065 = vmatpush1.msra.mxu0 0.0
        %2066 = vmatprep.subr.mxu0 0.0
        %2067 = vmatpush1.msra.mxu0 0.0
        %2068 = vmatprep.subr.mxu0 0.0
        %2069 = vmatpush1.msra.mxu0 0.0
        %2070 = vmatprep.subr.mxu0 0.0
        %2071 = vmatpush1.msra.mxu0 0.0
        %2072 = vmatprep.subr.mxu0 0.0
        %2073 = vmatpush1.msra.mxu0 0.0
        %2074 = vmatprep.subr.mxu0 0.0
        %2075 = vmatpush1.msra.mxu0 0.0
        %2076 = vmatprep.subr.mxu0 0.0
        %2077 = vmatpush1.msra.mxu0 0.0
        %2078 = vmatprep.subr.mxu0 0.0
        %2079 = vmatpush1.msra.mxu0 0.0
        %2080 = vmatprep.subr.mxu0 0.0
        %2081 = vmatpush1.msra.mxu0 0.0
        %2082 = vmatprep.subr.mxu0 0.0
        %2083 = vmatpush1.msra.mxu0 0.0
        %2084 = vmatprep.subr.mxu0 0.0
        %2085 = vmatpush1.msra.mxu0 0.0
        %2086 = vmatprep.subr.mxu0 0.0
        %2087 = vmatpush1.msra.mxu0 0.0
        %2088 = vmatprep.subr.mxu0 0.0
        %2089 = vmatpush1.msra.mxu0 0.0
        %2090 = vmatprep.subr.mxu0 %v1965
        %2091 = vmatpush1.msra.mxu0 %v1964
        %2092 = vmatprep.subr.mxu0 %v1949
        %2093 = vmatpush1.msra.mxu0 %v1948
        %2094 = vmatprep.subr.mxu0 0.0
        %2095 = vmatpush2.msra.mxu0 0.0
        %2096 = vmatprep.subr.mxu0 0.0
        %2097 = vmatpush2.msra.mxu0 0.0
        %2098 = vmatprep.subr.mxu0 0.0
        %2099 = vmatpush2.msra.mxu0 0.0
        %2100 = vmatprep.subr.mxu0 0.0
        %2101 = vmatpush2.msra.mxu0 0.0
        %2102 = vmatprep.subr.mxu0 0.0
        %2103 = vmatpush2.msra.mxu0 0.0
        %2104 = vmatprep.subr.mxu0 0.0
        %2105 = vmatpush2.msra.mxu0 0.0
        %2106 = vmatprep.subr.mxu0 0.0
        %2107 = vmatpush2.msra.mxu0 0.0
        %2108 = vmatprep.subr.mxu0 0.0
        %2109 = vmatpush2.msra.mxu0 0.0
        %2110 = vmatprep.subr.mxu0 0.0
        %2111 = vmatpush2.msra.mxu0 0.0
        %2112 = vmatprep.subr.mxu0 0.0
        %2113 = vmatpush2.msra.mxu0 0.0
        %2114 = vmatprep.subr.mxu0 0.0
        %2115 = vmatpush2.msra.mxu0 0.0
        %2116 = vmatprep.subr.mxu0 0.0
        %2117 = vmatpush2.msra.mxu0 0.0
        %2118 = vmatprep.subr.mxu0 0.0
        %2119 = vmatpush2.msra.mxu0 0.0
        %2120 = vmatprep.subr.mxu0 0.0
        %2121 = vmatpush2.msra.mxu0 0.0
        %2122 = vmatprep.subr.mxu0 0.0
        %2123 = vmatpush2.msra.mxu0 0.0
        %2124 = vmatprep.subr.mxu0 0.0
        %2125 = vmatpush2.msra.mxu0 0.0
        %2126 = vmatprep.mubr.f32.mxu0 0.0
        %2127 = vmatmul.mubr.f32.gmra.mxu0 %v1980
        %v2128 = vpop.f32.mrf.mxu0
        %v2129 = vadd.f32 0.0, %v2128
        %v2130 = vpop.f32.mrf.mxu0
        %v2131 = vadd.f32 0.0, %v2130
        %2132 = vmatprep.mubr.f32.mxu0 0.0
        %2133 = vmatmul.mubr.f32.gmra.mxu0 %v1983
        %v2134 = vpop.f32.mrf.mxu0
        %v2135 = vadd.f32 0.0, %v2134
        %v2136 = vpop.f32.mrf.mxu0
        %v2137 = vadd.f32 0.0, %v2136
        %2138 = vdwg.mxu0
        %2139 = vmatprep.subr.mxu0 0.0
        %2140 = vmatpush1.msra.mxu0 0.0
        %2141 = vmatprep.subr.mxu0 0.0
        %2142 = vmatpush1.msra.mxu0 0.0
        %2143 = vmatprep.subr.mxu0 0.0
        %2144 = vmatpush1.msra.mxu0 0.0
        %2145 = vmatprep.subr.mxu0 0.0
        %2146 = vmatpush1.msra.mxu0 0.0
        %2147 = vmatprep.subr.mxu0 0.0
        %2148 = vmatpush1.msra.mxu0 0.0
        %2149 = vmatprep.subr.mxu0 0.0
        %2150 = vmatpush1.msra.mxu0 0.0
        %2151 = vmatprep.subr.mxu0 0.0
        %2152 = vmatpush1.msra.mxu0 0.0
        %2153 = vmatprep.subr.mxu0 0.0
        %2154 = vmatpush1.msra.mxu0 0.0
        %2155 = vmatprep.subr.mxu0 0.0
        %2156 = vmatpush1.msra.mxu0 0.0
        %2157 = vmatprep.subr.mxu0 0.0
        %2158 = vmatpush1.msra.mxu0 0.0
        %2159 = vmatprep.subr.mxu0 0.0
        %2160 = vmatpush1.msra.mxu0 0.0
        %2161 = vmatprep.subr.mxu0 0.0
        %2162 = vmatpush1.msra.mxu0 0.0
        %2163 = vmatprep.subr.mxu0 0.0
        %2164 = vmatpush1.msra.mxu0 0.0
        %2165 = vmatprep.subr.mxu0 0.0
        %2166 = vmatpush1.msra.mxu0 0.0
        %2167 = vmatprep.subr.mxu0 %v1967
        %2168 = vmatpush1.msra.mxu0 %v1966
        %2169 = vmatprep.subr.mxu0 %v1951
        %2170 = vmatpush1.msra.mxu0 %v1950
        %2171 = vmatprep.subr.mxu0 0.0
        %2172 = vmatpush2.msra.mxu0 0.0
        %2173 = vmatprep.subr.mxu0 0.0
        %2174 = vmatpush2.msra.mxu0 0.0
        %2175 = vmatprep.subr.mxu0 0.0
        %2176 = vmatpush2.msra.mxu0 0.0
        %2177 = vmatprep.subr.mxu0 0.0
        %2178 = vmatpush2.msra.mxu0 0.0
        %2179 = vmatprep.subr.mxu0 0.0
        %2180 = vmatpush2.msra.mxu0 0.0
        %2181 = vmatprep.subr.mxu0 0.0
        %2182 = vmatpush2.msra.mxu0 0.0
        %2183 = vmatprep.subr.mxu0 0.0
        %2184 = vmatpush2.msra.mxu0 0.0
        %2185 = vmatprep.subr.mxu0 0.0
        %2186 = vmatpush2.msra.mxu0 0.0
        %2187 = vmatprep.subr.mxu0 0.0
        %2188 = vmatpush2.msra.mxu0 0.0
        %2189 = vmatprep.subr.mxu0 0.0
        %2190 = vmatpush2.msra.mxu0 0.0
        %2191 = vmatprep.subr.mxu0 0.0
        %2192 = vmatpush2.msra.mxu0 0.0
        %2193 = vmatprep.subr.mxu0 0.0
        %2194 = vmatpush2.msra.mxu0 0.0
        %2195 = vmatprep.subr.mxu0 0.0
        %2196 = vmatpush2.msra.mxu0 0.0
        %2197 = vmatprep.subr.mxu0 0.0
        %2198 = vmatpush2.msra.mxu0 0.0
        %2199 = vmatprep.subr.mxu0 0.0
        %2200 = vmatpush2.msra.mxu0 0.0
        %2201 = vmatprep.subr.mxu0 0.0
        %2202 = vmatpush2.msra.mxu0 0.0
        %2203 = vmatprep.mubr.f32.mxu0 0.0
        %2204 = vmatmul.mubr.f32.gmra.mxu0 %v1980
        %v2205 = vpop.f32.mrf.mxu0
        %v2206 = vadd.f32 0.0, %v2205
        %v2207 = vpop.f32.mrf.mxu0
        %v2208 = vadd.f32 0.0, %v2207
        %2209 = vmatprep.mubr.f32.mxu0 0.0
        %2210 = vmatmul.mubr.f32.gmra.mxu0 %v1983
        %v2211 = vpop.f32.mrf.mxu0
        %v2212 = vadd.f32 0.0, %v2211
        %v2213 = vpop.f32.mrf.mxu0
        %v2214 = vadd.f32 0.0, %v2213
        %2215 = vdwg.mxu0
        %2216 = vmatprep.subr.mxu0 0.0
        %2217 = vmatpush1.msra.mxu0 0.0
        %2218 = vmatprep.subr.mxu0 0.0
        %2219 = vmatpush1.msra.mxu0 0.0
        %2220 = vmatprep.subr.mxu0 0.0
        %2221 = vmatpush1.msra.mxu0 0.0
        %2222 = vmatprep.subr.mxu0 0.0
        %2223 = vmatpush1.msra.mxu0 0.0
        %2224 = vmatprep.subr.mxu0 0.0
        %2225 = vmatpush1.msra.mxu0 0.0
        %2226 = vmatprep.subr.mxu0 0.0
        %2227 = vmatpush1.msra.mxu0 0.0
        %2228 = vmatprep.subr.mxu0 0.0
        %2229 = vmatpush1.msra.mxu0 0.0
        %2230 = vmatprep.subr.mxu0 0.0
        %2231 = vmatpush1.msra.mxu0 0.0
        %2232 = vmatprep.subr.mxu0 0.0
        %2233 = vmatpush1.msra.mxu0 0.0
        %2234 = vmatprep.subr.mxu0 0.0
        %2235 = vmatpush1.msra.mxu0 0.0
        %2236 = vmatprep.subr.mxu0 0.0
        %2237 = vmatpush1.msra.mxu0 0.0
        %2238 = vmatprep.subr.mxu0 0.0
        %2239 = vmatpush1.msra.mxu0 0.0
        %2240 = vmatprep.subr.mxu0 0.0
        %2241 = vmatpush1.msra.mxu0 0.0
        %2242 = vmatprep.subr.mxu0 0.0
        %2243 = vmatpush1.msra.mxu0 0.0
        %2244 = vmatprep.subr.mxu0 %v1969
        %2245 = vmatpush1.msra.mxu0 %v1968
        %2246 = vmatprep.subr.mxu0 %v1953
        %2247 = vmatpush1.msra.mxu0 %v1952
        %2248 = vmatprep.subr.mxu0 0.0
        %2249 = vmatpush2.msra.mxu0 0.0
        %2250 = vmatprep.subr.mxu0 0.0
        %2251 = vmatpush2.msra.mxu0 0.0
        %2252 = vmatprep.subr.mxu0 0.0
        %2253 = vmatpush2.msra.mxu0 0.0
        %2254 = vmatprep.subr.mxu0 0.0
        %2255 = vmatpush2.msra.mxu0 0.0
        %2256 = vmatprep.subr.mxu0 0.0
        %2257 = vmatpush2.msra.mxu0 0.0
        %2258 = vmatprep.subr.mxu0 0.0
        %2259 = vmatpush2.msra.mxu0 0.0
        %2260 = vmatprep.subr.mxu0 0.0
        %2261 = vmatpush2.msra.mxu0 0.0
        %2262 = vmatprep.subr.mxu0 0.0
        %2263 = vmatpush2.msra.mxu0 0.0
        %2264 = vmatprep.subr.mxu0 0.0
        %2265 = vmatpush2.msra.mxu0 0.0
        %2266 = vmatprep.subr.mxu0 0.0
        %2267 = vmatpush2.msra.mxu0 0.0
        %2268 = vmatprep.subr.mxu0 0.0
        %2269 = vmatpush2.msra.mxu0 0.0
        %2270 = vmatprep.subr.mxu0 0.0
        %2271 = vmatpush2.msra.mxu0 0.0
        %2272 = vmatprep.subr.mxu0 0.0
        %2273 = vmatpush2.msra.mxu0 0.0
        %2274 = vmatprep.subr.mxu0 0.0
        %2275 = vmatpush2.msra.mxu0 0.0
        %2276 = vmatprep.subr.mxu0 0.0
        %2277 = vmatpush2.msra.mxu0 0.0
        %2278 = vmatprep.subr.mxu0 0.0
        %2279 = vmatpush2.msra.mxu0 0.0
        %2280 = vmatprep.mubr.f32.mxu0 0.0
        %2281 = vmatmul.mubr.f32.gmra.mxu0 %v1980
        %v2282 = vpop.f32.mrf.mxu0
        %v2283 = vadd.f32 0.0, %v2282
        %v2284 = vpop.f32.mrf.mxu0
        %v2285 = vadd.f32 0.0, %v2284
        %2286 = vmatprep.mubr.f32.mxu0 0.0
        %2287 = vmatmul.mubr.f32.gmra.mxu0 %v1983
        %v2288 = vpop.f32.mrf.mxu0
        %v2289 = vadd.f32 0.0, %v2288
        %v2290 = vpop.f32.mrf.mxu0
        %v2291 = vadd.f32 0.0, %v2290
        %2292 = vdwg.mxu0
        %2293 = vmatprep.subr.mxu0 0.0
        %2294 = vmatpush1.msra.mxu0 0.0
        %2295 = vmatprep.subr.mxu0 0.0
        %2296 = vmatpush1.msra.mxu0 0.0
        %2297 = vmatprep.subr.mxu0 0.0
        %2298 = vmatpush1.msra.mxu0 0.0
        %2299 = vmatprep.subr.mxu0 0.0
        %2300 = vmatpush1.msra.mxu0 0.0
        %2301 = vmatprep.subr.mxu0 0.0
        %2302 = vmatpush1.msra.mxu0 0.0
        %2303 = vmatprep.subr.mxu0 0.0
        %2304 = vmatpush1.msra.mxu0 0.0
        %2305 = vmatprep.subr.mxu0 0.0
        %2306 = vmatpush1.msra.mxu0 0.0
        %2307 = vmatprep.subr.mxu0 0.0
        %2308 = vmatpush1.msra.mxu0 0.0
        %2309 = vmatprep.subr.mxu0 0.0
        %2310 = vmatpush1.msra.mxu0 0.0
        %2311 = vmatprep.subr.mxu0 0.0
        %2312 = vmatpush1.msra.mxu0 0.0
        %2313 = vmatprep.subr.mxu0 0.0
        %2314 = vmatpush1.msra.mxu0 0.0
        %2315 = vmatprep.subr.mxu0 0.0
        %2316 = vmatpush1.msra.mxu0 0.0
        %2317 = vmatprep.subr.mxu0 0.0
        %2318 = vmatpush1.msra.mxu0 0.0
        %2319 = vmatprep.subr.mxu0 0.0
        %2320 = vmatpush1.msra.mxu0 0.0
        %2321 = vmatprep.subr.mxu0 %v1971
        %2322 = vmatpush1.msra.mxu0 %v1970
        %2323 = vmatprep.subr.mxu0 %v1955
        %2324 = vmatpush1.msra.mxu0 %v1954
        %2325 = vmatprep.subr.mxu0 0.0
        %2326 = vmatpush2.msra.mxu0 0.0
        %2327 = vmatprep.subr.mxu0 0.0
        %2328 = vmatpush2.msra.mxu0 0.0
        %2329 = vmatprep.subr.mxu0 0.0
        %2330 = vmatpush2.msra.mxu0 0.0
        %2331 = vmatprep.subr.mxu0 0.0
        %2332 = vmatpush2.msra.mxu0 0.0
        %2333 = vmatprep.subr.mxu0 0.0
        %2334 = vmatpush2.msra.mxu0 0.0
        %2335 = vmatprep.subr.mxu0 0.0
        %2336 = vmatpush2.msra.mxu0 0.0
        %2337 = vmatprep.subr.mxu0 0.0
        %2338 = vmatpush2.msra.mxu0 0.0
        %2339 = vmatprep.subr.mxu0 0.0
        %2340 = vmatpush2.msra.mxu0 0.0
        %2341 = vmatprep.subr.mxu0 0.0
        %2342 = vmatpush2.msra.mxu0 0.0
        %2343 = vmatprep.subr.mxu0 0.0
        %2344 = vmatpush2.msra.mxu0 0.0
        %2345 = vmatprep.subr.mxu0 0.0
        %2346 = vmatpush2.msra.mxu0 0.0
        %2347 = vmatprep.subr.mxu0 0.0
        %2348 = vmatpush2.msra.mxu0 0.0
        %2349 = vmatprep.subr.mxu0 0.0
        %2350 = vmatpush2.msra.mxu0 0.0
        %2351 = vmatprep.subr.mxu0 0.0
        %2352 = vmatpush2.msra.mxu0 0.0
        %2353 = vmatprep.subr.mxu0 0.0
        %2354 = vmatpush2.msra.mxu0 0.0
        %2355 = vmatprep.subr.mxu0 0.0
        %2356 = vmatpush2.msra.mxu0 0.0
        %2357 = vmatprep.mubr.f32.mxu0 0.0
        %2358 = vmatmul.mubr.f32.gmra.mxu0 %v1980
        %v2359 = vpop.f32.mrf.mxu0
        %v2360 = vadd.f32 0.0, %v2359
        %v2361 = vpop.f32.mrf.mxu0
        %v2362 = vadd.f32 0.0, %v2361
        %2363 = vmatprep.mubr.f32.mxu0 0.0
        %2364 = vmatmul.mubr.f32.gmra.mxu0 %v1983
        %v2365 = vpop.f32.mrf.mxu0
        %v2366 = vadd.f32 0.0, %v2365
        %v2367 = vpop.f32.mrf.mxu0
        %v2368 = vadd.f32 0.0, %v2367
        %2369 = vdwg.mxu0
        %2370 = vmatprep.subr.mxu0 0.0
        %2371 = vmatpush1.msra.mxu0 0.0
        %2372 = vmatprep.subr.mxu0 0.0
        %2373 = vmatpush1.msra.mxu0 0.0
        %2374 = vmatprep.subr.mxu0 0.0
        %2375 = vmatpush1.msra.mxu0 0.0
        %2376 = vmatprep.subr.mxu0 0.0
        %2377 = vmatpush1.msra.mxu0 0.0
        %2378 = vmatprep.subr.mxu0 0.0
        %2379 = vmatpush1.msra.mxu0 0.0
        %2380 = vmatprep.subr.mxu0 0.0
        %2381 = vmatpush1.msra.mxu0 0.0
        %2382 = vmatprep.subr.mxu0 0.0
        %2383 = vmatpush1.msra.mxu0 0.0
        %2384 = vmatprep.subr.mxu0 0.0
        %2385 = vmatpush1.msra.mxu0 0.0
        %2386 = vmatprep.subr.mxu0 0.0
        %2387 = vmatpush1.msra.mxu0 0.0
        %2388 = vmatprep.subr.mxu0 0.0
        %2389 = vmatpush1.msra.mxu0 0.0
        %2390 = vmatprep.subr.mxu0 0.0
        %2391 = vmatpush1.msra.mxu0 0.0
        %2392 = vmatprep.subr.mxu0 0.0
        %2393 = vmatpush1.msra.mxu0 0.0
        %2394 = vmatprep.subr.mxu0 0.0
        %2395 = vmatpush1.msra.mxu0 0.0
        %2396 = vmatprep.subr.mxu0 0.0
        %2397 = vmatpush1.msra.mxu0 0.0
        %2398 = vmatprep.subr.mxu0 %v1973
        %2399 = vmatpush1.msra.mxu0 %v1972
        %2400 = vmatprep.subr.mxu0 %v1957
        %2401 = vmatpush1.msra.mxu0 %v1956
        %2402 = vmatprep.subr.mxu0 0.0
        %2403 = vmatpush2.msra.mxu0 0.0
        %2404 = vmatprep.subr.mxu0 0.0
        %2405 = vmatpush2.msra.mxu0 0.0
        %2406 = vmatprep.subr.mxu0 0.0
        %2407 = vmatpush2.msra.mxu0 0.0
        %2408 = vmatprep.subr.mxu0 0.0
        %2409 = vmatpush2.msra.mxu0 0.0
        %2410 = vmatprep.subr.mxu0 0.0
        %2411 = vmatpush2.msra.mxu0 0.0
        %2412 = vmatprep.subr.mxu0 0.0
        %2413 = vmatpush2.msra.mxu0 0.0
        %2414 = vmatprep.subr.mxu0 0.0
        %2415 = vmatpush2.msra.mxu0 0.0
        %2416 = vmatprep.subr.mxu0 0.0
        %2417 = vmatpush2.msra.mxu0 0.0
        %2418 = vmatprep.subr.mxu0 0.0
        %2419 = vmatpush2.msra.mxu0 0.0
        %2420 = vmatprep.subr.mxu0 0.0
        %2421 = vmatpush2.msra.mxu0 0.0
        %2422 = vmatprep.subr.mxu0 0.0
        %2423 = vmatpush2.msra.mxu0 0.0
        %2424 = vmatprep.subr.mxu0 0.0
        %2425 = vmatpush2.msra.mxu0 0.0
        %2426 = vmatprep.subr.mxu0 0.0
        %2427 = vmatpush2.msra.mxu0 0.0
        %2428 = vmatprep.subr.mxu0 0.0
        %2429 = vmatpush2.msra.mxu0 0.0
        %2430 = vmatprep.subr.mxu0 0.0
        %2431 = vmatpush2.msra.mxu0 0.0
        %2432 = vmatprep.subr.mxu0 0.0
        %2433 = vmatpush2.msra.mxu0 0.0
        %2434 = vmatprep.mubr.f32.mxu0 0.0
        %2435 = vmatmul.mubr.f32.gmra.mxu0 %v1980
        %v2436 = vpop.f32.mrf.mxu0
        %v2437 = vadd.f32 0.0, %v2436
        %v2438 = vpop.f32.mrf.mxu0
        %v2439 = vadd.f32 0.0, %v2438
        %2440 = vmatprep.mubr.f32.mxu0 0.0
        %2441 = vmatmul.mubr.f32.gmra.mxu0 %v1983
        %v2442 = vpop.f32.mrf.mxu0
        %v2443 = vadd.f32 0.0, %v2442
        %v2444 = vpop.f32.mrf.mxu0
        %v2445 = vadd.f32 0.0, %v2444
        %2446 = vdwg.mxu0
        %2447 = vmatprep.subr.mxu0 0.0
        %2448 = vmatpush1.msra.mxu0 0.0
        %2449 = vmatprep.subr.mxu0 0.0
        %2450 = vmatpush1.msra.mxu0 0.0
        %2451 = vmatprep.subr.mxu0 0.0
        %2452 = vmatpush1.msra.mxu0 0.0
        %2453 = vmatprep.subr.mxu0 0.0
        %2454 = vmatpush1.msra.mxu0 0.0
        %2455 = vmatprep.subr.mxu0 0.0
        %2456 = vmatpush1.msra.mxu0 0.0
        %2457 = vmatprep.subr.mxu0 0.0
        %2458 = vmatpush1.msra.mxu0 0.0
        %2459 = vmatprep.subr.mxu0 0.0
        %2460 = vmatpush1.msra.mxu0 0.0
        %2461 = vmatprep.subr.mxu0 0.0
        %2462 = vmatpush1.msra.mxu0 0.0
        %2463 = vmatprep.subr.mxu0 0.0
        %2464 = vmatpush1.msra.mxu0 0.0
        %2465 = vmatprep.subr.mxu0 0.0
        %2466 = vmatpush1.msra.mxu0 0.0
        %2467 = vmatprep.subr.mxu0 0.0
        %2468 = vmatpush1.msra.mxu0 0.0
        %2469 = vmatprep.subr.mxu0 0.0
        %2470 = vmatpush1.msra.mxu0 0.0
        %2471 = vmatprep.subr.mxu0 0.0
        %2472 = vmatpush1.msra.mxu0 0.0
        %2473 = vmatprep.subr.mxu0 0.0
        %2474 = vmatpush1.msra.mxu0 0.0
        %2475 = vmatprep.subr.mxu0 %v1975
        %2476 = vmatpush1.msra.mxu0 %v1974
        %2477 = vmatprep.subr.mxu0 %v1959
        %2478 = vmatpush1.msra.mxu0 %v1958
        %2479 = vmatprep.subr.mxu0 0.0
        %2480 = vmatpush2.msra.mxu0 0.0
        %2481 = vmatprep.subr.mxu0 0.0
        %2482 = vmatpush2.msra.mxu0 0.0
        %2483 = vmatprep.subr.mxu0 0.0
        %2484 = vmatpush2.msra.mxu0 0.0
        %2485 = vmatprep.subr.mxu0 0.0
        %2486 = vmatpush2.msra.mxu0 0.0
        %2487 = vmatprep.subr.mxu0 0.0
        %2488 = vmatpush2.msra.mxu0 0.0
        %2489 = vmatprep.subr.mxu0 0.0
        %2490 = vmatpush2.msra.mxu0 0.0
        %2491 = vmatprep.subr.mxu0 0.0
        %2492 = vmatpush2.msra.mxu0 0.0
        %2493 = vmatprep.subr.mxu0 0.0
        %2494 = vmatpush2.msra.mxu0 0.0
        %2495 = vmatprep.subr.mxu0 0.0
        %2496 = vmatpush2.msra.mxu0 0.0
        %2497 = vmatprep.subr.mxu0 0.0
        %2498 = vmatpush2.msra.mxu0 0.0
        %2499 = vmatprep.subr.mxu0 0.0
        %2500 = vmatpush2.msra.mxu0 0.0
        %2501 = vmatprep.subr.mxu0 0.0
        %2502 = vmatpush2.msra.mxu0 0.0
        %2503 = vmatprep.subr.mxu0 0.0
        %2504 = vmatpush2.msra.mxu0 0.0
        %2505 = vmatprep.subr.mxu0 0.0
        %2506 = vmatpush2.msra.mxu0 0.0
        %2507 = vmatprep.subr.mxu0 0.0
        %2508 = vmatpush2.msra.mxu0 0.0
        %2509 = vmatprep.subr.mxu0 0.0
        %2510 = vmatpush2.msra.mxu0 0.0
        %2511 = vmatprep.mubr.f32.mxu0 0.0
        %2512 = vmatmul.mubr.f32.gmra.mxu0 %v1980
        %v2513 = vpop.f32.mrf.mxu0
        %v2514 = vadd.f32 0.0, %v2513
        %v2515 = vpop.f32.mrf.mxu0
        %v2516 = vadd.f32 0.0, %v2515
        %2517 = vmatprep.mubr.f32.mxu0 0.0
        %2518 = vmatmul.mubr.f32.gmra.mxu0 %v1983
        %v2519 = vpop.f32.mrf.mxu0
        %v2520 = vadd.f32 0.0, %v2519
        %v2521 = vpop.f32.mrf.mxu0
        %v2522 = vadd.f32 0.0, %v2521
        %2523 = vdwg.mxu0
        %2524 = vmatprep.subr.mxu0 0.0
        %2525 = vmatpush1.msra.mxu0 0.0
        %2526 = vmatprep.subr.mxu0 0.0
        %2527 = vmatpush1.msra.mxu0 0.0
        %2528 = vmatprep.subr.mxu0 0.0
        %2529 = vmatpush1.msra.mxu0 0.0
        %2530 = vmatprep.subr.mxu0 0.0
        %2531 = vmatpush1.msra.mxu0 0.0
        %2532 = vmatprep.subr.mxu0 0.0
        %2533 = vmatpush1.msra.mxu0 0.0
        %2534 = vmatprep.subr.mxu0 0.0
        %2535 = vmatpush1.msra.mxu0 0.0
        %2536 = vmatprep.subr.mxu0 0.0
        %2537 = vmatpush1.msra.mxu0 0.0
        %2538 = vmatprep.subr.mxu0 0.0
        %2539 = vmatpush1.msra.mxu0 0.0
        %2540 = vmatprep.subr.mxu0 0.0
        %2541 = vmatpush1.msra.mxu0 0.0
        %2542 = vmatprep.subr.mxu0 0.0
        %2543 = vmatpush1.msra.mxu0 0.0
        %2544 = vmatprep.subr.mxu0 0.0
        %2545 = vmatpush1.msra.mxu0 0.0
        %2546 = vmatprep.subr.mxu0 0.0
        %2547 = vmatpush1.msra.mxu0 0.0
        %2548 = vmatprep.subr.mxu0 0.0
        %2549 = vmatpush1.msra.mxu0 0.0
        %2550 = vmatprep.subr.mxu0 0.0
        %2551 = vmatpush1.msra.mxu0 0.0
        %2552 = vmatprep.subr.mxu0 %v1977
        %2553 = vmatpush1.msra.mxu0 %v1976
        %2554 = vmatprep.subr.mxu0 %v1961
        %2555 = vmatpush1.msra.mxu0 %v1960
        %2556 = vmatprep.subr.mxu0 0.0
        %2557 = vmatpush2.msra.mxu0 0.0
        %2558 = vmatprep.subr.mxu0 0.0
        %2559 = vmatpush2.msra.mxu0 0.0
        %2560 = vmatprep.subr.mxu0 0.0
        %2561 = vmatpush2.msra.mxu0 0.0
        %2562 = vmatprep.subr.mxu0 0.0
        %2563 = vmatpush2.msra.mxu0 0.0
        %2564 = vmatprep.subr.mxu0 0.0
        %2565 = vmatpush2.msra.mxu0 0.0
        %2566 = vmatprep.subr.mxu0 0.0
        %2567 = vmatpush2.msra.mxu0 0.0
        %2568 = vmatprep.subr.mxu0 0.0
        %2569 = vmatpush2.msra.mxu0 0.0
        %2570 = vmatprep.subr.mxu0 0.0
        %2571 = vmatpush2.msra.mxu0 0.0
        %2572 = vmatprep.subr.mxu0 0.0
        %2573 = vmatpush2.msra.mxu0 0.0
        %2574 = vmatprep.subr.mxu0 0.0
        %2575 = vmatpush2.msra.mxu0 0.0
        %2576 = vmatprep.subr.mxu0 0.0
        %2577 = vmatpush2.msra.mxu0 0.0
        %2578 = vmatprep.subr.mxu0 0.0
        %2579 = vmatpush2.msra.mxu0 0.0
        %2580 = vmatprep.subr.mxu0 0.0
        %2581 = vmatpush2.msra.mxu0 0.0
        %2582 = vmatprep.subr.mxu0 0.0
        %2583 = vmatpush2.msra.mxu0 0.0
        %2584 = vmatprep.subr.mxu0 0.0
        %2585 = vmatpush2.msra.mxu0 0.0
        %2586 = vmatprep.subr.mxu0 0.0
        %2587 = vmatpush2.msra.mxu0 0.0
        %2588 = vmatprep.mubr.f32.mxu0 0.0
        %2589 = vmatmul.mubr.f32.gmra.mxu0 %v1980
        %v2590 = vpop.f32.mrf.mxu0
        %v2591 = vadd.f32 0.0, %v2590
        %v2592 = vpop.f32.mrf.mxu0
        %v2593 = vadd.f32 0.0, %v2592
        %2594 = vmatprep.mubr.f32.mxu0 0.0
        %2595 = vmatmul.mubr.f32.gmra.mxu0 %v1983
        %v2596 = vpop.f32.mrf.mxu0
        %v2597 = vadd.f32 0.0, %v2596
        %v2598 = vpop.f32.mrf.mxu0
        %v2599 = vadd.f32 0.0, %v2598
        %2600 = vdwg.mxu0
        %v2602 = vsel %vm1978, %v1944, 0
        %v2605 = vsel %vm1978, %v1945, 0
        %2607 = vmatprep.subr.mxu0 0.0
        %2608 = vmatpush1.msra.mxu0 0.0
        %2609 = vmatprep.subr.mxu0 0.0
        %2610 = vmatpush1.msra.mxu0 0.0
        %2611 = vmatprep.subr.mxu0 0.0
        %2612 = vmatpush1.msra.mxu0 0.0
        %2613 = vmatprep.subr.mxu0 0.0
        %2614 = vmatpush1.msra.mxu0 0.0
        %2615 = vmatprep.subr.mxu0 0.0
        %2616 = vmatpush1.msra.mxu0 0.0
        %2617 = vmatprep.subr.mxu0 0.0
        %2618 = vmatpush1.msra.mxu0 0.0
        %2619 = vmatprep.subr.mxu0 0.0
        %2620 = vmatpush1.msra.mxu0 0.0
        %2621 = vmatprep.subr.mxu0 0.0
        %2622 = vmatpush1.msra.mxu0 0.0
        %2623 = vmatprep.subr.mxu0 0.0
        %2624 = vmatpush1.msra.mxu0 0.0
        %2625 = vmatprep.subr.mxu0 0.0
        %2626 = vmatpush1.msra.mxu0 0.0
        %2627 = vmatprep.subr.mxu0 0.0
        %2628 = vmatpush1.msra.mxu0 0.0
        %2629 = vmatprep.subr.mxu0 0.0
        %2630 = vmatpush1.msra.mxu0 0.0
        %2631 = vmatprep.subr.mxu0 0.0
        %2632 = vmatpush1.msra.mxu0 0.0
        %2633 = vmatprep.subr.mxu0 0.0
        %2634 = vmatpush1.msra.mxu0 0.0
        %2635 = vmatprep.subr.mxu0 %v1963
        %2636 = vmatpush1.msra.mxu0 %v1962
        %2637 = vmatprep.subr.mxu0 %v1947
        %2638 = vmatpush1.msra.mxu0 %v1946
        %2639 = vmatprep.subr.mxu0 0.0
        %2640 = vmatpush2.msra.mxu0 0.0
        %2641 = vmatprep.subr.mxu0 0.0
        %2642 = vmatpush2.msra.mxu0 0.0
        %2643 = vmatprep.subr.mxu0 0.0
        %2644 = vmatpush2.msra.mxu0 0.0
        %2645 = vmatprep.subr.mxu0 0.0
        %2646 = vmatpush2.msra.mxu0 0.0
        %2647 = vmatprep.subr.mxu0 0.0
        %2648 = vmatpush2.msra.mxu0 0.0
        %2649 = vmatprep.subr.mxu0 0.0
        %2650 = vmatpush2.msra.mxu0 0.0
        %2651 = vmatprep.subr.mxu0 0.0
        %2652 = vmatpush2.msra.mxu0 0.0
        %2653 = vmatprep.subr.mxu0 0.0
        %2654 = vmatpush2.msra.mxu0 0.0
        %2655 = vmatprep.subr.mxu0 0.0
        %2656 = vmatpush2.msra.mxu0 0.0
        %2657 = vmatprep.subr.mxu0 0.0
        %2658 = vmatpush2.msra.mxu0 0.0
        %2659 = vmatprep.subr.mxu0 0.0
        %2660 = vmatpush2.msra.mxu0 0.0
        %2661 = vmatprep.subr.mxu0 0.0
        %2662 = vmatpush2.msra.mxu0 0.0
        %2663 = vmatprep.subr.mxu0 0.0
        %2664 = vmatpush2.msra.mxu0 0.0
        %2665 = vmatprep.subr.mxu0 0.0
        %2666 = vmatpush2.msra.mxu0 0.0
        %2667 = vmatprep.subr.mxu0 0.0
        %2668 = vmatpush2.msra.mxu0 0.0
        %2669 = vmatprep.subr.mxu0 0.0
        %2670 = vmatpush2.msra.mxu0 0.0
        %2671 = vmatprep.mubr.f32.mxu0 0.0
        %2672 = vmatmul.mubr.f32.gmra.mxu0 %v2602
        %v2673 = vpop.f32.mrf.mxu0
        %v2674 = vadd.f32 0.0, %v2673
        %v2675 = vpop.f32.mrf.mxu0
        %v2676 = vadd.f32 0.0, %v2675
        %2677 = vmatprep.mubr.f32.mxu0 0.0
        %2678 = vmatmul.mubr.f32.gmra.mxu0 %v2605
        %v2679 = vpop.f32.mrf.mxu0
        %v2680 = vadd.f32 0.0, %v2679
        %v2681 = vpop.f32.mrf.mxu0
        %v2682 = vadd.f32 0.0, %v2681
        %2683 = vdwg.mxu0
        %2684 = vmatprep.subr.mxu0 0.0
        %2685 = vmatpush1.msra.mxu0 0.0
        %2686 = vmatprep.subr.mxu0 0.0
        %2687 = vmatpush1.msra.mxu0 0.0
        %2688 = vmatprep.subr.mxu0 0.0
        %2689 = vmatpush1.msra.mxu0 0.0
        %2690 = vmatprep.subr.mxu0 0.0
        %2691 = vmatpush1.msra.mxu0 0.0
        %2692 = vmatprep.subr.mxu0 0.0
        %2693 = vmatpush1.msra.mxu0 0.0
        %2694 = vmatprep.subr.mxu0 0.0
        %2695 = vmatpush1.msra.mxu0 0.0
        %2696 = vmatprep.subr.mxu0 0.0
        %2697 = vmatpush1.msra.mxu0 0.0
        %2698 = vmatprep.subr.mxu0 0.0
        %2699 = vmatpush1.msra.mxu0 0.0
        %2700 = vmatprep.subr.mxu0 0.0
        %2701 = vmatpush1.msra.mxu0 0.0
        %2702 = vmatprep.subr.mxu0 0.0
        %2703 = vmatpush1.msra.mxu0 0.0
        %2704 = vmatprep.subr.mxu0 0.0
        %2705 = vmatpush1.msra.mxu0 0.0
        %2706 = vmatprep.subr.mxu0 0.0
        %2707 = vmatpush1.msra.mxu0 0.0
        %2708 = vmatprep.subr.mxu0 0.0
        %2709 = vmatpush1.msra.mxu0 0.0
        %2710 = vmatprep.subr.mxu0 0.0
        %2711 = vmatpush1.msra.mxu0 0.0
        %2712 = vmatprep.subr.mxu0 %v1965
        %2713 = vmatpush1.msra.mxu0 %v1964
        %2714 = vmatprep.subr.mxu0 %v1949
        %2715 = vmatpush1.msra.mxu0 %v1948
        %2716 = vmatprep.subr.mxu0 0.0
        %2717 = vmatpush2.msra.mxu0 0.0
        %2718 = vmatprep.subr.mxu0 0.0
        %2719 = vmatpush2.msra.mxu0 0.0
        %2720 = vmatprep.subr.mxu0 0.0
        %2721 = vmatpush2.msra.mxu0 0.0
        %2722 = vmatprep.subr.mxu0 0.0
        %2723 = vmatpush2.msra.mxu0 0.0
        %2724 = vmatprep.subr.mxu0 0.0
        %2725 = vmatpush2.msra.mxu0 0.0
        %2726 = vmatprep.subr.mxu0 0.0
        %2727 = vmatpush2.msra.mxu0 0.0
        %2728 = vmatprep.subr.mxu0 0.0
        %2729 = vmatpush2.msra.mxu0 0.0
        %2730 = vmatprep.subr.mxu0 0.0
        %2731 = vmatpush2.msra.mxu0 0.0
        %2732 = vmatprep.subr.mxu0 0.0
        %2733 = vmatpush2.msra.mxu0 0.0
        %2734 = vmatprep.subr.mxu0 0.0
        %2735 = vmatpush2.msra.mxu0 0.0
        %2736 = vmatprep.subr.mxu0 0.0
        %2737 = vmatpush2.msra.mxu0 0.0
        %2738 = vmatprep.subr.mxu0 0.0
        %2739 = vmatpush2.msra.mxu0 0.0
        %2740 = vmatprep.subr.mxu0 0.0
        %2741 = vmatpush2.msra.mxu0 0.0
        %2742 = vmatprep.subr.mxu0 0.0
        %2743 = vmatpush2.msra.mxu0 0.0
        %2744 = vmatprep.subr.mxu0 0.0
        %2745 = vmatpush2.msra.mxu0 0.0
        %2746 = vmatprep.subr.mxu0 0.0
        %2747 = vmatpush2.msra.mxu0 0.0
        %2748 = vmatprep.mubr.f32.mxu0 0.0
        %2749 = vmatmul.mubr.f32.gmra.mxu0 %v2602
        %v2750 = vpop.f32.mrf.mxu0
        %v2751 = vadd.f32 0.0, %v2750
        %v2752 = vpop.f32.mrf.mxu0
        %v2753 = vadd.f32 0.0, %v2752
        %2754 = vmatprep.mubr.f32.mxu0 0.0
        %2755 = vmatmul.mubr.f32.gmra.mxu0 %v2605
        %v2756 = vpop.f32.mrf.mxu0
        %v2757 = vadd.f32 0.0, %v2756
        %v2758 = vpop.f32.mrf.mxu0
        %v2759 = vadd.f32 0.0, %v2758
        %2760 = vdwg.mxu0
        %2761 = vmatprep.subr.mxu0 0.0
        %2762 = vmatpush1.msra.mxu0 0.0
        %2763 = vmatprep.subr.mxu0 0.0
        %2764 = vmatpush1.msra.mxu0 0.0
        %2765 = vmatprep.subr.mxu0 0.0
        %2766 = vmatpush1.msra.mxu0 0.0
        %2767 = vmatprep.subr.mxu0 0.0
        %2768 = vmatpush1.msra.mxu0 0.0
        %2769 = vmatprep.subr.mxu0 0.0
        %2770 = vmatpush1.msra.mxu0 0.0
        %2771 = vmatprep.subr.mxu0 0.0
        %2772 = vmatpush1.msra.mxu0 0.0
        %2773 = vmatprep.subr.mxu0 0.0
        %2774 = vmatpush1.msra.mxu0 0.0
        %2775 = vmatprep.subr.mxu0 0.0
        %2776 = vmatpush1.msra.mxu0 0.0
        %2777 = vmatprep.subr.mxu0 0.0
        %2778 = vmatpush1.msra.mxu0 0.0
        %2779 = vmatprep.subr.mxu0 0.0
        %2780 = vmatpush1.msra.mxu0 0.0
        %2781 = vmatprep.subr.mxu0 0.0
        %2782 = vmatpush1.msra.mxu0 0.0
        %2783 = vmatprep.subr.mxu0 0.0
        %2784 = vmatpush1.msra.mxu0 0.0
        %2785 = vmatprep.subr.mxu0 0.0
        %2786 = vmatpush1.msra.mxu0 0.0
        %2787 = vmatprep.subr.mxu0 0.0
        %2788 = vmatpush1.msra.mxu0 0.0
        %2789 = vmatprep.subr.mxu0 %v1967
        %2790 = vmatpush1.msra.mxu0 %v1966
        %2791 = vmatprep.subr.mxu0 %v1951
        %2792 = vmatpush1.msra.mxu0 %v1950
        %2793 = vmatprep.subr.mxu0 0.0
        %2794 = vmatpush2.msra.mxu0 0.0
        %2795 = vmatprep.subr.mxu0 0.0
        %2796 = vmatpush2.msra.mxu0 0.0
        %2797 = vmatprep.subr.mxu0 0.0
        %2798 = vmatpush2.msra.mxu0 0.0
        %2799 = vmatprep.subr.mxu0 0.0
        %2800 = vmatpush2.msra.mxu0 0.0
        %2801 = vmatprep.subr.mxu0 0.0
        %2802 = vmatpush2.msra.mxu0 0.0
        %2803 = vmatprep.subr.mxu0 0.0
        %2804 = vmatpush2.msra.mxu0 0.0
        %2805 = vmatprep.subr.mxu0 0.0
        %2806 = vmatpush2.msra.mxu0 0.0
        %2807 = vmatprep.subr.mxu0 0.0
        %2808 = vmatpush2.msra.mxu0 0.0
        %2809 = vmatprep.subr.mxu0 0.0
        %2810 = vmatpush2.msra.mxu0 0.0
        %2811 = vmatprep.subr.mxu0 0.0
        %2812 = vmatpush2.msra.mxu0 0.0
        %2813 = vmatprep.subr.mxu0 0.0
        %2814 = vmatpush2.msra.mxu0 0.0
        %2815 = vmatprep.subr.mxu0 0.0
        %2816 = vmatpush2.msra.mxu0 0.0
        %2817 = vmatprep.subr.mxu0 0.0
        %2818 = vmatpush2.msra.mxu0 0.0
        %2819 = vmatprep.subr.mxu0 0.0
        %2820 = vmatpush2.msra.mxu0 0.0
        %2821 = vmatprep.subr.mxu0 0.0
        %2822 = vmatpush2.msra.mxu0 0.0
        %2823 = vmatprep.subr.mxu0 0.0
        %2824 = vmatpush2.msra.mxu0 0.0
        %2825 = vmatprep.mubr.f32.mxu0 0.0
        %2826 = vmatmul.mubr.f32.gmra.mxu0 %v2602
        %v2827 = vpop.f32.mrf.mxu0
        %v2828 = vadd.f32 0.0, %v2827
        %v2829 = vpop.f32.mrf.mxu0
        %v2830 = vadd.f32 0.0, %v2829
        %2831 = vmatprep.mubr.f32.mxu0 0.0
        %2832 = vmatmul.mubr.f32.gmra.mxu0 %v2605
        %v2833 = vpop.f32.mrf.mxu0
        %v2834 = vadd.f32 0.0, %v2833
        %v2835 = vpop.f32.mrf.mxu0
        %v2836 = vadd.f32 0.0, %v2835
        %2837 = vdwg.mxu0
        %2838 = vmatprep.subr.mxu0 0.0
        %2839 = vmatpush1.msra.mxu0 0.0
        %2840 = vmatprep.subr.mxu0 0.0
        %2841 = vmatpush1.msra.mxu0 0.0
        %2842 = vmatprep.subr.mxu0 0.0
        %2843 = vmatpush1.msra.mxu0 0.0
        %2844 = vmatprep.subr.mxu0 0.0
        %2845 = vmatpush1.msra.mxu0 0.0
        %2846 = vmatprep.subr.mxu0 0.0
        %2847 = vmatpush1.msra.mxu0 0.0
        %2848 = vmatprep.subr.mxu0 0.0
        %2849 = vmatpush1.msra.mxu0 0.0
        %2850 = vmatprep.subr.mxu0 0.0
        %2851 = vmatpush1.msra.mxu0 0.0
        %2852 = vmatprep.subr.mxu0 0.0
        %2853 = vmatpush1.msra.mxu0 0.0
        %2854 = vmatprep.subr.mxu0 0.0
        %2855 = vmatpush1.msra.mxu0 0.0
        %2856 = vmatprep.subr.mxu0 0.0
        %2857 = vmatpush1.msra.mxu0 0.0
        %2858 = vmatprep.subr.mxu0 0.0
        %2859 = vmatpush1.msra.mxu0 0.0
        %2860 = vmatprep.subr.mxu0 0.0
        %2861 = vmatpush1.msra.mxu0 0.0
        %2862 = vmatprep.subr.mxu0 0.0
        %2863 = vmatpush1.msra.mxu0 0.0
        %2864 = vmatprep.subr.mxu0 0.0
        %2865 = vmatpush1.msra.mxu0 0.0
        %2866 = vmatprep.subr.mxu0 %v1969
        %2867 = vmatpush1.msra.mxu0 %v1968
        %2868 = vmatprep.subr.mxu0 %v1953
        %2869 = vmatpush1.msra.mxu0 %v1952
        %2870 = vmatprep.subr.mxu0 0.0
        %2871 = vmatpush2.msra.mxu0 0.0
        %2872 = vmatprep.subr.mxu0 0.0
        %2873 = vmatpush2.msra.mxu0 0.0
        %2874 = vmatprep.subr.mxu0 0.0
        %2875 = vmatpush2.msra.mxu0 0.0
        %2876 = vmatprep.subr.mxu0 0.0
        %2877 = vmatpush2.msra.mxu0 0.0
        %2878 = vmatprep.subr.mxu0 0.0
        %2879 = vmatpush2.msra.mxu0 0.0
        %2880 = vmatprep.subr.mxu0 0.0
        %2881 = vmatpush2.msra.mxu0 0.0
        %2882 = vmatprep.subr.mxu0 0.0
        %2883 = vmatpush2.msra.mxu0 0.0
        %2884 = vmatprep.subr.mxu0 0.0
        %2885 = vmatpush2.msra.mxu0 0.0
        %2886 = vmatprep.subr.mxu0 0.0
        %2887 = vmatpush2.msra.mxu0 0.0
        %2888 = vmatprep.subr.mxu0 0.0
        %2889 = vmatpush2.msra.mxu0 0.0
        %2890 = vmatprep.subr.mxu0 0.0
        %2891 = vmatpush2.msra.mxu0 0.0
        %2892 = vmatprep.subr.mxu0 0.0
        %2893 = vmatpush2.msra.mxu0 0.0
        %2894 = vmatprep.subr.mxu0 0.0
        %2895 = vmatpush2.msra.mxu0 0.0
        %2896 = vmatprep.subr.mxu0 0.0
        %2897 = vmatpush2.msra.mxu0 0.0
        %2898 = vmatprep.subr.mxu0 0.0
        %2899 = vmatpush2.msra.mxu0 0.0
        %2900 = vmatprep.subr.mxu0 0.0
        %2901 = vmatpush2.msra.mxu0 0.0
        %2902 = vmatprep.mubr.f32.mxu0 0.0
        %2903 = vmatmul.mubr.f32.gmra.mxu0 %v2602
        %v2904 = vpop.f32.mrf.mxu0
        %v2905 = vadd.f32 0.0, %v2904
        %v2906 = vpop.f32.mrf.mxu0
        %v2907 = vadd.f32 0.0, %v2906
        %2908 = vmatprep.mubr.f32.mxu0 0.0
        %2909 = vmatmul.mubr.f32.gmra.mxu0 %v2605
        %v2910 = vpop.f32.mrf.mxu0
        %v2911 = vadd.f32 0.0, %v2910
        %v2912 = vpop.f32.mrf.mxu0
        %v2913 = vadd.f32 0.0, %v2912
        %2914 = vdwg.mxu0
        %2915 = vmatprep.subr.mxu0 0.0
        %2916 = vmatpush1.msra.mxu0 0.0
        %2917 = vmatprep.subr.mxu0 0.0
        %2918 = vmatpush1.msra.mxu0 0.0
        %2919 = vmatprep.subr.mxu0 0.0
        %2920 = vmatpush1.msra.mxu0 0.0
        %2921 = vmatprep.subr.mxu0 0.0
        %2922 = vmatpush1.msra.mxu0 0.0
        %2923 = vmatprep.subr.mxu0 0.0
        %2924 = vmatpush1.msra.mxu0 0.0
        %2925 = vmatprep.subr.mxu0 0.0
        %2926 = vmatpush1.msra.mxu0 0.0
        %2927 = vmatprep.subr.mxu0 0.0
        %2928 = vmatpush1.msra.mxu0 0.0
        %2929 = vmatprep.subr.mxu0 0.0
        %2930 = vmatpush1.msra.mxu0 0.0
        %2931 = vmatprep.subr.mxu0 0.0
        %2932 = vmatpush1.msra.mxu0 0.0
        %2933 = vmatprep.subr.mxu0 0.0
        %2934 = vmatpush1.msra.mxu0 0.0
        %2935 = vmatprep.subr.mxu0 0.0
        %2936 = vmatpush1.msra.mxu0 0.0
        %2937 = vmatprep.subr.mxu0 0.0
        %2938 = vmatpush1.msra.mxu0 0.0
        %2939 = vmatprep.subr.mxu0 0.0
        %2940 = vmatpush1.msra.mxu0 0.0
        %2941 = vmatprep.subr.mxu0 0.0
        %2942 = vmatpush1.msra.mxu0 0.0
        %2943 = vmatprep.subr.mxu0 %v1971
        %2944 = vmatpush1.msra.mxu0 %v1970
        %2945 = vmatprep.subr.mxu0 %v1955
        %2946 = vmatpush1.msra.mxu0 %v1954
        %2947 = vmatprep.subr.mxu0 0.0
        %2948 = vmatpush2.msra.mxu0 0.0
        %2949 = vmatprep.subr.mxu0 0.0
        %2950 = vmatpush2.msra.mxu0 0.0
        %2951 = vmatprep.subr.mxu0 0.0
        %2952 = vmatpush2.msra.mxu0 0.0
        %2953 = vmatprep.subr.mxu0 0.0
        %2954 = vmatpush2.msra.mxu0 0.0
        %2955 = vmatprep.subr.mxu0 0.0
        %2956 = vmatpush2.msra.mxu0 0.0
        %2957 = vmatprep.subr.mxu0 0.0
        %2958 = vmatpush2.msra.mxu0 0.0
        %2959 = vmatprep.subr.mxu0 0.0
        %2960 = vmatpush2.msra.mxu0 0.0
        %2961 = vmatprep.subr.mxu0 0.0
        %2962 = vmatpush2.msra.mxu0 0.0
        %2963 = vmatprep.subr.mxu0 0.0
        %2964 = vmatpush2.msra.mxu0 0.0
        %2965 = vmatprep.subr.mxu0 0.0
        %2966 = vmatpush2.msra.mxu0 0.0
        %2967 = vmatprep.subr.mxu0 0.0
        %2968 = vmatpush2.msra.mxu0 0.0
        %2969 = vmatprep.subr.mxu0 0.0
        %2970 = vmatpush2.msra.mxu0 0.0
        %2971 = vmatprep.subr.mxu0 0.0
        %2972 = vmatpush2.msra.mxu0 0.0
        %2973 = vmatprep.subr.mxu0 0.0
        %2974 = vmatpush2.msra.mxu0 0.0
        %2975 = vmatprep.subr.mxu0 0.0
        %2976 = vmatpush2.msra.mxu0 0.0
        %2977 = vmatprep.subr.mxu0 0.0
        %2978 = vmatpush2.msra.mxu0 0.0
        %2979 = vmatprep.mubr.f32.mxu0 0.0
        %2980 = vmatmul.mubr.f32.gmra.mxu0 %v2602
        %v2981 = vpop.f32.mrf.mxu0
        %v2982 = vadd.f32 0.0, %v2981
        %v2983 = vpop.f32.mrf.mxu0
        %v2984 = vadd.f32 0.0, %v2983
        %2985 = vmatprep.mubr.f32.mxu0 0.0
        %2986 = vmatmul.mubr.f32.gmra.mxu0 %v2605
        %v2987 = vpop.f32.mrf.mxu0
        %v2988 = vadd.f32 0.0, %v2987
        %v2989 = vpop.f32.mrf.mxu0
        %v2990 = vadd.f32 0.0, %v2989
        %2991 = vdwg.mxu0
        %2992 = vmatprep.subr.mxu0 0.0
        %2993 = vmatpush1.msra.mxu0 0.0
        %2994 = vmatprep.subr.mxu0 0.0
        %2995 = vmatpush1.msra.mxu0 0.0
        %2996 = vmatprep.subr.mxu0 0.0
        %2997 = vmatpush1.msra.mxu0 0.0
        %2998 = vmatprep.subr.mxu0 0.0
        %2999 = vmatpush1.msra.mxu0 0.0
        %3000 = vmatprep.subr.mxu0 0.0
        %3001 = vmatpush1.msra.mxu0 0.0
        %3002 = vmatprep.subr.mxu0 0.0
        %3003 = vmatpush1.msra.mxu0 0.0
        %3004 = vmatprep.subr.mxu0 0.0
        %3005 = vmatpush1.msra.mxu0 0.0
        %3006 = vmatprep.subr.mxu0 0.0
        %3007 = vmatpush1.msra.mxu0 0.0
        %3008 = vmatprep.subr.mxu0 0.0
        %3009 = vmatpush1.msra.mxu0 0.0
        %3010 = vmatprep.subr.mxu0 0.0
        %3011 = vmatpush1.msra.mxu0 0.0
        %3012 = vmatprep.subr.mxu0 0.0
        %3013 = vmatpush1.msra.mxu0 0.0
        %3014 = vmatprep.subr.mxu0 0.0
        %3015 = vmatpush1.msra.mxu0 0.0
        %3016 = vmatprep.subr.mxu0 0.0
        %3017 = vmatpush1.msra.mxu0 0.0
        %3018 = vmatprep.subr.mxu0 0.0
        %3019 = vmatpush1.msra.mxu0 0.0
        %3020 = vmatprep.subr.mxu0 %v1973
        %3021 = vmatpush1.msra.mxu0 %v1972
        %3022 = vmatprep.subr.mxu0 %v1957
        %3023 = vmatpush1.msra.mxu0 %v1956
        %3024 = vmatprep.subr.mxu0 0.0
        %3025 = vmatpush2.msra.mxu0 0.0
        %3026 = vmatprep.subr.mxu0 0.0
        %3027 = vmatpush2.msra.mxu0 0.0
        %3028 = vmatprep.subr.mxu0 0.0
        %3029 = vmatpush2.msra.mxu0 0.0
        %3030 = vmatprep.subr.mxu0 0.0
        %3031 = vmatpush2.msra.mxu0 0.0
        %3032 = vmatprep.subr.mxu0 0.0
        %3033 = vmatpush2.msra.mxu0 0.0
        %3034 = vmatprep.subr.mxu0 0.0
        %3035 = vmatpush2.msra.mxu0 0.0
        %3036 = vmatprep.subr.mxu0 0.0
        %3037 = vmatpush2.msra.mxu0 0.0
        %3038 = vmatprep.subr.mxu0 0.0
        %3039 = vmatpush2.msra.mxu0 0.0
        %3040 = vmatprep.subr.mxu0 0.0
        %3041 = vmatpush2.msra.mxu0 0.0
        %3042 = vmatprep.subr.mxu0 0.0
        %3043 = vmatpush2.msra.mxu0 0.0
        %3044 = vmatprep.subr.mxu0 0.0
        %3045 = vmatpush2.msra.mxu0 0.0
        %3046 = vmatprep.subr.mxu0 0.0
        %3047 = vmatpush2.msra.mxu0 0.0
        %3048 = vmatprep.subr.mxu0 0.0
        %3049 = vmatpush2.msra.mxu0 0.0
        %3050 = vmatprep.subr.mxu0 0.0
        %3051 = vmatpush2.msra.mxu0 0.0
        %3052 = vmatprep.subr.mxu0 0.0
        %3053 = vmatpush2.msra.mxu0 0.0
        %3054 = vmatprep.subr.mxu0 0.0
        %3055 = vmatpush2.msra.mxu0 0.0
        %3056 = vmatprep.mubr.f32.mxu0 0.0
        %3057 = vmatmul.mubr.f32.gmra.mxu0 %v2602
        %v3058 = vpop.f32.mrf.mxu0
        %v3059 = vadd.f32 0.0, %v3058
        %v3060 = vpop.f32.mrf.mxu0
        %v3061 = vadd.f32 0.0, %v3060
        %3062 = vmatprep.mubr.f32.mxu0 0.0
        %3063 = vmatmul.mubr.f32.gmra.mxu0 %v2605
        %v3064 = vpop.f32.mrf.mxu0
        %v3065 = vadd.f32 0.0, %v3064
        %v3066 = vpop.f32.mrf.mxu0
        %v3067 = vadd.f32 0.0, %v3066
        %3068 = vdwg.mxu0
        %3069 = vmatprep.subr.mxu0 0.0
        %3070 = vmatpush1.msra.mxu0 0.0
        %3071 = vmatprep.subr.mxu0 0.0
        %3072 = vmatpush1.msra.mxu0 0.0
        %3073 = vmatprep.subr.mxu0 0.0
        %3074 = vmatpush1.msra.mxu0 0.0
        %3075 = vmatprep.subr.mxu0 0.0
        %3076 = vmatpush1.msra.mxu0 0.0
        %3077 = vmatprep.subr.mxu0 0.0
        %3078 = vmatpush1.msra.mxu0 0.0
        %3079 = vmatprep.subr.mxu0 0.0
        %3080 = vmatpush1.msra.mxu0 0.0
        %3081 = vmatprep.subr.mxu0 0.0
        %3082 = vmatpush1.msra.mxu0 0.0
        %3083 = vmatprep.subr.mxu0 0.0
        %3084 = vmatpush1.msra.mxu0 0.0
        %3085 = vmatprep.subr.mxu0 0.0
        %3086 = vmatpush1.msra.mxu0 0.0
        %3087 = vmatprep.subr.mxu0 0.0
        %3088 = vmatpush1.msra.mxu0 0.0
        %3089 = vmatprep.subr.mxu0 0.0
        %3090 = vmatpush1.msra.mxu0 0.0
        %3091 = vmatprep.subr.mxu0 0.0
        %3092 = vmatpush1.msra.mxu0 0.0
        %3093 = vmatprep.subr.mxu0 0.0
        %3094 = vmatpush1.msra.mxu0 0.0
        %3095 = vmatprep.subr.mxu0 0.0
        %3096 = vmatpush1.msra.mxu0 0.0
        %3097 = vmatprep.subr.mxu0 %v1975
        %3098 = vmatpush1.msra.mxu0 %v1974
        %3099 = vmatprep.subr.mxu0 %v1959
        %3100 = vmatpush1.msra.mxu0 %v1958
        %3101 = vmatprep.subr.mxu0 0.0
        %3102 = vmatpush2.msra.mxu0 0.0
        %3103 = vmatprep.subr.mxu0 0.0
        %3104 = vmatpush2.msra.mxu0 0.0
        %3105 = vmatprep.subr.mxu0 0.0
        %3106 = vmatpush2.msra.mxu0 0.0
        %3107 = vmatprep.subr.mxu0 0.0
        %3108 = vmatpush2.msra.mxu0 0.0
        %3109 = vmatprep.subr.mxu0 0.0
        %3110 = vmatpush2.msra.mxu0 0.0
        %3111 = vmatprep.subr.mxu0 0.0
        %3112 = vmatpush2.msra.mxu0 0.0
        %3113 = vmatprep.subr.mxu0 0.0
        %3114 = vmatpush2.msra.mxu0 0.0
        %3115 = vmatprep.subr.mxu0 0.0
        %3116 = vmatpush2.msra.mxu0 0.0
        %3117 = vmatprep.subr.mxu0 0.0
        %3118 = vmatpush2.msra.mxu0 0.0
        %3119 = vmatprep.subr.mxu0 0.0
        %3120 = vmatpush2.msra.mxu0 0.0
        %3121 = vmatprep.subr.mxu0 0.0
        %3122 = vmatpush2.msra.mxu0 0.0
        %3123 = vmatprep.subr.mxu0 0.0
        %3124 = vmatpush2.msra.mxu0 0.0
        %3125 = vmatprep.subr.mxu0 0.0
        %3126 = vmatpush2.msra.mxu0 0.0
        %3127 = vmatprep.subr.mxu0 0.0
        %3128 = vmatpush2.msra.mxu0 0.0
        %3129 = vmatprep.subr.mxu0 0.0
        %3130 = vmatpush2.msra.mxu0 0.0
        %3131 = vmatprep.subr.mxu0 0.0
        %3132 = vmatpush2.msra.mxu0 0.0
        %3133 = vmatprep.mubr.f32.mxu0 0.0
        %3134 = vmatmul.mubr.f32.gmra.mxu0 %v2602
        %v3135 = vpop.f32.mrf.mxu0
        %v3136 = vadd.f32 0.0, %v3135
        %v3137 = vpop.f32.mrf.mxu0
        %v3138 = vadd.f32 0.0, %v3137
        %3139 = vmatprep.mubr.f32.mxu0 0.0
        %3140 = vmatmul.mubr.f32.gmra.mxu0 %v2605
        %v3141 = vpop.f32.mrf.mxu0
        %v3142 = vadd.f32 0.0, %v3141
        %v3143 = vpop.f32.mrf.mxu0
        %v3144 = vadd.f32 0.0, %v3143
        %3145 = vdwg.mxu0
        %3146 = vmatprep.subr.mxu0 0.0
        %3147 = vmatpush1.msra.mxu0 0.0
        %3148 = vmatprep.subr.mxu0 0.0
        %3149 = vmatpush1.msra.mxu0 0.0
        %3150 = vmatprep.subr.mxu0 0.0
        %3151 = vmatpush1.msra.mxu0 0.0
        %3152 = vmatprep.subr.mxu0 0.0
        %3153 = vmatpush1.msra.mxu0 0.0
        %3154 = vmatprep.subr.mxu0 0.0
        %3155 = vmatpush1.msra.mxu0 0.0
        %3156 = vmatprep.subr.mxu0 0.0
        %3157 = vmatpush1.msra.mxu0 0.0
        %3158 = vmatprep.subr.mxu0 0.0
        %3159 = vmatpush1.msra.mxu0 0.0
        %3160 = vmatprep.subr.mxu0 0.0
        %3161 = vmatpush1.msra.mxu0 0.0
        %3162 = vmatprep.subr.mxu0 0.0
        %3163 = vmatpush1.msra.mxu0 0.0
        %3164 = vmatprep.subr.mxu0 0.0
        %3165 = vmatpush1.msra.mxu0 0.0
        %3166 = vmatprep.subr.mxu0 0.0
        %3167 = vmatpush1.msra.mxu0 0.0
        %3168 = vmatprep.subr.mxu0 0.0
        %3169 = vmatpush1.msra.mxu0 0.0
        %3170 = vmatprep.subr.mxu0 0.0
        %3171 = vmatpush1.msra.mxu0 0.0
        %3172 = vmatprep.subr.mxu0 0.0
        %3173 = vmatpush1.msra.mxu0 0.0
        %3174 = vmatprep.subr.mxu0 %v1977
        %3175 = vmatpush1.msra.mxu0 %v1976
        %3176 = vmatprep.subr.mxu0 %v1961
        %3177 = vmatpush1.msra.mxu0 %v1960
        %3178 = vmatprep.subr.mxu0 0.0
        %3179 = vmatpush2.msra.mxu0 0.0
        %3180 = vmatprep.subr.mxu0 0.0
        %3181 = vmatpush2.msra.mxu0 0.0
        %3182 = vmatprep.subr.mxu0 0.0
        %3183 = vmatpush2.msra.mxu0 0.0
        %3184 = vmatprep.subr.mxu0 0.0
        %3185 = vmatpush2.msra.mxu0 0.0
        %3186 = vmatprep.subr.mxu0 0.0
        %3187 = vmatpush2.msra.mxu0 0.0
        %3188 = vmatprep.subr.mxu0 0.0
        %3189 = vmatpush2.msra.mxu0 0.0
        %3190 = vmatprep.subr.mxu0 0.0
        %3191 = vmatpush2.msra.mxu0 0.0
        %3192 = vmatprep.subr.mxu0 0.0
        %3193 = vmatpush2.msra.mxu0 0.0
        %3194 = vmatprep.subr.mxu0 0.0
        %3195 = vmatpush2.msra.mxu0 0.0
        %3196 = vmatprep.subr.mxu0 0.0
        %3197 = vmatpush2.msra.mxu0 0.0
        %3198 = vmatprep.subr.mxu0 0.0
        %3199 = vmatpush2.msra.mxu0 0.0
        %3200 = vmatprep.subr.mxu0 0.0
        %3201 = vmatpush2.msra.mxu0 0.0
        %3202 = vmatprep.subr.mxu0 0.0
        %3203 = vmatpush2.msra.mxu0 0.0
        %3204 = vmatprep.subr.mxu0 0.0
        %3205 = vmatpush2.msra.mxu0 0.0
        %3206 = vmatprep.subr.mxu0 0.0
        %3207 = vmatpush2.msra.mxu0 0.0
        %3208 = vmatprep.subr.mxu0 0.0
        %3209 = vmatpush2.msra.mxu0 0.0
        %3210 = vmatprep.mubr.f32.mxu0 0.0
        %3211 = vmatmul.mubr.f32.gmra.mxu0 %v2602
        %v3212 = vpop.f32.mrf.mxu0
        %v3213 = vadd.f32 0.0, %v3212
        %v3214 = vpop.f32.mrf.mxu0
        %v3215 = vadd.f32 0.0, %v3214
        %3216 = vmatprep.mubr.f32.mxu0 0.0
        %3217 = vmatmul.mubr.f32.gmra.mxu0 %v2605
        %v3218 = vpop.f32.mrf.mxu0
        %v3219 = vadd.f32 0.0, %v3218
        %v3220 = vpop.f32.mrf.mxu0
        %v3221 = vadd.f32 0.0, %v3220
        %3222 = vdwg.mxu0
        %v3223 = vmul.f32 %v414, %v2052
        %v3224 = vmul.f32 %v416, %v2054
        %v3225 = vmul.f32 %v491, %v2129
        %v3226 = vmul.f32 %v493, %v2131
        %v3227 = vmul.f32 %v568, %v2206
        %v3228 = vmul.f32 %v570, %v2208
        %v3229 = vmul.f32 %v645, %v2283
        %v3230 = vmul.f32 %v647, %v2285
        %v3231 = vmul.f32 %v722, %v2360
        %v3232 = vmul.f32 %v724, %v2362
        %v3233 = vmul.f32 %v799, %v2437
        %v3234 = vmul.f32 %v801, %v2439
        %v3235 = vmul.f32 %v876, %v2514
        %v3236 = vmul.f32 %v878, %v2516
        %v3237 = vmul.f32 %v953, %v2591
        %v3238 = vmul.f32 %v955, %v2593
        %v3239 = vmul.f32 %v420, %v2058
        %v3240 = vmul.f32 %v422, %v2060
        %v3241 = vmul.f32 %v497, %v2135
        %v3242 = vmul.f32 %v499, %v2137
        %v3243 = vmul.f32 %v574, %v2212
        %v3244 = vmul.f32 %v576, %v2214
        %v3245 = vmul.f32 %v651, %v2289
        %v3246 = vmul.f32 %v653, %v2291
        %v3247 = vmul.f32 %v728, %v2366
        %v3248 = vmul.f32 %v730, %v2368
        %v3249 = vmul.f32 %v805, %v2443
        %v3250 = vmul.f32 %v807, %v2445
        %v3251 = vmul.f32 %v882, %v2520
        %v3252 = vmul.f32 %v884, %v2522
        %v3253 = vmul.f32 %v959, %v2597
        %v3254 = vmul.f32 %v961, %v2599
        %v3255 = vadd.f32 %v3223, %v2674
        %v3256 = vadd.f32 %v3224, %v2676
        %v3257 = vadd.f32 %v3225, %v2751
        %v3258 = vadd.f32 %v3226, %v2753
        %v3259 = vadd.f32 %v3227, %v2828
        %v3260 = vadd.f32 %v3228, %v2830
        %v3261 = vadd.f32 %v3229, %v2905
        %v3262 = vadd.f32 %v3230, %v2907
        %v3263 = vadd.f32 %v3231, %v2982
        %v3264 = vadd.f32 %v3232, %v2984
        %v3265 = vadd.f32 %v3233, %v3059
        %v3266 = vadd.f32 %v3234, %v3061
        %v3267 = vadd.f32 %v3235, %v3136
        %v3268 = vadd.f32 %v3236, %v3138
        %v3269 = vadd.f32 %v3237, %v3213
        %v3270 = vadd.f32 %v3238, %v3215
        %v3271 = vadd.f32 %v3239, %v2680
        %v3272 = vadd.f32 %v3240, %v2682
        %v3273 = vadd.f32 %v3241, %v2757
        %v3274 = vadd.f32 %v3242, %v2759
        %v3275 = vadd.f32 %v3243, %v2834
        %v3276 = vadd.f32 %v3244, %v2836
        %v3277 = vadd.f32 %v3245, %v2911
        %v3278 = vadd.f32 %v3246, %v2913
        %v3279 = vadd.f32 %v3247, %v2988
        %v3280 = vadd.f32 %v3248, %v2990
        %v3281 = vadd.f32 %v3249, %v3065
        %v3282 = vadd.f32 %v3250, %v3067
        %v3283 = vadd.f32 %v3251, %v3142
        %v3284 = vadd.f32 %v3252, %v3144
        %v3285 = vadd.f32 %v3253, %v3219
        %v3286 = vadd.f32 %v3254, %v3221
        %v3287 = vld [vmem:[%s5] sm:$0xff]
        %v3288 = vld [vmem:[%s5 + $0x8] sm:$0xff]
        %v3291 = vlaneseq
        %v3292 = vshrl.u32 %v3291, 7
        %v3293 = vsub.s32 0, %v3292
        %v3294 = vrot.slane %v3287, %v3293
        %v3295 = vlaneseq
        %v3296 = vshrl.u32 %v3295, 7
        %v3297 = vsub.s32 1, %v3296
        %v3298 = vrot.slane %v3287, %v3297
        %v3299 = vlaneseq
        %v3300 = vshrl.u32 %v3299, 7
        %v3301 = vsub.s32 2, %v3300
        %v3302 = vrot.slane %v3287, %v3301
        %v3303 = vlaneseq
        %v3304 = vshrl.u32 %v3303, 7
        %v3305 = vsub.s32 3, %v3304
        %v3306 = vrot.slane %v3287, %v3305
        %v3307 = vlaneseq
        %v3308 = vshrl.u32 %v3307, 7
        %v3309 = vsub.s32 4, %v3308
        %v3310 = vrot.slane %v3287, %v3309
        %v3311 = vlaneseq
        %v3312 = vshrl.u32 %v3311, 7
        %v3313 = vsub.s32 5, %v3312
        %v3314 = vrot.slane %v3287, %v3313
        %v3315 = vlaneseq
        %v3316 = vshrl.u32 %v3315, 7
        %v3317 = vsub.s32 6, %v3316
        %v3318 = vrot.slane %v3287, %v3317
        %v3319 = vlaneseq
        %v3320 = vshrl.u32 %v3319, 7
        %v3321 = vsub.s32 7, %v3320
        %v3322 = vrot.slane %v3287, %v3321
        %v3323 = vlaneseq
        %v3324 = vshrl.u32 %v3323, 7
        %v3325 = vsub.s32 0, %v3324
        %v3326 = vrot.slane %v3288, %v3325
        %v3327 = vlaneseq
        %v3328 = vshrl.u32 %v3327, 7
        %v3329 = vsub.s32 1, %v3328
        %v3330 = vrot.slane %v3288, %v3329
        %v3331 = vlaneseq
        %v3332 = vshrl.u32 %v3331, 7
        %v3333 = vsub.s32 2, %v3332
        %v3334 = vrot.slane %v3288, %v3333
        %v3335 = vlaneseq
        %v3336 = vshrl.u32 %v3335, 7
        %v3337 = vsub.s32 3, %v3336
        %v3338 = vrot.slane %v3288, %v3337
        %v3339 = vlaneseq
        %v3340 = vshrl.u32 %v3339, 7
        %v3341 = vsub.s32 4, %v3340
        %v3342 = vrot.slane %v3288, %v3341
        %v3343 = vlaneseq
        %v3344 = vshrl.u32 %v3343, 7
        %v3345 = vsub.s32 5, %v3344
        %v3346 = vrot.slane %v3288, %v3345
        %v3347 = vlaneseq
        %v3348 = vshrl.u32 %v3347, 7
        %v3349 = vsub.s32 6, %v3348
        %v3350 = vrot.slane %v3288, %v3349
        %v3351 = vlaneseq
        %v3352 = vshrl.u32 %v3351, 7
        %v3353 = vsub.s32 7, %v3352
        %v3354 = vrot.slane %v3288, %v3353
        %v3371 = vadd.f32 %v3255, %v3294
        %v3372 = vadd.f32 %v3256, %v3298
        %v3373 = vadd.f32 %v3257, %v3302
        %v3374 = vadd.f32 %v3258, %v3306
        %v3375 = vadd.f32 %v3259, %v3310
        %v3376 = vadd.f32 %v3260, %v3314
        %v3377 = vadd.f32 %v3261, %v3318
        %v3378 = vadd.f32 %v3262, %v3322
        %v3379 = vadd.f32 %v3263, %v3326
        %v3380 = vadd.f32 %v3264, %v3330
        %v3381 = vadd.f32 %v3265, %v3334
        %v3382 = vadd.f32 %v3266, %v3338
        %v3383 = vadd.f32 %v3267, %v3342
        %v3384 = vadd.f32 %v3268, %v3346
        %v3385 = vadd.f32 %v3269, %v3350
        %v3386 = vadd.f32 %v3270, %v3354
        %v3387 = vadd.f32 %v3271, %v3294
        %v3388 = vadd.f32 %v3272, %v3298
        %v3389 = vadd.f32 %v3273, %v3302
        %v3390 = vadd.f32 %v3274, %v3306
        %v3391 = vadd.f32 %v3275, %v3310
        %v3392 = vadd.f32 %v3276, %v3314
        %v3393 = vadd.f32 %v3277, %v3318
        %v3394 = vadd.f32 %v3278, %v3322
        %v3395 = vadd.f32 %v3279, %v3326
        %v3396 = vadd.f32 %v3280, %v3330
        %v3397 = vadd.f32 %v3281, %v3334
        %v3398 = vadd.f32 %v3282, %v3338
        %v3399 = vadd.f32 %v3283, %v3342
        %v3400 = vadd.f32 %v3284, %v3346
        %v3401 = vadd.f32 %v3285, %v3350
        %v3402 = vadd.f32 %v3286, %v3354
        %v3403 = vpack.c.bf16 %v3387, %v3371
        %v3404 = vpack.c.bf16 %v3388, %v3372
        %v3405 = vpack.c.bf16 %v3389, %v3373
        %v3406 = vpack.c.bf16 %v3390, %v3374
        %v3407 = vpack.c.bf16 %v3391, %v3375
        %v3408 = vpack.c.bf16 %v3392, %v3376
        %v3409 = vpack.c.bf16 %v3393, %v3377
        %v3410 = vpack.c.bf16 %v3394, %v3378
        %v3411 = vpack.c.bf16 %v3395, %v3379
        %v3412 = vpack.c.bf16 %v3396, %v3380
        %v3413 = vpack.c.bf16 %v3397, %v3381
        %v3414 = vpack.c.bf16 %v3398, %v3382
        %v3415 = vpack.c.bf16 %v3399, %v3383
        %v3416 = vpack.c.bf16 %v3400, %v3384
        %v3417 = vpack.c.bf16 %v3401, %v3385
        %v3418 = vpack.c.bf16 %v3402, %v3386
        %v3423 = vunpack.c.l.b16 %v3403
        %v3424 = vunpack.c.l.b16 %v3404
        %v3425 = vunpack.c.l.b16 %v3405
        %v3426 = vunpack.c.l.b16 %v3406
        %v3427 = vunpack.c.h.b16 %v3403
        %v3428 = vunpack.c.h.b16 %v3404
        %v3429 = vunpack.c.h.b16 %v3405
        %v3430 = vunpack.c.h.b16 %v3406
        %v3431 = vpack.c.b16 %v3424, %v3423
        %v3432 = vpack.c.b16 %v3426, %v3425
        %v3433 = vpack.c.b16 %v3428, %v3427
        %v3434 = vpack.c.b16 %v3430, %v3429
        %3439 = vst [vmem:[%s269] sm:$0xff] %v3431
        %3440 = vst [vmem:[%s269 + $0x8] sm:$0xff] %v3432
        %3441 = vst [vmem:[%s269 + $0x40] sm:$0xff] %v3433
        %3442 = vst [vmem:[%s269 + $0x48] sm:$0xff] %v3434
        %v3447 = vunpack.c.l.b16 %v3407
        %v3448 = vunpack.c.l.b16 %v3408
        %v3449 = vunpack.c.l.b16 %v3409
        %v3450 = vunpack.c.l.b16 %v3410
        %v3451 = vunpack.c.h.b16 %v3407
        %v3452 = vunpack.c.h.b16 %v3408
        %v3453 = vunpack.c.h.b16 %v3409
        %v3454 = vunpack.c.h.b16 %v3410
        %v3455 = vpack.c.b16 %v3448, %v3447
        %v3456 = vpack.c.b16 %v3450, %v3449
        %v3457 = vpack.c.b16 %v3452, %v3451
        %v3458 = vpack.c.b16 %v3454, %v3453
        %s3463 = scalar_lea.vmem %s269, 16 [#allocation2]
        %3464 = vst [vmem:[%s3463] sm:$0xff] %v3455
        %3465 = vst [vmem:[%s3463 + $0x8] sm:$0xff] %v3456
        %3466 = vst [vmem:[%s3463 + $0x40] sm:$0xff] %v3457
        %3467 = vst [vmem:[%s3463 + $0x48] sm:$0xff] %v3458
        %v3472 = vunpack.c.l.b16 %v3411
        %v3473 = vunpack.c.l.b16 %v3412
        %v3474 = vunpack.c.l.b16 %v3413
        %v3475 = vunpack.c.l.b16 %v3414
        %v3476 = vunpack.c.h.b16 %v3411
        %v3477 = vunpack.c.h.b16 %v3412
        %v3478 = vunpack.c.h.b16 %v3413
        %v3479 = vunpack.c.h.b16 %v3414
        %v3480 = vpack.c.b16 %v3473, %v3472
        %v3481 = vpack.c.b16 %v3475, %v3474
        %v3482 = vpack.c.b16 %v3477, %v3476
        %v3483 = vpack.c.b16 %v3479, %v3478
        %s3488 = scalar_lea.vmem %s269, 32 [#allocation2]
        %3489 = vst [vmem:[%s3488] sm:$0xff] %v3480
        %3490 = vst [vmem:[%s3488 + $0x8] sm:$0xff] %v3481
        %3491 = vst [vmem:[%s3488 + $0x40] sm:$0xff] %v3482
        %3492 = vst [vmem:[%s3488 + $0x48] sm:$0xff] %v3483
        %v3497 = vunpack.c.l.b16 %v3415
        %v3498 = vunpack.c.l.b16 %v3416
        %v3499 = vunpack.c.l.b16 %v3417
        %v3500 = vunpack.c.l.b16 %v3418
        %v3501 = vunpack.c.h.b16 %v3415
        %v3502 = vunpack.c.h.b16 %v3416
        %v3503 = vunpack.c.h.b16 %v3417
        %v3504 = vunpack.c.h.b16 %v3418
        %v3505 = vpack.c.b16 %v3498, %v3497
        %v3506 = vpack.c.b16 %v3500, %v3499
        %v3507 = vpack.c.b16 %v3502, %v3501
        %v3508 = vpack.c.b16 %v3504, %v3503
        %s3513 = scalar_lea.vmem %s269, 48 [#allocation2]
        %3514 = vst [vmem:[%s3513] sm:$0xff] %v3505
        %3515 = vst [vmem:[%s3513 + $0x8] sm:$0xff] %v3506
        %3516 = vst [vmem:[%s3513 + $0x40] sm:$0xff] %v3507
        %3517 = vst [vmem:[%s3513 + $0x48] sm:$0xff] %v3508
        %s3518 = sand.u32 %s175, 1
        %s3519 = scalar_lea.sflag [#allocation3], %s3518
        %s3520 = sand.u32 %s175, 1
        %s3521 = smul.addr %s3520, 128
        %s3522 = scalar_lea.vmem [#allocation2], %s3521
        // Predicated region
        $region45: #{tpu_custom_call.1} parent=43 // pred_check
          %p3523 = pneg %p185
        $region46: #{tpu_custom_call.1} parent=43 // pred_check_branch
          %3525 = sbr.rel (%p3523) target = $region48
        $region47: #{tpu_custom_call.1} parent=43 // pred_region
          %s3526 = smul.u32 2, %s25
          %s3528 = ssub.s32 2048, 2048
          %3529 = vsyncadd %s3519, %s3528
          %s3530 = smul.addr %s3526, 16
          %s3531 = smul.addr %s24, 128
          %s3532 = sadd.s32 %s3530, %s3531
          %s3533 = smul.addr %s3532, 64
          %s3534 = scalar_lea.hbm %s6, %s3533
          %s3535 = sshll.u32 %s3522, 4
          %s3536 = int_to_ptr.vmem [resolvable:$true] %s3535
          %3541 = dma.vmem_to_hbm [thread:$0]  %s3536, 2048, %s3534, %s3519, 256, 256, 16
        $region48: #{tpu_custom_call.1} parent=43 // pred_fallthru
          _
      $region44: #{tpu_custom_call.1} parent=5 // pred_fallthru
        _
      %p3542 = scmp.le.s32.totalorder 2, %s15
      // Predicated region
      $region49: #{tpu_custom_call.1} parent=5 // pred_check
        %p3543 = pneg %p3542
      $region50: #{tpu_custom_call.1} parent=5 // pred_check_branch
        %3545 = sbr.rel (%p3543) target = $region52
      $region51: #{tpu_custom_call.1} parent=5 // pred_region
        %s3546 = ssub.s32 %s15, 2
        // Predicated region
        $region53: #{tpu_custom_call.1} parent=51 // pred_check
          %p3547 = pneg %p191
        $region54: #{tpu_custom_call.1} parent=51 // pred_check_branch
          %3549 = sbr.rel (%p3547) target = $region56
        $region55: #{tpu_custom_call.1} parent=51 // pred_region
          %s3550 = sand.u32 %s176, 1
          %s3551 = scalar_lea.sflag [#allocation3], %s3550
          %s3552 = sand.u32 %s176, 1
          %s3553 = smul.addr %s3552, 128
          %s3554 = scalar_lea.vmem [#allocation2], %s3553
          %3555 = dma.done %s3551, 2048
        $region56: #{tpu_custom_call.1} parent=51 // pred_fallthru
          _
      $region52: #{tpu_custom_call.1} parent=5 // pred_fallthru
        _
    $region6: #{tpu_custom_call.1} parent=1 // loop_footer
      %s19 = sadd.s32 1, %s15
    $region7: #{tpu_custom_call.1} parent=1 // loop_footer_branch
      %14 = sbr.rel target = $region3
    $region8: #{tpu_custom_call.1} parent=1 // loop_exit
      _
    %3556 = vsyncpa [#allocation3], 1
    %s3557 = scalar_lea.sflag [#allocation3], 1
    %3558 = vsyncpa %s3557, 1

// kernel: tpu_custom_call.1
$region0: #{tpu_custom_call.1}
  #allocation0 [shape = 'u32[]', space=smem, size = 0x4, offset = 0x4, fixed_abs, tag = 'smem constant byte address 0x4 - core index']
  #allocation1 [shape = 'u32[144,128]{1,0:T(1,128)}', space=vmem, size = 0x12000, scoped, tag = 'internal scratch']
  %s0 = inlined_call_operand.vmem [shape: f32[2,64,4], index: 0, kind: input, shape index: {}]
  %s1 = inlined_call_operand.vmem [shape: f32[4,2048], index: 1, kind: input, shape index: {}]
  %s2 = inlined_call_operand.vmem [shape: f32[4,16], index: 2, kind: input, shape index: {}]
  %s3 = inlined_call_operand.vmem [shape: f32[2048,16], index: 3, kind: input, shape index: {}]
  %s4 = inlined_call_operand.vmem [shape: f32[16,2048], index: 4, kind: input, shape index: {}]
  %s5 = inlined_call_operand.vmem [shape: f32[1,2048], index: 5, kind: input, shape index: {}]
  %s6 = inlined_call_operand.hbm [shape: bf16[2,8,4,8,512], index: 6, kind: output, shape index: {}]
  %s7 = sld [smem:[#allocation0]]
  $region57: #{tpu_custom_call.1} parent=0
    _
  %s9 = ssub.s32 1, %s7
  %s10 = scalar_select 0, %s9, %s7
  $region1: #{tpu_custom_call.1} parent=0
    #allocation2 [shape = 'u8[131072]{0}', space=vmem, size = 0x20000, scoped, tag = 'output window, operand 0']
    #allocation3 [shape = 's32[2]{0}', space=sflag, size = 0x8, scoped, tag = 'scoped memory for tpu_custom_call.1']
    %11 = vsyncpa [#allocation3], 0
    %s12 = scalar_lea.sflag [#allocation3], 1
    %13 = vsyncpa %s12, 0
    loop: start=0, step=1, limit=10
    $region2: #{tpu_custom_call.1} parent=1 // loop_pre_header
      _
    $region3: #{tpu_custom_call.1} parent=1 // loop_header
      %s15 = sphi 0, %s19
      %p16 = scmp.ge.s32.totalorder %s15, 10
      %s22 = sphi 0, %s34
      %s23 = sphi 0, %s30
      %s24 = sphi 0, %s22
      %s25 = sphi 0, %s23
      %s26 = sphi 0, %s24
      %s27 = sphi 0, %s25
      %s39 = sphi 0, %s41
      %s42 = sphi 0, %s39
      %s43 = sphi 0, %s42
      %s59 = sphi 0, %s43
      %s63 = sphi 0, %s63
      %s65 = sphi 0, %s63
      %s66 = sphi 0, %s65
      %s80 = sphi 0, %s66
      %s84 = sphi 0, %s84
      %s86 = sphi 0, %s84
      %s87 = sphi 0, %s86
      %s101 = sphi 0, %s87
      %s105 = sphi 0, %s105
      %s107 = sphi 0, %s105
      %s108 = sphi 0, %s107
      %s122 = sphi 0, %s108
      %s126 = sphi 0, %s126
      %s128 = sphi 0, %s126
      %s129 = sphi 0, %s128
      %s143 = sphi 0, %s129
      %s147 = sphi 0, %s147
      %s149 = sphi 0, %s147
      %s150 = sphi 0, %s149
      %s164 = sphi 0, %s150
      %s172 = sphi 0, %s174
      %s175 = sphi 0, %s172
      %s176 = sphi 0, %s175
      %s192 = sphi 0, %s176
    $region4: #{tpu_custom_call.1} parent=1 // loop_header_branch
      %18 = sbr.rel (%p16) target = $region8
    $region5: #{tpu_custom_call.1} parent=1 // loop_body
      %s20 = ssub.s32 %s15, 1
      %s21 = ssub.s32 %s15, 2
      %s28 = sadd.s32 1, %s23
      %p29 = scmp.ge.s32.totalorder %s28, 4
      %s30 = scalar_select %p29, 0, %s28
      %s31 = sadd.s32 1, %s22
      %s32 = scalar_select %p29, %s31, %s22
      %p33 = scmp.ge.s32.totalorder %s32, 2
      %s34 = scalar_select %p33, 0, %s32
      %s35 = ssub.s32 %s22, %s34
      %s36 = ssub.s32 %s23, %s30
      %s37 = sor.u32 %s35, %s36
      %p38 = scmp.eq.s32.totalorder %s37, 0
      %s40 = sadd.s32 %s39, 1
      %s41 = scalar_select %p38, %s39, %s40
      %p44 = pneg %p38
      %p45 = scmp.eq.s32.totalorder %s15, 7
      %p46 = por %p44, %p45
      %p47 = scmp.ne.s32.totalorder %s39, %s42
      %p48 = scmp.eq.s32.totalorder %s15, 0
      %p49 = por %p47, %p48
      %p50 = scmp.ne.s32.totalorder %s39, %s42
      %p51 = scmp.eq.s32.totalorder %s20, 7
      %p52 = por %p50, %p51
      %p53 = scmp.ne.s32.totalorder %s42, %s43
      %p54 = scmp.eq.s32.totalorder %s20, 0
      %p55 = por %p53, %p54
      %p56 = scmp.ne.s32.totalorder %s42, %s43
      %p57 = scmp.eq.s32.totalorder %s21, 7
      %p58 = por %p56, %p57
      %p60 = scmp.ne.s32.totalorder %s43, %s59
      %p61 = scmp.eq.s32.totalorder %s21, 0
      %p62 = por %p60, %p61
      %s64 = sadd.s32 %s63, 1
      %p67 = scmp.eq.s32.totalorder %s15, 7
      %p68 = scmp.ne.s32.totalorder %s63, %s65
      %p69 = scmp.eq.s32.totalorder %s15, 0
      %p70 = por %p68, %p69
      %p71 = scmp.ne.s32.totalorder %s63, %s65
      %p72 = scmp.eq.s32.totalorder %s20, 7
      %p73 = por %p71, %p72
      %p74 = scmp.ne.s32.totalorder %s65, %s66
      %p75 = scmp.eq.s32.totalorder %s20, 0
      %p76 = por %p74, %p75
      %p77 = scmp.ne.s32.totalorder %s65, %s66
      %p78 = scmp.eq.s32.totalorder %s21, 7
      %p79 = por %p77, %p78
      %p81 = scmp.ne.s32.totalorder %s66, %s80
      %p82 = scmp.eq.s32.totalorder %s21, 0
      %p83 = por %p81, %p82
      %s85 = sadd.s32 %s84, 1
      %p88 = scmp.eq.s32.totalorder %s15, 7
      %p89 = scmp.ne.s32.totalorder %s84, %s86
      %p90 = scmp.eq.s32.totalorder %s15, 0
      %p91 = por %p89, %p90
      %p92 = scmp.ne.s32.totalorder %s84, %s86
      %p93 = scmp.eq.s32.totalorder %s20, 7
      %p94 = por %p92, %p93
      %p95 = scmp.ne.s32.totalorder %s86, %s87
      %p96 = scmp.eq.s32.totalorder %s20, 0
      %p97 = por %p95, %p96
      %p98 = scmp.ne.s32.totalorder %s86, %s87
      %p99 = scmp.eq.s32.totalorder %s21, 7
      %p100 = por %p98, %p99
      %p102 = scmp.ne.s32.totalorder %s87, %s101
      %p103 = scmp.eq.s32.totalorder %s21, 0
      %p104 = por %p102, %p103
      %s106 = sadd.s32 %s105, 1
      %p109 = scmp.eq.s32.totalorder %s15, 7
      %p110 = scmp.ne.s32.totalorder %s105, %s107
      %p111 = scmp.eq.s32.totalorder %s15, 0
      %p112 = por %p110, %p111
      %p113 = scmp.ne.s32.totalorder %s105, %s107
      %p114 = scmp.eq.s32.totalorder %s20, 7
      %p115 = por %p113, %p114
      %p116 = scmp.ne.s32.totalorder %s107, %s108
      %p117 = scmp.eq.s32.totalorder %s20, 0
      %p118 = por %p116, %p117
      %p119 = scmp.ne.s32.totalorder %s107, %s108
      %p120 = scmp.eq.s32.totalorder %s21, 7
      %p121 = por %p119, %p120
      %p123 = scmp.ne.s32.totalorder %s108, %s122
      %p124 = scmp.eq.s32.totalorder %s21, 0
      %p125 = por %p123, %p124
      %s127 = sadd.s32 %s126, 1
      %p130 = scmp.eq.s32.totalorder %s15, 7
      %p131 = scmp.ne.s32.totalorder %s126, %s128
      %p132 = scmp.eq.s32.totalorder %s15, 0
      %p133 = por %p131, %p132
      %p134 = scmp.ne.s32.totalorder %s126, %s128
      %p135 = scmp.eq.s32.totalorder %s20, 7
      %p136 = por %p134, %p135
      %p137 = scmp.ne.s32.totalorder %s128, %s129
      %p138 = scmp.eq.s32.totalorder %s20, 0
      %p139 = por %p137, %p138
      %p140 = scmp.ne.s32.totalorder %s128, %s129
      %p141 = scmp.eq.s32.totalorder %s21, 7
      %p142 = por %p140, %p141
      %p144 = scmp.ne.s32.totalorder %s129, %s143
      %p145 = scmp.eq.s32.totalorder %s21, 0
      %p146 = por %p144, %p145
      %s148 = sadd.s32 %s147, 1
      %p151 = scmp.eq.s32.totalorder %s15, 7
      %p152 = scmp.ne.s32.totalorder %s147, %s149
      %p153 = scmp.eq.s32.totalorder %s15, 0
      %p154 = por %p152, %p153
      %p155 = scmp.ne.s32.totalorder %s147, %s149
      %p156 = scmp.eq.s32.totalorder %s20, 7
      %p157 = por %p155, %p156
      %p158 = scmp.ne.s32.totalorder %s149, %s150
      %p159 = scmp.eq.s32.totalorder %s20, 0
      %p160 = por %p158, %p159
      %p161 = scmp.ne.s32.totalorder %s149, %s150
      %p162 = scmp.eq.s32.totalorder %s21, 7
      %p163 = por %p161, %p162
      %p165 = scmp.ne.s32.totalorder %s150, %s164
      %p166 = scmp.eq.s32.totalorder %s21, 0
      %p167 = por %p165, %p166
      %s168 = ssub.s32 %s22, %s34
      %s169 = ssub.s32 %s23, %s30
      %s170 = sor.u32 %s168, %s169
      %p171 = scmp.eq.s32.totalorder %s170, 0
      %s173 = sadd.s32 %s172, 1
      %s174 = scalar_select %p171, %s172, %s173
      %p177 = pneg %p171
      %p178 = scmp.eq.s32.totalorder %s15, 7
      %p179 = por %p177, %p178
      %p180 = scmp.ne.s32.totalorder %s172, %s175
      %p181 = scmp.eq.s32.totalorder %s15, 0
      %p182 = por %p180, %p181
      %p183 = scmp.ne.s32.totalorder %s172, %s175
      %p184 = scmp.eq.s32.totalorder %s20, 7
      %p185 = por %p183, %p184
      %p186 = scmp.ne.s32.totalorder %s175, %s176
      %p187 = scmp.eq.s32.totalorder %s20, 0
      %p188 = por %p186, %p187
      %p189 = scmp.ne.s32.totalorder %s175, %s176
      %p190 = scmp.eq.s32.totalorder %s21, 7
      %p191 = por %p189, %p190
      %p193 = scmp.ne.s32.totalorder %s176, %s192
      %p194 = scmp.eq.s32.totalorder %s21, 0
      %p195 = por %p193, %p194
      %p196 = scmp.le.s32.totalorder 1, %s15
      %p197 = scmp.lt.s32.totalorder %s15, 9
      %p198 = pnand %p196, %p197
      %p199 = pneg %p198
      // Predicated region
      $region9: #{tpu_custom_call.1} parent=5 // pred_check
        _
      $region10: #{tpu_custom_call.1} parent=5 // pred_check_branch
        %201 = sbr.rel (%p198) target = $region12
      $region11: #{tpu_custom_call.1} parent=5 // pred_region
        %s202 = ssub.s32 %s15, 1
        // Predicated region
        $region13: #{tpu_custom_call.1} parent=11 // pred_check
          %p203 = pneg %p76
        $region14: #{tpu_custom_call.1} parent=11 // pred_check_branch
          %205 = sbr.rel (%p203) target = $region16
        $region15: #{tpu_custom_call.1} parent=11 // pred_region
          _
        $region16: #{tpu_custom_call.1} parent=11 // pred_fallthru
          _
        // Predicated region
        $region17: #{tpu_custom_call.1} parent=11 // pred_check
          %p206 = pneg %p97
        $region18: #{tpu_custom_call.1} parent=11 // pred_check_branch
          %208 = sbr.rel (%p206) target = $region20
        $region19: #{tpu_custom_call.1} parent=11 // pred_region
          _
        $region20: #{tpu_custom_call.1} parent=11 // pred_fallthru
          _
        // Predicated region
        $region21: #{tpu_custom_call.1} parent=11 // pred_check
          %p209 = pneg %p118
        $region22: #{tpu_custom_call.1} parent=11 // pred_check_branch
          %211 = sbr.rel (%p209) target = $region24
        $region23: #{tpu_custom_call.1} parent=11 // pred_region
          _
        $region24: #{tpu_custom_call.1} parent=11 // pred_fallthru
          _
        // Predicated region
        $region25: #{tpu_custom_call.1} parent=11 // pred_check
          %p212 = pneg %p139
        $region26: #{tpu_custom_call.1} parent=11 // pred_check_branch
          %214 = sbr.rel (%p212) target = $region28
        $region27: #{tpu_custom_call.1} parent=11 // pred_region
          _
        $region28: #{tpu_custom_call.1} parent=11 // pred_fallthru
          _
        // Predicated region
        $region29: #{tpu_custom_call.1} parent=11 // pred_check
          %p215 = pneg %p160
        $region30: #{tpu_custom_call.1} parent=11 // pred_check_branch
          %217 = sbr.rel (%p215) target = $region32
        $region31: #{tpu_custom_call.1} parent=11 // pred_region
          _
        $region32: #{tpu_custom_call.1} parent=11 // pred_fallthru
          _
      $region12: #{tpu_custom_call.1} parent=5 // pred_fallthru
        _
      %p218 = scmp.lt.s32.totalorder %s15, 8
      // Predicated region
      $region33: #{tpu_custom_call.1} parent=5 // pred_check
        %p219 = pneg %p218
      $region34: #{tpu_custom_call.1} parent=5 // pred_check_branch
        %221 = sbr.rel (%p219) target = $region36
      $region35: #{tpu_custom_call.1} parent=5 // pred_region
        // Predicated region
        $region37: #{tpu_custom_call.1} parent=35 // pred_check
          %p222 = pneg %p49
        $region38: #{tpu_custom_call.1} parent=35 // pred_check_branch
          %224 = sbr.rel (%p222) target = $region40
        $region39: #{tpu_custom_call.1} parent=35 // pred_region
          %s225 = smul.u32 2, %s23
          %p226 = scmp.lt.s32.totalorder %s22, 1
          %s227 = scalar_select %p226, %s22, 1
          %p228 = scmp.lt.s32.totalorder %s225, 7
          %s229 = scalar_select %p228, %s225, 7
          %s230 = smul.addr %s227, 8
          %s231 = sadd.s32 %s229, %s230
          %s232 = smul.addr %s231, 8
          %s233 = scalar_lea.vmem %s0, %s232
          %s234 = smul.u32 2, %s23
        $region40: #{tpu_custom_call.1} parent=35 // pred_fallthru
          _
      $region36: #{tpu_custom_call.1} parent=5 // pred_fallthru
        _
      %p235 = scmp.le.s32.totalorder 1, %s15
      %p236 = scmp.lt.s32.totalorder %s15, 9
      %p237 = pnand %p235, %p236
      %p238 = pneg %p237
      // Predicated region
      $region41: #{tpu_custom_call.1} parent=5 // pred_check
        _
      $region42: #{tpu_custom_call.1} parent=5 // pred_check_branch
        %240 = sbr.rel (%p237) target = $region44
      $region43: #{tpu_custom_call.1} parent=5 // pred_region
        %s241 = ssub.s32 %s15, 1
        %s242 = smul.u32 2, %s25
        %p243 = scmp.lt.s32.totalorder %s24, 1
        %s244 = scalar_select %p243, %s24, 1
        %p245 = scmp.lt.s32.totalorder %s242, 7
        %s246 = scalar_select %p245, %s242, 7
        %s247 = smul.addr %s244, 8
        %s248 = sadd.s32 %s246, %s247
        %s249 = smul.addr %s248, 8
        %s250 = scalar_lea.vmem %s0, %s249
        %p251 = pneg %p55
        %p252 = pneg %p52
        %p253 = pneg %p76
        %p254 = pneg %p73
        %p255 = pneg %p97
        %p256 = pneg %p94
        %p257 = pneg %p118
        %p258 = pneg %p115
        %p259 = pneg %p139
        %p260 = pneg %p136
        %p261 = pneg %p160
        %p262 = pneg %p157
        %p263 = pneg %p188
        %p264 = pneg %p185
        %s265 = sand.u32 %s175, 1
        %s266 = scalar_lea.sflag [#allocation3], %s265
        %s267 = sand.u32 %s175, 1
        %s268 = smul.addr %s267, 128
        %s269 = scalar_lea.vmem [#allocation2], %s268
        %s270 = smul.u32 2, %s25
        %p271 = scmp.lt.s32.totalorder %s24, 1
        %s272 = scalar_select %p271, %s24, 1
        %p273 = scmp.lt.s32.totalorder %s270, 7
        %s274 = scalar_select %p273, %s270, 7
        %s275 = smul.addr %s272, 8
        %s276 = sadd.s32 %s274, %s275
        %s277 = smul.addr %s276, 8
        %s278 = scalar_lea.vmem %s0, %s277
        %s279 = smul.u32 2, %s25
        %s280 = smul.u32 2, %s25
        %v281 = vld [vmem:[%s278] sm:$0xff]
        %v282 = vld [vmem:[%s278 + $0x8] sm:$0xff]
        %v283 = vld [vmem:[%s1] sm:$0xff]
        %v284 = vld [vmem:[%s1 + $0x8] sm:$0xff]
        %v285 = vld [vmem:[%s1 + $0x10] sm:$0xff]
        %v286 = vld [vmem:[%s1 + $0x18] sm:$0xff]
        %v287 = vld [vmem:[%s1 + $0x20] sm:$0xff]
        %v288 = vld [vmem:[%s1 + $0x28] sm:$0xff]
        %v289 = vld [vmem:[%s1 + $0x30] sm:$0xff]
        %v290 = vld [vmem:[%s1 + $0x38] sm:$0xff]
        %v299 = vcombine.high %v283, %v283
        %v300 = vcombine.high %v284, %v284
        %v301 = vcombine.high %v285, %v285
        %v302 = vcombine.high %v286, %v286
        %v303 = vcombine.high %v287, %v287
        %v304 = vcombine.high %v288, %v288
        %v305 = vcombine.high %v289, %v289
        %v306 = vcombine.high %v290, %v290
        %vm307 = vcmask 31744
        %v309 = vsel %vm307, %v281, 0
        %v312 = vsel %vm307, %v282, 0
        %vm314 = vcmask 1043456
        %v315 = vsel %vm314, %v283, 0
        %v317 = vsel %vm314, %v299, 0
        %v319 = vsel %vm314, %v284, 0
        %v321 = vsel %vm314, %v300, 0
        %v323 = vsel %vm314, %v285, 0
        %v325 = vsel %vm314, %v301, 0
        %v327 = vsel %vm314, %v286, 0
        %v329 = vsel %vm314, %v302, 0
        %v331 = vsel %vm314, %v287, 0
        %v333 = vsel %vm314, %v303, 0
        %v335 = vsel %vm314, %v288, 0
        %v337 = vsel %vm314, %v304, 0
        %v339 = vsel %vm314, %v289, 0
        %v341 = vsel %vm314, %v305, 0
        %v343 = vsel %vm314, %v290, 0
        %v345 = vsel %vm314, %v306, 0
        %347 = vmatprep.subr.mxu0 0.0
        %348 = vmatpush1.msra.mxu0 0.0
        %349 = vmatprep.subr.mxu0 0.0
        %350 = vmatpush1.msra.mxu0 0.0
        %351 = vmatprep.subr.mxu0 0.0
        %352 = vmatpush1.msra.mxu0 0.0
        %353 = vmatprep.subr.mxu0 0.0
        %354 = vmatpush1.msra.mxu0 0.0
        %355 = vmatprep.subr.mxu0 0.0
        %356 = vmatpush1.msra.mxu0 0.0
        %357 = vmatprep.subr.mxu0 0.0
        %358 = vmatpush1.msra.mxu0 0.0
        %359 = vmatprep.subr.mxu0 0.0
        %360 = vmatpush1.msra.mxu0 0.0
        %361 = vmatprep.subr.mxu0 0.0
        %362 = vmatpush1.msra.mxu0 0.0
        %363 = vmatprep.subr.mxu0 0.0
        %364 = vmatpush1.msra.mxu0 0.0
        %365 = vmatprep.subr.mxu0 0.0
        %366 = vmatpush1.msra.mxu0 0.0
        %367 = vmatprep.subr.mxu0 0.0
        %368 = vmatpush1.msra.mxu0 0.0
        %369 = vmatprep.subr.mxu0 0.0
        %370 = vmatpush1.msra.mxu0 0.0
        %371 = vmatprep.subr.mxu0 0.0
        %372 = vmatpush1.msra.mxu0 0.0
        %373 = vmatprep.subr.mxu0 0.0
        %374 = vmatpush1.msra.mxu0 0.0
        %375 = vmatprep.subr.mxu0 0.0
        %376 = vmatpush1.msra.mxu0 0.0
        %377 = vmatprep.subr.mxu0 %v317
        %378 = vmatpush1.msra.mxu0 %v315
        %379 = vmatprep.subr.mxu0 0.0
        %380 = vmatpush2.msra.mxu0 0.0
        %381 = vmatprep.subr.mxu0 0.0
        %382 = vmatpush2.msra.mxu0 0.0
        %383 = vmatprep.subr.mxu0 0.0
        %384 = vmatpush2.msra.mxu0 0.0
        %385 = vmatprep.subr.mxu0 0.0
        %386 = vmatpush2.msra.mxu0 0.0
        %387 = vmatprep.subr.mxu0 0.0
        %388 = vmatpush2.msra.mxu0 0.0
        %389 = vmatprep.subr.mxu0 0.0
        %390 = vmatpush2.msra.mxu0 0.0
        %391 = vmatprep.subr.mxu0 0.0
        %392 = vmatpush2.msra.mxu0 0.0
        %393 = vmatprep.subr.mxu0 0.0
        %394 = vmatpush2.msra.mxu0 0.0
        %395 = vmatprep.subr.mxu0 0.0
        %396 = vmatpush2.msra.mxu0 0.0
        %397 = vmatprep.subr.mxu0 0.0
        %398 = vmatpush2.msra.mxu0 0.0
        %399 = vmatprep.subr.mxu0 0.0
        %400 = vmatpush2.msra.mxu0 0.0
        %401 = vmatprep.subr.mxu0 0.0
        %402 = vmatpush2.msra.mxu0 0.0
        %403 = vmatprep.subr.mxu0 0.0
        %404 = vmatpush2.msra.mxu0 0.0
        %405 = vmatprep.subr.mxu0 0.0
        %406 = vmatpush2.msra.mxu0 0.0
        %407 = vmatprep.subr.mxu0 0.0
        %408 = vmatpush2.msra.mxu0 0.0
        %409 = vmatprep.subr.mxu0 0.0
        %410 = vmatpush2.msra.mxu0 0.0
        %411 = vmatprep.mubr.f32.mxu0 0.0
        %412 = vmatmul.mubr.f32.gmra.mxu0 %v309
        %v413 = vpop.f32.mrf.mxu0
        %v414 = vadd.f32 0.0, %v413
        %v415 = vpop.f32.mrf.mxu0
        %v416 = vadd.f32 0.0, %v415
        %417 = vmatprep.mubr.f32.mxu0 0.0
        %418 = vmatmul.mubr.f32.gmra.mxu0 %v312
        %v419 = vpop.f32.mrf.mxu0
        %v420 = vadd.f32 0.0, %v419
        %v421 = vpop.f32.mrf.mxu0
        %v422 = vadd.f32 0.0, %v421
        %423 = vdwg.mxu0
        %424 = vmatprep.subr.mxu0 0.0
        %425 = vmatpush1.msra.mxu0 0.0
        %426 = vmatprep.subr.mxu0 0.0
        %427 = vmatpush1.msra.mxu0 0.0
        %428 = vmatprep.subr.mxu0 0.0
        %429 = vmatpush1.msra.mxu0 0.0
        %430 = vmatprep.subr.mxu0 0.0
        %431 = vmatpush1.msra.mxu0 0.0
        %432 = vmatprep.subr.mxu0 0.0
        %433 = vmatpush1.msra.mxu0 0.0
        %434 = vmatprep.subr.mxu0 0.0
        %435 = vmatpush1.msra.mxu0 0.0
        %436 = vmatprep.subr.mxu0 0.0
        %437 = vmatpush1.msra.mxu0 0.0
        %438 = vmatprep.subr.mxu0 0.0
        %439 = vmatpush1.msra.mxu0 0.0
        %440 = vmatprep.subr.mxu0 0.0
        %441 = vmatpush1.msra.mxu0 0.0
        %442 = vmatprep.subr.mxu0 0.0
        %443 = vmatpush1.msra.mxu0 0.0
        %444 = vmatprep.subr.mxu0 0.0
        %445 = vmatpush1.msra.mxu0 0.0
        %446 = vmatprep.subr.mxu0 0.0
        %447 = vmatpush1.msra.mxu0 0.0
        %448 = vmatprep.subr.mxu0 0.0
        %449 = vmatpush1.msra.mxu0 0.0
        %450 = vmatprep.subr.mxu0 0.0
        %451 = vmatpush1.msra.mxu0 0.0
        %452 = vmatprep.subr.mxu0 0.0
        %453 = vmatpush1.msra.mxu0 0.0
        %454 = vmatprep.subr.mxu0 %v321
        %455 = vmatpush1.msra.mxu0 %v319
        %456 = vmatprep.subr.mxu0 0.0
        %457 = vmatpush2.msra.mxu0 0.0
        %458 = vmatprep.subr.mxu0 0.0
        %459 = vmatpush2.msra.mxu0 0.0
        %460 = vmatprep.subr.mxu0 0.0
        %461 = vmatpush2.msra.mxu0 0.0
        %462 = vmatprep.subr.mxu0 0.0
        %463 = vmatpush2.msra.mxu0 0.0
        %464 = vmatprep.subr.mxu0 0.0
        %465 = vmatpush2.msra.mxu0 0.0
        %466 = vmatprep.subr.mxu0 0.0
        %467 = vmatpush2.msra.mxu0 0.0
        %468 = vmatprep.subr.mxu0 0.0
        %469 = vmatpush2.msra.mxu0 0.0
        %470 = vmatprep.subr.mxu0 0.0
        %471 = vmatpush2.msra.mxu0 0.0
        %472 = vmatprep.subr.mxu0 0.0
        %473 = vmatpush2.msra.mxu0 0.0
        %474 = vmatprep.subr.mxu0 0.0
        %475 = vmatpush2.msra.mxu0 0.0
        %476 = vmatprep.subr.mxu0 0.0
        %477 = vmatpush2.msra.mxu0 0.0
        %478 = vmatprep.subr.mxu0 0.0
        %479 = vmatpush2.msra.mxu0 0.0
        %480 = vmatprep.subr.mxu0 0.0
        %481 = vmatpush2.msra.mxu0 0.0
        %482 = vmatprep.subr.mxu0 0.0
        %483 = vmatpush2.msra.mxu0 0.0
        %484 = vmatprep.subr.mxu0 0.0
        %485 = vmatpush2.msra.mxu0 0.0
        %486 = vmatprep.subr.mxu0 0.0
        %487 = vmatpush2.msra.mxu0 0.0
        %488 = vmatprep.mubr.f32.mxu0 0.0
        %489 = vmatmul.mubr.f32.gmra.mxu0 %v309
        %v490 = vpop.f32.mrf.mxu0
        %v491 = vadd.f32 0.0, %v490
        %v492 = vpop.f32.mrf.mxu0
        %v493 = vadd.f32 0.0, %v492
        %494 = vmatprep.mubr.f32.mxu0 0.0
        %495 = vmatmul.mubr.f32.gmra.mxu0 %v312
        %v496 = vpop.f32.mrf.mxu0
        %v497 = vadd.f32 0.0, %v496
        %v498 = vpop.f32.mrf.mxu0
        %v499 = vadd.f32 0.0, %v498
        %500 = vdwg.mxu0
        %501 = vmatprep.subr.mxu0 0.0
        %502 = vmatpush1.msra.mxu0 0.0
        %503 = vmatprep.subr.mxu0 0.0
        %504 = vmatpush1.msra.mxu0 0.0
        %505 = vmatprep.subr.mxu0 0.0
        %506 = vmatpush1.msra.mxu0 0.0
        %507 = vmatprep.subr.mxu0 0.0
        %508 = vmatpush1.msra.mxu0 0.0
        %509 = vmatprep.subr.mxu0 0.0
        %510 = vmatpush1.msra.mxu0 0.0
        %511 = vmatprep.subr.mxu0 0.0
        %512 = vmatpush1.msra.mxu0 0.0
        %513 = vmatprep.subr.mxu0 0.0
        %514 = vmatpush1.msra.mxu0 0.0
        %515 = vmatprep.subr.mxu0 0.0
        %516 = vmatpush1.msra.mxu0 0.0
        %517 = vmatprep.subr.mxu0 0.0
        %518 = vmatpush1.msra.mxu0 0.0
        %519 = vmatprep.subr.mxu0 0.0
        %520 = vmatpush1.msra.mxu0 0.0
        %521 = vmatprep.subr.mxu0 0.0
        %522 = vmatpush1.msra.mxu0 0.0
        %523 = vmatprep.subr.mxu0 0.0
        %524 = vmatpush1.msra.mxu0 0.0
        %525 = vmatprep.subr.mxu0 0.0
        %526 = vmatpush1.msra.mxu0 0.0
        %527 = vmatprep.subr.mxu0 0.0
        %528 = vmatpush1.msra.mxu0 0.0
        %529 = vmatprep.subr.mxu0 0.0
        %530 = vmatpush1.msra.mxu0 0.0
        %531 = vmatprep.subr.mxu0 %v325
        %532 = vmatpush1.msra.mxu0 %v323
        %533 = vmatprep.subr.mxu0 0.0
        %534 = vmatpush2.msra.mxu0 0.0
        %535 = vmatprep.subr.mxu0 0.0
        %536 = vmatpush2.msra.mxu0 0.0
        %537 = vmatprep.subr.mxu0 0.0
        %538 = vmatpush2.msra.mxu0 0.0
        %539 = vmatprep.subr.mxu0 0.0
        %540 = vmatpush2.msra.mxu0 0.0
        %541 = vmatprep.subr.mxu0 0.0
        %542 = vmatpush2.msra.mxu0 0.0
        %543 = vmatprep.subr.mxu0 0.0
        %544 = vmatpush2.msra.mxu0 0.0
        %545 = vmatprep.subr.mxu0 0.0
        %546 = vmatpush2.msra.mxu0 0.0
        %547 = vmatprep.subr.mxu0 0.0
        %548 = vmatpush2.msra.mxu0 0.0
        %549 = vmatprep.subr.mxu0 0.0
        %550 = vmatpush2.msra.mxu0 0.0
        %551 = vmatprep.subr.mxu0 0.0
        %552 = vmatpush2.msra.mxu0 0.0
        %553 = vmatprep.subr.mxu0 0.0
        %554 = vmatpush2.msra.mxu0 0.0
        %555 = vmatprep.subr.mxu0 0.0
        %556 = vmatpush2.msra.mxu0 0.0
        %557 = vmatprep.subr.mxu0 0.0
        %558 = vmatpush2.msra.mxu0 0.0
        %559 = vmatprep.subr.mxu0 0.0
        %560 = vmatpush2.msra.mxu0 0.0
        %561 = vmatprep.subr.mxu0 0.0
        %562 = vmatpush2.msra.mxu0 0.0
        %563 = vmatprep.subr.mxu0 0.0
        %564 = vmatpush2.msra.mxu0 0.0
        %565 = vmatprep.mubr.f32.mxu0 0.0
        %566 = vmatmul.mubr.f32.gmra.mxu0 %v309
        %v567 = vpop.f32.mrf.mxu0
        %v568 = vadd.f32 0.0, %v567
        %v569 = vpop.f32.mrf.mxu0
        %v570 = vadd.f32 0.0, %v569
        %571 = vmatprep.mubr.f32.mxu0 0.0
        %572 = vmatmul.mubr.f32.gmra.mxu0 %v312
        %v573 = vpop.f32.mrf.mxu0
        %v574 = vadd.f32 0.0, %v573
        %v575 = vpop.f32.mrf.mxu0
        %v576 = vadd.f32 0.0, %v575
        %577 = vdwg.mxu0
        %578 = vmatprep.subr.mxu0 0.0
        %579 = vmatpush1.msra.mxu0 0.0
        %580 = vmatprep.subr.mxu0 0.0
        %581 = vmatpush1.msra.mxu0 0.0
        %582 = vmatprep.subr.mxu0 0.0
        %583 = vmatpush1.msra.mxu0 0.0
        %584 = vmatprep.subr.mxu0 0.0
        %585 = vmatpush1.msra.mxu0 0.0
        %586 = vmatprep.subr.mxu0 0.0
        %587 = vmatpush1.msra.mxu0 0.0
        %588 = vmatprep.subr.mxu0 0.0
        %589 = vmatpush1.msra.mxu0 0.0
        %590 = vmatprep.subr.mxu0 0.0
        %591 = vmatpush1.msra.mxu0 0.0
        %592 = vmatprep.subr.mxu0 0.0
        %593 = vmatpush1.msra.mxu0 0.0
        %594 = vmatprep.subr.mxu0 0.0
        %595 = vmatpush1.msra.mxu0 0.0
        %596 = vmatprep.subr.mxu0 0.0
        %597 = vmatpush1.msra.mxu0 0.0
        %598 = vmatprep.subr.mxu0 0.0
        %599 = vmatpush1.msra.mxu0 0.0
        %600 = vmatprep.subr.mxu0 0.0
        %601 = vmatpush1.msra.mxu0 0.0
        %602 = vmatprep.subr.mxu0 0.0
        %603 = vmatpush1.msra.mxu0 0.0
        %604 = vmatprep.subr.mxu0 0.0
        %605 = vmatpush1.msra.mxu0 0.0
        %606 = vmatprep.subr.mxu0 0.0
        %607 = vmatpush1.msra.mxu0 0.0
        %608 = vmatprep.subr.mxu0 %v329
        %609 = vmatpush1.msra.mxu0 %v327
        %610 = vmatprep.subr.mxu0 0.0
        %611 = vmatpush2.msra.mxu0 0.0
        %612 = vmatprep.subr.mxu0 0.0
        %613 = vmatpush2.msra.mxu0 0.0
        %614 = vmatprep.subr.mxu0 0.0
        %615 = vmatpush2.msra.mxu0 0.0
        %616 = vmatprep.subr.mxu0 0.0
        %617 = vmatpush2.msra.mxu0 0.0
        %618 = vmatprep.subr.mxu0 0.0
        %619 = vmatpush2.msra.mxu0 0.0
        %620 = vmatprep.subr.mxu0 0.0
        %621 = vmatpush2.msra.mxu0 0.0
        %622 = vmatprep.subr.mxu0 0.0
        %623 = vmatpush2.msra.mxu0 0.0
        %624 = vmatprep.subr.mxu0 0.0
        %625 = vmatpush2.msra.mxu0 0.0
        %626 = vmatprep.subr.mxu0 0.0
        %627 = vmatpush2.msra.mxu0 0.0
        %628 = vmatprep.subr.mxu0 0.0
        %629 = vmatpush2.msra.mxu0 0.0
        %630 = vmatprep.subr.mxu0 0.0
        %631 = vmatpush2.msra.mxu0 0.0
        %632 = vmatprep.subr.mxu0 0.0
        %633 = vmatpush2.msra.mxu0 0.0
        %634 = vmatprep.subr.mxu0 0.0
        %635 = vmatpush2.msra.mxu0 0.0
        %636 = vmatprep.subr.mxu0 0.0
        %637 = vmatpush2.msra.mxu0 0.0
        %638 = vmatprep.subr.mxu0 0.0
        %639 = vmatpush2.msra.mxu0 0.0
        %640 = vmatprep.subr.mxu0 0.0
        %641 = vmatpush2.msra.mxu0 0.0
        %642 = vmatprep.mubr.f32.mxu0 0.0
        %643 = vmatmul.mubr.f32.gmra.mxu0 %v309
        %v644 = vpop.f32.mrf.mxu0
        %v645 = vadd.f32 0.0, %v644
        %v646 = vpop.f32.mrf.mxu0
        %v647 = vadd.f32 0.0, %v646
        %648 = vmatprep.mubr.f32.mxu0 0.0
        %649 = vmatmul.mubr.f32.gmra.mxu0 %v312
        %v650 = vpop.f32.mrf.mxu0
        %v651 = vadd.f32 0.0, %v650
        %v652 = vpop.f32.mrf.mxu0
        %v653 = vadd.f32 0.0, %v652
        %654 = vdwg.mxu0
        %655 = vmatprep.subr.mxu0 0.0
        %656 = vmatpush1.msra.mxu0 0.0
        %657 = vmatprep.subr.mxu0 0.0
        %658 = vmatpush1.msra.mxu0 0.0
        %659 = vmatprep.subr.mxu0 0.0
        %660 = vmatpush1.msra.mxu0 0.0
        %661 = vmatprep.subr.mxu0 0.0
        %662 = vmatpush1.msra.mxu0 0.0
        %663 = vmatprep.subr.mxu0 0.0
        %664 = vmatpush1.msra.mxu0 0.0
        %665 = vmatprep.subr.mxu0 0.0
        %666 = vmatpush1.msra.mxu0 0.0
        %667 = vmatprep.subr.mxu0 0.0
        %668 = vmatpush1.msra.mxu0 0.0
        %669 = vmatprep.subr.mxu0 0.0
        %670 = vmatpush1.msra.mxu0 0.0
        %671 = vmatprep.subr.mxu0 0.0
        %672 = vmatpush1.msra.mxu0 0.0
        %673 = vmatprep.subr.mxu0 0.0
        %674 = vmatpush1.msra.mxu0 0.0
        %675 = vmatprep.subr.mxu0 0.0
        %676 = vmatpush1.msra.mxu0 0.0
        %677 = vmatprep.subr.mxu0 0.0
        %678 = vmatpush1.msra.mxu0 0.0
        %679 = vmatprep.subr.mxu0 0.0
        %680 = vmatpush1.msra.mxu0 0.0
        %681 = vmatprep.subr.mxu0 0.0
        %682 = vmatpush1.msra.mxu0 0.0
        %683 = vmatprep.subr.mxu0 0.0
        %684 = vmatpush1.msra.mxu0 0.0
        %685 = vmatprep.subr.mxu0 %v333
        %686 = vmatpush1.msra.mxu0 %v331
        %687 = vmatprep.subr.mxu0 0.0
        %688 = vmatpush2.msra.mxu0 0.0
        %689 = vmatprep.subr.mxu0 0.0
        %690 = vmatpush2.msra.mxu0 0.0
        %691 = vmatprep.subr.mxu0 0.0
        %692 = vmatpush2.msra.mxu0 0.0
        %693 = vmatprep.subr.mxu0 0.0
        %694 = vmatpush2.msra.mxu0 0.0
        %695 = vmatprep.subr.mxu0 0.0
        %696 = vmatpush2.msra.mxu0 0.0
        %697 = vmatprep.subr.mxu0 0.0
        %698 = vmatpush2.msra.mxu0 0.0
        %699 = vmatprep.subr.mxu0 0.0
        %700 = vmatpush2.msra.mxu0 0.0
        %701 = vmatprep.subr.mxu0 0.0
        %702 = vmatpush2.msra.mxu0 0.0
        %703 = vmatprep.subr.mxu0 0.0
        %704 = vmatpush2.msra.mxu0 0.0
        %705 = vmatprep.subr.mxu0 0.0
        %706 = vmatpush2.msra.mxu0 0.0
        %707 = vmatprep.subr.mxu0 0.0
        %708 = vmatpush2.msra.mxu0 0.0
        %709 = vmatprep.subr.mxu0 0.0
        %710 = vmatpush2.msra.mxu0 0.0
        %711 = vmatprep.subr.mxu0 0.0
        %712 = vmatpush2.msra.mxu0 0.0
        %713 = vmatprep.subr.mxu0 0.0
        %714 = vmatpush2.msra.mxu0 0.0
        %715 = vmatprep.subr.mxu0 0.0
        %716 = vmatpush2.msra.mxu0 0.0
        %717 = vmatprep.subr.mxu0 0.0
        %718 = vmatpush2.msra.mxu0 0.0
        %719 = vmatprep.mubr.f32.mxu0 0.0
        %720 = vmatmul.mubr.f32.gmra.mxu0 %v309
        %v721 = vpop.f32.mrf.mxu0
        %v722 = vadd.f32 0.0, %v721
        %v723 = vpop.f32.mrf.mxu0
        %v724 = vadd.f32 0.0, %v723
        %725 = vmatprep.mubr.f32.mxu0 0.0
        %726 = vmatmul.mubr.f32.gmra.mxu0 %v312
        %v727 = vpop.f32.mrf.mxu0
        %v728 = vadd.f32 0.0, %v727
        %v729 = vpop.f32.mrf.mxu0
        %v730 = vadd.f32 0.0, %v729
        %731 = vdwg.mxu0
        %732 = vmatprep.subr.mxu0 0.0
        %733 = vmatpush1.msra.mxu0 0.0
        %734 = vmatprep.subr.mxu0 0.0
        %735 = vmatpush1.msra.mxu0 0.0
        %736 = vmatprep.subr.mxu0 0.0
        %737 = vmatpush1.msra.mxu0 0.0
        %738 = vmatprep.subr.mxu0 0.0
        %739 = vmatpush1.msra.mxu0 0.0
        %740 = vmatprep.subr.mxu0 0.0
        %741 = vmatpush1.msra.mxu0 0.0
        %742 = vmatprep.subr.mxu0 0.0
        %743 = vmatpush1.msra.mxu0 0.0
        %744 = vmatprep.subr.mxu0 0.0
        %745 = vmatpush1.msra.mxu0 0.0
        %746 = vmatprep.subr.mxu0 0.0
        %747 = vmatpush1.msra.mxu0 0.0
        %748 = vmatprep.subr.mxu0 0.0
        %749 = vmatpush1.msra.mxu0 0.0
        %750 = vmatprep.subr.mxu0 0.0
        %751 = vmatpush1.msra.mxu0 0.0
        %752 = vmatprep.subr.mxu0 0.0
        %753 = vmatpush1.msra.mxu0 0.0
        %754 = vmatprep.subr.mxu0 0.0
        %755 = vmatpush1.msra.mxu0 0.0
        %756 = vmatprep.subr.mxu0 0.0
        %757 = vmatpush1.msra.mxu0 0.0
        %758 = vmatprep.subr.mxu0 0.0
        %759 = vmatpush1.msra.mxu0 0.0
        %760 = vmatprep.subr.mxu0 0.0
        %761 = vmatpush1.msra.mxu0 0.0
        %762 = vmatprep.subr.mxu0 %v337
        %763 = vmatpush1.msra.mxu0 %v335
        %764 = vmatprep.subr.mxu0 0.0
        %765 = vmatpush2.msra.mxu0 0.0
        %766 = vmatprep.subr.mxu0 0.0
        %767 = vmatpush2.msra.mxu0 0.0
        %768 = vmatprep.subr.mxu0 0.0
        %769 = vmatpush2.msra.mxu0 0.0
        %770 = vmatprep.subr.mxu0 0.0
        %771 = vmatpush2.msra.mxu0 0.0
        %772 = vmatprep.subr.mxu0 0.0
        %773 = vmatpush2.msra.mxu0 0.0
        %774 = vmatprep.subr.mxu0 0.0
        %775 = vmatpush2.msra.mxu0 0.0
        %776 = vmatprep.subr.mxu0 0.0
        %777 = vmatpush2.msra.mxu0 0.0
        %778 = vmatprep.subr.mxu0 0.0
        %779 = vmatpush2.msra.mxu0 0.0
        %780 = vmatprep.subr.mxu0 0.0
        %781 = vmatpush2.msra.mxu0 0.0
        %782 = vmatprep.subr.mxu0 0.0
        %783 = vmatpush2.msra.mxu0 0.0
        %784 = vmatprep.subr.mxu0 0.0
        %785 = vmatpush2.msra.mxu0 0.0
        %786 = vmatprep.subr.mxu0 0.0
        %787 = vmatpush2.msra.mxu0 0.0
        %788 = vmatprep.subr.mxu0 0.0
        %789 = vmatpush2.msra.mxu0 0.0
        %790 = vmatprep.subr.mxu0 0.0
        %791 = vmatpush2.msra.mxu0 0.0
        %792 = vmatprep.subr.mxu0 0.0
        %793 = vmatpush2.msra.mxu0 0.0
        %794 = vmatprep.subr.mxu0 0.0
        %795 = vmatpush2.msra.mxu0 0.0
        %796 = vmatprep.mubr.f32.mxu0 0.0
        %797 = vmatmul.mubr.f32.gmra.mxu0 %v309
        %v798 = vpop.f32.mrf.mxu0
        %v799 = vadd.f32 0.0, %v798
        %v800 = vpop.f32.mrf.mxu0
        %v801 = vadd.f32 0.0, %v800
        %802 = vmatprep.mubr.f32.mxu0 0.0
        %803 = vmatmul.mubr.f32.gmra.mxu0 %v312
        %v804 = vpop.f32.mrf.mxu0
        %v805 = vadd.f32 0.0, %v804
        %v806 = vpop.f32.mrf.mxu0
        %v807 = vadd.f32 0.0, %v806
        %808 = vdwg.mxu0
        %809 = vmatprep.subr.mxu0 0.0
        %810 = vmatpush1.msra.mxu0 0.0
        %811 = vmatprep.subr.mxu0 0.0
        %812 = vmatpush1.msra.mxu0 0.0
        %813 = vmatprep.subr.mxu0 0.0
        %814 = vmatpush1.msra.mxu0 0.0
        %815 = vmatprep.subr.mxu0 0.0
        %816 = vmatpush1.msra.mxu0 0.0
        %817 = vmatprep.subr.mxu0 0.0
        %818 = vmatpush1.msra.mxu0 0.0
        %819 = vmatprep.subr.mxu0 0.0
        %820 = vmatpush1.msra.mxu0 0.0
        %821 = vmatprep.subr.mxu0 0.0
        %822 = vmatpush1.msra.mxu0 0.0
        %823 = vmatprep.subr.mxu0 0.0
        %824 = vmatpush1.msra.mxu0 0.0
        %825 = vmatprep.subr.mxu0 0.0
        %826 = vmatpush1.msra.mxu0 0.0
        %827 = vmatprep.subr.mxu0 0.0
        %828 = vmatpush1.msra.mxu0 0.0
        %829 = vmatprep.subr.mxu0 0.0
        %830 = vmatpush1.msra.mxu0 0.0
        %831 = vmatprep.subr.mxu0 0.0
        %832 = vmatpush1.msra.mxu0 0.0
        %833 = vmatprep.subr.mxu0 0.0
        %834 = vmatpush1.msra.mxu0 0.0
        %835 = vmatprep.subr.mxu0 0.0
        %836 = vmatpush1.msra.mxu0 0.0
        %837 = vmatprep.subr.mxu0 0.0
        %838 = vmatpush1.msra.mxu0 0.0
        %839 = vmatprep.subr.mxu0 %v341
        %840 = vmatpush1.msra.mxu0 %v339
        %841 = vmatprep.subr.mxu0 0.0
        %842 = vmatpush2.msra.mxu0 0.0
        %843 = vmatprep.subr.mxu0 0.0
        %844 = vmatpush2.msra.mxu0 0.0
        %845 = vmatprep.subr.mxu0 0.0
        %846 = vmatpush2.msra.mxu0 0.0
        %847 = vmatprep.subr.mxu0 0.0
        %848 = vmatpush2.msra.mxu0 0.0
        %849 = vmatprep.subr.mxu0 0.0
        %850 = vmatpush2.msra.mxu0 0.0
        %851 = vmatprep.subr.mxu0 0.0
        %852 = vmatpush2.msra.mxu0 0.0
        %853 = vmatprep.subr.mxu0 0.0
        %854 = vmatpush2.msra.mxu0 0.0
        %855 = vmatprep.subr.mxu0 0.0
        %856 = vmatpush2.msra.mxu0 0.0
        %857 = vmatprep.subr.mxu0 0.0
        %858 = vmatpush2.msra.mxu0 0.0
        %859 = vmatprep.subr.mxu0 0.0
        %860 = vmatpush2.msra.mxu0 0.0
        %861 = vmatprep.subr.mxu0 0.0
        %862 = vmatpush2.msra.mxu0 0.0
        %863 = vmatprep.subr.mxu0 0.0
        %864 = vmatpush2.msra.mxu0 0.0
        %865 = vmatprep.subr.mxu0 0.0
        %866 = vmatpush2.msra.mxu0 0.0
        %867 = vmatprep.subr.mxu0 0.0
        %868 = vmatpush2.msra.mxu0 0.0
        %869 = vmatprep.subr.mxu0 0.0
        %870 = vmatpush2.msra.mxu0 0.0
        %871 = vmatprep.subr.mxu0 0.0
        %872 = vmatpush2.msra.mxu0 0.0
        %873 = vmatprep.mubr.f32.mxu0 0.0
        %874 = vmatmul.mubr.f32.gmra.mxu0 %v309
        %v875 = vpop.f32.mrf.mxu0
        %v876 = vadd.f32 0.0, %v875
        %v877 = vpop.f32.mrf.mxu0
        %v878 = vadd.f32 0.0, %v877
        %879 = vmatprep.mubr.f32.mxu0 0.0
        %880 = vmatmul.mubr.f32.gmra.mxu0 %v312
        %v881 = vpop.f32.mrf.mxu0
        %v882 = vadd.f32 0.0, %v881
        %v883 = vpop.f32.mrf.mxu0
        %v884 = vadd.f32 0.0, %v883
        %885 = vdwg.mxu0
        %886 = vmatprep.subr.mxu0 0.0
        %887 = vmatpush1.msra.mxu0 0.0
        %888 = vmatprep.subr.mxu0 0.0
        %889 = vmatpush1.msra.mxu0 0.0
        %890 = vmatprep.subr.mxu0 0.0
        %891 = vmatpush1.msra.mxu0 0.0
        %892 = vmatprep.subr.mxu0 0.0
        %893 = vmatpush1.msra.mxu0 0.0
        %894 = vmatprep.subr.mxu0 0.0
        %895 = vmatpush1.msra.mxu0 0.0
        %896 = vmatprep.subr.mxu0 0.0
        %897 = vmatpush1.msra.mxu0 0.0
        %898 = vmatprep.subr.mxu0 0.0
        %899 = vmatpush1.msra.mxu0 0.0
        %900 = vmatprep.subr.mxu0 0.0
        %901 = vmatpush1.msra.mxu0 0.0
        %902 = vmatprep.subr.mxu0 0.0
        %903 = vmatpush1.msra.mxu0 0.0
        %904 = vmatprep.subr.mxu0 0.0
        %905 = vmatpush1.msra.mxu0 0.0
        %906 = vmatprep.subr.mxu0 0.0
        %907 = vmatpush1.msra.mxu0 0.0
        %908 = vmatprep.subr.mxu0 0.0
        %909 = vmatpush1.msra.mxu0 0.0
        %910 = vmatprep.subr.mxu0 0.0
        %911 = vmatpush1.msra.mxu0 0.0
        %912 = vmatprep.subr.mxu0 0.0
        %913 = vmatpush1.msra.mxu0 0.0
        %914 = vmatprep.subr.mxu0 0.0
        %915 = vmatpush1.msra.mxu0 0.0
        %916 = vmatprep.subr.mxu0 %v345
        %917 = vmatpush1.msra.mxu0 %v343
        %918 = vmatprep.subr.mxu0 0.0
        %919 = vmatpush2.msra.mxu0 0.0
        %920 = vmatprep.subr.mxu0 0.0
        %921 = vmatpush2.msra.mxu0 0.0
        %922 = vmatprep.subr.mxu0 0.0
        %923 = vmatpush2.msra.mxu0 0.0
        %924 = vmatprep.subr.mxu0 0.0
        %925 = vmatpush2.msra.mxu0 0.0
        %926 = vmatprep.subr.mxu0 0.0
        %927 = vmatpush2.msra.mxu0 0.0
        %928 = vmatprep.subr.mxu0 0.0
        %929 = vmatpush2.msra.mxu0 0.0
        %930 = vmatprep.subr.mxu0 0.0
        %931 = vmatpush2.msra.mxu0 0.0
        %932 = vmatprep.subr.mxu0 0.0
        %933 = vmatpush2.msra.mxu0 0.0
        %934 = vmatprep.subr.mxu0 0.0
        %935 = vmatpush2.msra.mxu0 0.0
        %936 = vmatprep.subr.mxu0 0.0
        %937 = vmatpush2.msra.mxu0 0.0
        %938 = vmatprep.subr.mxu0 0.0
        %939 = vmatpush2.msra.mxu0 0.0
        %940 = vmatprep.subr.mxu0 0.0
        %941 = vmatpush2.msra.mxu0 0.0
        %942 = vmatprep.subr.mxu0 0.0
        %943 = vmatpush2.msra.mxu0 0.0
        %944 = vmatprep.subr.mxu0 0.0
        %945 = vmatpush2.msra.mxu0 0.0
        %946 = vmatprep.subr.mxu0 0.0
        %947 = vmatpush2.msra.mxu0 0.0
        %948 = vmatprep.subr.mxu0 0.0
        %949 = vmatpush2.msra.mxu0 0.0
        %950 = vmatprep.mubr.f32.mxu0 0.0
        %951 = vmatmul.mubr.f32.gmra.mxu0 %v309
        %v952 = vpop.f32.mrf.mxu0
        %v953 = vadd.f32 0.0, %v952
        %v954 = vpop.f32.mrf.mxu0
        %v955 = vadd.f32 0.0, %v954
        %956 = vmatprep.mubr.f32.mxu0 0.0
        %957 = vmatmul.mubr.f32.gmra.mxu0 %v312
        %v958 = vpop.f32.mrf.mxu0
        %v959 = vadd.f32 0.0, %v958
        %v960 = vpop.f32.mrf.mxu0
        %v961 = vadd.f32 0.0, %v960
        %962 = vdwg.mxu0
        %v963 = vld [vmem:[%s2] sm:$0xf]
        %v965 = vsel %vm314, %v963, 0
        %967 = vmatprep.subr.mxu0 0.0
        %968 = vmatpush1.msra.mxu0 0.0
        %969 = vmatprep.subr.mxu0 0.0
        %970 = vmatpush1.msra.mxu0 0.0
        %971 = vmatprep.subr.mxu0 0.0
        %972 = vmatpush1.msra.mxu0 0.0
        %973 = vmatprep.subr.mxu0 0.0
        %974 = vmatpush1.msra.mxu0 0.0
        %975 = vmatprep.subr.mxu0 0.0
        %976 = vmatpush1.msra.mxu0 0.0
        %977 = vmatprep.subr.mxu0 0.0
        %978 = vmatpush1.msra.mxu0 0.0
        %979 = vmatprep.subr.mxu0 0.0
        %980 = vmatpush1.msra.mxu0 0.0
        %981 = vmatprep.subr.mxu0 0.0
        %982 = vmatpush1.msra.mxu0 0.0
        %983 = vmatprep.subr.mxu0 0.0
        %984 = vmatpush1.msra.mxu0 0.0
        %985 = vmatprep.subr.mxu0 0.0
        %986 = vmatpush1.msra.mxu0 0.0
        %987 = vmatprep.subr.mxu0 0.0
        %988 = vmatpush1.msra.mxu0 0.0
        %989 = vmatprep.subr.mxu0 0.0
        %990 = vmatpush1.msra.mxu0 0.0
        %991 = vmatprep.subr.mxu0 0.0
        %992 = vmatpush1.msra.mxu0 0.0
        %993 = vmatprep.subr.mxu0 0.0
        %994 = vmatpush1.msra.mxu0 0.0
        %995 = vmatprep.subr.mxu0 0.0
        %996 = vmatpush1.msra.mxu0 0.0
        %997 = vmatprep.subr.mxu0 0.0
        %998 = vmatpush1.msra.mxu0 %v965
        %999 = vmatprep.subr.mxu0 0.0
        %1000 = vmatpush2.msra.mxu0 0.0
        %1001 = vmatprep.subr.mxu0 0.0
        %1002 = vmatpush2.msra.mxu0 0.0
        %1003 = vmatprep.subr.mxu0 0.0
        %1004 = vmatpush2.msra.mxu0 0.0
        %1005 = vmatprep.subr.mxu0 0.0
        %1006 = vmatpush2.msra.mxu0 0.0
        %1007 = vmatprep.subr.mxu0 0.0
        %1008 = vmatpush2.msra.mxu0 0.0
        %1009 = vmatprep.subr.mxu0 0.0
        %1010 = vmatpush2.msra.mxu0 0.0
        %1011 = vmatprep.subr.mxu0 0.0
        %1012 = vmatpush2.msra.mxu0 0.0
        %1013 = vmatprep.subr.mxu0 0.0
        %1014 = vmatpush2.msra.mxu0 0.0
        %1015 = vmatprep.subr.mxu0 0.0
        %1016 = vmatpush2.msra.mxu0 0.0
        %1017 = vmatprep.subr.mxu0 0.0
        %1018 = vmatpush2.msra.mxu0 0.0
        %1019 = vmatprep.subr.mxu0 0.0
        %1020 = vmatpush2.msra.mxu0 0.0
        %1021 = vmatprep.subr.mxu0 0.0
        %1022 = vmatpush2.msra.mxu0 0.0
        %1023 = vmatprep.subr.mxu0 0.0
        %1024 = vmatpush2.msra.mxu0 0.0
        %1025 = vmatprep.subr.mxu0 0.0
        %1026 = vmatpush2.msra.mxu0 0.0
        %1027 = vmatprep.subr.mxu0 0.0
        %1028 = vmatpush2.msra.mxu0 0.0
        %1029 = vmatprep.subr.mxu0 0.0
        %1030 = vmatpush2.msra.mxu0 0.0
        %1031 = vmatprep.mubr.f32.mxu0 0.0
        %1032 = vmatmul.mubr.f32.gmra.mxu0 %v309
        %v1033 = vpop.f32.mrf.mxu0
        %v1034 = vadd.f32 0.0, %v1033
        %v1035 = vpop.f32.mrf.mxu0
        %1036 = vmatprep.mubr.f32.mxu0 0.0
        %1037 = vmatmul.mubr.f32.gmra.mxu0 %v312
        %v1038 = vpop.f32.mrf.mxu0
        %v1039 = vadd.f32 0.0, %v1038
        %v1040 = vpop.f32.mrf.mxu0
        %1041 = vdwg.mxu0
        %v1042 = vmul.f32 %v414, %v414
        %v1043 = vmul.f32 %v416, %v416
        %v1044 = vmul.f32 %v491, %v491
        %v1045 = vmul.f32 %v493, %v493
        %v1046 = vmul.f32 %v568, %v568
        %v1047 = vmul.f32 %v570, %v570
        %v1048 = vmul.f32 %v645, %v645
        %v1049 = vmul.f32 %v647, %v647
        %v1050 = vmul.f32 %v722, %v722
        %v1051 = vmul.f32 %v724, %v724
        %v1052 = vmul.f32 %v799, %v799
        %v1053 = vmul.f32 %v801, %v801
        %v1054 = vmul.f32 %v876, %v876
        %v1055 = vmul.f32 %v878, %v878
        %v1056 = vmul.f32 %v953, %v953
        %v1057 = vmul.f32 %v955, %v955
        %v1058 = vmul.f32 %v420, %v420
        %v1059 = vmul.f32 %v422, %v422
        %v1060 = vmul.f32 %v497, %v497
        %v1061 = vmul.f32 %v499, %v499
        %v1062 = vmul.f32 %v574, %v574
        %v1063 = vmul.f32 %v576, %v576
        %v1064 = vmul.f32 %v651, %v651
        %v1065 = vmul.f32 %v653, %v653
        %v1066 = vmul.f32 %v728, %v728
        %v1067 = vmul.f32 %v730, %v730
        %v1068 = vmul.f32 %v805, %v805
        %v1069 = vmul.f32 %v807, %v807
        %v1070 = vmul.f32 %v882, %v882
        %v1071 = vmul.f32 %v884, %v884
        %v1072 = vmul.f32 %v959, %v959
        %v1073 = vmul.f32 %v961, %v961
        %v1074 = vld [vmem:[%s3] sm:$0xff]
        %v1075 = vld [vmem:[%s3 + $0x8] sm:$0xff]
        %v1076 = vld [vmem:[%s3 + $0x10] sm:$0xff]
        %v1077 = vld [vmem:[%s3 + $0x18] sm:$0xff]
        %v1078 = vld [vmem:[%s3 + $0x20] sm:$0xff]
        %v1079 = vld [vmem:[%s3 + $0x28] sm:$0xff]
        %v1080 = vld [vmem:[%s3 + $0x30] sm:$0xff]
        %v1081 = vld [vmem:[%s3 + $0x38] sm:$0xff]
        %v1082 = vld [vmem:[%s3 + $0x40] sm:$0xff]
        %v1083 = vld [vmem:[%s3 + $0x48] sm:$0xff]
        %v1084 = vld [vmem:[%s3 + $0x50] sm:$0xff]
        %v1085 = vld [vmem:[%s3 + $0x58] sm:$0xff]
        %v1086 = vld [vmem:[%s3 + $0x60] sm:$0xff]
        %v1087 = vld [vmem:[%s3 + $0x68] sm:$0xff]
        %v1088 = vld [vmem:[%s3 + $0x70] sm:$0xff]
        %v1089 = vld [vmem:[%s3 + $0x78] sm:$0xff]
        %v1090 = vld [vmem:[%s3 + $0x80] sm:$0xff]
        %v1091 = vld [vmem:[%s3 + $0x88] sm:$0xff]
        %v1092 = vld [vmem:[%s3 + $0x90] sm:$0xff]
        %v1093 = vld [vmem:[%s3 + $0x98] sm:$0xff]
        %v1094 = vld [vmem:[%s3 + $0xa0] sm:$0xff]
        %v1095 = vld [vmem:[%s3 + $0xa8] sm:$0xff]
        %v1096 = vld [vmem:[%s3 + $0xb0] sm:$0xff]
        %v1097 = vld [vmem:[%s3 + $0xb8] sm:$0xff]
        %v1098 = vld [vmem:[%s3 + $0xc0] sm:$0xff]
        %v1099 = vld [vmem:[%s3 + $0xc8] sm:$0xff]
        %v1100 = vld [vmem:[%s3 + $0xd0] sm:$0xff]
        %v1101 = vld [vmem:[%s3 + $0xd8] sm:$0xff]
        %v1102 = vld [vmem:[%s3 + $0xe0] sm:$0xff]
        %v1103 = vld [vmem:[%s3 + $0xe8] sm:$0xff]
        %v1104 = vld [vmem:[%s3 + $0xf0] sm:$0xff]
        %v1105 = vld [vmem:[%s3 + $0xf8] sm:$0xff]
        %v1106 = vld [vmem:[%s3 + $0x100] sm:$0xff]
        %v1107 = vld [vmem:[%s3 + $0x108] sm:$0xff]
        %v1108 = vld [vmem:[%s3 + $0x110] sm:$0xff]
        %v1109 = vld [vmem:[%s3 + $0x118] sm:$0xff]
        %v1110 = vld [vmem:[%s3 + $0x120] sm:$0xff]
        %v1111 = vld [vmem:[%s3 + $0x128] sm:$0xff]
        %v1112 = vld [vmem:[%s3 + $0x130] sm:$0xff]
        %v1113 = vld [vmem:[%s3 + $0x138] sm:$0xff]
        %v1114 = vld [vmem:[%s3 + $0x140] sm:$0xff]
        %v1115 = vld [vmem:[%s3 + $0x148] sm:$0xff]
        %v1116 = vld [vmem:[%s3 + $0x150] sm:$0xff]
        %v1117 = vld [vmem:[%s3 + $0x158] sm:$0xff]
        %v1118 = vld [vmem:[%s3 + $0x160] sm:$0xff]
        %v1119 = vld [vmem:[%s3 + $0x168] sm:$0xff]
        %v1120 = vld [vmem:[%s3 + $0x170] sm:$0xff]
        %v1121 = vld [vmem:[%s3 + $0x178] sm:$0xff]
        %v1122 = vld [vmem:[%s3 + $0x180] sm:$0xff]
        %v1123 = vld [vmem:[%s3 + $0x188] sm:$0xff]
        %v1124 = vld [vmem:[%s3 + $0x190] sm:$0xff]
        %v1125 = vld [vmem:[%s3 + $0x198] sm:$0xff]
        %v1126 = vld [vmem:[%s3 + $0x1a0] sm:$0xff]
        %v1127 = vld [vmem:[%s3 + $0x1a8] sm:$0xff]
        %v1128 = vld [vmem:[%s3 + $0x1b0] sm:$0xff]
        %v1129 = vld [vmem:[%s3 + $0x1b8] sm:$0xff]
        %v1130 = vld [vmem:[%s3 + $0x1c0] sm:$0xff]
        %v1131 = vld [vmem:[%s3 + $0x1c8] sm:$0xff]
        %v1132 = vld [vmem:[%s3 + $0x1d0] sm:$0xff]
        %v1133 = vld [vmem:[%s3 + $0x1d8] sm:$0xff]
        %v1134 = vld [vmem:[%s3 + $0x1e0] sm:$0xff]
        %v1135 = vld [vmem:[%s3 + $0x1e8] sm:$0xff]
        %v1136 = vld [vmem:[%s3 + $0x1f0] sm:$0xff]
        %v1137 = vld [vmem:[%s3 + $0x1f8] sm:$0xff]
        %v1138 = vld [vmem:[%s3 + $0x200] sm:$0xff]
        %v1139 = vld [vmem:[%s3 + $0x208] sm:$0xff]
        %v1140 = vld [vmem:[%s3 + $0x210] sm:$0xff]
        %v1141 = vld [vmem:[%s3 + $0x218] sm:$0xff]
        %v1142 = vld [vmem:[%s3 + $0x220] sm:$0xff]
        %v1143 = vld [vmem:[%s3 + $0x228] sm:$0xff]
        %v1144 = vld [vmem:[%s3 + $0x230] sm:$0xff]
        %v1145 = vld [vmem:[%s3 + $0x238] sm:$0xff]
        %v1146 = vld [vmem:[%s3 + $0x240] sm:$0xff]
        %v1147 = vld [vmem:[%s3 + $0x248] sm:$0xff]
        %v1148 = vld [vmem:[%s3 + $0x250] sm:$0xff]
        %v1149 = vld [vmem:[%s3 + $0x258] sm:$0xff]
        %v1150 = vld [vmem:[%s3 + $0x260] sm:$0xff]
        %v1151 = vld [vmem:[%s3 + $0x268] sm:$0xff]
        %v1152 = vld [vmem:[%s3 + $0x270] sm:$0xff]
        %v1153 = vld [vmem:[%s3 + $0x278] sm:$0xff]
        %v1154 = vld [vmem:[%s3 + $0x280] sm:$0xff]
        %v1155 = vld [vmem:[%s3 + $0x288] sm:$0xff]
        %v1156 = vld [vmem:[%s3 + $0x290] sm:$0xff]
        %v1157 = vld [vmem:[%s3 + $0x298] sm:$0xff]
        %v1158 = vld [vmem:[%s3 + $0x2a0] sm:$0xff]
        %v1159 = vld [vmem:[%s3 + $0x2a8] sm:$0xff]
        %v1160 = vld [vmem:[%s3 + $0x2b0] sm:$0xff]
        %v1161 = vld [vmem:[%s3 + $0x2b8] sm:$0xff]
        %v1162 = vld [vmem:[%s3 + $0x2c0] sm:$0xff]
        %v1163 = vld [vmem:[%s3 + $0x2c8] sm:$0xff]
        %v1164 = vld [vmem:[%s3 + $0x2d0] sm:$0xff]
        %v1165 = vld [vmem:[%s3 + $0x2d8] sm:$0xff]
        %v1166 = vld [vmem:[%s3 + $0x2e0] sm:$0xff]
        %v1167 = vld [vmem:[%s3 + $0x2e8] sm:$0xff]
        %v1168 = vld [vmem:[%s3 + $0x2f0] sm:$0xff]
        %v1169 = vld [vmem:[%s3 + $0x2f8] sm:$0xff]
        %v1170 = vld [vmem:[%s3 + $0x300] sm:$0xff]
        %v1171 = vld [vmem:[%s3 + $0x308] sm:$0xff]
        %v1172 = vld [vmem:[%s3 + $0x310] sm:$0xff]
        %v1173 = vld [vmem:[%s3 + $0x318] sm:$0xff]
        %v1174 = vld [vmem:[%s3 + $0x320] sm:$0xff]
        %v1175 = vld [vmem:[%s3 + $0x328] sm:$0xff]
        %v1176 = vld [vmem:[%s3 + $0x330] sm:$0xff]
        %v1177 = vld [vmem:[%s3 + $0x338] sm:$0xff]
        %v1178 = vld [vmem:[%s3 + $0x340] sm:$0xff]
        %v1179 = vld [vmem:[%s3 + $0x348] sm:$0xff]
        %v1180 = vld [vmem:[%s3 + $0x350] sm:$0xff]
        %v1181 = vld [vmem:[%s3 + $0x358] sm:$0xff]
        %v1182 = vld [vmem:[%s3 + $0x360] sm:$0xff]
        %v1183 = vld [vmem:[%s3 + $0x368] sm:$0xff]
        %v1184 = vld [vmem:[%s3 + $0x370] sm:$0xff]
        %v1185 = vld [vmem:[%s3 + $0x378] sm:$0xff]
        %v1186 = vld [vmem:[%s3 + $0x380] sm:$0xff]
        %v1187 = vld [vmem:[%s3 + $0x388] sm:$0xff]
        %v1188 = vld [vmem:[%s3 + $0x390] sm:$0xff]
        %v1189 = vld [vmem:[%s3 + $0x398] sm:$0xff]
        %v1190 = vld [vmem:[%s3 + $0x3a0] sm:$0xff]
        %v1191 = vld [vmem:[%s3 + $0x3a8] sm:$0xff]
        %v1192 = vld [vmem:[%s3 + $0x3b0] sm:$0xff]
        %v1193 = vld [vmem:[%s3 + $0x3b8] sm:$0xff]
        %v1194 = vld [vmem:[%s3 + $0x3c0] sm:$0xff]
        %v1195 = vld [vmem:[%s3 + $0x3c8] sm:$0xff]
        %v1196 = vld [vmem:[%s3 + $0x3d0] sm:$0xff]
        %v1197 = vld [vmem:[%s3 + $0x3d8] sm:$0xff]
        %v1198 = vld [vmem:[%s3 + $0x3e0] sm:$0xff]
        %v1199 = vld [vmem:[%s3 + $0x3e8] sm:$0xff]
        %v1200 = vld [vmem:[%s3 + $0x3f0] sm:$0xff]
        %v1201 = vld [vmem:[%s3 + $0x3f8] sm:$0xff]
        %v1202 = vld [vmem:[%s3 + $0x400] sm:$0xff]
        %v1203 = vld [vmem:[%s3 + $0x408] sm:$0xff]
        %v1204 = vld [vmem:[%s3 + $0x410] sm:$0xff]
        %v1205 = vld [vmem:[%s3 + $0x418] sm:$0xff]
        %v1206 = vld [vmem:[%s3 + $0x420] sm:$0xff]
        %v1207 = vld [vmem:[%s3 + $0x428] sm:$0xff]
        %v1208 = vld [vmem:[%s3 + $0x430] sm:$0xff]
        %v1209 = vld [vmem:[%s3 + $0x438] sm:$0xff]
        %v1210 = vld [vmem:[%s3 + $0x440] sm:$0xff]
        %v1211 = vld [vmem:[%s3 + $0x448] sm:$0xff]
        %v1212 = vld [vmem:[%s3 + $0x450] sm:$0xff]
        %v1213 = vld [vmem:[%s3 + $0x458] sm:$0xff]
        %v1214 = vld [vmem:[%s3 + $0x460] sm:$0xff]
        %v1215 = vld [vmem:[%s3 + $0x468] sm:$0xff]
        %v1216 = vld [vmem:[%s3 + $0x470] sm:$0xff]
        %v1217 = vld [vmem:[%s3 + $0x478] sm:$0xff]
        %v1218 = vld [vmem:[%s3 + $0x480] sm:$0xff]
        %v1219 = vld [vmem:[%s3 + $0x488] sm:$0xff]
        %v1220 = vld [vmem:[%s3 + $0x490] sm:$0xff]
        %v1221 = vld [vmem:[%s3 + $0x498] sm:$0xff]
        %v1222 = vld [vmem:[%s3 + $0x4a0] sm:$0xff]
        %v1223 = vld [vmem:[%s3 + $0x4a8] sm:$0xff]
        %v1224 = vld [vmem:[%s3 + $0x4b0] sm:$0xff]
        %v1225 = vld [vmem:[%s3 + $0x4b8] sm:$0xff]
        %v1226 = vld [vmem:[%s3 + $0x4c0] sm:$0xff]
        %v1227 = vld [vmem:[%s3 + $0x4c8] sm:$0xff]
        %v1228 = vld [vmem:[%s3 + $0x4d0] sm:$0xff]
        %v1229 = vld [vmem:[%s3 + $0x4d8] sm:$0xff]
        %v1230 = vld [vmem:[%s3 + $0x4e0] sm:$0xff]
        %v1231 = vld [vmem:[%s3 + $0x4e8] sm:$0xff]
        %v1232 = vld [vmem:[%s3 + $0x4f0] sm:$0xff]
        %v1233 = vld [vmem:[%s3 + $0x4f8] sm:$0xff]
        %v1234 = vld [vmem:[%s3 + $0x500] sm:$0xff]
        %v1235 = vld [vmem:[%s3 + $0x508] sm:$0xff]
        %v1236 = vld [vmem:[%s3 + $0x510] sm:$0xff]
        %v1237 = vld [vmem:[%s3 + $0x518] sm:$0xff]
        %v1238 = vld [vmem:[%s3 + $0x520] sm:$0xff]
        %v1239 = vld [vmem:[%s3 + $0x528] sm:$0xff]
        %v1240 = vld [vmem:[%s3 + $0x530] sm:$0xff]
        %v1241 = vld [vmem:[%s3 + $0x538] sm:$0xff]
        %v1242 = vld [vmem:[%s3 + $0x540] sm:$0xff]
        %v1243 = vld [vmem:[%s3 + $0x548] sm:$0xff]
        %v1244 = vld [vmem:[%s3 + $0x550] sm:$0xff]
        %v1245 = vld [vmem:[%s3 + $0x558] sm:$0xff]
        %v1246 = vld [vmem:[%s3 + $0x560] sm:$0xff]
        %v1247 = vld [vmem:[%s3 + $0x568] sm:$0xff]
        %v1248 = vld [vmem:[%s3 + $0x570] sm:$0xff]
        %v1249 = vld [vmem:[%s3 + $0x578] sm:$0xff]
        %v1250 = vld [vmem:[%s3 + $0x580] sm:$0xff]
        %v1251 = vld [vmem:[%s3 + $0x588] sm:$0xff]
        %v1252 = vld [vmem:[%s3 + $0x590] sm:$0xff]
        %v1253 = vld [vmem:[%s3 + $0x598] sm:$0xff]
        %v1254 = vld [vmem:[%s3 + $0x5a0] sm:$0xff]
        %v1255 = vld [vmem:[%s3 + $0x5a8] sm:$0xff]
        %v1256 = vld [vmem:[%s3 + $0x5b0] sm:$0xff]
        %v1257 = vld [vmem:[%s3 + $0x5b8] sm:$0xff]
        %v1258 = vld [vmem:[%s3 + $0x5c0] sm:$0xff]
        %v1259 = vld [vmem:[%s3 + $0x5c8] sm:$0xff]
        %v1260 = vld [vmem:[%s3 + $0x5d0] sm:$0xff]
        %v1261 = vld [vmem:[%s3 + $0x5d8] sm:$0xff]
        %v1262 = vld [vmem:[%s3 + $0x5e0] sm:$0xff]
        %v1263 = vld [vmem:[%s3 + $0x5e8] sm:$0xff]
        %v1264 = vld [vmem:[%s3 + $0x5f0] sm:$0xff]
        %v1265 = vld [vmem:[%s3 + $0x5f8] sm:$0xff]
        %v1266 = vld [vmem:[%s3 + $0x600] sm:$0xff]
        %v1267 = vld [vmem:[%s3 + $0x608] sm:$0xff]
        %v1268 = vld [vmem:[%s3 + $0x610] sm:$0xff]
        %v1269 = vld [vmem:[%s3 + $0x618] sm:$0xff]
        %v1270 = vld [vmem:[%s3 + $0x620] sm:$0xff]
        %v1271 = vld [vmem:[%s3 + $0x628] sm:$0xff]
        %v1272 = vld [vmem:[%s3 + $0x630] sm:$0xff]
        %v1273 = vld [vmem:[%s3 + $0x638] sm:$0xff]
        %v1274 = vld [vmem:[%s3 + $0x640] sm:$0xff]
        %v1275 = vld [vmem:[%s3 + $0x648] sm:$0xff]
        %v1276 = vld [vmem:[%s3 + $0x650] sm:$0xff]
        %v1277 = vld [vmem:[%s3 + $0x658] sm:$0xff]
        %v1278 = vld [vmem:[%s3 + $0x660] sm:$0xff]
        %v1279 = vld [vmem:[%s3 + $0x668] sm:$0xff]
        %v1280 = vld [vmem:[%s3 + $0x670] sm:$0xff]
        %v1281 = vld [vmem:[%s3 + $0x678] sm:$0xff]
        %v1282 = vld [vmem:[%s3 + $0x680] sm:$0xff]
        %v1283 = vld [vmem:[%s3 + $0x688] sm:$0xff]
        %v1284 = vld [vmem:[%s3 + $0x690] sm:$0xff]
        %v1285 = vld [vmem:[%s3 + $0x698] sm:$0xff]
        %v1286 = vld [vmem:[%s3 + $0x6a0] sm:$0xff]
        %v1287 = vld [vmem:[%s3 + $0x6a8] sm:$0xff]
        %v1288 = vld [vmem:[%s3 + $0x6b0] sm:$0xff]
        %v1289 = vld [vmem:[%s3 + $0x6b8] sm:$0xff]
        %v1290 = vld [vmem:[%s3 + $0x6c0] sm:$0xff]
        %v1291 = vld [vmem:[%s3 + $0x6c8] sm:$0xff]
        %v1292 = vld [vmem:[%s3 + $0x6d0] sm:$0xff]
        %v1293 = vld [vmem:[%s3 + $0x6d8] sm:$0xff]
        %v1294 = vld [vmem:[%s3 + $0x6e0] sm:$0xff]
        %v1295 = vld [vmem:[%s3 + $0x6e8] sm:$0xff]
        %v1296 = vld [vmem:[%s3 + $0x6f0] sm:$0xff]
        %v1297 = vld [vmem:[%s3 + $0x6f8] sm:$0xff]
        %v1298 = vld [vmem:[%s3 + $0x700] sm:$0xff]
        %v1299 = vld [vmem:[%s3 + $0x708] sm:$0xff]
        %v1300 = vld [vmem:[%s3 + $0x710] sm:$0xff]
        %v1301 = vld [vmem:[%s3 + $0x718] sm:$0xff]
        %v1302 = vld [vmem:[%s3 + $0x720] sm:$0xff]
        %v1303 = vld [vmem:[%s3 + $0x728] sm:$0xff]
        %v1304 = vld [vmem:[%s3 + $0x730] sm:$0xff]
        %v1305 = vld [vmem:[%s3 + $0x738] sm:$0xff]
        %v1306 = vld [vmem:[%s3 + $0x740] sm:$0xff]
        %v1307 = vld [vmem:[%s3 + $0x748] sm:$0xff]
        %v1308 = vld [vmem:[%s3 + $0x750] sm:$0xff]
        %v1309 = vld [vmem:[%s3 + $0x758] sm:$0xff]
        %v1310 = vld [vmem:[%s3 + $0x760] sm:$0xff]
        %v1311 = vld [vmem:[%s3 + $0x768] sm:$0xff]
        %v1312 = vld [vmem:[%s3 + $0x770] sm:$0xff]
        %v1313 = vld [vmem:[%s3 + $0x778] sm:$0xff]
        %v1314 = vld [vmem:[%s3 + $0x780] sm:$0xff]
        %v1315 = vld [vmem:[%s3 + $0x788] sm:$0xff]
        %v1316 = vld [vmem:[%s3 + $0x790] sm:$0xff]
        %v1317 = vld [vmem:[%s3 + $0x798] sm:$0xff]
        %v1318 = vld [vmem:[%s3 + $0x7a0] sm:$0xff]
        %v1319 = vld [vmem:[%s3 + $0x7a8] sm:$0xff]
        %v1320 = vld [vmem:[%s3 + $0x7b0] sm:$0xff]
        %v1321 = vld [vmem:[%s3 + $0x7b8] sm:$0xff]
        %v1322 = vld [vmem:[%s3 + $0x7c0] sm:$0xff]
        %v1323 = vld [vmem:[%s3 + $0x7c8] sm:$0xff]
        %v1324 = vld [vmem:[%s3 + $0x7d0] sm:$0xff]
        %v1325 = vld [vmem:[%s3 + $0x7d8] sm:$0xff]
        %v1326 = vld [vmem:[%s3 + $0x7e0] sm:$0xff]
        %v1327 = vld [vmem:[%s3 + $0x7e8] sm:$0xff]
        %v1328 = vld [vmem:[%s3 + $0x7f0] sm:$0xff]
        %v1329 = vld [vmem:[%s3 + $0x7f8] sm:$0xff]
        %1330 = vmatprep.subr.mxu0 0.0
        %1331 = vmatpush1.msra.mxu0 %v1089
        %1332 = vmatprep.subr.mxu0 0.0
        %1333 = vmatpush1.msra.mxu0 %v1088
        %1334 = vmatprep.subr.mxu0 0.0
        %1335 = vmatpush1.msra.mxu0 %v1087
        %1336 = vmatprep.subr.mxu0 0.0
        %1337 = vmatpush1.msra.mxu0 %v1086
        %1338 = vmatprep.subr.mxu0 0.0
        %1339 = vmatpush1.msra.mxu0 %v1085
        %1340 = vmatprep.subr.mxu0 0.0
        %1341 = vmatpush1.msra.mxu0 %v1084
        %1342 = vmatprep.subr.mxu0 0.0
        %1343 = vmatpush1.msra.mxu0 %v1083
        %1344 = vmatprep.subr.mxu0 0.0
        %1345 = vmatpush1.msra.mxu0 %v1082
        %1346 = vmatprep.subr.mxu0 0.0
        %1347 = vmatpush1.msra.mxu0 %v1081
        %1348 = vmatprep.subr.mxu0 0.0
        %1349 = vmatpush1.msra.mxu0 %v1080
        %1350 = vmatprep.subr.mxu0 0.0
        %1351 = vmatpush1.msra.mxu0 %v1079
        %1352 = vmatprep.subr.mxu0 0.0
        %1353 = vmatpush1.msra.mxu0 %v1078
        %1354 = vmatprep.subr.mxu0 0.0
        %1355 = vmatpush1.msra.mxu0 %v1077
        %1356 = vmatprep.subr.mxu0 0.0
        %1357 = vmatpush1.msra.mxu0 %v1076
        %1358 = vmatprep.subr.mxu0 0.0
        %1359 = vmatpush1.msra.mxu0 %v1075
        %1360 = vmatprep.subr.mxu0 0.0
        %1361 = vmatpush1.msra.mxu0 %v1074
        %1362 = vmatprep.subr.mxu0 0.0
        %1363 = vmatpush2.msra.mxu0 %v1105
        %1364 = vmatprep.subr.mxu0 0.0
        %1365 = vmatpush2.msra.mxu0 %v1104
        %1366 = vmatprep.subr.mxu0 0.0
        %1367 = vmatpush2.msra.mxu0 %v1103
        %1368 = vmatprep.subr.mxu0 0.0
        %1369 = vmatpush2.msra.mxu0 %v1102
        %1370 = vmatprep.subr.mxu0 0.0
        %1371 = vmatpush2.msra.mxu0 %v1101
        %1372 = vmatprep.subr.mxu0 0.0
        %1373 = vmatpush2.msra.mxu0 %v1100
        %1374 = vmatprep.subr.mxu0 0.0
        %1375 = vmatpush2.msra.mxu0 %v1099
        %1376 = vmatprep.subr.mxu0 0.0
        %1377 = vmatpush2.msra.mxu0 %v1098
        %1378 = vmatprep.subr.mxu0 0.0
        %1379 = vmatpush2.msra.mxu0 %v1097
        %1380 = vmatprep.subr.mxu0 0.0
        %1381 = vmatpush2.msra.mxu0 %v1096
        %1382 = vmatprep.subr.mxu0 0.0
        %1383 = vmatpush2.msra.mxu0 %v1095
        %1384 = vmatprep.subr.mxu0 0.0
        %1385 = vmatpush2.msra.mxu0 %v1094
        %1386 = vmatprep.subr.mxu0 0.0
        %1387 = vmatpush2.msra.mxu0 %v1093
        %1388 = vmatprep.subr.mxu0 0.0
        %1389 = vmatpush2.msra.mxu0 %v1092
        %1390 = vmatprep.subr.mxu0 0.0
        %1391 = vmatpush2.msra.mxu0 %v1091
        %1392 = vmatprep.subr.mxu0 0.0
        %1393 = vmatpush2.msra.mxu0 %v1090
        %1394 = vmatprep.mubr.f32.mxu0 %v1043
        %1395 = vmatmul.mubr.f32.gmra.mxu0 %v1042
        %v1396 = vpop.f32.mrf.mxu0
        %v1397 = vadd.f32 0.0, %v1396
        %v1398 = vpop.f32.mrf.mxu0
        %1399 = vmatprep.mubr.f32.mxu0 %v1059
        %1400 = vmatmul.mubr.f32.gmra.mxu0 %v1058
        %v1401 = vpop.f32.mrf.mxu0
        %v1402 = vadd.f32 0.0, %v1401
        %v1403 = vpop.f32.mrf.mxu0
        %1404 = vdwg.mxu0
        %1405 = vmatprep.subr.mxu0 0.0
        %1406 = vmatpush1.msra.mxu0 %v1121
        %1407 = vmatprep.subr.mxu0 0.0
        %1408 = vmatpush1.msra.mxu0 %v1120
        %1409 = vmatprep.subr.mxu0 0.0
        %1410 = vmatpush1.msra.mxu0 %v1119
        %1411 = vmatprep.subr.mxu0 0.0
        %1412 = vmatpush1.msra.mxu0 %v1118
        %1413 = vmatprep.subr.mxu0 0.0
        %1414 = vmatpush1.msra.mxu0 %v1117
        %1415 = vmatprep.subr.mxu0 0.0
        %1416 = vmatpush1.msra.mxu0 %v1116
        %1417 = vmatprep.subr.mxu0 0.0
        %1418 = vmatpush1.msra.mxu0 %v1115
        %1419 = vmatprep.subr.mxu0 0.0
        %1420 = vmatpush1.msra.mxu0 %v1114
        %1421 = vmatprep.subr.mxu0 0.0
        %1422 = vmatpush1.msra.mxu0 %v1113
        %1423 = vmatprep.subr.mxu0 0.0
        %1424 = vmatpush1.msra.mxu0 %v1112
        %1425 = vmatprep.subr.mxu0 0.0
        %1426 = vmatpush1.msra.mxu0 %v1111
        %1427 = vmatprep.subr.mxu0 0.0
        %1428 = vmatpush1.msra.mxu0 %v1110
        %1429 = vmatprep.subr.mxu0 0.0
        %1430 = vmatpush1.msra.mxu0 %v1109
        %1431 = vmatprep.subr.mxu0 0.0
        %1432 = vmatpush1.msra.mxu0 %v1108
        %1433 = vmatprep.subr.mxu0 0.0
        %1434 = vmatpush1.msra.mxu0 %v1107
        %1435 = vmatprep.subr.mxu0 0.0
        %1436 = vmatpush1.msra.mxu0 %v1106
        %1437 = vmatprep.subr.mxu0 0.0
        %1438 = vmatpush2.msra.mxu0 %v1137
        %1439 = vmatprep.subr.mxu0 0.0
        %1440 = vmatpush2.msra.mxu0 %v1136
        %1441 = vmatprep.subr.mxu0 0.0
        %1442 = vmatpush2.msra.mxu0 %v1135
        %1443 = vmatprep.subr.mxu0 0.0
        %1444 = vmatpush2.msra.mxu0 %v1134
        %1445 = vmatprep.subr.mxu0 0.0
        %1446 = vmatpush2.msra.mxu0 %v1133
        %1447 = vmatprep.subr.mxu0 0.0
        %1448 = vmatpush2.msra.mxu0 %v1132
        %1449 = vmatprep.subr.mxu0 0.0
        %1450 = vmatpush2.msra.mxu0 %v1131
        %1451 = vmatprep.subr.mxu0 0.0
        %1452 = vmatpush2.msra.mxu0 %v1130
        %1453 = vmatprep.subr.mxu0 0.0
        %1454 = vmatpush2.msra.mxu0 %v1129
        %1455 = vmatprep.subr.mxu0 0.0
        %1456 = vmatpush2.msra.mxu0 %v1128
        %1457 = vmatprep.subr.mxu0 0.0
        %1458 = vmatpush2.msra.mxu0 %v1127
        %1459 = vmatprep.subr.mxu0 0.0
        %1460 = vmatpush2.msra.mxu0 %v1126
        %1461 = vmatprep.subr.mxu0 0.0
        %1462 = vmatpush2.msra.mxu0 %v1125
        %1463 = vmatprep.subr.mxu0 0.0
        %1464 = vmatpush2.msra.mxu0 %v1124
        %1465 = vmatprep.subr.mxu0 0.0
        %1466 = vmatpush2.msra.mxu0 %v1123
        %1467 = vmatprep.subr.mxu0 0.0
        %1468 = vmatpush2.msra.mxu0 %v1122
        %1469 = vmatprep.mubr.f32.mxu0 %v1045
        %1470 = vmatmul.mubr.f32.gmra.mxu0 %v1044
        %v1471 = vpop.f32.mrf.mxu0
        %v1472 = vadd.f32 %v1397, %v1471
        %v1473 = vpop.f32.mrf.mxu0
        %1474 = vmatprep.mubr.f32.mxu0 %v1061
        %1475 = vmatmul.mubr.f32.gmra.mxu0 %v1060
        %v1476 = vpop.f32.mrf.mxu0
        %v1477 = vadd.f32 %v1402, %v1476
        %v1478 = vpop.f32.mrf.mxu0
        %1479 = vdwg.mxu0
        %1480 = vmatprep.subr.mxu0 0.0
        %1481 = vmatpush1.msra.mxu0 %v1153
        %1482 = vmatprep.subr.mxu0 0.0
        %1483 = vmatpush1.msra.mxu0 %v1152
        %1484 = vmatprep.subr.mxu0 0.0
        %1485 = vmatpush1.msra.mxu0 %v1151
        %1486 = vmatprep.subr.mxu0 0.0
        %1487 = vmatpush1.msra.mxu0 %v1150
        %1488 = vmatprep.subr.mxu0 0.0
        %1489 = vmatpush1.msra.mxu0 %v1149
        %1490 = vmatprep.subr.mxu0 0.0
        %1491 = vmatpush1.msra.mxu0 %v1148
        %1492 = vmatprep.subr.mxu0 0.0
        %1493 = vmatpush1.msra.mxu0 %v1147
        %1494 = vmatprep.subr.mxu0 0.0
        %1495 = vmatpush1.msra.mxu0 %v1146
        %1496 = vmatprep.subr.mxu0 0.0
        %1497 = vmatpush1.msra.mxu0 %v1145
        %1498 = vmatprep.subr.mxu0 0.0
        %1499 = vmatpush1.msra.mxu0 %v1144
        %1500 = vmatprep.subr.mxu0 0.0
        %1501 = vmatpush1.msra.mxu0 %v1143
        %1502 = vmatprep.subr.mxu0 0.0
        %1503 = vmatpush1.msra.mxu0 %v1142
        %1504 = vmatprep.subr.mxu0 0.0
        %1505 = vmatpush1.msra.mxu0 %v1141
        %1506 = vmatprep.subr.mxu0 0.0
        %1507 = vmatpush1.msra.mxu0 %v1140
        %1508 = vmatprep.subr.mxu0 0.0
        %1509 = vmatpush1.msra.mxu0 %v1139
        %1510 = vmatprep.subr.mxu0 0.0
        %1511 = vmatpush1.msra.mxu0 %v1138
        %1512 = vmatprep.subr.mxu0 0.0
        %1513 = vmatpush2.msra.mxu0 %v1169
        %1514 = vmatprep.subr.mxu0 0.0
        %1515 = vmatpush2.msra.mxu0 %v1168
        %1516 = vmatprep.subr.mxu0 0.0
        %1517 = vmatpush2.msra.mxu0 %v1167
        %1518 = vmatprep.subr.mxu0 0.0
        %1519 = vmatpush2.msra.mxu0 %v1166
        %1520 = vmatprep.subr.mxu0 0.0
        %1521 = vmatpush2.msra.mxu0 %v1165
        %1522 = vmatprep.subr.mxu0 0.0
        %1523 = vmatpush2.msra.mxu0 %v1164
        %1524 = vmatprep.subr.mxu0 0.0
        %1525 = vmatpush2.msra.mxu0 %v1163
        %1526 = vmatprep.subr.mxu0 0.0
        %1527 = vmatpush2.msra.mxu0 %v1162
        %1528 = vmatprep.subr.mxu0 0.0
        %1529 = vmatpush2.msra.mxu0 %v1161
        %1530 = vmatprep.subr.mxu0 0.0
        %1531 = vmatpush2.msra.mxu0 %v1160
        %1532 = vmatprep.subr.mxu0 0.0
        %1533 = vmatpush2.msra.mxu0 %v1159
        %1534 = vmatprep.subr.mxu0 0.0
        %1535 = vmatpush2.msra.mxu0 %v1158
        %1536 = vmatprep.subr.mxu0 0.0
        %1537 = vmatpush2.msra.mxu0 %v1157
        %1538 = vmatprep.subr.mxu0 0.0
        %1539 = vmatpush2.msra.mxu0 %v1156
        %1540 = vmatprep.subr.mxu0 0.0
        %1541 = vmatpush2.msra.mxu0 %v1155
        %1542 = vmatprep.subr.mxu0 0.0
        %1543 = vmatpush2.msra.mxu0 %v1154
        %1544 = vmatprep.mubr.f32.mxu0 %v1047
        %1545 = vmatmul.mubr.f32.gmra.mxu0 %v1046
        %v1546 = vpop.f32.mrf.mxu0
        %v1547 = vadd.f32 %v1472, %v1546
        %v1548 = vpop.f32.mrf.mxu0
        %1549 = vmatprep.mubr.f32.mxu0 %v1063
        %1550 = vmatmul.mubr.f32.gmra.mxu0 %v1062
        %v1551 = vpop.f32.mrf.mxu0
        %v1552 = vadd.f32 %v1477, %v1551
        %v1553 = vpop.f32.mrf.mxu0
        %1554 = vdwg.mxu0
        %1555 = vmatprep.subr.mxu0 0.0
        %1556 = vmatpush1.msra.mxu0 %v1185
        %1557 = vmatprep.subr.mxu0 0.0
        %1558 = vmatpush1.msra.mxu0 %v1184
        %1559 = vmatprep.subr.mxu0 0.0
        %1560 = vmatpush1.msra.mxu0 %v1183
        %1561 = vmatprep.subr.mxu0 0.0
        %1562 = vmatpush1.msra.mxu0 %v1182
        %1563 = vmatprep.subr.mxu0 0.0
        %1564 = vmatpush1.msra.mxu0 %v1181
        %1565 = vmatprep.subr.mxu0 0.0
        %1566 = vmatpush1.msra.mxu0 %v1180
        %1567 = vmatprep.subr.mxu0 0.0
        %1568 = vmatpush1.msra.mxu0 %v1179
        %1569 = vmatprep.subr.mxu0 0.0
        %1570 = vmatpush1.msra.mxu0 %v1178
        %1571 = vmatprep.subr.mxu0 0.0
        %1572 = vmatpush1.msra.mxu0 %v1177
        %1573 = vmatprep.subr.mxu0 0.0
        %1574 = vmatpush1.msra.mxu0 %v1176
        %1575 = vmatprep.subr.mxu0 0.0
        %1576 = vmatpush1.msra.mxu0 %v1175
        %1577 = vmatprep.subr.mxu0 0.0
        %1578 = vmatpush1.msra.mxu0 %v1174
        %1579 = vmatprep.subr.mxu0 0.0
        %1580 = vmatpush1.msra.mxu0 %v1173
        %1581 = vmatprep.subr.mxu0 0.0
        %1582 = vmatpush1.msra.mxu0 %v1172
        %1583 = vmatprep.subr.mxu0 0.0
        %1584 = vmatpush1.msra.mxu0 %v1171
        %1585 = vmatprep.subr.mxu0 0.0
        %1586 = vmatpush1.msra.mxu0 %v1170
        %1587 = vmatprep.subr.mxu0 0.0
        %1588 = vmatpush2.msra.mxu0 %v1201
        %1589 = vmatprep.subr.mxu0 0.0
        %1590 = vmatpush2.msra.mxu0 %v1200
        %1591 = vmatprep.subr.mxu0 0.0
        %1592 = vmatpush2.msra.mxu0 %v1199
        %1593 = vmatprep.subr.mxu0 0.0
        %1594 = vmatpush2.msra.mxu0 %v1198
        %1595 = vmatprep.subr.mxu0 0.0
        %1596 = vmatpush2.msra.mxu0 %v1197
        %1597 = vmatprep.subr.mxu0 0.0
        %1598 = vmatpush2.msra.mxu0 %v1196
        %1599 = vmatprep.subr.mxu0 0.0
        %1600 = vmatpush2.msra.mxu0 %v1195
        %1601 = vmatprep.subr.mxu0 0.0
        %1602 = vmatpush2.msra.mxu0 %v1194
        %1603 = vmatprep.subr.mxu0 0.0
        %1604 = vmatpush2.msra.mxu0 %v1193
        %1605 = vmatprep.subr.mxu0 0.0
        %1606 = vmatpush2.msra.mxu0 %v1192
        %1607 = vmatprep.subr.mxu0 0.0
        %1608 = vmatpush2.msra.mxu0 %v1191
        %1609 = vmatprep.subr.mxu0 0.0
        %1610 = vmatpush2.msra.mxu0 %v1190
        %1611 = vmatprep.subr.mxu0 0.0
        %1612 = vmatpush2.msra.mxu0 %v1189
        %1613 = vmatprep.subr.mxu0 0.0
        %1614 = vmatpush2.msra.mxu0 %v1188
        %1615 = vmatprep.subr.mxu0 0.0
        %1616 = vmatpush2.msra.mxu0 %v1187
        %1617 = vmatprep.subr.mxu0 0.0
        %1618 = vmatpush2.msra.mxu0 %v1186
        %1619 = vmatprep.mubr.f32.mxu0 %v1049
        %1620 = vmatmul.mubr.f32.gmra.mxu0 %v1048
        %v1621 = vpop.f32.mrf.mxu0
        %v1622 = vadd.f32 %v1547, %v1621
        %v1623 = vpop.f32.mrf.mxu0
        %1624 = vmatprep.mubr.f32.mxu0 %v1065
        %1625 = vmatmul.mubr.f32.gmra.mxu0 %v1064
        %v1626 = vpop.f32.mrf.mxu0
        %v1627 = vadd.f32 %v1552, %v1626
        %v1628 = vpop.f32.mrf.mxu0
        %1629 = vdwg.mxu0
        %1630 = vmatprep.subr.mxu0 0.0
        %1631 = vmatpush1.msra.mxu0 %v1217
        %1632 = vmatprep.subr.mxu0 0.0
        %1633 = vmatpush1.msra.mxu0 %v1216
        %1634 = vmatprep.subr.mxu0 0.0
        %1635 = vmatpush1.msra.mxu0 %v1215
        %1636 = vmatprep.subr.mxu0 0.0
        %1637 = vmatpush1.msra.mxu0 %v1214
        %1638 = vmatprep.subr.mxu0 0.0
        %1639 = vmatpush1.msra.mxu0 %v1213
        %1640 = vmatprep.subr.mxu0 0.0
        %1641 = vmatpush1.msra.mxu0 %v1212
        %1642 = vmatprep.subr.mxu0 0.0
        %1643 = vmatpush1.msra.mxu0 %v1211
        %1644 = vmatprep.subr.mxu0 0.0
        %1645 = vmatpush1.msra.mxu0 %v1210
        %1646 = vmatprep.subr.mxu0 0.0
        %1647 = vmatpush1.msra.mxu0 %v1209
        %1648 = vmatprep.subr.mxu0 0.0
        %1649 = vmatpush1.msra.mxu0 %v1208
        %1650 = vmatprep.subr.mxu0 0.0
        %1651 = vmatpush1.msra.mxu0 %v1207
        %1652 = vmatprep.subr.mxu0 0.0
        %1653 = vmatpush1.msra.mxu0 %v1206
        %1654 = vmatprep.subr.mxu0 0.0
        %1655 = vmatpush1.msra.mxu0 %v1205
        %1656 = vmatprep.subr.mxu0 0.0
        %1657 = vmatpush1.msra.mxu0 %v1204
        %1658 = vmatprep.subr.mxu0 0.0
        %1659 = vmatpush1.msra.mxu0 %v1203
        %1660 = vmatprep.subr.mxu0 0.0
        %1661 = vmatpush1.msra.mxu0 %v1202
        %1662 = vmatprep.subr.mxu0 0.0
        %1663 = vmatpush2.msra.mxu0 %v1233
        %1664 = vmatprep.subr.mxu0 0.0
        %1665 = vmatpush2.msra.mxu0 %v1232
        %1666 = vmatprep.subr.mxu0 0.0
        %1667 = vmatpush2.msra.mxu0 %v1231
        %1668 = vmatprep.subr.mxu0 0.0
        %1669 = vmatpush2.msra.mxu0 %v1230
        %1670 = vmatprep.subr.mxu0 0.0
        %1671 = vmatpush2.msra.mxu0 %v1229
        %1672 = vmatprep.subr.mxu0 0.0
        %1673 = vmatpush2.msra.mxu0 %v1228
        %1674 = vmatprep.subr.mxu0 0.0
        %1675 = vmatpush2.msra.mxu0 %v1227
        %1676 = vmatprep.subr.mxu0 0.0
        %1677 = vmatpush2.msra.mxu0 %v1226
        %1678 = vmatprep.subr.mxu0 0.0
        %1679 = vmatpush2.msra.mxu0 %v1225
        %1680 = vmatprep.subr.mxu0 0.0
        %1681 = vmatpush2.msra.mxu0 %v1224
        %1682 = vmatprep.subr.mxu0 0.0
        %1683 = vmatpush2.msra.mxu0 %v1223
        %1684 = vmatprep.subr.mxu0 0.0
        %1685 = vmatpush2.msra.mxu0 %v1222
        %1686 = vmatprep.subr.mxu0 0.0
        %1687 = vmatpush2.msra.mxu0 %v1221
        %1688 = vmatprep.subr.mxu0 0.0
        %1689 = vmatpush2.msra.mxu0 %v1220
        %1690 = vmatprep.subr.mxu0 0.0
        %1691 = vmatpush2.msra.mxu0 %v1219
        %1692 = vmatprep.subr.mxu0 0.0
        %1693 = vmatpush2.msra.mxu0 %v1218
        %1694 = vmatprep.mubr.f32.mxu0 %v1051
        %1695 = vmatmul.mubr.f32.gmra.mxu0 %v1050
        %v1696 = vpop.f32.mrf.mxu0
        %v1697 = vadd.f32 %v1622, %v1696
        %v1698 = vpop.f32.mrf.mxu0
        %1699 = vmatprep.mubr.f32.mxu0 %v1067
        %1700 = vmatmul.mubr.f32.gmra.mxu0 %v1066
        %v1701 = vpop.f32.mrf.mxu0
        %v1702 = vadd.f32 %v1627, %v1701
        %v1703 = vpop.f32.mrf.mxu0
        %1704 = vdwg.mxu0
        %1705 = vmatprep.subr.mxu0 0.0
        %1706 = vmatpush1.msra.mxu0 %v1249
        %1707 = vmatprep.subr.mxu0 0.0
        %1708 = vmatpush1.msra.mxu0 %v1248
        %1709 = vmatprep.subr.mxu0 0.0
        %1710 = vmatpush1.msra.mxu0 %v1247
        %1711 = vmatprep.subr.mxu0 0.0
        %1712 = vmatpush1.msra.mxu0 %v1246
        %1713 = vmatprep.subr.mxu0 0.0
        %1714 = vmatpush1.msra.mxu0 %v1245
        %1715 = vmatprep.subr.mxu0 0.0
        %1716 = vmatpush1.msra.mxu0 %v1244
        %1717 = vmatprep.subr.mxu0 0.0
        %1718 = vmatpush1.msra.mxu0 %v1243
        %1719 = vmatprep.subr.mxu0 0.0
        %1720 = vmatpush1.msra.mxu0 %v1242
        %1721 = vmatprep.subr.mxu0 0.0
        %1722 = vmatpush1.msra.mxu0 %v1241
        %1723 = vmatprep.subr.mxu0 0.0
        %1724 = vmatpush1.msra.mxu0 %v1240
        %1725 = vmatprep.subr.mxu0 0.0
        %1726 = vmatpush1.msra.mxu0 %v1239
        %1727 = vmatprep.subr.mxu0 0.0
        %1728 = vmatpush1.msra.mxu0 %v1238
        %1729 = vmatprep.subr.mxu0 0.0
        %1730 = vmatpush1.msra.mxu0 %v1237
        %1731 = vmatprep.subr.mxu0 0.0
        %1732 = vmatpush1.msra.mxu0 %v1236
        %1733 = vmatprep.subr.mxu0 0.0
        %1734 = vmatpush1.msra.mxu0 %v1235
        %1735 = vmatprep.subr.mxu0 0.0
        %1736 = vmatpush1.msra.mxu0 %v1234
        %1737 = vmatprep.subr.mxu0 0.0
        %1738 = vmatpush2.msra.mxu0 %v1265
        %1739 = vmatprep.subr.mxu0 0.0
        %1740 = vmatpush2.msra.mxu0 %v1264
        %1741 = vmatprep.subr.mxu0 0.0
        %1742 = vmatpush2.msra.mxu0 %v1263
        %1743 = vmatprep.subr.mxu0 0.0
        %1744 = vmatpush2.msra.mxu0 %v1262
        %1745 = vmatprep.subr.mxu0 0.0
        %1746 = vmatpush2.msra.mxu0 %v1261
        %1747 = vmatprep.subr.mxu0 0.0
        %1748 = vmatpush2.msra.mxu0 %v1260
        %1749 = vmatprep.subr.mxu0 0.0
        %1750 = vmatpush2.msra.mxu0 %v1259
        %1751 = vmatprep.subr.mxu0 0.0
        %1752 = vmatpush2.msra.mxu0 %v1258
        %1753 = vmatprep.subr.mxu0 0.0
        %1754 = vmatpush2.msra.mxu0 %v1257
        %1755 = vmatprep.subr.mxu0 0.0
        %1756 = vmatpush2.msra.mxu0 %v1256
        %1757 = vmatprep.subr.mxu0 0.0
        %1758 = vmatpush2.msra.mxu0 %v1255
        %1759 = vmatprep.subr.mxu0 0.0
        %1760 = vmatpush2.msra.mxu0 %v1254
        %1761 = vmatprep.subr.mxu0 0.0
        %1762 = vmatpush2.msra.mxu0 %v1253
        %1763 = vmatprep.subr.mxu0 0.0
        %1764 = vmatpush2.msra.mxu0 %v1252
        %1765 = vmatprep.subr.mxu0 0.0
        %1766 = vmatpush2.msra.mxu0 %v1251
        %1767 = vmatprep.subr.mxu0 0.0
        %1768 = vmatpush2.msra.mxu0 %v1250
        %1769 = vmatprep.mubr.f32.mxu0 %v1053
        %1770 = vmatmul.mubr.f32.gmra.mxu0 %v1052
        %v1771 = vpop.f32.mrf.mxu0
        %v1772 = vadd.f32 %v1697, %v1771
        %v1773 = vpop.f32.mrf.mxu0
        %1774 = vmatprep.mubr.f32.mxu0 %v1069
        %1775 = vmatmul.mubr.f32.gmra.mxu0 %v1068
        %v1776 = vpop.f32.mrf.mxu0
        %v1777 = vadd.f32 %v1702, %v1776
        %v1778 = vpop.f32.mrf.mxu0
        %1779 = vdwg.mxu0
        %1780 = vmatprep.subr.mxu0 0.0
        %1781 = vmatpush1.msra.mxu0 %v1281
        %1782 = vmatprep.subr.mxu0 0.0
        %1783 = vmatpush1.msra.mxu0 %v1280
        %1784 = vmatprep.subr.mxu0 0.0
        %1785 = vmatpush1.msra.mxu0 %v1279
        %1786 = vmatprep.subr.mxu0 0.0
        %1787 = vmatpush1.msra.mxu0 %v1278
        %1788 = vmatprep.subr.mxu0 0.0
        %1789 = vmatpush1.msra.mxu0 %v1277
        %1790 = vmatprep.subr.mxu0 0.0
        %1791 = vmatpush1.msra.mxu0 %v1276
        %1792 = vmatprep.subr.mxu0 0.0
        %1793 = vmatpush1.msra.mxu0 %v1275
        %1794 = vmatprep.subr.mxu0 0.0
        %1795 = vmatpush1.msra.mxu0 %v1274
        %1796 = vmatprep.subr.mxu0 0.0
        %1797 = vmatpush1.msra.mxu0 %v1273
        %1798 = vmatprep.subr.mxu0 0.0
        %1799 = vmatpush1.msra.mxu0 %v1272
        %1800 = vmatprep.subr.mxu0 0.0
        %1801 = vmatpush1.msra.mxu0 %v1271
        %1802 = vmatprep.subr.mxu0 0.0
        %1803 = vmatpush1.msra.mxu0 %v1270
        %1804 = vmatprep.subr.mxu0 0.0
        %1805 = vmatpush1.msra.mxu0 %v1269
        %1806 = vmatprep.subr.mxu0 0.0
        %1807 = vmatpush1.msra.mxu0 %v1268
        %1808 = vmatprep.subr.mxu0 0.0
        %1809 = vmatpush1.msra.mxu0 %v1267
        %1810 = vmatprep.subr.mxu0 0.0
        %1811 = vmatpush1.msra.mxu0 %v1266
        %1812 = vmatprep.subr.mxu0 0.0
        %1813 = vmatpush2.msra.mxu0 %v1297
        %1814 = vmatprep.subr.mxu0 0.0
        %1815 = vmatpush2.msra.mxu0 %v1296
        %1816 = vmatprep.subr.mxu0 0.0
        %1817 = vmatpush2.msra.mxu0 %v1295
        %1818 = vmatprep.subr.mxu0 0.0
        %1819 = vmatpush2.msra.mxu0 %v1294
        %1820 = vmatprep.subr.mxu0 0.0
        %1821 = vmatpush2.msra.mxu0 %v1293
        %1822 = vmatprep.subr.mxu0 0.0
        %1823 = vmatpush2.msra.mxu0 %v1292
        %1824 = vmatprep.subr.mxu0 0.0
        %1825 = vmatpush2.msra.mxu0 %v1291
        %1826 = vmatprep.subr.mxu0 0.0
        %1827 = vmatpush2.msra.mxu0 %v1290
        %1828 = vmatprep.subr.mxu0 0.0
        %1829 = vmatpush2.msra.mxu0 %v1289
        %1830 = vmatprep.subr.mxu0 0.0
        %1831 = vmatpush2.msra.mxu0 %v1288
        %1832 = vmatprep.subr.mxu0 0.0
        %1833 = vmatpush2.msra.mxu0 %v1287
        %1834 = vmatprep.subr.mxu0 0.0
        %1835 = vmatpush2.msra.mxu0 %v1286
        %1836 = vmatprep.subr.mxu0 0.0
        %1837 = vmatpush2.msra.mxu0 %v1285
        %1838 = vmatprep.subr.mxu0 0.0
        %1839 = vmatpush2.msra.mxu0 %v1284
        %1840 = vmatprep.subr.mxu0 0.0
        %1841 = vmatpush2.msra.mxu0 %v1283
        %1842 = vmatprep.subr.mxu0 0.0
        %1843 = vmatpush2.msra.mxu0 %v1282
        %1844 = vmatprep.mubr.f32.mxu0 %v1055
        %1845 = vmatmul.mubr.f32.gmra.mxu0 %v1054
        %v1846 = vpop.f32.mrf.mxu0
        %v1847 = vadd.f32 %v1772, %v1846
        %v1848 = vpop.f32.mrf.mxu0
        %1849 = vmatprep.mubr.f32.mxu0 %v1071
        %1850 = vmatmul.mubr.f32.gmra.mxu0 %v1070
        %v1851 = vpop.f32.mrf.mxu0
        %v1852 = vadd.f32 %v1777, %v1851
        %v1853 = vpop.f32.mrf.mxu0
        %1854 = vdwg.mxu0
        %1855 = vmatprep.subr.mxu0 0.0
        %1856 = vmatpush1.msra.mxu0 %v1313
        %1857 = vmatprep.subr.mxu0 0.0
        %1858 = vmatpush1.msra.mxu0 %v1312
        %1859 = vmatprep.subr.mxu0 0.0
        %1860 = vmatpush1.msra.mxu0 %v1311
        %1861 = vmatprep.subr.mxu0 0.0
        %1862 = vmatpush1.msra.mxu0 %v1310
        %1863 = vmatprep.subr.mxu0 0.0
        %1864 = vmatpush1.msra.mxu0 %v1309
        %1865 = vmatprep.subr.mxu0 0.0
        %1866 = vmatpush1.msra.mxu0 %v1308
        %1867 = vmatprep.subr.mxu0 0.0
        %1868 = vmatpush1.msra.mxu0 %v1307
        %1869 = vmatprep.subr.mxu0 0.0
        %1870 = vmatpush1.msra.mxu0 %v1306
        %1871 = vmatprep.subr.mxu0 0.0
        %1872 = vmatpush1.msra.mxu0 %v1305
        %1873 = vmatprep.subr.mxu0 0.0
        %1874 = vmatpush1.msra.mxu0 %v1304
        %1875 = vmatprep.subr.mxu0 0.0
        %1876 = vmatpush1.msra.mxu0 %v1303
        %1877 = vmatprep.subr.mxu0 0.0
        %1878 = vmatpush1.msra.mxu0 %v1302
        %1879 = vmatprep.subr.mxu0 0.0
        %1880 = vmatpush1.msra.mxu0 %v1301
        %1881 = vmatprep.subr.mxu0 0.0
        %1882 = vmatpush1.msra.mxu0 %v1300
        %1883 = vmatprep.subr.mxu0 0.0
        %1884 = vmatpush1.msra.mxu0 %v1299
        %1885 = vmatprep.subr.mxu0 0.0
        %1886 = vmatpush1.msra.mxu0 %v1298
        %1887 = vmatprep.subr.mxu0 0.0
        %1888 = vmatpush2.msra.mxu0 %v1329
        %1889 = vmatprep.subr.mxu0 0.0
        %1890 = vmatpush2.msra.mxu0 %v1328
        %1891 = vmatprep.subr.mxu0 0.0
        %1892 = vmatpush2.msra.mxu0 %v1327
        %1893 = vmatprep.subr.mxu0 0.0
        %1894 = vmatpush2.msra.mxu0 %v1326
        %1895 = vmatprep.subr.mxu0 0.0
        %1896 = vmatpush2.msra.mxu0 %v1325
        %1897 = vmatprep.subr.mxu0 0.0
        %1898 = vmatpush2.msra.mxu0 %v1324
        %1899 = vmatprep.subr.mxu0 0.0
        %1900 = vmatpush2.msra.mxu0 %v1323
        %1901 = vmatprep.subr.mxu0 0.0
        %1902 = vmatpush2.msra.mxu0 %v1322
        %1903 = vmatprep.subr.mxu0 0.0
        %1904 = vmatpush2.msra.mxu0 %v1321
        %1905 = vmatprep.subr.mxu0 0.0
        %1906 = vmatpush2.msra.mxu0 %v1320
        %1907 = vmatprep.subr.mxu0 0.0
        %1908 = vmatpush2.msra.mxu0 %v1319
        %1909 = vmatprep.subr.mxu0 0.0
        %1910 = vmatpush2.msra.mxu0 %v1318
        %1911 = vmatprep.subr.mxu0 0.0
        %1912 = vmatpush2.msra.mxu0 %v1317
        %1913 = vmatprep.subr.mxu0 0.0
        %1914 = vmatpush2.msra.mxu0 %v1316
        %1915 = vmatprep.subr.mxu0 0.0
        %1916 = vmatpush2.msra.mxu0 %v1315
        %1917 = vmatprep.subr.mxu0 0.0
        %1918 = vmatpush2.msra.mxu0 %v1314
        %1919 = vmatprep.mubr.f32.mxu0 %v1057
        %1920 = vmatmul.mubr.f32.gmra.mxu0 %v1056
        %v1921 = vpop.f32.mrf.mxu0
        %v1922 = vadd.f32 %v1847, %v1921
        %v1923 = vpop.f32.mrf.mxu0
        %1924 = vmatprep.mubr.f32.mxu0 %v1073
        %1925 = vmatmul.mubr.f32.gmra.mxu0 %v1072
        %v1926 = vpop.f32.mrf.mxu0
        %v1927 = vadd.f32 %v1852, %v1926
        %v1928 = vpop.f32.mrf.mxu0
        %1929 = vdwg.mxu0
        %v1930 = vmul.f32 %v1922, 0.0078125
        %v1931 = vmul.f32 %v1927, 0.0078125
        %v1932 = vmul.f32 %v1034, %v1034
        %v1933 = vmul.f32 %v1039, %v1039
        %v1934 = vsub.f32 %v1930, %v1932
        %v1935 = vsub.f32 %v1931, %v1933
        %v1936 = vmax.f32 %v1934, 0.0
        %v1937 = vmax.f32 %v1935, 0.0
        %v1938 = vadd.f32 %v1936, 1e-05
        %v1939 = vadd.f32 %v1937, 1e-05
        %v1940 = vrsqrt.pop %v1938
        %v1941 = vrsqrt.pop %v1939
        %v1942 = vmul.f32 %v1034, %v1940
        %v1943 = vmul.f32 %v1039, %v1941
        %v1944 = vsub.f32 0.0, %v1942
        %v1945 = vsub.f32 0.0, %v1943
        %v1946 = vld [vmem:[%s4] sm:$0xff]
        %v1947 = vld [vmem:[%s4 + $0x8] sm:$0xff]
        %v1948 = vld [vmem:[%s4 + $0x10] sm:$0xff]
        %v1949 = vld [vmem:[%s4 + $0x18] sm:$0xff]
        %v1950 = vld [vmem:[%s4 + $0x20] sm:$0xff]
        %v1951 = vld [vmem:[%s4 + $0x28] sm:$0xff]
        %v1952 = vld [vmem:[%s4 + $0x30] sm:$0xff]
        %v1953 = vld [vmem:[%s4 + $0x38] sm:$0xff]
        %v1954 = vld [vmem:[%s4 + $0x40] sm:$0xff]
        %v1955 = vld [vmem:[%s4 + $0x48] sm:$0xff]
        %v1956 = vld [vmem:[%s4 + $0x50] sm:$0xff]
        %v1957 = vld [vmem:[%s4 + $0x58] sm:$0xff]
        %v1958 = vld [vmem:[%s4 + $0x60] sm:$0xff]
        %v1959 = vld [vmem:[%s4 + $0x68] sm:$0xff]
        %v1960 = vld [vmem:[%s4 + $0x70] sm:$0xff]
        %v1961 = vld [vmem:[%s4 + $0x78] sm:$0xff]
        %v1962 = vld [vmem:[%s4 + $0x80] sm:$0xff]
        %v1963 = vld [vmem:[%s4 + $0x88] sm:$0xff]
        %v1964 = vld [vmem:[%s4 + $0x90] sm:$0xff]
        %v1965 = vld [vmem:[%s4 + $0x98] sm:$0xff]
        %v1966 = vld [vmem:[%s4 + $0xa0] sm:$0xff]
        %v1967 = vld [vmem:[%s4 + $0xa8] sm:$0xff]
        %v1968 = vld [vmem:[%s4 + $0xb0] sm:$0xff]
        %v1969 = vld [vmem:[%s4 + $0xb8] sm:$0xff]
        %v1970 = vld [vmem:[%s4 + $0xc0] sm:$0xff]
        %v1971 = vld [vmem:[%s4 + $0xc8] sm:$0xff]
        %v1972 = vld [vmem:[%s4 + $0xd0] sm:$0xff]
        %v1973 = vld [vmem:[%s4 + $0xd8] sm:$0xff]
        %v1974 = vld [vmem:[%s4 + $0xe0] sm:$0xff]
        %v1975 = vld [vmem:[%s4 + $0xe8] sm:$0xff]
        %v1976 = vld [vmem:[%s4 + $0xf0] sm:$0xff]
        %v1977 = vld [vmem:[%s4 + $0xf8] sm:$0xff]
        %vm1978 = vcmask 130048
        %v1980 = vsel %vm1978, %v1940, 0
        %v1983 = vsel %vm1978, %v1941, 0
        %1985 = vmatprep.subr.mxu0 0.0
        %1986 = vmatpush1.msra.mxu0 0.0
        %1987 = vmatprep.subr.mxu0 0.0
        %1988 = vmatpush1.msra.mxu0 0.0
        %1989 = vmatprep.subr.mxu0 0.0
        %1990 = vmatpush1.msra.mxu0 0.0
        %1991 = vmatprep.subr.mxu0 0.0
        %1992 = vmatpush1.msra.mxu0 0.0
        %1993 = vmatprep.subr.mxu0 0.0
        %1994 = vmatpush1.msra.mxu0 0.0
        %1995 = vmatprep.subr.mxu0 0.0
        %1996 = vmatpush1.msra.mxu0 0.0
        %1997 = vmatprep.subr.mxu0 0.0
        %1998 = vmatpush1.msra.mxu0 0.0
        %1999 = vmatprep.subr.mxu0 0.0
        %2000 = vmatpush1.msra.mxu0 0.0
        %2001 = vmatprep.subr.mxu0 0.0
        %2002 = vmatpush1.msra.mxu0 0.0
        %2003 = vmatprep.subr.mxu0 0.0
        %2004 = vmatpush1.msra.mxu0 0.0
        %2005 = vmatprep.subr.mxu0 0.0
        %2006 = vmatpush1.msra.mxu0 0.0
        %2007 = vmatprep.subr.mxu0 0.0
        %2008 = vmatpush1.msra.mxu0 0.0
        %2009 = vmatprep.subr.mxu0 0.0
        %2010 = vmatpush1.msra.mxu0 0.0
        %2011 = vmatprep.subr.mxu0 0.0
        %2012 = vmatpush1.msra.mxu0 0.0
        %2013 = vmatprep.subr.mxu0 %v1963
        %2014 = vmatpush1.msra.mxu0 %v1962
        %2015 = vmatprep.subr.mxu0 %v1947
        %2016 = vmatpush1.msra.mxu0 %v1946
        %2017 = vmatprep.subr.mxu0 0.0
        %2018 = vmatpush2.msra.mxu0 0.0
        %2019 = vmatprep.subr.mxu0 0.0
        %2020 = vmatpush2.msra.mxu0 0.0
        %2021 = vmatprep.subr.mxu0 0.0
        %2022 = vmatpush2.msra.mxu0 0.0
        %2023 = vmatprep.subr.mxu0 0.0
        %2024 = vmatpush2.msra.mxu0 0.0
        %2025 = vmatprep.subr.mxu0 0.0
        %2026 = vmatpush2.msra.mxu0 0.0
        %2027 = vmatprep.subr.mxu0 0.0
        %2028 = vmatpush2.msra.mxu0 0.0
        %2029 = vmatprep.subr.mxu0 0.0
        %2030 = vmatpush2.msra.mxu0 0.0
        %2031 = vmatprep.subr.mxu0 0.0
        %2032 = vmatpush2.msra.mxu0 0.0
        %2033 = vmatprep.subr.mxu0 0.0
        %2034 = vmatpush2.msra.mxu0 0.0
        %2035 = vmatprep.subr.mxu0 0.0
        %2036 = vmatpush2.msra.mxu0 0.0
        %2037 = vmatprep.subr.mxu0 0.0
        %2038 = vmatpush2.msra.mxu0 0.0
        %2039 = vmatprep.subr.mxu0 0.0
        %2040 = vmatpush2.msra.mxu0 0.0
        %2041 = vmatprep.subr.mxu0 0.0
        %2042 = vmatpush2.msra.mxu0 0.0
        %2043 = vmatprep.subr.mxu0 0.0
        %2044 = vmatpush2.msra.mxu0 0.0
        %2045 = vmatprep.subr.mxu0 0.0
        %2046 = vmatpush2.msra.mxu0 0.0
        %2047 = vmatprep.subr.mxu0 0.0
        %2048 = vmatpush2.msra.mxu0 0.0
        %2049 = vmatprep.mubr.f32.mxu0 0.0
        %2050 = vmatmul.mubr.f32.gmra.mxu0 %v1980
        %v2051 = vpop.f32.mrf.mxu0
        %v2052 = vadd.f32 0.0, %v2051
        %v2053 = vpop.f32.mrf.mxu0
        %v2054 = vadd.f32 0.0, %v2053
        %2055 = vmatprep.mubr.f32.mxu0 0.0
        %2056 = vmatmul.mubr.f32.gmra.mxu0 %v1983
        %v2057 = vpop.f32.mrf.mxu0
        %v2058 = vadd.f32 0.0, %v2057
        %v2059 = vpop.f32.mrf.mxu0
        %v2060 = vadd.f32 0.0, %v2059
        %2061 = vdwg.mxu0
        %2062 = vmatprep.subr.mxu0 0.0
        %2063 = vmatpush1.msra.mxu0 0.0
        %2064 = vmatprep.subr.mxu0 0.0
        %2065 = vmatpush1.msra.mxu0 0.0
        %2066 = vmatprep.subr.mxu0 0.0
        %2067 = vmatpush1.msra.mxu0 0.0
        %2068 = vmatprep.subr.mxu0 0.0
        %2069 = vmatpush1.msra.mxu0 0.0
        %2070 = vmatprep.subr.mxu0 0.0
        %2071 = vmatpush1.msra.mxu0 0.0
        %2072 = vmatprep.subr.mxu0 0.0
        %2073 = vmatpush1.msra.mxu0 0.0
        %2074 = vmatprep.subr.mxu0 0.0
        %2075 = vmatpush1.msra.mxu0 0.0
        %2076 = vmatprep.subr.mxu0 0.0
        %2077 = vmatpush1.msra.mxu0 0.0
        %2078 = vmatprep.subr.mxu0 0.0
        %2079 = vmatpush1.msra.mxu0 0.0
        %2080 = vmatprep.subr.mxu0 0.0
        %2081 = vmatpush1.msra.mxu0 0.0
        %2082 = vmatprep.subr.mxu0 0.0
        %2083 = vmatpush1.msra.mxu0 0.0
        %2084 = vmatprep.subr.mxu0 0.0
        %2085 = vmatpush1.msra.mxu0 0.0
        %2086 = vmatprep.subr.mxu0 0.0
        %2087 = vmatpush1.msra.mxu0 0.0
        %2088 = vmatprep.subr.mxu0 0.0
        %2089 = vmatpush1.msra.mxu0 0.0
        %2090 = vmatprep.subr.mxu0 %v1965
        %2091 = vmatpush1.msra.mxu0 %v1964
        %2092 = vmatprep.subr.mxu0 %v1949
        %2093 = vmatpush1.msra.mxu0 %v1948
        %2094 = vmatprep.subr.mxu0 0.0
        %2095 = vmatpush2.msra.mxu0 0.0
        %2096 = vmatprep.subr.mxu0 0.0
        %2097 = vmatpush2.msra.mxu0 0.0
        %2098 = vmatprep.subr.mxu0 0.0
        %2099 = vmatpush2.msra.mxu0 0.0
        %2100 = vmatprep.subr.mxu0 0.0
        %2101 = vmatpush2.msra.mxu0 0.0
        %2102 = vmatprep.subr.mxu0 0.0
        %2103 = vmatpush2.msra.mxu0 0.0
        %2104 = vmatprep.subr.mxu0 0.0
        %2105 = vmatpush2.msra.mxu0 0.0
        %2106 = vmatprep.subr.mxu0 0.0
        %2107 = vmatpush2.msra.mxu0 0.0
        %2108 = vmatprep.subr.mxu0 0.0
        %2109 = vmatpush2.msra.mxu0 0.0
        %2110 = vmatprep.subr.mxu0 0.0
        %2111 = vmatpush2.msra.mxu0 0.0
        %2112 = vmatprep.subr.mxu0 0.0
        %2113 = vmatpush2.msra.mxu0 0.0
        %2114 = vmatprep.subr.mxu0 0.0
        %2115 = vmatpush2.msra.mxu0 0.0
        %2116 = vmatprep.subr.mxu0 0.0
        %2117 = vmatpush2.msra.mxu0 0.0
        %2118 = vmatprep.subr.mxu0 0.0
        %2119 = vmatpush2.msra.mxu0 0.0
        %2120 = vmatprep.subr.mxu0 0.0
        %2121 = vmatpush2.msra.mxu0 0.0
        %2122 = vmatprep.subr.mxu0 0.0
        %2123 = vmatpush2.msra.mxu0 0.0
        %2124 = vmatprep.subr.mxu0 0.0
        %2125 = vmatpush2.msra.mxu0 0.0
        %2126 = vmatprep.mubr.f32.mxu0 0.0
        %2127 = vmatmul.mubr.f32.gmra.mxu0 %v1980
        %v2128 = vpop.f32.mrf.mxu0
        %v2129 = vadd.f32 0.0, %v2128
        %v2130 = vpop.f32.mrf.mxu0
        %v2131 = vadd.f32 0.0, %v2130
        %2132 = vmatprep.mubr.f32.mxu0 0.0
        %2133 = vmatmul.mubr.f32.gmra.mxu0 %v1983
        %v2134 = vpop.f32.mrf.mxu0
        %v2135 = vadd.f32 0.0, %v2134
        %v2136 = vpop.f32.mrf.mxu0
        %v2137 = vadd.f32 0.0, %v2136
        %2138 = vdwg.mxu0
        %2139 = vmatprep.subr.mxu0 0.0
        %2140 = vmatpush1.msra.mxu0 0.0
        %2141 = vmatprep.subr.mxu0 0.0
        %2142 = vmatpush1.msra.mxu0 0.0
        %2143 = vmatprep.subr.mxu0 0.0
        %2144 = vmatpush1.msra.mxu0 0.0
        %2145 = vmatprep.subr.mxu0 0.0
        %2146 = vmatpush1.msra.mxu0 0.0
        %2147 = vmatprep.subr.mxu0 0.0
        %2148 = vmatpush1.msra.mxu0 0.0
        %2149 = vmatprep.subr.mxu0 0.0
        %2150 = vmatpush1.msra.mxu0 0.0
        %2151 = vmatprep.subr.mxu0 0.0
        %2152 = vmatpush1.msra.mxu0 0.0
        %2153 = vmatprep.subr.mxu0 0.0
        %2154 = vmatpush1.msra.mxu0 0.0
        %2155 = vmatprep.subr.mxu0 0.0
        %2156 = vmatpush1.msra.mxu0 0.0
        %2157 = vmatprep.subr.mxu0 0.0
        %2158 = vmatpush1.msra.mxu0 0.0
        %2159 = vmatprep.subr.mxu0 0.0
        %2160 = vmatpush1.msra.mxu0 0.0
        %2161 = vmatprep.subr.mxu0 0.0
        %2162 = vmatpush1.msra.mxu0 0.0
        %2163 = vmatprep.subr.mxu0 0.0
        %2164 = vmatpush1.msra.mxu0 0.0
        %2165 = vmatprep.subr.mxu0 0.0
        %2166 = vmatpush1.msra.mxu0 0.0
        %2167 = vmatprep.subr.mxu0 %v1967
        %2168 = vmatpush1.msra.mxu0 %v1966
        %2169 = vmatprep.subr.mxu0 %v1951
        %2170 = vmatpush1.msra.mxu0 %v1950
        %2171 = vmatprep.subr.mxu0 0.0
        %2172 = vmatpush2.msra.mxu0 0.0
        %2173 = vmatprep.subr.mxu0 0.0
        %2174 = vmatpush2.msra.mxu0 0.0
        %2175 = vmatprep.subr.mxu0 0.0
        %2176 = vmatpush2.msra.mxu0 0.0
        %2177 = vmatprep.subr.mxu0 0.0
        %2178 = vmatpush2.msra.mxu0 0.0
        %2179 = vmatprep.subr.mxu0 0.0
        %2180 = vmatpush2.msra.mxu0 0.0
        %2181 = vmatprep.subr.mxu0 0.0
        %2182 = vmatpush2.msra.mxu0 0.0
        %2183 = vmatprep.subr.mxu0 0.0
        %2184 = vmatpush2.msra.mxu0 0.0
        %2185 = vmatprep.subr.mxu0 0.0
        %2186 = vmatpush2.msra.mxu0 0.0
        %2187 = vmatprep.subr.mxu0 0.0
        %2188 = vmatpush2.msra.mxu0 0.0
        %2189 = vmatprep.subr.mxu0 0.0
        %2190 = vmatpush2.msra.mxu0 0.0
        %2191 = vmatprep.subr.mxu0 0.0
        %2192 = vmatpush2.msra.mxu0 0.0
        %2193 = vmatprep.subr.mxu0 0.0
        %2194 = vmatpush2.msra.mxu0 0.0
        %2195 = vmatprep.subr.mxu0 0.0
        %2196 = vmatpush2.msra.mxu0 0.0
        %2197 = vmatprep.subr.mxu0 0.0
        %2198 = vmatpush2.msra.mxu0 0.0
        %2199 = vmatprep.subr.mxu0 0.0
        %2200 = vmatpush2.msra.mxu0 0.0
        %2201 = vmatprep.subr.mxu0 0.0
        %2202 = vmatpush2.msra.mxu0 0.0
        %2203 = vmatprep.mubr.f32.mxu0 0.0
        %2204 = vmatmul.mubr.f32.gmra.mxu0 %v1980
        %v2205 = vpop.f32.mrf.mxu0
        %v2206 = vadd.f32 0.0, %v2205
        %v2207 = vpop.f32.mrf.mxu0
        %v2208 = vadd.f32 0.0, %v2207
        %2209 = vmatprep.mubr.f32.mxu0 0.0
        %2210 = vmatmul.mubr.f32.gmra.mxu0 %v1983
        %v2211 = vpop.f32.mrf.mxu0
        %v2212 = vadd.f32 0.0, %v2211
        %v2213 = vpop.f32.mrf.mxu0
        %v2214 = vadd.f32 0.0, %v2213
        %2215 = vdwg.mxu0
        %2216 = vmatprep.subr.mxu0 0.0
        %2217 = vmatpush1.msra.mxu0 0.0
        %2218 = vmatprep.subr.mxu0 0.0
        %2219 = vmatpush1.msra.mxu0 0.0
        %2220 = vmatprep.subr.mxu0 0.0
        %2221 = vmatpush1.msra.mxu0 0.0
        %2222 = vmatprep.subr.mxu0 0.0
        %2223 = vmatpush1.msra.mxu0 0.0
        %2224 = vmatprep.subr.mxu0 0.0
        %2225 = vmatpush1.msra.mxu0 0.0
        %2226 = vmatprep.subr.mxu0 0.0
        %2227 = vmatpush1.msra.mxu0 0.0
        %2228 = vmatprep.subr.mxu0 0.0
        %2229 = vmatpush1.msra.mxu0 0.0
        %2230 = vmatprep.subr.mxu0 0.0
        %2231 = vmatpush1.msra.mxu0 0.0
        %2232 = vmatprep.subr.mxu0 0.0
        %2233 = vmatpush1.msra.mxu0 0.0
        %2234 = vmatprep.subr.mxu0 0.0
        %2235 = vmatpush1.msra.mxu0 0.0
        %2236 = vmatprep.subr.mxu0 0.0
        %2237 = vmatpush1.msra.mxu0 0.0
        %2238 = vmatprep.subr.mxu0 0.0
        %2239 = vmatpush1.msra.mxu0 0.0
        %2240 = vmatprep.subr.mxu0 0.0
        %2241 = vmatpush1.msra.mxu0 0.0
        %2242 = vmatprep.subr.mxu0 0.0
        %2243 = vmatpush1.msra.mxu0 0.0
        %2244 = vmatprep.subr.mxu0 %v1969
        %2245 = vmatpush1.msra.mxu0 %v1968
        %2246 = vmatprep.subr.mxu0 %v1953
        %2247 = vmatpush1.msra.mxu0 %v1952
        %2248 = vmatprep.subr.mxu0 0.0
        %2249 = vmatpush2.msra.mxu0 0.0
        %2250 = vmatprep.subr.mxu0 0.0
        %2251 = vmatpush2.msra.mxu0 0.0
        %2252 = vmatprep.subr.mxu0 0.0
        %2253 = vmatpush2.msra.mxu0 0.0
        %2254 = vmatprep.subr.mxu0 0.0
        %2255 = vmatpush2.msra.mxu0 0.0
        %2256 = vmatprep.subr.mxu0 0.0
        %2257 = vmatpush2.msra.mxu0 0.0
        %2258 = vmatprep.subr.mxu0 0.0
        %2259 = vmatpush2.msra.mxu0 0.0
        %2260 = vmatprep.subr.mxu0 0.0
        %2261 = vmatpush2.msra.mxu0 0.0
        %2262 = vmatprep.subr.mxu0 0.0
        %2263 = vmatpush2.msra.mxu0 0.0
        %2264 = vmatprep.subr.mxu0 0.0
        %2265 = vmatpush2.msra.mxu0 0.0
        %2266 = vmatprep.subr.mxu0 0.0
        %2267 = vmatpush2.msra.mxu0 0.0
        %2268 = vmatprep.subr.mxu0 0.0
        %2269 = vmatpush2.msra.mxu0 0.0
        %2270 = vmatprep.subr.mxu0 0.0
        %2271 = vmatpush2.msra.mxu0 0.0
        %2272 = vmatprep.subr.mxu0 0.0
        %2273 = vmatpush2.msra.mxu0 0.0
        %2274 = vmatprep.subr.mxu0 0.0
        %2275 = vmatpush2.msra.mxu0 0.0
        %2276 = vmatprep.subr.mxu0 0.0
        %2277 = vmatpush2.msra.mxu0 0.0
        %2278 = vmatprep.subr.mxu0 0.0
        %2279 = vmatpush2.msra.mxu0 0.0
        %2280 = vmatprep.mubr.f32.mxu0 0.0
        %2281 = vmatmul.mubr.f32.gmra.mxu0 %v1980
        %v2282 = vpop.f32.mrf.mxu0
        %v2283 = vadd.f32 0.0, %v2282
        %v2284 = vpop.f32.mrf.mxu0
        %v2285 = vadd.f32 0.0, %v2284
        %2286 = vmatprep.mubr.f32.mxu0 0.0
        %2287 = vmatmul.mubr.f32.gmra.mxu0 %v1983
        %v2288 = vpop.f32.mrf.mxu0
        %v2289 = vadd.f32 0.0, %v2288
        %v2290 = vpop.f32.mrf.mxu0
        %v2291 = vadd.f32 0.0, %v2290
        %2292 = vdwg.mxu0
        %2293 = vmatprep.subr.mxu0 0.0
        %2294 = vmatpush1.msra.mxu0 0.0
        %2295 = vmatprep.subr.mxu0 0.0
        %2296 = vmatpush1.msra.mxu0 0.0
        %2297 = vmatprep.subr.mxu0 0.0
        %2298 = vmatpush1.msra.mxu0 0.0
        %2299 = vmatprep.subr.mxu0 0.0
        %2300 = vmatpush1.msra.mxu0 0.0
        %2301 = vmatprep.subr.mxu0 0.0
        %2302 = vmatpush1.msra.mxu0 0.0
        %2303 = vmatprep.subr.mxu0 0.0
        %2304 = vmatpush1.msra.mxu0 0.0
        %2305 = vmatprep.subr.mxu0 0.0
        %2306 = vmatpush1.msra.mxu0 0.0
        %2307 = vmatprep.subr.mxu0 0.0
        %2308 = vmatpush1.msra.mxu0 0.0
        %2309 = vmatprep.subr.mxu0 0.0
        %2310 = vmatpush1.msra.mxu0 0.0
        %2311 = vmatprep.subr.mxu0 0.0
        %2312 = vmatpush1.msra.mxu0 0.0
        %2313 = vmatprep.subr.mxu0 0.0
        %2314 = vmatpush1.msra.mxu0 0.0
        %2315 = vmatprep.subr.mxu0 0.0
        %2316 = vmatpush1.msra.mxu0 0.0
        %2317 = vmatprep.subr.mxu0 0.0
        %2318 = vmatpush1.msra.mxu0 0.0
        %2319 = vmatprep.subr.mxu0 0.0
        %2320 = vmatpush1.msra.mxu0 0.0
        %2321 = vmatprep.subr.mxu0 %v1971
        %2322 = vmatpush1.msra.mxu0 %v1970
        %2323 = vmatprep.subr.mxu0 %v1955
        %2324 = vmatpush1.msra.mxu0 %v1954
        %2325 = vmatprep.subr.mxu0 0.0
        %2326 = vmatpush2.msra.mxu0 0.0
        %2327 = vmatprep.subr.mxu0 0.0
        %2328 = vmatpush2.msra.mxu0 0.0
        %2329 = vmatprep.subr.mxu0 0.0
        %2330 = vmatpush2.msra.mxu0 0.0
        %2331 = vmatprep.subr.mxu0 0.0
        %2332 = vmatpush2.msra.mxu0 0.0
        %2333 = vmatprep.subr.mxu0 0.0
        %2334 = vmatpush2.msra.mxu0 0.0
        %2335 = vmatprep.subr.mxu0 0.0
        %2336 = vmatpush2.msra.mxu0 0.0
        %2337 = vmatprep.subr.mxu0 0.0
        %2338 = vmatpush2.msra.mxu0 0.0
        %2339 = vmatprep.subr.mxu0 0.0
        %2340 = vmatpush2.msra.mxu0 0.0
        %2341 = vmatprep.subr.mxu0 0.0
        %2342 = vmatpush2.msra.mxu0 0.0
        %2343 = vmatprep.subr.mxu0 0.0
        %2344 = vmatpush2.msra.mxu0 0.0
        %2345 = vmatprep.subr.mxu0 0.0
        %2346 = vmatpush2.msra.mxu0 0.0
        %2347 = vmatprep.subr.mxu0 0.0
        %2348 = vmatpush2.msra.mxu0 0.0
        %2349 = vmatprep.subr.mxu0 0.0
        %2350 = vmatpush2.msra.mxu0 0.0
        %2351 = vmatprep.subr.mxu0 0.0
        %2352 = vmatpush2.msra.mxu0 0.0
        %2353 = vmatprep.subr.mxu0 0.0
        %2354 = vmatpush2.msra.mxu0 0.0
        %2355 = vmatprep.subr.mxu0 0.0
        %2356 = vmatpush2.msra.mxu0 0.0
        %2357 = vmatprep.mubr.f32.mxu0 0.0
        %2358 = vmatmul.mubr.f32.gmra.mxu0 %v1980
        %v2359 = vpop.f32.mrf.mxu0
        %v2360 = vadd.f32 0.0, %v2359
        %v2361 = vpop.f32.mrf.mxu0
        %v2362 = vadd.f32 0.0, %v2361
        %2363 = vmatprep.mubr.f32.mxu0 0.0
        %2364 = vmatmul.mubr.f32.gmra.mxu0 %v1983
        %v2365 = vpop.f32.mrf.mxu0
        %v2366 = vadd.f32 0.0, %v2365
        %v2367 = vpop.f32.mrf.mxu0
        %v2368 = vadd.f32 0.0, %v2367
        %2369 = vdwg.mxu0
        %2370 = vmatprep.subr.mxu0 0.0
        %2371 = vmatpush1.msra.mxu0 0.0
        %2372 = vmatprep.subr.mxu0 0.0
        %2373 = vmatpush1.msra.mxu0 0.0
        %2374 = vmatprep.subr.mxu0 0.0
        %2375 = vmatpush1.msra.mxu0 0.0
        %2376 = vmatprep.subr.mxu0 0.0
        %2377 = vmatpush1.msra.mxu0 0.0
        %2378 = vmatprep.subr.mxu0 0.0
        %2379 = vmatpush1.msra.mxu0 0.0
        %2380 = vmatprep.subr.mxu0 0.0
        %2381 = vmatpush1.msra.mxu0 0.0
        %2382 = vmatprep.subr.mxu0 0.0
        %2383 = vmatpush1.msra.mxu0 0.0
        %2384 = vmatprep.subr.mxu0 0.0
        %2385 = vmatpush1.msra.mxu0 0.0
        %2386 = vmatprep.subr.mxu0 0.0
        %2387 = vmatpush1.msra.mxu0 0.0
        %2388 = vmatprep.subr.mxu0 0.0
        %2389 = vmatpush1.msra.mxu0 0.0
        %2390 = vmatprep.subr.mxu0 0.0
        %2391 = vmatpush1.msra.mxu0 0.0
        %2392 = vmatprep.subr.mxu0 0.0
        %2393 = vmatpush1.msra.mxu0 0.0
        %2394 = vmatprep.subr.mxu0 0.0
        %2395 = vmatpush1.msra.mxu0 0.0
        %2396 = vmatprep.subr.mxu0 0.0
        %2397 = vmatpush1.msra.mxu0 0.0
        %2398 = vmatprep.subr.mxu0 %v1973
        %2399 = vmatpush1.msra.mxu0 %v1972
        %2400 = vmatprep.subr.mxu0 %v1957
        %2401 = vmatpush1.msra.mxu0 %v1956
        %2402 = vmatprep.subr.mxu0 0.0
        %2403 = vmatpush2.msra.mxu0 0.0
        %2404 = vmatprep.subr.mxu0 0.0
        %2405 = vmatpush2.msra.mxu0 0.0
        %2406 = vmatprep.subr.mxu0 0.0
        %2407 = vmatpush2.msra.mxu0 0.0
        %2408 = vmatprep.subr.mxu0 0.0
        %2409 = vmatpush2.msra.mxu0 0.0
        %2410 = vmatprep.subr.mxu0 0.0
        %2411 = vmatpush2.msra.mxu0 0.0
        %2412 = vmatprep.subr.mxu0 0.0
        %2413 = vmatpush2.msra.mxu0 0.0
        %2414 = vmatprep.subr.mxu0 0.0
        %2415 = vmatpush2.msra.mxu0 0.0
        %2416 = vmatprep.subr.mxu0 0.0
        %2417 = vmatpush2.msra.mxu0 0.0
        %2418 = vmatprep.subr.mxu0 0.0
        %2419 = vmatpush2.msra.mxu0 0.0
        %2420 = vmatprep.subr.mxu0 0.0
        %2421 = vmatpush2.msra.mxu0 0.0
        %2422 = vmatprep.subr.mxu0 0.0
        %2423 = vmatpush2.msra.mxu0 0.0
        %2424 = vmatprep.subr.mxu0 0.0
        %2425 = vmatpush2.msra.mxu0 0.0
        %2426 = vmatprep.subr.mxu0 0.0
        %2427 = vmatpush2.msra.mxu0 0.0
        %2428 = vmatprep.subr.mxu0 0.0
        %2429 = vmatpush2.msra.mxu0 0.0
        %2430 = vmatprep.subr.mxu0 0.0
        %2431 = vmatpush2.msra.mxu0 0.0
        %2432 = vmatprep.subr.mxu0 0.0
        %2433 = vmatpush2.msra.mxu0 0.0
        %2434 = vmatprep.mubr.f32.mxu0 0.0
        %2435 = vmatmul.mubr.f32.gmra.mxu0 %v1980
        %v2436 = vpop.f32.mrf.mxu0
        %v2437 = vadd.f32 0.0, %v2436
        %v2438 = vpop.f32.mrf.mxu0
        %v2439 = vadd.f32 0.0, %v2438
        %2440 = vmatprep.mubr.f32.mxu0 0.0
        %2441 = vmatmul.mubr.f32.gmra.mxu0 %v1983
        %v2442 = vpop.f32.mrf.mxu0
        %v2443 = vadd.f32 0.0, %v2442
        %v2444 = vpop.f32.mrf.mxu0
        %v2445 = vadd.f32 0.0, %v2444
        %2446 = vdwg.mxu0
        %2447 = vmatprep.subr.mxu0 0.0
        %2448 = vmatpush1.msra.mxu0 0.0
        %2449 = vmatprep.subr.mxu0 0.0
        %2450 = vmatpush1.msra.mxu0 0.0
        %2451 = vmatprep.subr.mxu0 0.0
        %2452 = vmatpush1.msra.mxu0 0.0
        %2453 = vmatprep.subr.mxu0 0.0
        %2454 = vmatpush1.msra.mxu0 0.0
        %2455 = vmatprep.subr.mxu0 0.0
        %2456 = vmatpush1.msra.mxu0 0.0
        %2457 = vmatprep.subr.mxu0 0.0
        %2458 = vmatpush1.msra.mxu0 0.0
        %2459 = vmatprep.subr.mxu0 0.0
        %2460 = vmatpush1.msra.mxu0 0.0
        %2461 = vmatprep.subr.mxu0 0.0
        %2462 = vmatpush1.msra.mxu0 0.0
        %2463 = vmatprep.subr.mxu0 0.0
        %2464 = vmatpush1.msra.mxu0 0.0
        %2465 = vmatprep.subr.mxu0 0.0
        %2466 = vmatpush1.msra.mxu0 0.0
        %2467 = vmatprep.subr.mxu0 0.0
        %2468 = vmatpush1.msra.mxu0 0.0
        %2469 = vmatprep.subr.mxu0 0.0
        %2470 = vmatpush1.msra.mxu0 0.0
        %2471 = vmatprep.subr.mxu0 0.0
        %2472 = vmatpush1.msra.mxu0 0.0
        %2473 = vmatprep.subr.mxu0 0.0
        %2474 = vmatpush1.msra.mxu0 0.0
        %2475 = vmatprep.subr.mxu0 %v1975
        %2476 = vmatpush1.msra.mxu0 %v1974
        %2477 = vmatprep.subr.mxu0 %v1959
        %2478 = vmatpush1.msra.mxu0 %v1958
        %2479 = vmatprep.subr.mxu0 0.0
        %2480 = vmatpush2.msra.mxu0 0.0
        %2481 = vmatprep.subr.mxu0 0.0
        %2482 = vmatpush2.msra.mxu0 0.0
        %2483 = vmatprep.subr.mxu0 0.0
        %2484 = vmatpush2.msra.mxu0 0.0
        %2485 = vmatprep.subr.mxu0 0.0
        %2486 = vmatpush2.msra.mxu0 0.0
        %2487 = vmatprep.subr.mxu0 0.0
        %2488 = vmatpush2.msra.mxu0 0.0
        %2489 = vmatprep.subr.mxu0 0.0
        %2490 = vmatpush2.msra.mxu0 0.0
        %2491 = vmatprep.subr.mxu0 0.0
        %2492 = vmatpush2.msra.mxu0 0.0
        %2493 = vmatprep.subr.mxu0 0.0
        %2494 = vmatpush2.msra.mxu0 0.0
        %2495 = vmatprep.subr.mxu0 0.0
        %2496 = vmatpush2.msra.mxu0 0.0
        %2497 = vmatprep.subr.mxu0 0.0
        %2498 = vmatpush2.msra.mxu0 0.0
        %2499 = vmatprep.subr.mxu0 0.0
        %2500 = vmatpush2.msra.mxu0 0.0
        %2501 = vmatprep.subr.mxu0 0.0
        %2502 = vmatpush2.msra.mxu0 0.0
        %2503 = vmatprep.subr.mxu0 0.0
        %2504 = vmatpush2.msra.mxu0 0.0
        %2505 = vmatprep.subr.mxu0 0.0
        %2506 = vmatpush2.msra.mxu0 0.0
        %2507 = vmatprep.subr.mxu0 0.0
        %2508 = vmatpush2.msra.mxu0 0.0
        %2509 = vmatprep.subr.mxu0 0.0
        %2510 = vmatpush2.msra.mxu0 0.0
        %2511 = vmatprep.mubr.f32.mxu0 0.0
        %2512 = vmatmul.mubr.f32.gmra.mxu0 %v1980
        %v2513 = vpop.f32.mrf.mxu0
        %v2514 = vadd.f32 0.0, %v2513
        %v2515 = vpop.f32.mrf.mxu0
        %v2516 = vadd.f32 0.0, %v2515
        %2517 = vmatprep.mubr.f32.mxu0 0.0
        %2518 = vmatmul.mubr.f32.gmra.mxu0 %v1983
        %v2519 = vpop.f32.mrf.mxu0
        %v2520 = vadd.f32 0.0, %v2519
        %v2521 = vpop.f32.mrf.mxu0
        %v2522 = vadd.f32 0.0, %v2521
        %2523 = vdwg.mxu0
        %2524 = vmatprep.subr.mxu0 0.0
        %2525 = vmatpush1.msra.mxu0 0.0
        %2526 = vmatprep.subr.mxu0 0.0
        %2527 = vmatpush1.msra.mxu0 0.0
        %2528 = vmatprep.subr.mxu0 0.0
        %2529 = vmatpush1.msra.mxu0 0.0
        %2530 = vmatprep.subr.mxu0 0.0
        %2531 = vmatpush1.msra.mxu0 0.0
        %2532 = vmatprep.subr.mxu0 0.0
        %2533 = vmatpush1.msra.mxu0 0.0
        %2534 = vmatprep.subr.mxu0 0.0
        %2535 = vmatpush1.msra.mxu0 0.0
        %2536 = vmatprep.subr.mxu0 0.0
        %2537 = vmatpush1.msra.mxu0 0.0
        %2538 = vmatprep.subr.mxu0 0.0
        %2539 = vmatpush1.msra.mxu0 0.0
        %2540 = vmatprep.subr.mxu0 0.0
        %2541 = vmatpush1.msra.mxu0 0.0
        %2542 = vmatprep.subr.mxu0 0.0
        %2543 = vmatpush1.msra.mxu0 0.0
        %2544 = vmatprep.subr.mxu0 0.0
        %2545 = vmatpush1.msra.mxu0 0.0
        %2546 = vmatprep.subr.mxu0 0.0
        %2547 = vmatpush1.msra.mxu0 0.0
        %2548 = vmatprep.subr.mxu0 0.0
        %2549 = vmatpush1.msra.mxu0 0.0
        %2550 = vmatprep.subr.mxu0 0.0
        %2551 = vmatpush1.msra.mxu0 0.0
        %2552 = vmatprep.subr.mxu0 %v1977
        %2553 = vmatpush1.msra.mxu0 %v1976
        %2554 = vmatprep.subr.mxu0 %v1961
        %2555 = vmatpush1.msra.mxu0 %v1960
        %2556 = vmatprep.subr.mxu0 0.0
        %2557 = vmatpush2.msra.mxu0 0.0
        %2558 = vmatprep.subr.mxu0 0.0
        %2559 = vmatpush2.msra.mxu0 0.0
        %2560 = vmatprep.subr.mxu0 0.0
        %2561 = vmatpush2.msra.mxu0 0.0
        %2562 = vmatprep.subr.mxu0 0.0
        %2563 = vmatpush2.msra.mxu0 0.0
        %2564 = vmatprep.subr.mxu0 0.0
        %2565 = vmatpush2.msra.mxu0 0.0
        %2566 = vmatprep.subr.mxu0 0.0
        %2567 = vmatpush2.msra.mxu0 0.0
        %2568 = vmatprep.subr.mxu0 0.0
        %2569 = vmatpush2.msra.mxu0 0.0
        %2570 = vmatprep.subr.mxu0 0.0
        %2571 = vmatpush2.msra.mxu0 0.0
        %2572 = vmatprep.subr.mxu0 0.0
        %2573 = vmatpush2.msra.mxu0 0.0
        %2574 = vmatprep.subr.mxu0 0.0
        %2575 = vmatpush2.msra.mxu0 0.0
        %2576 = vmatprep.subr.mxu0 0.0
        %2577 = vmatpush2.msra.mxu0 0.0
        %2578 = vmatprep.subr.mxu0 0.0
        %2579 = vmatpush2.msra.mxu0 0.0
        %2580 = vmatprep.subr.mxu0 0.0
        %2581 = vmatpush2.msra.mxu0 0.0
        %2582 = vmatprep.subr.mxu0 0.0
        %2583 = vmatpush2.msra.mxu0 0.0
        %2584 = vmatprep.subr.mxu0 0.0
        %2585 = vmatpush2.msra.mxu0 0.0
        %2586 = vmatprep.subr.mxu0 0.0
        %2587 = vmatpush2.msra.mxu0 0.0
        %2588 = vmatprep.mubr.f32.mxu0 0.0
        %2589 = vmatmul.mubr.f32.gmra.mxu0 %v1980
        %v2590 = vpop.f32.mrf.mxu0
        %v2591 = vadd.f32 0.0, %v2590
        %v2592 = vpop.f32.mrf.mxu0
        %v2593 = vadd.f32 0.0, %v2592
        %2594 = vmatprep.mubr.f32.mxu0 0.0
        %2595 = vmatmul.mubr.f32.gmra.mxu0 %v1983
        %v2596 = vpop.f32.mrf.mxu0
        %v2597 = vadd.f32 0.0, %v2596
        %v2598 = vpop.f32.mrf.mxu0
        %v2599 = vadd.f32 0.0, %v2598
        %2600 = vdwg.mxu0
        %v2602 = vsel %vm1978, %v1944, 0
        %v2605 = vsel %vm1978, %v1945, 0
        %2607 = vmatprep.subr.mxu0 0.0
        %2608 = vmatpush1.msra.mxu0 0.0
        %2609 = vmatprep.subr.mxu0 0.0
        %2610 = vmatpush1.msra.mxu0 0.0
        %2611 = vmatprep.subr.mxu0 0.0
        %2612 = vmatpush1.msra.mxu0 0.0
        %2613 = vmatprep.subr.mxu0 0.0
        %2614 = vmatpush1.msra.mxu0 0.0
        %2615 = vmatprep.subr.mxu0 0.0
        %2616 = vmatpush1.msra.mxu0 0.0
        %2617 = vmatprep.subr.mxu0 0.0
        %2618 = vmatpush1.msra.mxu0 0.0
        %2619 = vmatprep.subr.mxu0 0.0
        %2620 = vmatpush1.msra.mxu0 0.0
        %2621 = vmatprep.subr.mxu0 0.0
        %2622 = vmatpush1.msra.mxu0 0.0
        %2623 = vmatprep.subr.mxu0 0.0
        %2624 = vmatpush1.msra.mxu0 0.0
        %2625 = vmatprep.subr.mxu0 0.0
        %2626 = vmatpush1.msra.mxu0 0.0
        %2627 = vmatprep.subr.mxu0 0.0
        %2628 = vmatpush1.msra.mxu0 0.0
        %2629 = vmatprep.subr.mxu0 0.0
        %2630 = vmatpush1.msra.mxu0 0.0
        %2631 = vmatprep.subr.mxu0 0.0
        %2632 = vmatpush1.msra.mxu0 0.0
        %2633 = vmatprep.subr.mxu0 0.0
        %2634 = vmatpush1.msra.mxu0 0.0
        %2635 = vmatprep.subr.mxu0 %v1963
        %2636 = vmatpush1.msra.mxu0 %v1962
        %2637 = vmatprep.subr.mxu0 %v1947
        %2638 = vmatpush1.msra.mxu0 %v1946
        %2639 = vmatprep.subr.mxu0 0.0
        %2640 = vmatpush2.msra.mxu0 0.0
        %2641 = vmatprep.subr.mxu0 0.0
        %2642 = vmatpush2.msra.mxu0 0.0
        %2643 = vmatprep.subr.mxu0 0.0
        %2644 = vmatpush2.msra.mxu0 0.0
        %2645 = vmatprep.subr.mxu0 0.0
        %2646 = vmatpush2.msra.mxu0 0.0
        %2647 = vmatprep.subr.mxu0 0.0
        %2648 = vmatpush2.msra.mxu0 0.0
        %2649 = vmatprep.subr.mxu0 0.0
        %2650 = vmatpush2.msra.mxu0 0.0
        %2651 = vmatprep.subr.mxu0 0.0
        %2652 = vmatpush2.msra.mxu0 0.0
        %2653 = vmatprep.subr.mxu0 0.0
        %2654 = vmatpush2.msra.mxu0 0.0
        %2655 = vmatprep.subr.mxu0 0.0
        %2656 = vmatpush2.msra.mxu0 0.0
        %2657 = vmatprep.subr.mxu0 0.0
        %2658 = vmatpush2.msra.mxu0 0.0
        %2659 = vmatprep.subr.mxu0 0.0
        %2660 = vmatpush2.msra.mxu0 0.0
        %2661 = vmatprep.subr.mxu0 0.0
        %2662 = vmatpush2.msra.mxu0 0.0
        %2663 = vmatprep.subr.mxu0 0.0
        %2664 = vmatpush2.msra.mxu0 0.0
        %2665 = vmatprep.subr.mxu0 0.0
        %2666 = vmatpush2.msra.mxu0 0.0
        %2667 = vmatprep.subr.mxu0 0.0
        %2668 = vmatpush2.msra.mxu0 0.0
        %2669 = vmatprep.subr.mxu0 0.0
        %2670 = vmatpush2.msra.mxu0 0.0
        %2671 = vmatprep.mubr.f32.mxu0 0.0
        %2672 = vmatmul.mubr.f32.gmra.mxu0 %v2602
        %v2673 = vpop.f32.mrf.mxu0
        %v2674 = vadd.f32 0.0, %v2673
        %v2675 = vpop.f32.mrf.mxu0
        %v2676 = vadd.f32 0.0, %v2675
        %2677 = vmatprep.mubr.f32.mxu0 0.0
        %2678 = vmatmul.mubr.f32.gmra.mxu0 %v2605
        %v2679 = vpop.f32.mrf.mxu0
        %v2680 = vadd.f32 0.0, %v2679
        %v2681 = vpop.f32.mrf.mxu0
        %v2682 = vadd.f32 0.0, %v2681
        %2683 = vdwg.mxu0
        %2684 = vmatprep.subr.mxu0 0.0
        %2685 = vmatpush1.msra.mxu0 0.0
        %2686 = vmatprep.subr.mxu0 0.0
        %2687 = vmatpush1.msra.mxu0 0.0
        %2688 = vmatprep.subr.mxu0 0.0
        %2689 = vmatpush1.msra.mxu0 0.0
        %2690 = vmatprep.subr.mxu0 0.0
        %2691 = vmatpush1.msra.mxu0 0.0
        %2692 = vmatprep.subr.mxu0 0.0
        %2693 = vmatpush1.msra.mxu0 0.0
        %2694 = vmatprep.subr.mxu0 0.0
        %2695 = vmatpush1.msra.mxu0 0.0
        %2696 = vmatprep.subr.mxu0 0.0
        %2697 = vmatpush1.msra.mxu0 0.0
        %2698 = vmatprep.subr.mxu0 0.0
        %2699 = vmatpush1.msra.mxu0 0.0
        %2700 = vmatprep.subr.mxu0 0.0
        %2701 = vmatpush1.msra.mxu0 0.0
        %2702 = vmatprep.subr.mxu0 0.0
        %2703 = vmatpush1.msra.mxu0 0.0
        %2704 = vmatprep.subr.mxu0 0.0
        %2705 = vmatpush1.msra.mxu0 0.0
        %2706 = vmatprep.subr.mxu0 0.0
        %2707 = vmatpush1.msra.mxu0 0.0
        %2708 = vmatprep.subr.mxu0 0.0
        %2709 = vmatpush1.msra.mxu0 0.0
        %2710 = vmatprep.subr.mxu0 0.0
        %2711 = vmatpush1.msra.mxu0 0.0
        %2712 = vmatprep.subr.mxu0 %v1965
        %2713 = vmatpush1.msra.mxu0 %v1964
        %2714 = vmatprep.subr.mxu0 %v1949
        %2715 = vmatpush1.msra.mxu0 %v1948
        %2716 = vmatprep.subr.mxu0 0.0
        %2717 = vmatpush2.msra.mxu0 0.0
        %2718 = vmatprep.subr.mxu0 0.0
        %2719 = vmatpush2.msra.mxu0 0.0
        %2720 = vmatprep.subr.mxu0 0.0
        %2721 = vmatpush2.msra.mxu0 0.0
        %2722 = vmatprep.subr.mxu0 0.0
        %2723 = vmatpush2.msra.mxu0 0.0
        %2724 = vmatprep.subr.mxu0 0.0
        %2725 = vmatpush2.msra.mxu0 0.0
        %2726 = vmatprep.subr.mxu0 0.0
        %2727 = vmatpush2.msra.mxu0 0.0
        %2728 = vmatprep.subr.mxu0 0.0
        %2729 = vmatpush2.msra.mxu0 0.0
        %2730 = vmatprep.subr.mxu0 0.0
        %2731 = vmatpush2.msra.mxu0 0.0
        %2732 = vmatprep.subr.mxu0 0.0
        %2733 = vmatpush2.msra.mxu0 0.0
        %2734 = vmatprep.subr.mxu0 0.0
        %2735 = vmatpush2.msra.mxu0 0.0
        %2736 = vmatprep.subr.mxu0 0.0
        %2737 = vmatpush2.msra.mxu0 0.0
        %2738 = vmatprep.subr.mxu0 0.0
        %2739 = vmatpush2.msra.mxu0 0.0
        %2740 = vmatprep.subr.mxu0 0.0
        %2741 = vmatpush2.msra.mxu0 0.0
        %2742 = vmatprep.subr.mxu0 0.0
        %2743 = vmatpush2.msra.mxu0 0.0
        %2744 = vmatprep.subr.mxu0 0.0
        %2745 = vmatpush2.msra.mxu0 0.0
        %2746 = vmatprep.subr.mxu0 0.0
        %2747 = vmatpush2.msra.mxu0 0.0
        %2748 = vmatprep.mubr.f32.mxu0 0.0
        %2749 = vmatmul.mubr.f32.gmra.mxu0 %v2602
        %v2750 = vpop.f32.mrf.mxu0
        %v2751 = vadd.f32 0.0, %v2750
        %v2752 = vpop.f32.mrf.mxu0
        %v2753 = vadd.f32 0.0, %v2752
        %2754 = vmatprep.mubr.f32.mxu0 0.0
        %2755 = vmatmul.mubr.f32.gmra.mxu0 %v2605
        %v2756 = vpop.f32.mrf.mxu0
        %v2757 = vadd.f32 0.0, %v2756
        %v2758 = vpop.f32.mrf.mxu0
        %v2759 = vadd.f32 0.0, %v2758
        %2760 = vdwg.mxu0
        %2761 = vmatprep.subr.mxu0 0.0
        %2762 = vmatpush1.msra.mxu0 0.0
        %2763 = vmatprep.subr.mxu0 0.0
        %2764 = vmatpush1.msra.mxu0 0.0
        %2765 = vmatprep.subr.mxu0 0.0
        %2766 = vmatpush1.msra.mxu0 0.0
        %2767 = vmatprep.subr.mxu0 0.0
        %2768 = vmatpush1.msra.mxu0 0.0
        %2769 = vmatprep.subr.mxu0 0.0
        %2770 = vmatpush1.msra.mxu0 0.0
        %2771 = vmatprep.subr.mxu0 0.0
        %2772 = vmatpush1.msra.mxu0 0.0
        %2773 = vmatprep.subr.mxu0 0.0
        %2774 = vmatpush1.msra.mxu0 0.0
        %2775 = vmatprep.subr.mxu0 0.0
        %2776 = vmatpush1.msra.mxu0 0.0
        %2777 = vmatprep.subr.mxu0 0.0
        %2778 = vmatpush1.msra.mxu0 0.0
        %2779 = vmatprep.subr.mxu0 0.0
        %2780 = vmatpush1.msra.mxu0 0.0
        %2781 = vmatprep.subr.mxu0 0.0
        %2782 = vmatpush1.msra.mxu0 0.0
        %2783 = vmatprep.subr.mxu0 0.0
        %2784 = vmatpush1.msra.mxu0 0.0
        %2785 = vmatprep.subr.mxu0 0.0
        %2786 = vmatpush1.msra.mxu0 0.0
        %2787 = vmatprep.subr.mxu0 0.0
        %2788 = vmatpush1.msra.mxu0 0.0
        %2789 = vmatprep.subr.mxu0 %v1967
        %2790 = vmatpush1.msra.mxu0 %v1966
        %2791 = vmatprep.subr.mxu0 %v1951
        %2792 = vmatpush1.msra.mxu0 %v1950
        %2793 = vmatprep.subr.mxu0 0.0
        %2794 = vmatpush2.msra.mxu0 0.0
        %2795 = vmatprep.subr.mxu0 0.0
        %2796 = vmatpush2.msra.mxu0 0.0
        %2797 = vmatprep.subr.mxu0 0.0
        %2798 = vmatpush2.msra.mxu0 0.0
        %2799 = vmatprep.subr.mxu0 0.0
        %2800 = vmatpush2.msra.mxu0 0.0
        %2801 = vmatprep.subr.mxu0 0.0
        %2802 = vmatpush2.msra.mxu0 0.0
        %2803 = vmatprep.subr.mxu0 0.0
        %2804 = vmatpush2.msra.mxu0 0.0
        %2805 = vmatprep.subr.mxu0 0.0
        %2806 = vmatpush2.msra.mxu0 0.0
        %2807 = vmatprep.subr.mxu0 0.0
        %2808 = vmatpush2.msra.mxu0 0.0
        %2809 = vmatprep.subr.mxu0 0.0
        %2810 = vmatpush2.msra.mxu0 0.0
        %2811 = vmatprep.subr.mxu0 0.0
        %2812 = vmatpush2.msra.mxu0 0.0
        %2813 = vmatprep.subr.mxu0 0.0
        %2814 = vmatpush2.msra.mxu0 0.0
        %2815 = vmatprep.subr.mxu0 0.0
        %2816 = vmatpush2.msra.mxu0 0.0
        %2817 = vmatprep.subr.mxu0 0.0
        %2818 = vmatpush2.msra.mxu0 0.0
        %2819 = vmatprep.subr.mxu0 0.0
        %2820 = vmatpush2.msra.mxu0 0.0
        %2821 = vmatprep.subr.mxu0 0.0
        %2822 = vmatpush2.msra.mxu0 0.0
        %2823 = vmatprep.subr.mxu0 0.0
        %2824 = vmatpush2.msra.mxu0 0.0
        %2825 = vmatprep.mubr.f32.mxu0 0.0
        %2826 = vmatmul.mubr.f32.gmra.mxu0 %v2602
        %v2827 = vpop.f32.mrf.mxu0
        %v2828 = vadd.f32 0.0, %v2827
        %v2829 = vpop.f32.mrf.mxu0
        %v2830 = vadd.f32 0.0, %v2829
        %2831 = vmatprep.mubr.f32.mxu0 0.0
        %2832 = vmatmul.mubr.f32.gmra.mxu0 %v2605
        %v2833 = vpop.f32.mrf.mxu0
        %v2834 = vadd.f32 0.0, %v2833
        %v2835 = vpop.f32.mrf.mxu0
        %v2836 = vadd.f32 0.0, %v2835
        %2837 = vdwg.mxu0
        %2838 = vmatprep.subr.mxu0 0.0
        %2839 = vmatpush1.msra.mxu0 0.0
        %2840 = vmatprep.subr.mxu0 0.0
        %2841 = vmatpush1.msra.mxu0 0.0
        %2842 = vmatprep.subr.mxu0 0.0
        %2843 = vmatpush1.msra.mxu0 0.0
        %2844 = vmatprep.subr.mxu0 0.0
        %2845 = vmatpush1.msra.mxu0 0.0
        %2846 = vmatprep.subr.mxu0 0.0
        %2847 = vmatpush1.msra.mxu0 0.0
        %2848 = vmatprep.subr.mxu0 0.0
        %2849 = vmatpush1.msra.mxu0 0.0
        %2850 = vmatprep.subr.mxu0 0.0
        %2851 = vmatpush1.msra.mxu0 0.0
        %2852 = vmatprep.subr.mxu0 0.0
        %2853 = vmatpush1.msra.mxu0 0.0
        %2854 = vmatprep.subr.mxu0 0.0
        %2855 = vmatpush1.msra.mxu0 0.0
        %2856 = vmatprep.subr.mxu0 0.0
        %2857 = vmatpush1.msra.mxu0 0.0
        %2858 = vmatprep.subr.mxu0 0.0
        %2859 = vmatpush1.msra.mxu0 0.0
        %2860 = vmatprep.subr.mxu0 0.0
        %2861 = vmatpush1.msra.mxu0 0.0
        %2862 = vmatprep.subr.mxu0 0.0
        %2863 = vmatpush1.msra.mxu0 0.0
        %2864 = vmatprep.subr.mxu0 0.0
        %2865 = vmatpush1.msra.mxu0 0.0
        %2866 = vmatprep.subr.mxu0 %v1969
        %2867 = vmatpush1.msra.mxu0 %v1968
        %2868 = vmatprep.subr.mxu0 %v1953
        %2869 = vmatpush1.msra.mxu0 %v1952
        %2870 = vmatprep.subr.mxu0 0.0
        %2871 = vmatpush2.msra.mxu0 0.0
        %2872 = vmatprep.subr.mxu0 0.0
        %2873 = vmatpush2.msra.mxu0 0.0
        %2874 = vmatprep.subr.mxu0 0.0
        %2875 = vmatpush2.msra.mxu0 0.0
        %2876 = vmatprep.subr.mxu0 0.0
        %2877 = vmatpush2.msra.mxu0 0.0
        %2878 = vmatprep.subr.mxu0 0.0
        %2879 = vmatpush2.msra.mxu0 0.0
        %2880 = vmatprep.subr.mxu0 0.0
        %2881 = vmatpush2.msra.mxu0 0.0
        %2882 = vmatprep.subr.mxu0 0.0
        %2883 = vmatpush2.msra.mxu0 0.0
        %2884 = vmatprep.subr.mxu0 0.0
        %2885 = vmatpush2.msra.mxu0 0.0
        %2886 = vmatprep.subr.mxu0 0.0
        %2887 = vmatpush2.msra.mxu0 0.0
        %2888 = vmatprep.subr.mxu0 0.0
        %2889 = vmatpush2.msra.mxu0 0.0
        %2890 = vmatprep.subr.mxu0 0.0
        %2891 = vmatpush2.msra.mxu0 0.0
        %2892 = vmatprep.subr.mxu0 0.0
        %2893 = vmatpush2.msra.mxu0 0.0
        %2894 = vmatprep.subr.mxu0 0.0
        %2895 = vmatpush2.msra.mxu0 0.0
        %2896 = vmatprep.subr.mxu0 0.0
        %2897 = vmatpush2.msra.mxu0 0.0
        %2898 = vmatprep.subr.mxu0 0.0
        %2899 = vmatpush2.msra.mxu0 0.0
        %2900 = vmatprep.subr.mxu0 0.0
        %2901 = vmatpush2.msra.mxu0 0.0
        %2902 = vmatprep.mubr.f32.mxu0 0.0
        %2903 = vmatmul.mubr.f32.gmra.mxu0 %v2602
        %v2904 = vpop.f32.mrf.mxu0
        %v2905 = vadd.f32 0.0, %v2904
        %v2906 = vpop.f32.mrf.mxu0
        %v2907 = vadd.f32 0.0, %v2906
        %2908 = vmatprep.mubr.f32.mxu0 0.0
        %2909 = vmatmul.mubr.f32.gmra.mxu0 %v2605
        %v2910 = vpop.f32.mrf.mxu0
        %v2911 = vadd.f32 0.0, %v2910
        %v2912 = vpop.f32.mrf.mxu0
        %v2913 = vadd.f32 0.0, %v2912
        %2914 = vdwg.mxu0
        %2915 = vmatprep.subr.mxu0 0.0
        %2916 = vmatpush1.msra.mxu0 0.0
        %2917 = vmatprep.subr.mxu0 0.0
        %2918 = vmatpush1.msra.mxu0 0.0
        %2919 = vmatprep.subr.mxu0 0.0
        %2920 = vmatpush1.msra.mxu0 0.0
        %2921 = vmatprep.subr.mxu0 0.0
        %2922 = vmatpush1.msra.mxu0 0.0
        %2923 = vmatprep.subr.mxu0 0.0
        %2924 = vmatpush1.msra.mxu0 0.0
        %2925 = vmatprep.subr.mxu0 0.0
        %2926 = vmatpush1.msra.mxu0 0.0
        %2927 = vmatprep.subr.mxu0 0.0
        %2928 = vmatpush1.msra.mxu0 0.0
        %2929 = vmatprep.subr.mxu0 0.0
        %2930 = vmatpush1.msra.mxu0 0.0
        %2931 = vmatprep.subr.mxu0 0.0
        %2932 = vmatpush1.msra.mxu0 0.0
        %2933 = vmatprep.subr.mxu0 0.0
        %2934 = vmatpush1.msra.mxu0 0.0
        %2935 = vmatprep.subr.mxu0 0.0
        %2936 = vmatpush1.msra.mxu0 0.0
        %2937 = vmatprep.subr.mxu0 0.0
        %2938 = vmatpush1.msra.mxu0 0.0
        %2939 = vmatprep.subr.mxu0 0.0
        %2940 = vmatpush1.msra.mxu0 0.0
        %2941 = vmatprep.subr.mxu0 0.0
        %2942 = vmatpush1.msra.mxu0 0.0
        %2943 = vmatprep.subr.mxu0 %v1971
        %2944 = vmatpush1.msra.mxu0 %v1970
        %2945 = vmatprep.subr.mxu0 %v1955
        %2946 = vmatpush1.msra.mxu0 %v1954
        %2947 = vmatprep.subr.mxu0 0.0
        %2948 = vmatpush2.msra.mxu0 0.0
        %2949 = vmatprep.subr.mxu0 0.0
        %2950 = vmatpush2.msra.mxu0 0.0
        %2951 = vmatprep.subr.mxu0 0.0
        %2952 = vmatpush2.msra.mxu0 0.0
        %2953 = vmatprep.subr.mxu0 0.0
        %2954 = vmatpush2.msra.mxu0 0.0
        %2955 = vmatprep.subr.mxu0 0.0
        %2956 = vmatpush2.msra.mxu0 0.0
        %2957 = vmatprep.subr.mxu0 0.0
        %2958 = vmatpush2.msra.mxu0 0.0
        %2959 = vmatprep.subr.mxu0 0.0
        %2960 = vmatpush2.msra.mxu0 0.0
        %2961 = vmatprep.subr.mxu0 0.0
        %2962 = vmatpush2.msra.mxu0 0.0
        %2963 = vmatprep.subr.mxu0 0.0
        %2964 = vmatpush2.msra.mxu0 0.0
        %2965 = vmatprep.subr.mxu0 0.0
        %2966 = vmatpush2.msra.mxu0 0.0
        %2967 = vmatprep.subr.mxu0 0.0
        %2968 = vmatpush2.msra.mxu0 0.0
        %2969 = vmatprep.subr.mxu0 0.0
        %2970 = vmatpush2.msra.mxu0 0.0
        %2971 = vmatprep.subr.mxu0 0.0
        %2972 = vmatpush2.msra.mxu0 0.0
        %2973 = vmatprep.subr.mxu0 0.0
        %2974 = vmatpush2.msra.mxu0 0.0
        %2975 = vmatprep.subr.mxu0 0.0
        %2976 = vmatpush2.msra.mxu0 0.0
        %2977 = vmatprep.subr.mxu0 0.0
        %2978 = vmatpush2.msra.mxu0 0.0
        %2979 = vmatprep.mubr.f32.mxu0 0.0
        %2980 = vmatmul.mubr.f32.gmra.mxu0 %v2602
        %v2981 = vpop.f32.mrf.mxu0
        %v2982 = vadd.f32 0.0, %v2981
        %v2983 = vpop.f32.mrf.mxu0
        %v2984 = vadd.f32 0.0, %v2983
        %2985 = vmatprep.mubr.f32.mxu0 0.0
        %2986 = vmatmul.mubr.f32.gmra.mxu0 %v2605
        %v2987 = vpop.f32.mrf.mxu0
        %v2988 = vadd.f32 0.0, %v2987
        %v2989 = vpop.f32.mrf.mxu0
        %v2990 = vadd.f32 0.0, %v2989
        %2991 = vdwg.mxu0
        %2992 = vmatprep.subr.mxu0 0.0
        %2993 = vmatpush1.msra.mxu0 0.0
        %2994 = vmatprep.subr.mxu0 0.0
        %2995 = vmatpush1.msra.mxu0 0.0
        %2996 = vmatprep.subr.mxu0 0.0
        %2997 = vmatpush1.msra.mxu0 0.0
        %2998 = vmatprep.subr.mxu0 0.0
        %2999 = vmatpush1.msra.mxu0 0.0
        %3000 = vmatprep.subr.mxu0 0.0
        %3001 = vmatpush1.msra.mxu0 0.0
        %3002 = vmatprep.subr.mxu0 0.0
        %3003 = vmatpush1.msra.mxu0 0.0
        %3004 = vmatprep.subr.mxu0 0.0
        %3005 = vmatpush1.msra.mxu0 0.0
        %3006 = vmatprep.subr.mxu0 0.0
        %3007 = vmatpush1.msra.mxu0 0.0
        %3008 = vmatprep.subr.mxu0 0.0
        %3009 = vmatpush1.msra.mxu0 0.0
        %3010 = vmatprep.subr.mxu0 0.0
        %3011 = vmatpush1.msra.mxu0 0.0
        %3012 = vmatprep.subr.mxu0 0.0
        %3013 = vmatpush1.msra.mxu0 0.0
        %3014 = vmatprep.subr.mxu0 0.0
        %3015 = vmatpush1.msra.mxu0 0.0
        %3016 = vmatprep.subr.mxu0 0.0
        %3017 = vmatpush1.msra.mxu0 0.0
        %3018 = vmatprep.subr.mxu0 0.0
        %3019 = vmatpush1.msra.mxu0 0.0
        %3020 = vmatprep.subr.mxu0 %v1973
        %3021 = vmatpush1.msra.mxu0 %v1972
        %3022 = vmatprep.subr.mxu0 %v1957
        %3023 = vmatpush1.msra.mxu0 %v1956
        %3024 = vmatprep.subr.mxu0 0.0
        %3025 = vmatpush2.msra.mxu0 0.0
        %3026 = vmatprep.subr.mxu0 0.0
        %3027 = vmatpush2.msra.mxu0 0.0
        %3028 = vmatprep.subr.mxu0 0.0
        %3029 = vmatpush2.msra.mxu0 0.0
        %3030 = vmatprep.subr.mxu0 0.0
        %3031 = vmatpush2.msra.mxu0 0.0
        %3032 = vmatprep.subr.mxu0 0.0
        %3033 = vmatpush2.msra.mxu0 0.0
        %3034 = vmatprep.subr.mxu0 0.0
        %3035 = vmatpush2.msra.mxu0 0.0
        %3036 = vmatprep.subr.mxu0 0.0
        %3037 = vmatpush2.msra.mxu0 0.0
        %3038 = vmatprep.subr.mxu0 0.0
        %3039 = vmatpush2.msra.mxu0 0.0
        %3040 = vmatprep.subr.mxu0 0.0
        %3041 = vmatpush2.msra.mxu0 0.0
        %3042 = vmatprep.subr.mxu0 0.0
        %3043 = vmatpush2.msra.mxu0 0.0
        %3044 = vmatprep.subr.mxu0 0.0
        %3045 = vmatpush2.msra.mxu0 0.0
        %3046 = vmatprep.subr.mxu0 0.0
        %3047 = vmatpush2.msra.mxu0 0.0
        %3048 = vmatprep.subr.mxu0 0.0
        %3049 = vmatpush2.msra.mxu0 0.0
        %3050 = vmatprep.subr.mxu0 0.0
        %3051 = vmatpush2.msra.mxu0 0.0
        %3052 = vmatprep.subr.mxu0 0.0
        %3053 = vmatpush2.msra.mxu0 0.0
        %3054 = vmatprep.subr.mxu0 0.0
        %3055 = vmatpush2.msra.mxu0 0.0
        %3056 = vmatprep.mubr.f32.mxu0 0.0
        %3057 = vmatmul.mubr.f32.gmra.mxu0 %v2602
        %v3058 = vpop.f32.mrf.mxu0
        %v3059 = vadd.f32 0.0, %v3058
        %v3060 = vpop.f32.mrf.mxu0
        %v3061 = vadd.f32 0.0, %v3060
        %3062 = vmatprep.mubr.f32.mxu0 0.0
        %3063 = vmatmul.mubr.f32.gmra.mxu0 %v2605
        %v3064 = vpop.f32.mrf.mxu0
        %v3065 = vadd.f32 0.0, %v3064
        %v3066 = vpop.f32.mrf.mxu0
        %v3067 = vadd.f32 0.0, %v3066
        %3068 = vdwg.mxu0
        %3069 = vmatprep.subr.mxu0 0.0
        %3070 = vmatpush1.msra.mxu0 0.0
        %3071 = vmatprep.subr.mxu0 0.0
        %3072 = vmatpush1.msra.mxu0 0.0
        %3073 = vmatprep.subr.mxu0 0.0
        %3074 = vmatpush1.msra.mxu0 0.0
        %3075 = vmatprep.subr.mxu0 0.0
        %3076 = vmatpush1.msra.mxu0 0.0
        %3077 = vmatprep.subr.mxu0 0.0
        %3078 = vmatpush1.msra.mxu0 0.0
        %3079 = vmatprep.subr.mxu0 0.0
        %3080 = vmatpush1.msra.mxu0 0.0
        %3081 = vmatprep.subr.mxu0 0.0
        %3082 = vmatpush1.msra.mxu0 0.0
        %3083 = vmatprep.subr.mxu0 0.0
        %3084 = vmatpush1.msra.mxu0 0.0
        %3085 = vmatprep.subr.mxu0 0.0
        %3086 = vmatpush1.msra.mxu0 0.0
        %3087 = vmatprep.subr.mxu0 0.0
        %3088 = vmatpush1.msra.mxu0 0.0
        %3089 = vmatprep.subr.mxu0 0.0
        %3090 = vmatpush1.msra.mxu0 0.0
        %3091 = vmatprep.subr.mxu0 0.0
        %3092 = vmatpush1.msra.mxu0 0.0
        %3093 = vmatprep.subr.mxu0 0.0
        %3094 = vmatpush1.msra.mxu0 0.0
        %3095 = vmatprep.subr.mxu0 0.0
        %3096 = vmatpush1.msra.mxu0 0.0
        %3097 = vmatprep.subr.mxu0 %v1975
        %3098 = vmatpush1.msra.mxu0 %v1974
        %3099 = vmatprep.subr.mxu0 %v1959
        %3100 = vmatpush1.msra.mxu0 %v1958
        %3101 = vmatprep.subr.mxu0 0.0
        %3102 = vmatpush2.msra.mxu0 0.0
        %3103 = vmatprep.subr.mxu0 0.0
        %3104 = vmatpush2.msra.mxu0 0.0
        %3105 = vmatprep.subr.mxu0 0.0
        %3106 = vmatpush2.msra.mxu0 0.0
        %3107 = vmatprep.subr.mxu0 0.0
        %3108 = vmatpush2.msra.mxu0 0.0
        %3109 = vmatprep.subr.mxu0 0.0
        %3110 = vmatpush2.msra.mxu0 0.0
        %3111 = vmatprep.subr.mxu0 0.0
        %3112 = vmatpush2.msra.mxu0 0.0
        %3113 = vmatprep.subr.mxu0 0.0
        %3114 = vmatpush2.msra.mxu0 0.0
        %3115 = vmatprep.subr.mxu0 0.0
        %3116 = vmatpush2.msra.mxu0 0.0
        %3117 = vmatprep.subr.mxu0 0.0
        %3118 = vmatpush2.msra.mxu0 0.0
        %3119 = vmatprep.subr.mxu0 0.0
        %3120 = vmatpush2.msra.mxu0 0.0
        %3121 = vmatprep.subr.mxu0 0.0
        %3122 = vmatpush2.msra.mxu0 0.0
        %3123 = vmatprep.subr.mxu0 0.0
        %3124 = vmatpush2.msra.mxu0 0.0
        %3125 = vmatprep.subr.mxu0 0.0
        %3126 = vmatpush2.msra.mxu0 0.0
        %3127 = vmatprep.subr.mxu0 0.0
        %3128 = vmatpush2.msra.mxu0 0.0
        %3129 = vmatprep.subr.mxu0 0.0
        %3130 = vmatpush2.msra.mxu0 0.0
        %3131 = vmatprep.subr.mxu0 0.0
        %3132 = vmatpush2.msra.mxu0 0.0
        %3133 = vmatprep.mubr.f32.mxu0 0.0
        %3134 = vmatmul.mubr.f32.gmra.mxu0 %v2602
        %v3135 = vpop.f32.mrf.mxu0
        %v3136 = vadd.f32 0.0, %v3135
        %v3137 = vpop.f32.mrf.mxu0
        %v3138 = vadd.f32 0.0, %v3137
        %3139 = vmatprep.mubr.f32.mxu0 0.0
        %3140 = vmatmul.mubr.f32.gmra.mxu0 %v2605
        %v3141 = vpop.f32.mrf.mxu0
        %v3142 = vadd.f32 0.0, %v3141
        %v3143 = vpop.f32.mrf.mxu0
        %v3144 = vadd.f32 0.0, %v3143
        %3145 = vdwg.mxu0
        %3146 = vmatprep.subr.mxu0 0.0
        %3147 = vmatpush1.msra.mxu0 0.0
        %3148 = vmatprep.subr.mxu0 0.0
        %3149 = vmatpush1.msra.mxu0 0.0
        %3150 = vmatprep.subr.mxu0 0.0
        %3151 = vmatpush1.msra.mxu0 0.0
        %3152 = vmatprep.subr.mxu0 0.0
        %3153 = vmatpush1.msra.mxu0 0.0
        %3154 = vmatprep.subr.mxu0 0.0
        %3155 = vmatpush1.msra.mxu0 0.0
        %3156 = vmatprep.subr.mxu0 0.0
        %3157 = vmatpush1.msra.mxu0 0.0
        %3158 = vmatprep.subr.mxu0 0.0
        %3159 = vmatpush1.msra.mxu0 0.0
        %3160 = vmatprep.subr.mxu0 0.0
        %3161 = vmatpush1.msra.mxu0 0.0
        %3162 = vmatprep.subr.mxu0 0.0
        %3163 = vmatpush1.msra.mxu0 0.0
        %3164 = vmatprep.subr.mxu0 0.0
        %3165 = vmatpush1.msra.mxu0 0.0
        %3166 = vmatprep.subr.mxu0 0.0
        %3167 = vmatpush1.msra.mxu0 0.0
        %3168 = vmatprep.subr.mxu0 0.0
        %3169 = vmatpush1.msra.mxu0 0.0
        %3170 = vmatprep.subr.mxu0 0.0
        %3171 = vmatpush1.msra.mxu0 0.0
        %3172 = vmatprep.subr.mxu0 0.0
        %3173 = vmatpush1.msra.mxu0 0.0
        %3174 = vmatprep.subr.mxu0 %v1977
        %3175 = vmatpush1.msra.mxu0 %v1976
        %3176 = vmatprep.subr.mxu0 %v1961
        %3177 = vmatpush1.msra.mxu0 %v1960
        %3178 = vmatprep.subr.mxu0 0.0
        %3179 = vmatpush2.msra.mxu0 0.0
        %3180 = vmatprep.subr.mxu0 0.0
        %3181 = vmatpush2.msra.mxu0 0.0
        %3182 = vmatprep.subr.mxu0 0.0
        %3183 = vmatpush2.msra.mxu0 0.0
        %3184 = vmatprep.subr.mxu0 0.0
        %3185 = vmatpush2.msra.mxu0 0.0
        %3186 = vmatprep.subr.mxu0 0.0
        %3187 = vmatpush2.msra.mxu0 0.0
        %3188 = vmatprep.subr.mxu0 0.0
        %3189 = vmatpush2.msra.mxu0 0.0
        %3190 = vmatprep.subr.mxu0 0.0
        %3191 = vmatpush2.msra.mxu0 0.0
        %3192 = vmatprep.subr.mxu0 0.0
        %3193 = vmatpush2.msra.mxu0 0.0
        %3194 = vmatprep.subr.mxu0 0.0
        %3195 = vmatpush2.msra.mxu0 0.0
        %3196 = vmatprep.subr.mxu0 0.0
        %3197 = vmatpush2.msra.mxu0 0.0
        %3198 = vmatprep.subr.mxu0 0.0
        %3199 = vmatpush2.msra.mxu0 0.0
        %3200 = vmatprep.subr.mxu0 0.0
        %3201 = vmatpush2.msra.mxu0 0.0
        %3202 = vmatprep.subr.mxu0 0.0
        %3203 = vmatpush2.msra.mxu0 0.0
        %3204 = vmatprep.subr.mxu0 0.0
        %3205 = vmatpush2.msra.mxu0 0.0
        %3206 = vmatprep.subr.mxu0 0.0
        %3207 = vmatpush2.msra.mxu0 0.0
        %3208 = vmatprep.subr.mxu0 0.0
        %3209 = vmatpush2.msra.mxu0 0.0
        %3210 = vmatprep.mubr.f32.mxu0 0.0
        %3211 = vmatmul.mubr.f32.gmra.mxu0 %v2602
        %v3212 = vpop.f32.mrf.mxu0
        %v3213 = vadd.f32 0.0, %v3212
        %v3214 = vpop.f32.mrf.mxu0
        %v3215 = vadd.f32 0.0, %v3214
        %3216 = vmatprep.mubr.f32.mxu0 0.0
        %3217 = vmatmul.mubr.f32.gmra.mxu0 %v2605
        %v3218 = vpop.f32.mrf.mxu0
        %v3219 = vadd.f32 0.0, %v3218
        %v3220 = vpop.f32.mrf.mxu0
        %v3221 = vadd.f32 0.0, %v3220
        %3222 = vdwg.mxu0
        %v3223 = vmul.f32 %v414, %v2052
        %v3224 = vmul.f32 %v416, %v2054
        %v3225 = vmul.f32 %v491, %v2129
        %v3226 = vmul.f32 %v493, %v2131
        %v3227 = vmul.f32 %v568, %v2206
        %v3228 = vmul.f32 %v570, %v2208
        %v3229 = vmul.f32 %v645, %v2283
        %v3230 = vmul.f32 %v647, %v2285
        %v3231 = vmul.f32 %v722, %v2360
        %v3232 = vmul.f32 %v724, %v2362
        %v3233 = vmul.f32 %v799, %v2437
        %v3234 = vmul.f32 %v801, %v2439
        %v3235 = vmul.f32 %v876, %v2514
        %v3236 = vmul.f32 %v878, %v2516
        %v3237 = vmul.f32 %v953, %v2591
        %v3238 = vmul.f32 %v955, %v2593
        %v3239 = vmul.f32 %v420, %v2058
        %v3240 = vmul.f32 %v422, %v2060
        %v3241 = vmul.f32 %v497, %v2135
        %v3242 = vmul.f32 %v499, %v2137
        %v3243 = vmul.f32 %v574, %v2212
        %v3244 = vmul.f32 %v576, %v2214
        %v3245 = vmul.f32 %v651, %v2289
        %v3246 = vmul.f32 %v653, %v2291
        %v3247 = vmul.f32 %v728, %v2366
        %v3248 = vmul.f32 %v730, %v2368
        %v3249 = vmul.f32 %v805, %v2443
        %v3250 = vmul.f32 %v807, %v2445
        %v3251 = vmul.f32 %v882, %v2520
        %v3252 = vmul.f32 %v884, %v2522
        %v3253 = vmul.f32 %v959, %v2597
        %v3254 = vmul.f32 %v961, %v2599
        %v3255 = vadd.f32 %v3223, %v2674
        %v3256 = vadd.f32 %v3224, %v2676
        %v3257 = vadd.f32 %v3225, %v2751
        %v3258 = vadd.f32 %v3226, %v2753
        %v3259 = vadd.f32 %v3227, %v2828
        %v3260 = vadd.f32 %v3228, %v2830
        %v3261 = vadd.f32 %v3229, %v2905
        %v3262 = vadd.f32 %v3230, %v2907
        %v3263 = vadd.f32 %v3231, %v2982
        %v3264 = vadd.f32 %v3232, %v2984
        %v3265 = vadd.f32 %v3233, %v3059
        %v3266 = vadd.f32 %v3234, %v3061
        %v3267 = vadd.f32 %v3235, %v3136
        %v3268 = vadd.f32 %v3236, %v3138
        %v3269 = vadd.f32 %v3237, %v3213
        %v3270 = vadd.f32 %v3238, %v3215
        %v3271 = vadd.f32 %v3239, %v2680
        %v3272 = vadd.f32 %v3240, %v2682
        %v3273 = vadd.f32 %v3241, %v2757
        %v3274 = vadd.f32 %v3242, %v2759
        %v3275 = vadd.f32 %v3243, %v2834
        %v3276 = vadd.f32 %v3244, %v2836
        %v3277 = vadd.f32 %v3245, %v2911
        %v3278 = vadd.f32 %v3246, %v2913
        %v3279 = vadd.f32 %v3247, %v2988
        %v3280 = vadd.f32 %v3248, %v2990
        %v3281 = vadd.f32 %v3249, %v3065
        %v3282 = vadd.f32 %v3250, %v3067
        %v3283 = vadd.f32 %v3251, %v3142
        %v3284 = vadd.f32 %v3252, %v3144
        %v3285 = vadd.f32 %v3253, %v3219
        %v3286 = vadd.f32 %v3254, %v3221
        %v3287 = vld [vmem:[%s5] sm:$0xff]
        %v3288 = vld [vmem:[%s5 + $0x8] sm:$0xff]
        %v3291 = vlaneseq
        %v3292 = vshrl.u32 %v3291, 7
        %v3293 = vsub.s32 0, %v3292
        %v3294 = vrot.slane %v3287, %v3293
        %v3295 = vlaneseq
        %v3296 = vshrl.u32 %v3295, 7
        %v3297 = vsub.s32 1, %v3296
        %v3298 = vrot.slane %v3287, %v3297
        %v3299 = vlaneseq
        %v3300 = vshrl.u32 %v3299, 7
        %v3301 = vsub.s32 2, %v3300
        %v3302 = vrot.slane %v3287, %v3301
        %v3303 = vlaneseq
        %v3304 = vshrl.u32 %v3303, 7
        %v3305 = vsub.s32 3, %v3304
        %v3306 = vrot.slane %v3287, %v3305
        %v3307 = vlaneseq
        %v3308 = vshrl.u32 %v3307, 7
        %v3309 = vsub.s32 4, %v3308
        %v3310 = vrot.slane %v3287, %v3309
        %v3311 = vlaneseq
        %v3312 = vshrl.u32 %v3311, 7
        %v3313 = vsub.s32 5, %v3312
        %v3314 = vrot.slane %v3287, %v3313
        %v3315 = vlaneseq
        %v3316 = vshrl.u32 %v3315, 7
        %v3317 = vsub.s32 6, %v3316
        %v3318 = vrot.slane %v3287, %v3317
        %v3319 = vlaneseq
        %v3320 = vshrl.u32 %v3319, 7
        %v3321 = vsub.s32 7, %v3320
        %v3322 = vrot.slane %v3287, %v3321
        %v3323 = vlaneseq
        %v3324 = vshrl.u32 %v3323, 7
        %v3325 = vsub.s32 0, %v3324
        %v3326 = vrot.slane %v3288, %v3325
        %v3327 = vlaneseq
        %v3328 = vshrl.u32 %v3327, 7
        %v3329 = vsub.s32 1, %v3328
        %v3330 = vrot.slane %v3288, %v3329
        %v3331 = vlaneseq
        %v3332 = vshrl.u32 %v3331, 7
        %v3333 = vsub.s32 2, %v3332
        %v3334 = vrot.slane %v3288, %v3333
        %v3335 = vlaneseq
        %v3336 = vshrl.u32 %v3335, 7
        %v3337 = vsub.s32 3, %v3336
        %v3338 = vrot.slane %v3288, %v3337
        %v3339 = vlaneseq
        %v3340 = vshrl.u32 %v3339, 7
        %v3341 = vsub.s32 4, %v3340
        %v3342 = vrot.slane %v3288, %v3341
        %v3343 = vlaneseq
        %v3344 = vshrl.u32 %v3343, 7
        %v3345 = vsub.s32 5, %v3344
        %v3346 = vrot.slane %v3288, %v3345
        %v3347 = vlaneseq
        %v3348 = vshrl.u32 %v3347, 7
        %v3349 = vsub.s32 6, %v3348
        %v3350 = vrot.slane %v3288, %v3349
        %v3351 = vlaneseq
        %v3352 = vshrl.u32 %v3351, 7
        %v3353 = vsub.s32 7, %v3352
        %v3354 = vrot.slane %v3288, %v3353
        %v3371 = vadd.f32 %v3255, %v3294
        %v3372 = vadd.f32 %v3256, %v3298
        %v3373 = vadd.f32 %v3257, %v3302
        %v3374 = vadd.f32 %v3258, %v3306
        %v3375 = vadd.f32 %v3259, %v3310
        %v3376 = vadd.f32 %v3260, %v3314
        %v3377 = vadd.f32 %v3261, %v3318
        %v3378 = vadd.f32 %v3262, %v3322
        %v3379 = vadd.f32 %v3263, %v3326
        %v3380 = vadd.f32 %v3264, %v3330
        %v3381 = vadd.f32 %v3265, %v3334
        %v3382 = vadd.f32 %v3266, %v3338
        %v3383 = vadd.f32 %v3267, %v3342
        %v3384 = vadd.f32 %v3268, %v3346
        %v3385 = vadd.f32 %v3269, %v3350
        %v3386 = vadd.f32 %v3270, %v3354
        %v3387 = vadd.f32 %v3271, %v3294
        %v3388 = vadd.f32 %v3272, %v3298
        %v3389 = vadd.f32 %v3273, %v3302
        %v3390 = vadd.f32 %v3274, %v3306
        %v3391 = vadd.f32 %v3275, %v3310
        %v3392 = vadd.f32 %v3276, %v3314
        %v3393 = vadd.f32 %v3277, %v3318
        %v3394 = vadd.f32 %v3278, %v3322
        %v3395 = vadd.f32 %v3279, %v3326
        %v3396 = vadd.f32 %v3280, %v3330
        %v3397 = vadd.f32 %v3281, %v3334
        %v3398 = vadd.f32 %v3282, %v3338
        %v3399 = vadd.f32 %v3283, %v3342
        %v3400 = vadd.f32 %v3284, %v3346
        %v3401 = vadd.f32 %v3285, %v3350
        %v3402 = vadd.f32 %v3286, %v3354
        %v3403 = vpack.c.bf16 %v3387, %v3371
        %v3404 = vpack.c.bf16 %v3388, %v3372
        %v3405 = vpack.c.bf16 %v3389, %v3373
        %v3406 = vpack.c.bf16 %v3390, %v3374
        %v3407 = vpack.c.bf16 %v3391, %v3375
        %v3408 = vpack.c.bf16 %v3392, %v3376
        %v3409 = vpack.c.bf16 %v3393, %v3377
        %v3410 = vpack.c.bf16 %v3394, %v3378
        %v3411 = vpack.c.bf16 %v3395, %v3379
        %v3412 = vpack.c.bf16 %v3396, %v3380
        %v3413 = vpack.c.bf16 %v3397, %v3381
        %v3414 = vpack.c.bf16 %v3398, %v3382
        %v3415 = vpack.c.bf16 %v3399, %v3383
        %v3416 = vpack.c.bf16 %v3400, %v3384
        %v3417 = vpack.c.bf16 %v3401, %v3385
        %v3418 = vpack.c.bf16 %v3402, %v3386
        %v3423 = vunpack.c.l.b16 %v3403
        %v3424 = vunpack.c.l.b16 %v3404
        %v3425 = vunpack.c.l.b16 %v3405
        %v3426 = vunpack.c.l.b16 %v3406
        %v3427 = vunpack.c.h.b16 %v3403
        %v3428 = vunpack.c.h.b16 %v3404
        %v3429 = vunpack.c.h.b16 %v3405
        %v3430 = vunpack.c.h.b16 %v3406
        %v3431 = vpack.c.b16 %v3424, %v3423
        %v3432 = vpack.c.b16 %v3426, %v3425
        %v3433 = vpack.c.b16 %v3428, %v3427
        %v3434 = vpack.c.b16 %v3430, %v3429
        %3439 = vst [vmem:[%s269] sm:$0xff] %v3431
        %3440 = vst [vmem:[%s269 + $0x8] sm:$0xff] %v3432
        %3441 = vst [vmem:[%s269 + $0x40] sm:$0xff] %v3433
        %3442 = vst [vmem:[%s269 + $0x48] sm:$0xff] %v3434
        %v3447 = vunpack.c.l.b16 %v3407
        %v3448 = vunpack.c.l.b16 %v3408
        %v3449 = vunpack.c.l.b16 %v3409
        %v3450 = vunpack.c.l.b16 %v3410
        %v3451 = vunpack.c.h.b16 %v3407
        %v3452 = vunpack.c.h.b16 %v3408
        %v3453 = vunpack.c.h.b16 %v3409
        %v3454 = vunpack.c.h.b16 %v3410
        %v3455 = vpack.c.b16 %v3448, %v3447
        %v3456 = vpack.c.b16 %v3450, %v3449
        %v3457 = vpack.c.b16 %v3452, %v3451
        %v3458 = vpack.c.b16 %v3454, %v3453
        %s3463 = scalar_lea.vmem %s269, 16 [#allocation2]
        %3464 = vst [vmem:[%s3463] sm:$0xff] %v3455
        %3465 = vst [vmem:[%s3463 + $0x8] sm:$0xff] %v3456
        %3466 = vst [vmem:[%s3463 + $0x40] sm:$0xff] %v3457
        %3467 = vst [vmem:[%s3463 + $0x48] sm:$0xff] %v3458
        %v3472 = vunpack.c.l.b16 %v3411
        %v3473 = vunpack.c.l.b16 %v3412
        %v3474 = vunpack.c.l.b16 %v3413
        %v3475 = vunpack.c.l.b16 %v3414
        %v3476 = vunpack.c.h.b16 %v3411
        %v3477 = vunpack.c.h.b16 %v3412
        %v3478 = vunpack.c.h.b16 %v3413
        %v3479 = vunpack.c.h.b16 %v3414
        %v3480 = vpack.c.b16 %v3473, %v3472
        %v3481 = vpack.c.b16 %v3475, %v3474
        %v3482 = vpack.c.b16 %v3477, %v3476
        %v3483 = vpack.c.b16 %v3479, %v3478
        %s3488 = scalar_lea.vmem %s269, 32 [#allocation2]
        %3489 = vst [vmem:[%s3488] sm:$0xff] %v3480
        %3490 = vst [vmem:[%s3488 + $0x8] sm:$0xff] %v3481
        %3491 = vst [vmem:[%s3488 + $0x40] sm:$0xff] %v3482
        %3492 = vst [vmem:[%s3488 + $0x48] sm:$0xff] %v3483
        %v3497 = vunpack.c.l.b16 %v3415
        %v3498 = vunpack.c.l.b16 %v3416
        %v3499 = vunpack.c.l.b16 %v3417
        %v3500 = vunpack.c.l.b16 %v3418
        %v3501 = vunpack.c.h.b16 %v3415
        %v3502 = vunpack.c.h.b16 %v3416
        %v3503 = vunpack.c.h.b16 %v3417
        %v3504 = vunpack.c.h.b16 %v3418
        %v3505 = vpack.c.b16 %v3498, %v3497
        %v3506 = vpack.c.b16 %v3500, %v3499
        %v3507 = vpack.c.b16 %v3502, %v3501
        %v3508 = vpack.c.b16 %v3504, %v3503
        %s3513 = scalar_lea.vmem %s269, 48 [#allocation2]
        %3514 = vst [vmem:[%s3513] sm:$0xff] %v3505
        %3515 = vst [vmem:[%s3513 + $0x8] sm:$0xff] %v3506
        %3516 = vst [vmem:[%s3513 + $0x40] sm:$0xff] %v3507
        %3517 = vst [vmem:[%s3513 + $0x48] sm:$0xff] %v3508
        %s3518 = sand.u32 %s175, 1
        %s3519 = scalar_lea.sflag [#allocation3], %s3518
        %s3520 = sand.u32 %s175, 1
        %s3521 = smul.addr %s3520, 128
        %s3522 = scalar_lea.vmem [#allocation2], %s3521
        // Predicated region
        $region45: #{tpu_custom_call.1} parent=43 // pred_check
          %p3523 = pneg %p185
        $region46: #{tpu_custom_call.1} parent=43 // pred_check_branch
          %3525 = sbr.rel (%p3523) target = $region48
        $region47: #{tpu_custom_call.1} parent=43 // pred_region
          %s3526 = smul.u32 2, %s25
          %s3528 = ssub.s32 2048, 2048
          %3529 = vsyncadd %s3519, %s3528
          %s3530 = smul.addr %s3526, 16
          %s3531 = smul.addr %s24, 128
          %s3532 = sadd.s32 %s3530, %s3531
          %s3533 = smul.addr %s3532, 64
          %s3534 = scalar_lea.hbm %s6, %s3533
          %s3535 = sshll.u32 %s3522, 4
          %s3536 = int_to_ptr.vmem [resolvable:$true] %s3535
          %3541 = dma.vmem_to_hbm [thread:$0]  %s3536, 2048, %s3534, %s3519, 256, 256, 16
        $region48: #{tpu_custom_call.1} parent=43 // pred_fallthru
          _
      $region44: #{tpu_custom_call.1} parent=5 // pred_fallthru
        _
      %p3542 = scmp.le.s32.totalorder 2, %s15
      // Predicated region
      $region49: #{tpu_custom_call.1} parent=5 // pred_check
        %p3543 = pneg %p3542
      $region50: #{tpu_custom_call.1} parent=5 // pred_check_branch
        %3545 = sbr.rel (%p3543) target = $region52
      $region51: #{tpu_custom_call.1} parent=5 // pred_region
        %s3546 = ssub.s32 %s15, 2
        // Predicated region
        $region53: #{tpu_custom_call.1} parent=51 // pred_check
          %p3547 = pneg %p191
        $region54: #{tpu_custom_call.1} parent=51 // pred_check_branch
          %3549 = sbr.rel (%p3547) target = $region56
        $region55: #{tpu_custom_call.1} parent=51 // pred_region
          %s3550 = sand.u32 %s176, 1
          %s3551 = scalar_lea.sflag [#allocation3], %s3550
          %s3552 = sand.u32 %s176, 1
          %s3553 = smul.addr %s3552, 128
          %s3554 = scalar_lea.vmem [#allocation2], %s3553
          %3555 = dma.done %s3551, 2048
        $region56: #{tpu_custom_call.1} parent=51 // pred_fallthru
          _
      $region52: #{tpu_custom_call.1} parent=5 // pred_fallthru
        _
    $region6: #{tpu_custom_call.1} parent=1 // loop_footer
      %s19 = sadd.s32 1, %s15
    $region7: #{tpu_custom_call.1} parent=1 // loop_footer_branch
      %14 = sbr.rel target = $region3
    $region8: #{tpu_custom_call.1} parent=1 // loop_exit
      _
    %3556 = vsyncpa [#allocation3], 1
    %s3557 = scalar_lea.sflag [#allocation3], 1
    %3558 = vsyncpa %s3557, 1

</llo_original>
